<compile_context>
chip_gen: v6e
topology: v6e:2x2x1
jax: 0.10.0
libtpu: 0.0.40
codegen_flags: <defaults>
</compile_context>

<pallas_src>
import jax
import jax.numpy as jnp
from jax import lax
from jax.experimental import pallas as pl
from jax.experimental.pallas import tpu as pltpu


# ---------------------------------------------------------------------------
# Tiny XLA layout glue: reflect pad, s2d <-> dense, final crop.
# s2d: dense (2H, 2W, C) stored as (H, W, 4C); channel block (i*2+j)*C holds the dense
# pixel with (row, col) parity (i, j).
# ---------------------------------------------------------------------------
def space_to_depth(x):
    B, H2, W2, C = x.shape
    H, W = H2 // 2, W2 // 2
    return x.reshape(B, H, 2, W, 2, C).transpose(0, 1, 3, 2, 4, 5).reshape(B, H, W, 4 * C)


def depth_to_space(x):
    B, H, W, C4 = x.shape
    C = C4 // 4
    return x.reshape(B, H, W, 2, 2, C).transpose(0, 1, 3, 2, 4, 5).reshape(B, 2 * H, 2 * W, C)


def s2d_union_weight(w_hwio):
    """Zero-scattered union weight for an odd-K 'same' conv computed on the s2d grid.

    Patch column order : (u3, v3, i, j, ci)  -- 3x3 coarse offset, parity, channel,
                         i.e. 9 contiguous slabs of the raw s2d channel blocks.
    Output column order: (cls=2*alpha+beta, oc).
    Shape: (9 * 4 * Cin, 4 * Cout).
    """
    K, _, Cin, Cout = w_hwio.shape
    P = K // 2
    cls_mats = []
    for a in (0, 1):
        for b in (0, 1):
            wp = jnp.pad(w_hwio, ((a, 1 - a), (b, 1 - b), (0, 0), (0, 0)))  # (2P+2, 2P+2, Ci, Co)
            wp = wp.reshape(P + 1, 2, P + 1, 2, Cin, Cout)                  # (u3, i, v3, j, ci, oc)
            wp = jnp.transpose(wp, (0, 2, 1, 3, 4, 5))                      # (u3, v3, i, j, ci, oc)
            cls_mats.append(wp.reshape((P + 1) * (P + 1) * 4 * Cin, Cout))
    return jnp.concatenate(cls_mats, axis=1)


# ---------------------------------------------------------------------------
# Fused forward kernel (one grid step == one batch item).
# ---------------------------------------------------------------------------
def _make_fused_kernel(H, W, Ce, Cb, Cu, Cd, Co):
    HW = H * W

    def zero_halo(buf):
        # only the 1-pixel halo strips; the interior is fully rewritten below.
        Hh, Wh, C = buf.shape
        buf[0:1, :, :] = jnp.zeros((1, Wh, C), buf.dtype)
        buf[Hh - 1:Hh, :, :] = jnp.zeros((1, Wh, C), buf.dtype)
        buf[1:Hh - 1, 0:1, :] = jnp.zeros((Hh - 2, 1, C), buf.dtype)
        buf[1:Hh - 1, Wh - 1:Wh, :] = jnp.zeros((Hh - 2, 1, C), buf.dtype)

    def fill_union_patch(patch, pad_buf, base, Cs):
        # 9 slab copies, each Cs(=4*cin) lanes wide, at lane-aligned column offsets.
        for u3 in range(3):
            for v3 in range(3):
                c0 = base + (u3 * 3 + v3) * Cs
                patch[:, c0:c0 + Cs] = pad_buf[u3:u3 + H, v3:v3 + W, :].reshape(HW, Cs)

    def kernel(xs_ref, we_ref, be_ref, wb_ref, bb_ref, wu_ref, bu_ref,
               wd_ref, bd_ref, wo_ref, bo_ref, out_ref,
               pad_x, patch_e, pad_pool, patch_b, pad_up, pad_enc, patch_d):
        for buf in (pad_x, pad_pool, pad_up, pad_enc):
            zero_halo(buf)

        # ---- stage the s2d input into its zero-padded scratch ------------------
        pad_x[1:1 + H, 1:1 + W, :] = xs_ref[0]

        # ---- EncLayer: 5x5 conv (cin=1) + ReLU, single union-patch matmul ------
        fill_union_patch(patch_e, pad_x, 0, 4)
        enc = jnp.dot(patch_e[...], we_ref[...],
                      preferred_element_type=jnp.float32) + be_ref[...]
        enc = jnp.maximum(enc, 0.0)                              # (HW, 4*Ce), class-major
        pad_enc[1:1 + H, 1:1 + W, :] = enc.reshape(H, W, 4 * Ce)
        # fused MaxPool2d(2,2): elementwise max over the 4 parity classes
        pool = jnp.maximum(jnp.maximum(enc[:, 0:Ce], enc[:, Ce:2 * Ce]),
                           jnp.maximum(enc[:, 2 * Ce:3 * Ce], enc[:, 3 * Ce:4 * Ce]))
        pad_pool[1:1 + H, 1:1 + W, :] = pool.reshape(H, W, Ce)

        # ---- BottleneckLayer: dense 3x3 conv + ReLU on the coarse grid ---------
        for kh in range(3):
            for kw in range(3):
                c0 = (kh * 3 + kw) * Ce
                patch_b[:, c0:c0 + Ce] = pad_pool[kh:kh + H, kw:kw + W, :].reshape(HW, Ce)
        bott = jnp.dot(patch_b[...], wb_ref[...],
                       preferred_element_type=jnp.float32) + bb_ref[...]
        bott = jnp.maximum(bott, 0.0)                            # (HW, Cb)

        # ---- ConvTranspose2d(k=2,s=2): one matmul, lands directly in s2d -------
        up = jnp.dot(bott, wu_ref[...],
                     preferred_element_type=jnp.float32) + bu_ref[...]      # (HW, 4*Cu)
        pad_up[1:1 + H, 1:1 + W, :] = up.reshape(H, W, 4 * Cu)

        # ---- DecoderLayer 5x5 conv over concat(up, enc) (split union weight) ---
        fill_union_patch(patch_d, pad_up, 0, 4 * Cu)
        fill_union_patch(patch_d, pad_enc, 9 * 4 * Cu, 4 * Ce)
        dec = jnp.dot(patch_d[...], wd_ref[...],
                      preferred_element_type=jnp.float32) + bd_ref[...]
        dec = jnp.maximum(dec, 0.0)                              # (HW, 4*Cd)

        # ---- OutputLayer 1x1 conv fused (block-diagonal weight) ----------------
        out = jnp.dot(dec, wo_ref[...],
                      preferred_element_type=jnp.float32) + bo_ref[...]     # (HW, 4*Co)
        out_ref[...] = out.reshape(1, H, W, 4 * Co)

    return kernel


# ---------------------------------------------------------------------------
# AudioModel.forward (NHWC).  Conv weights are HWIO (torch OIHW transposed (2,3,1,0));
# the ConvTranspose2d weight keeps its native torch IOHW layout.
# ---------------------------------------------------------------------------
def audio_model_forward(x, params):
    B, Hin, Win, Cin = x.shape
    assert Cin == 1 and Hin % 2 == 0 and Win % 2 == 0
    Hp, Wp = Hin + 10, Win + 10
    # coarse grid rounded up to a multiple of 8 so all (H,W,C)<->(HW,C) reshapes are
    # layout-preserving; the extra zero border never reaches the cropped output.
    Hc = ((Hp // 2 + 7) // 8) * 8
    Wc = ((Wp // 2 + 7) // 8) * 8

    xp = jnp.pad(x, ((0, 0), (5, 5), (5, 5), (0, 0)), mode='reflect')
    xp = jnp.pad(xp, ((0, 0), (0, 2 * Hc - Hp), (0, 2 * Wc - Wp), (0, 0)))
    xs = space_to_depth(xp)                                       # (B, Hc, Wc, 4)

    Ce, Cb, Cu, Cd = 32, 64, 32, 32
    Co = params['w_out'].shape[-1]

    # ---- weight prep (tiny, XLA) ----
    w_enc_u = s2d_union_weight(params['w_enc'])                           # (36, 128)
    b_enc4 = jnp.tile(params['b_enc'], 4).reshape(1, 4 * Ce)
    w_bott_m = params['w_bott'].reshape(9 * Ce, Cb)                       # (288, 64)
    b_bott_r = params['b_bott'].reshape(1, Cb)
    w_up_m = jnp.transpose(params['w_up'], (0, 2, 3, 1)).reshape(Cb, 4 * Cu)   # (64, 128)
    b_up4 = jnp.tile(params['b_up'], 4).reshape(1, 4 * Cu)
    w_dec_u = jnp.concatenate(                                            # (2304, 128)
        [s2d_union_weight(params['w_dec'][:, :, :Cu, :]),                 # torch cat order:
         s2d_union_weight(params['w_dec'][:, :, Cu:, :])], axis=0)        # [up, enc]
    b_dec4 = jnp.tile(params['b_dec'], 4).reshape(1, 4 * Cd)
    w_out_blk = jnp.kron(jnp.eye(4, dtype=jnp.float32),
                         params['w_out'].reshape(Cd, Co))                 # (128, 4*Co)
    b_out4 = jnp.tile(params['b_out'], 4).reshape(1, 4 * Co)

    kernel = _make_fused_kernel(Hc, Wc, Ce, Cb, Cu, Cd, Co)

    def full2d(a):
        return pl.BlockSpec(a.shape, lambda b: (0, 0))

    in_specs = [
        pl.BlockSpec((1, Hc, Wc, 4), lambda b: (b, 0, 0, 0)),
        full2d(w_enc_u), full2d(b_enc4),
        full2d(w_bott_m), full2d(b_bott_r),
        full2d(w_up_m), full2d(b_up4),
        full2d(w_dec_u), full2d(b_dec4),
        full2d(w_out_blk), full2d(b_out4),
    ]
    scratch = [
        pltpu.VMEM((Hc + 2, Wc + 2, 4), jnp.float32),             # pad_x
        pltpu.VMEM((Hc * Wc, 9 * 4), jnp.float32),                # patch_e
        pltpu.VMEM((Hc + 2, Wc + 2, Ce), jnp.float32),            # pad_pool
        pltpu.VMEM((Hc * Wc, 9 * Ce), jnp.float32),               # patch_b
        pltpu.VMEM((Hc + 2, Wc + 2, 4 * Cu), jnp.float32),        # pad_up
        pltpu.VMEM((Hc + 2, Wc + 2, 4 * Ce), jnp.float32),        # pad_enc
        pltpu.VMEM((Hc * Wc, 9 * 4 * (Cu + Ce)), jnp.float32),    # patch_d
    ]

    out_s2d = pl.pallas_call(
        kernel,
        out_shape=jax.ShapeDtypeStruct((B, Hc, Wc, 4 * Co), jnp.float32),
        grid=(B,),
        in_specs=in_specs,
        out_specs=pl.BlockSpec((1, Hc, Wc, 4 * Co), lambda b: (b, 0, 0, 0)),
        scratch_shapes=scratch,
        compiler_params=pltpu.CompilerParams(
            dimension_semantics=("parallel",),
            vmem_limit_bytes=32 * 1024 * 1024),
    )(xs, w_enc_u, b_enc4, w_bott_m, b_bott_r, w_up_m, b_up4,
      w_dec_u, b_dec4, w_out_blk, b_out4)

    out = depth_to_space(out_s2d)                                 # (B, 2Hc, 2Wc, Co)
    return out[:, 5:5 + Hin, 5:5 + Win, :]


# ---------------------------------------------------------------------------
# pure-JAX reference for validation
# ---------------------------------------------------------------------------
def _reference(x, params):
    def conv(v, w, b, pad):
        y = lax.conv_general_dilated(v, w, (1, 1), ((pad, pad), (pad, pad)),
                                     dimension_numbers=('NHWC', 'HWIO', 'NHWC'))
        return y + b

    xp = jnp.pad(x, ((0, 0), (5, 5), (5, 5), (0, 0)), mode='reflect')
    enc = jnp.maximum(conv(xp, params['w_enc'], params['b_enc'], 2), 0.0)
    pool = lax.reduce_window(enc, -jnp.inf, lax.max, (1, 2, 2, 1), (1, 2, 2, 1), 'VALID')
    bott = jnp.maximum(conv(pool, params['w_bott'], params['b_bott'], 1), 0.0)
    B, H, W, _ = bott.shape
    Cout = params['w_up'].shape[1]
    up = jnp.einsum('bhwi,iojk->bhjwko', bott, params['w_up'])
    up = up.reshape(B, 2 * H, 2 * W, Cout) + params['b_up']
    cat = jnp.concatenate([up, enc], axis=-1)
    dec = jnp.maximum(conv(cat, params['w_dec'], params['b_dec'], 2), 0.0)
    out = conv(dec, params['w_out'], params['b_out'], 0)
    return out[:, 5:-5, 5:-5, :]


if __name__ == "__main__":
    key = jax.random.PRNGKey(0)
    ks = jax.random.split(key, 11)

    B, Hin, Win = 2, 16, 16
    # NHWC input (torch equivalent: (B, 1, 16, 16) NCHW)
    x = jax.random.normal(ks[0], (B, Hin, Win, 1), jnp.float32)

    params = {
        'w_enc': 0.2 * jax.random.normal(ks[1], (5, 5, 1, 32), jnp.float32),
        'b_enc': 0.1 * jax.random.normal(ks[2], (32,), jnp.float32),
        'w_bott': 0.1 * jax.random.normal(ks[3], (3, 3, 32, 64), jnp.float32),
        'b_bott': 0.1 * jax.random.normal(ks[4], (64,), jnp.float32),
        'w_up': 0.1 * jax.random.normal(ks[5], (64, 32, 2, 2), jnp.float32),   # IOHW
        'b_up': 0.1 * jax.random.normal(ks[6], (32,), jnp.float32),
        'w_dec': 0.05 * jax.random.normal(ks[7], (5, 5, 64, 32), jnp.float32),
        'b_dec': 0.1 * jax.random.normal(ks[8], (32,), jnp.float32),
        'w_out': 0.1 * jax.random.normal(ks[9], (1, 1, 32, 1), jnp.float32),
        'b_out': 0.1 * jax.random.normal(ks[10], (1,), jnp.float32),
    }

    fwd = jax.jit(audio_model_forward)
    out = jax.block_until_ready(fwd(x, params))

    ref = _reference(x, params)
    assert out.shape == (B, Hin, Win, 1)
    # tolerance covers MXU default-precision (bf16-operand) dot products vs XLA's f32
    # reference convolution; structural errors would be O(0.1-1).
    err = float(jnp.max(jnp.abs(out - ref)))
    assert jnp.allclose(out, ref, atol=2e-2, rtol=2e-2), err
    print("KERNEL_OK")
</pallas_src>

<mosaic_0001>
module attributes {stable_mosaic.version = 11 : i64} {
  func.func @kernel(%arg0: i32, %arg1: memref<1x16x16x4xf32, #tpu.memory_space<vmem>>, %arg2: memref<36x128xf32, #tpu.memory_space<vmem>>, %arg3: memref<1x128xf32, #tpu.memory_space<vmem>>, %arg4: memref<288x64xf32, #tpu.memory_space<vmem>>, %arg5: memref<1x64xf32, #tpu.memory_space<vmem>>, %arg6: memref<64x128xf32, #tpu.memory_space<vmem>>, %arg7: memref<1x128xf32, #tpu.memory_space<vmem>>, %arg8: memref<2304x128xf32, #tpu.memory_space<vmem>>, %arg9: memref<1x128xf32, #tpu.memory_space<vmem>>, %arg10: memref<128x4xf32, #tpu.memory_space<vmem>>, %arg11: memref<1x4xf32, #tpu.memory_space<vmem>>, %arg12: memref<1x16x16x4xf32, #tpu.memory_space<vmem>>, %arg13: memref<18x18x4xf32, #tpu.memory_space<vmem>>, %arg14: memref<256x36xf32, #tpu.memory_space<vmem>>, %arg15: memref<18x18x32xf32, #tpu.memory_space<vmem>>, %arg16: memref<256x288xf32, #tpu.memory_space<vmem>>, %arg17: memref<18x18x128xf32, #tpu.memory_space<vmem>>, %arg18: memref<18x18x128xf32, #tpu.memory_space<vmem>>, %arg19: memref<256x2304xf32, #tpu.memory_space<vmem>>) attributes {dimension_semantics = [#tpu.dimension_semantics<parallel>], iteration_bounds = array<i64: 2>, scalar_prefetch = 0 : i64, scratch_operands = 7 : i64, tpu.core_type = #tpu.core_type<tc>, window_params = [{transform_indices = @transform_0, window_bounds = array<i64: 1, 16, 16, 4>}, {pipeline_mode = #tpu.pipeline_mode<synchronous>, transform_indices = @transform_1, window_bounds = array<i64: 36, 128>}, {pipeline_mode = #tpu.pipeline_mode<synchronous>, transform_indices = @transform_2, window_bounds = array<i64: 1, 128>}, {pipeline_mode = #tpu.pipeline_mode<synchronous>, transform_indices = @transform_3, window_bounds = array<i64: 288, 64>}, {pipeline_mode = #tpu.pipeline_mode<synchronous>, transform_indices = @transform_4, window_bounds = array<i64: 1, 64>}, {pipeline_mode = #tpu.pipeline_mode<synchronous>, transform_indices = @transform_5, window_bounds = array<i64: 64, 128>}, {pipeline_mode = #tpu.pipeline_mode<synchronous>, transform_indices = @transform_6, window_bounds = array<i64: 1, 128>}, {pipeline_mode = #tpu.pipeline_mode<synchronous>, transform_indices = @transform_7, window_bounds = array<i64: 2304, 128>}, {pipeline_mode = #tpu.pipeline_mode<synchronous>, transform_indices = @transform_8, window_bounds = array<i64: 1, 128>}, {pipeline_mode = #tpu.pipeline_mode<synchronous>, transform_indices = @transform_9, window_bounds = array<i64: 128, 4>}, {pipeline_mode = #tpu.pipeline_mode<synchronous>, transform_indices = @transform_10, window_bounds = array<i64: 1, 4>}, {transform_indices = @transform_11, window_bounds = array<i64: 1, 16, 16, 4>}]} {
    %cst = arith.constant 0.000000e+00 : f32
    %0 = vector.broadcast %cst : f32 to vector<1x18x4xf32>
    %c0 = arith.constant 0 : index
    %c0_0 = arith.constant 0 : index
    %c0_1 = arith.constant 0 : index
    %1 = vector.load %arg13[%c0, %c0_0, %c0_1] : memref<18x18x4xf32, #tpu.memory_space<vmem>>, vector<1x18x4xf32>
    tpu.vector_store %arg13[%c0, %c0_0, %c0_1], %0 {strides = array<i32>} : memref<18x18x4xf32, #tpu.memory_space<vmem>>, vector<1x18x4xf32>,
    %cst_2 = arith.constant 0.000000e+00 : f32
    %2 = vector.broadcast %cst_2 : f32 to vector<1x18x4xf32>
    %c17 = arith.constant 17 : index
    %c0_3 = arith.constant 0 : index
    %c0_4 = arith.constant 0 : index
    %3 = vector.load %arg13[%c17, %c0_3, %c0_4] : memref<18x18x4xf32, #tpu.memory_space<vmem>>, vector<1x18x4xf32>
    tpu.vector_store %arg13[%c17, %c0_3, %c0_4], %2 {strides = array<i32>} : memref<18x18x4xf32, #tpu.memory_space<vmem>>, vector<1x18x4xf32>,
    %cst_5 = arith.constant 0.000000e+00 : f32
    %4 = vector.broadcast %cst_5 : f32 to vector<16x1x4xf32>
    %c1 = arith.constant 1 : index
    %c0_6 = arith.constant 0 : index
    %c0_7 = arith.constant 0 : index
    %5 = vector.load %arg13[%c1, %c0_6, %c0_7] : memref<18x18x4xf32, #tpu.memory_space<vmem>>, vector<16x1x4xf32>
    tpu.vector_store %arg13[%c1, %c0_6, %c0_7], %4 {strides = array<i32>} : memref<18x18x4xf32, #tpu.memory_space<vmem>>, vector<16x1x4xf32>,
    %cst_8 = arith.constant 0.000000e+00 : f32
    %6 = vector.broadcast %cst_8 : f32 to vector<16x1x4xf32>
    %c1_9 = arith.constant 1 : index
    %c17_10 = arith.constant 17 : index
    %c0_11 = arith.constant 0 : index
    %7 = vector.load %arg13[%c1_9, %c17_10, %c0_11] : memref<18x18x4xf32, #tpu.memory_space<vmem>>, vector<16x1x4xf32>
    tpu.vector_store %arg13[%c1_9, %c17_10, %c0_11], %6 {strides = array<i32>} : memref<18x18x4xf32, #tpu.memory_space<vmem>>, vector<16x1x4xf32>,
    %cst_12 = arith.constant 0.000000e+00 : f32
    %8 = vector.broadcast %cst_12 : f32 to vector<1x18x32xf32>
    %c0_13 = arith.constant 0 : index
    %c0_14 = arith.constant 0 : index
    %c0_15 = arith.constant 0 : index
    %9 = vector.load %arg15[%c0_13, %c0_14, %c0_15] : memref<18x18x32xf32, #tpu.memory_space<vmem>>, vector<1x18x32xf32>
    tpu.vector_store %arg15[%c0_13, %c0_14, %c0_15], %8 {strides = array<i32>} : memref<18x18x32xf32, #tpu.memory_space<vmem>>, vector<1x18x32xf32>,
    %cst_16 = arith.constant 0.000000e+00 : f32
    %10 = vector.broadcast %cst_16 : f32 to vector<1x18x32xf32>
    %c17_17 = arith.constant 17 : index
    %c0_18 = arith.constant 0 : index
    %c0_19 = arith.constant 0 : index
    %11 = vector.load %arg15[%c17_17, %c0_18, %c0_19] : memref<18x18x32xf32, #tpu.memory_space<vmem>>, vector<1x18x32xf32>
    tpu.vector_store %arg15[%c17_17, %c0_18, %c0_19], %10 {strides = array<i32>} : memref<18x18x32xf32, #tpu.memory_space<vmem>>, vector<1x18x32xf32>,
    %cst_20 = arith.constant 0.000000e+00 : f32
    %12 = vector.broadcast %cst_20 : f32 to vector<16x1x32xf32>
    %c1_21 = arith.constant 1 : index
    %c0_22 = arith.constant 0 : index
    %c0_23 = arith.constant 0 : index
    %13 = vector.load %arg15[%c1_21, %c0_22, %c0_23] : memref<18x18x32xf32, #tpu.memory_space<vmem>>, vector<16x1x32xf32>
    tpu.vector_store %arg15[%c1_21, %c0_22, %c0_23], %12 {strides = array<i32>} : memref<18x18x32xf32, #tpu.memory_space<vmem>>, vector<16x1x32xf32>,
    %cst_24 = arith.constant 0.000000e+00 : f32
    %14 = vector.broadcast %cst_24 : f32 to vector<16x1x32xf32>
    %c1_25 = arith.constant 1 : index
    %c17_26 = arith.constant 17 : index
    %c0_27 = arith.constant 0 : index
    %15 = vector.load %arg15[%c1_25, %c17_26, %c0_27] : memref<18x18x32xf32, #tpu.memory_space<vmem>>, vector<16x1x32xf32>
    tpu.vector_store %arg15[%c1_25, %c17_26, %c0_27], %14 {strides = array<i32>} : memref<18x18x32xf32, #tpu.memory_space<vmem>>, vector<16x1x32xf32>,
    %cst_28 = arith.constant 0.000000e+00 : f32
    %16 = vector.broadcast %cst_28 : f32 to vector<1x18x128xf32>
    %c0_29 = arith.constant 0 : index
    %c0_30 = arith.constant 0 : index
    %c0_31 = arith.constant 0 : index
    %17 = vector.load %arg17[%c0_29, %c0_30, %c0_31] : memref<18x18x128xf32, #tpu.memory_space<vmem>>, vector<1x18x128xf32>
    tpu.vector_store %arg17[%c0_29, %c0_30, %c0_31], %16 {strides = array<i32>} : memref<18x18x128xf32, #tpu.memory_space<vmem>>, vector<1x18x128xf32>,
    %cst_32 = arith.constant 0.000000e+00 : f32
    %18 = vector.broadcast %cst_32 : f32 to vector<1x18x128xf32>
    %c17_33 = arith.constant 17 : index
    %c0_34 = arith.constant 0 : index
    %c0_35 = arith.constant 0 : index
    %19 = vector.load %arg17[%c17_33, %c0_34, %c0_35] : memref<18x18x128xf32, #tpu.memory_space<vmem>>, vector<1x18x128xf32>
    tpu.vector_store %arg17[%c17_33, %c0_34, %c0_35], %18 {strides = array<i32>} : memref<18x18x128xf32, #tpu.memory_space<vmem>>, vector<1x18x128xf32>,
    %cst_36 = arith.constant 0.000000e+00 : f32
    %20 = vector.broadcast %cst_36 : f32 to vector<16x1x128xf32>
    %c1_37 = arith.constant 1 : index
    %c0_38 = arith.constant 0 : index
    %c0_39 = arith.constant 0 : index
    %21 = vector.load %arg17[%c1_37, %c0_38, %c0_39] : memref<18x18x128xf32, #tpu.memory_space<vmem>>, vector<16x1x128xf32>
    tpu.vector_store %arg17[%c1_37, %c0_38, %c0_39], %20 {strides = array<i32>} : memref<18x18x128xf32, #tpu.memory_space<vmem>>, vector<16x1x128xf32>,
    %cst_40 = arith.constant 0.000000e+00 : f32
    %22 = vector.broadcast %cst_40 : f32 to vector<16x1x128xf32>
    %c1_41 = arith.constant 1 : index
    %c17_42 = arith.constant 17 : index
    %c0_43 = arith.constant 0 : index
    %23 = vector.load %arg17[%c1_41, %c17_42, %c0_43] : memref<18x18x128xf32, #tpu.memory_space<vmem>>, vector<16x1x128xf32>
    tpu.vector_store %arg17[%c1_41, %c17_42, %c0_43], %22 {strides = array<i32>} : memref<18x18x128xf32, #tpu.memory_space<vmem>>, vector<16x1x128xf32>,
    %cst_44 = arith.constant 0.000000e+00 : f32
    %24 = vector.broadcast %cst_44 : f32 to vector<1x18x128xf32>
    %c0_45 = arith.constant 0 : index
    %c0_46 = arith.constant 0 : index
    %c0_47 = arith.constant 0 : index
    %25 = vector.load %arg18[%c0_45, %c0_46, %c0_47] : memref<18x18x128xf32, #tpu.memory_space<vmem>>, vector<1x18x128xf32>
    tpu.vector_store %arg18[%c0_45, %c0_46, %c0_47], %24 {strides = array<i32>} : memref<18x18x128xf32, #tpu.memory_space<vmem>>, vector<1x18x128xf32>,
    %cst_48 = arith.constant 0.000000e+00 : f32
    %26 = vector.broadcast %cst_48 : f32 to vector<1x18x128xf32>
    %c17_49 = arith.constant 17 : index
    %c0_50 = arith.constant 0 : index
    %c0_51 = arith.constant 0 : index
    %27 = vector.load %arg18[%c17_49, %c0_50, %c0_51] : memref<18x18x128xf32, #tpu.memory_space<vmem>>, vector<1x18x128xf32>
    tpu.vector_store %arg18[%c17_49, %c0_50, %c0_51], %26 {strides = array<i32>} : memref<18x18x128xf32, #tpu.memory_space<vmem>>, vector<1x18x128xf32>,
    %cst_52 = arith.constant 0.000000e+00 : f32
    %28 = vector.broadcast %cst_52 : f32 to vector<16x1x128xf32>
    %c1_53 = arith.constant 1 : index
    %c0_54 = arith.constant 0 : index
    %c0_55 = arith.constant 0 : index
    %29 = vector.load %arg18[%c1_53, %c0_54, %c0_55] : memref<18x18x128xf32, #tpu.memory_space<vmem>>, vector<16x1x128xf32>
    tpu.vector_store %arg18[%c1_53, %c0_54, %c0_55], %28 {strides = array<i32>} : memref<18x18x128xf32, #tpu.memory_space<vmem>>, vector<16x1x128xf32>,
    %cst_56 = arith.constant 0.000000e+00 : f32
    %30 = vector.broadcast %cst_56 : f32 to vector<16x1x128xf32>
    %c1_57 = arith.constant 1 : index
    %c17_58 = arith.constant 17 : index
    %c0_59 = arith.constant 0 : index
    %31 = vector.load %arg18[%c1_57, %c17_58, %c0_59] : memref<18x18x128xf32, #tpu.memory_space<vmem>>, vector<16x1x128xf32>
    tpu.vector_store %arg18[%c1_57, %c17_58, %c0_59], %30 {strides = array<i32>} : memref<18x18x128xf32, #tpu.memory_space<vmem>>, vector<16x1x128xf32>,
    %c0_60 = arith.constant 0 : index
    %c0_61 = arith.constant 0 : index
    %c0_62 = arith.constant 0 : index
    %c0_63 = arith.constant 0 : index
    %32 = vector.load %arg1[%c0_60, %c0_61, %c0_62, %c0_63] : memref<1x16x16x4xf32, #tpu.memory_space<vmem>>, vector<1x16x16x4xf32>
    %33 = vector.shape_cast %32 : vector<1x16x16x4xf32> to vector<16x16x4xf32>
    %c1_64 = arith.constant 1 : index
    %c1_65 = arith.constant 1 : index
    %c0_66 = arith.constant 0 : index
    %34 = vector.load %arg13[%c1_64, %c1_65, %c0_66] : memref<18x18x4xf32, #tpu.memory_space<vmem>>, vector<16x16x4xf32>
    tpu.vector_store %arg13[%c1_64, %c1_65, %c0_66], %33 {strides = array<i32>} : memref<18x18x4xf32, #tpu.memory_space<vmem>>, vector<16x16x4xf32>,
    %c0_67 = arith.constant 0 : index
    %c0_68 = arith.constant 0 : index
    %c0_69 = arith.constant 0 : index
    %35 = vector.load %arg13[%c0_67, %c0_68, %c0_69] : memref<18x18x4xf32, #tpu.memory_space<vmem>>, vector<16x16x4xf32>
    %36 = vector.shape_cast %35 : vector<16x16x4xf32> to vector<256x4xf32>
    %c0_70 = arith.constant 0 : index
    %c0_71 = arith.constant 0 : index
    %37 = vector.load %arg14[%c0_70, %c0_71] : memref<256x36xf32, #tpu.memory_space<vmem>>, vector<256x4xf32>
    tpu.vector_store %arg14[%c0_70, %c0_71], %36 {strides = array<i32>} : memref<256x36xf32, #tpu.memory_space<vmem>>, vector<256x4xf32>,
    %c0_72 = arith.constant 0 : index
    %c1_73 = arith.constant 1 : index
    %c0_74 = arith.constant 0 : index
    %38 = vector.load %arg13[%c0_72, %c1_73, %c0_74] : memref<18x18x4xf32, #tpu.memory_space<vmem>>, vector<16x16x4xf32>
    %39 = vector.shape_cast %38 : vector<16x16x4xf32> to vector<256x4xf32>
    %c0_75 = arith.constant 0 : index
    %c4 = arith.constant 4 : index
    %40 = vector.load %arg14[%c0_75, %c4] : memref<256x36xf32, #tpu.memory_space<vmem>>, vector<256x4xf32>
    tpu.vector_store %arg14[%c0_75, %c4], %39 {strides = array<i32>} : memref<256x36xf32, #tpu.memory_space<vmem>>, vector<256x4xf32>,
    %c0_76 = arith.constant 0 : index
    %c2 = arith.constant 2 : index
    %c0_77 = arith.constant 0 : index
    %41 = vector.load %arg13[%c0_76, %c2, %c0_77] : memref<18x18x4xf32, #tpu.memory_space<vmem>>, vector<16x16x4xf32>
    %42 = vector.shape_cast %41 : vector<16x16x4xf32> to vector<256x4xf32>
    %c0_78 = arith.constant 0 : index
    %c8 = arith.constant 8 : index
    %43 = vector.load %arg14[%c0_78, %c8] : memref<256x36xf32, #tpu.memory_space<vmem>>, vector<256x4xf32>
    tpu.vector_store %arg14[%c0_78, %c8], %42 {strides = array<i32>} : memref<256x36xf32, #tpu.memory_space<vmem>>, vector<256x4xf32>,
    %c1_79 = arith.constant 1 : index
    %c0_80 = arith.constant 0 : index
    %c0_81 = arith.constant 0 : index
    %44 = vector.load %arg13[%c1_79, %c0_80, %c0_81] : memref<18x18x4xf32, #tpu.memory_space<vmem>>, vector<16x16x4xf32>
    %45 = vector.shape_cast %44 : vector<16x16x4xf32> to vector<256x4xf32>
    %c0_82 = arith.constant 0 : index
    %c12 = arith.constant 12 : index
    %46 = vector.load %arg14[%c0_82, %c12] : memref<256x36xf32, #tpu.memory_space<vmem>>, vector<256x4xf32>
    tpu.vector_store %arg14[%c0_82, %c12], %45 {strides = array<i32>} : memref<256x36xf32, #tpu.memory_space<vmem>>, vector<256x4xf32>,
    %c1_83 = arith.constant 1 : index
    %c1_84 = arith.constant 1 : index
    %c0_85 = arith.constant 0 : index
    %47 = vector.load %arg13[%c1_83, %c1_84, %c0_85] : memref<18x18x4xf32, #tpu.memory_space<vmem>>, vector<16x16x4xf32>
    %48 = vector.shape_cast %47 : vector<16x16x4xf32> to vector<256x4xf32>
    %c0_86 = arith.constant 0 : index
    %c16 = arith.constant 16 : index
    %49 = vector.load %arg14[%c0_86, %c16] : memref<256x36xf32, #tpu.memory_space<vmem>>, vector<256x4xf32>
    tpu.vector_store %arg14[%c0_86, %c16], %48 {strides = array<i32>} : memref<256x36xf32, #tpu.memory_space<vmem>>, vector<256x4xf32>,
    %c1_87 = arith.constant 1 : index
    %c2_88 = arith.constant 2 : index
    %c0_89 = arith.constant 0 : index
    %50 = vector.load %arg13[%c1_87, %c2_88, %c0_89] : memref<18x18x4xf32, #tpu.memory_space<vmem>>, vector<16x16x4xf32>
    %51 = vector.shape_cast %50 : vector<16x16x4xf32> to vector<256x4xf32>
    %c0_90 = arith.constant 0 : index
    %c20 = arith.constant 20 : index
    %52 = vector.load %arg14[%c0_90, %c20] : memref<256x36xf32, #tpu.memory_space<vmem>>, vector<256x4xf32>
    tpu.vector_store %arg14[%c0_90, %c20], %51 {strides = array<i32>} : memref<256x36xf32, #tpu.memory_space<vmem>>, vector<256x4xf32>,
    %c2_91 = arith.constant 2 : index
    %c0_92 = arith.constant 0 : index
    %c0_93 = arith.constant 0 : index
    %53 = vector.load %arg13[%c2_91, %c0_92, %c0_93] : memref<18x18x4xf32, #tpu.memory_space<vmem>>, vector<16x16x4xf32>
    %54 = vector.shape_cast %53 : vector<16x16x4xf32> to vector<256x4xf32>
    %c0_94 = arith.constant 0 : index
    %c24 = arith.constant 24 : index
    %55 = vector.load %arg14[%c0_94, %c24] : memref<256x36xf32, #tpu.memory_space<vmem>>, vector<256x4xf32>
    tpu.vector_store %arg14[%c0_94, %c24], %54 {strides = array<i32>} : memref<256x36xf32, #tpu.memory_space<vmem>>, vector<256x4xf32>,
    %c2_95 = arith.constant 2 : index
    %c1_96 = arith.constant 1 : index
    %c0_97 = arith.constant 0 : index
    %56 = vector.load %arg13[%c2_95, %c1_96, %c0_97] : memref<18x18x4xf32, #tpu.memory_space<vmem>>, vector<16x16x4xf32>
    %57 = vector.shape_cast %56 : vector<16x16x4xf32> to vector<256x4xf32>
    %c0_98 = arith.constant 0 : index
    %c28 = arith.constant 28 : index
    %58 = vector.load %arg14[%c0_98, %c28] : memref<256x36xf32, #tpu.memory_space<vmem>>, vector<256x4xf32>
    tpu.vector_store %arg14[%c0_98, %c28], %57 {strides = array<i32>} : memref<256x36xf32, #tpu.memory_space<vmem>>, vector<256x4xf32>,
    %c2_99 = arith.constant 2 : index
    %c2_100 = arith.constant 2 : index
    %c0_101 = arith.constant 0 : index
    %59 = vector.load %arg13[%c2_99, %c2_100, %c0_101] : memref<18x18x4xf32, #tpu.memory_space<vmem>>, vector<16x16x4xf32>
    %60 = vector.shape_cast %59 : vector<16x16x4xf32> to vector<256x4xf32>
    %c0_102 = arith.constant 0 : index
    %c32 = arith.constant 32 : index
    %61 = vector.load %arg14[%c0_102, %c32] : memref<256x36xf32, #tpu.memory_space<vmem>>, vector<256x4xf32>
    tpu.vector_store %arg14[%c0_102, %c32], %60 {strides = array<i32>} : memref<256x36xf32, #tpu.memory_space<vmem>>, vector<256x4xf32>,
    %c0_103 = arith.constant 0 : index
    %c0_104 = arith.constant 0 : index
    %62 = vector.load %arg14[%c0_103, %c0_104] : memref<256x36xf32, #tpu.memory_space<vmem>>, vector<256x36xf32>
    %c0_105 = arith.constant 0 : index
    %c0_106 = arith.constant 0 : index
    %63 = vector.load %arg2[%c0_105, %c0_106] : memref<36x128xf32, #tpu.memory_space<vmem>>, vector<36x128xf32>
    %cst_107 = arith.constant dense<0.000000e+00> : vector<256x128xf32>
    %64 = tpu.matmul %62, %63, %cst_107 {dimension_numbers = #tpu.dot_dimension_numbers<[1], [0], [0], [1], [0, 0, 1, 1], [], []>} : vector<256x36xf32>, vector<36x128xf32>, vector<256x128xf32> -> vector<256x128xf32>
    %c0_108 = arith.constant 0 : index
    %c0_109 = arith.constant 0 : index
    %65 = vector.load %arg3[%c0_108, %c0_109] : memref<1x128xf32, #tpu.memory_space<vmem>>, vector<1x128xf32>
    %66 = vector.broadcast %65 : vector<1x128xf32> to vector<256x128xf32>
    %67 = arith.addf %64, %66 : vector<256x128xf32>
    %cst_110 = arith.constant 0.000000e+00 : f32
    %68 = vector.broadcast %cst_110 : f32 to vector<256x128xf32>
    %69 = arith.maximumf %67, %68 : vector<256x128xf32>
    %70 = vector.shape_cast %69 : vector<256x128xf32> to vector<16x16x128xf32>
    %c1_111 = arith.constant 1 : index
    %c1_112 = arith.constant 1 : index
    %c0_113 = arith.constant 0 : index
    %71 = vector.load %arg18[%c1_111, %c1_112, %c0_113] : memref<18x18x128xf32, #tpu.memory_space<vmem>>, vector<16x16x128xf32>
    tpu.vector_store %arg18[%c1_111, %c1_112, %c0_113], %70 {strides = array<i32>} : memref<18x18x128xf32, #tpu.memory_space<vmem>>, vector<16x16x128xf32>,
    %72 = vector.extract_strided_slice %69 {offsets = [0, 0], sizes = [256, 32], strides = [1, 1]} : vector<256x128xf32> to vector<256x32xf32>
    %73 = vector.extract_strided_slice %69 {offsets = [0, 32], sizes = [256, 32], strides = [1, 1]} : vector<256x128xf32> to vector<256x32xf32>
    %74 = arith.maximumf %72, %73 : vector<256x32xf32>
    %75 = vector.extract_strided_slice %69 {offsets = [0, 64], sizes = [256, 32], strides = [1, 1]} : vector<256x128xf32> to vector<256x32xf32>
    %76 = vector.extract_strided_slice %69 {offsets = [0, 96], sizes = [256, 32], strides = [1, 1]} : vector<256x128xf32> to vector<256x32xf32>
    %77 = arith.maximumf %75, %76 : vector<256x32xf32>
    %78 = arith.maximumf %74, %77 : vector<256x32xf32>
    %79 = vector.shape_cast %78 : vector<256x32xf32> to vector<16x16x32xf32>
    %c1_114 = arith.constant 1 : index
    %c1_115 = arith.constant 1 : index
    %c0_116 = arith.constant 0 : index
    %80 = vector.load %arg15[%c1_114, %c1_115, %c0_116] : memref<18x18x32xf32, #tpu.memory_space<vmem>>, vector<16x16x32xf32>
    tpu.vector_store %arg15[%c1_114, %c1_115, %c0_116], %79 {strides = array<i32>} : memref<18x18x32xf32, #tpu.memory_space<vmem>>, vector<16x16x32xf32>,
    %c0_117 = arith.constant 0 : index
    %c0_118 = arith.constant 0 : index
    %c0_119 = arith.constant 0 : index
    %81 = vector.load %arg15[%c0_117, %c0_118, %c0_119] : memref<18x18x32xf32, #tpu.memory_space<vmem>>, vector<16x16x32xf32>
    %82 = vector.shape_cast %81 : vector<16x16x32xf32> to vector<256x32xf32>
    %c0_120 = arith.constant 0 : index
    %c0_121 = arith.constant 0 : index
    %83 = vector.load %arg16[%c0_120, %c0_121] : memref<256x288xf32, #tpu.memory_space<vmem>>, vector<256x32xf32>
    tpu.vector_store %arg16[%c0_120, %c0_121], %82 {strides = array<i32>} : memref<256x288xf32, #tpu.memory_space<vmem>>, vector<256x32xf32>,
    %c0_122 = arith.constant 0 : index
    %c1_123 = arith.constant 1 : index
    %c0_124 = arith.constant 0 : index
    %84 = vector.load %arg15[%c0_122, %c1_123, %c0_124] : memref<18x18x32xf32, #tpu.memory_space<vmem>>, vector<16x16x32xf32>
    %85 = vector.shape_cast %84 : vector<16x16x32xf32> to vector<256x32xf32>
    %c0_125 = arith.constant 0 : index
    %c32_126 = arith.constant 32 : index
    %86 = vector.load %arg16[%c0_125, %c32_126] : memref<256x288xf32, #tpu.memory_space<vmem>>, vector<256x32xf32>
    tpu.vector_store %arg16[%c0_125, %c32_126], %85 {strides = array<i32>} : memref<256x288xf32, #tpu.memory_space<vmem>>, vector<256x32xf32>,
    %c0_127 = arith.constant 0 : index
    %c2_128 = arith.constant 2 : index
    %c0_129 = arith.constant 0 : index
    %87 = vector.load %arg15[%c0_127, %c2_128, %c0_129] : memref<18x18x32xf32, #tpu.memory_space<vmem>>, vector<16x16x32xf32>
    %88 = vector.shape_cast %87 : vector<16x16x32xf32> to vector<256x32xf32>
    %c0_130 = arith.constant 0 : index
    %c64 = arith.constant 64 : index
    %89 = vector.load %arg16[%c0_130, %c64] : memref<256x288xf32, #tpu.memory_space<vmem>>, vector<256x32xf32>
    tpu.vector_store %arg16[%c0_130, %c64], %88 {strides = array<i32>} : memref<256x288xf32, #tpu.memory_space<vmem>>, vector<256x32xf32>,
    %c1_131 = arith.constant 1 : index
    %c0_132 = arith.constant 0 : index
    %c0_133 = arith.constant 0 : index
    %90 = vector.load %arg15[%c1_131, %c0_132, %c0_133] : memref<18x18x32xf32, #tpu.memory_space<vmem>>, vector<16x16x32xf32>
    %91 = vector.shape_cast %90 : vector<16x16x32xf32> to vector<256x32xf32>
    %c0_134 = arith.constant 0 : index
    %c96 = arith.constant 96 : index
    %92 = vector.load %arg16[%c0_134, %c96] : memref<256x288xf32, #tpu.memory_space<vmem>>, vector<256x32xf32>
    tpu.vector_store %arg16[%c0_134, %c96], %91 {strides = array<i32>} : memref<256x288xf32, #tpu.memory_space<vmem>>, vector<256x32xf32>,
    %c1_135 = arith.constant 1 : index
    %c1_136 = arith.constant 1 : index
    %c0_137 = arith.constant 0 : index
    %93 = vector.load %arg15[%c1_135, %c1_136, %c0_137] : memref<18x18x32xf32, #tpu.memory_space<vmem>>, vector<16x16x32xf32>
    %94 = vector.shape_cast %93 : vector<16x16x32xf32> to vector<256x32xf32>
    %c0_138 = arith.constant 0 : index
    %c128 = arith.constant 128 : index
    %95 = vector.load %arg16[%c0_138, %c128] : memref<256x288xf32, #tpu.memory_space<vmem>>, vector<256x32xf32>
    tpu.vector_store %arg16[%c0_138, %c128], %94 {strides = array<i32>} : memref<256x288xf32, #tpu.memory_space<vmem>>, vector<256x32xf32>,
    %c1_139 = arith.constant 1 : index
    %c2_140 = arith.constant 2 : index
    %c0_141 = arith.constant 0 : index
    %96 = vector.load %arg15[%c1_139, %c2_140, %c0_141] : memref<18x18x32xf32, #tpu.memory_space<vmem>>, vector<16x16x32xf32>
    %97 = vector.shape_cast %96 : vector<16x16x32xf32> to vector<256x32xf32>
    %c0_142 = arith.constant 0 : index
    %c160 = arith.constant 160 : index
    %98 = vector.load %arg16[%c0_142, %c160] : memref<256x288xf32, #tpu.memory_space<vmem>>, vector<256x32xf32>
    tpu.vector_store %arg16[%c0_142, %c160], %97 {strides = array<i32>} : memref<256x288xf32, #tpu.memory_space<vmem>>, vector<256x32xf32>,
    %c2_143 = arith.constant 2 : index
    %c0_144 = arith.constant 0 : index
    %c0_145 = arith.constant 0 : index
    %99 = vector.load %arg15[%c2_143, %c0_144, %c0_145] : memref<18x18x32xf32, #tpu.memory_space<vmem>>, vector<16x16x32xf32>
    %100 = vector.shape_cast %99 : vector<16x16x32xf32> to vector<256x32xf32>
    %c0_146 = arith.constant 0 : index
    %c192 = arith.constant 192 : index
    %101 = vector.load %arg16[%c0_146, %c192] : memref<256x288xf32, #tpu.memory_space<vmem>>, vector<256x32xf32>
    tpu.vector_store %arg16[%c0_146, %c192], %100 {strides = array<i32>} : memref<256x288xf32, #tpu.memory_space<vmem>>, vector<256x32xf32>,
    %c2_147 = arith.constant 2 : index
    %c1_148 = arith.constant 1 : index
    %c0_149 = arith.constant 0 : index
    %102 = vector.load %arg15[%c2_147, %c1_148, %c0_149] : memref<18x18x32xf32, #tpu.memory_space<vmem>>, vector<16x16x32xf32>
    %103 = vector.shape_cast %102 : vector<16x16x32xf32> to vector<256x32xf32>
    %c0_150 = arith.constant 0 : index
    %c224 = arith.constant 224 : index
    %104 = vector.load %arg16[%c0_150, %c224] : memref<256x288xf32, #tpu.memory_space<vmem>>, vector<256x32xf32>
    tpu.vector_store %arg16[%c0_150, %c224], %103 {strides = array<i32>} : memref<256x288xf32, #tpu.memory_space<vmem>>, vector<256x32xf32>,
    %c2_151 = arith.constant 2 : index
    %c2_152 = arith.constant 2 : index
    %c0_153 = arith.constant 0 : index
    %105 = vector.load %arg15[%c2_151, %c2_152, %c0_153] : memref<18x18x32xf32, #tpu.memory_space<vmem>>, vector<16x16x32xf32>
    %106 = vector.shape_cast %105 : vector<16x16x32xf32> to vector<256x32xf32>
    %c0_154 = arith.constant 0 : index
    %c256 = arith.constant 256 : index
    %107 = vector.load %arg16[%c0_154, %c256] : memref<256x288xf32, #tpu.memory_space<vmem>>, vector<256x32xf32>
    tpu.vector_store %arg16[%c0_154, %c256], %106 {strides = array<i32>} : memref<256x288xf32, #tpu.memory_space<vmem>>, vector<256x32xf32>,
    %c0_155 = arith.constant 0 : index
    %c0_156 = arith.constant 0 : index
    %108 = vector.load %arg16[%c0_155, %c0_156] : memref<256x288xf32, #tpu.memory_space<vmem>>, vector<256x288xf32>
    %c0_157 = arith.constant 0 : index
    %c0_158 = arith.constant 0 : index
    %109 = vector.load %arg4[%c0_157, %c0_158] : memref<288x64xf32, #tpu.memory_space<vmem>>, vector<288x64xf32>
    %cst_159 = arith.constant dense<0.000000e+00> : vector<256x64xf32>
    %110 = tpu.matmul %108, %109, %cst_159 {dimension_numbers = #tpu.dot_dimension_numbers<[1], [0], [0], [1], [0, 0, 1, 1], [], []>} : vector<256x288xf32>, vector<288x64xf32>, vector<256x64xf32> -> vector<256x64xf32>
    %c0_160 = arith.constant 0 : index
    %c0_161 = arith.constant 0 : index
    %111 = vector.load %arg5[%c0_160, %c0_161] : memref<1x64xf32, #tpu.memory_space<vmem>>, vector<1x64xf32>
    %112 = vector.broadcast %111 : vector<1x64xf32> to vector<256x64xf32>
    %113 = arith.addf %110, %112 : vector<256x64xf32>
    %cst_162 = arith.constant 0.000000e+00 : f32
    %114 = vector.broadcast %cst_162 : f32 to vector<256x64xf32>
    %115 = arith.maximumf %113, %114 : vector<256x64xf32>
    %c0_163 = arith.constant 0 : index
    %c0_164 = arith.constant 0 : index
    %116 = vector.load %arg6[%c0_163, %c0_164] : memref<64x128xf32, #tpu.memory_space<vmem>>, vector<64x128xf32>
    %cst_165 = arith.constant dense<0.000000e+00> : vector<256x128xf32>
    %117 = tpu.matmul %115, %116, %cst_165 {dimension_numbers = #tpu.dot_dimension_numbers<[1], [0], [0], [1], [0, 0, 1, 1], [], []>} : vector<256x64xf32>, vector<64x128xf32>, vector<256x128xf32> -> vector<256x128xf32>
    %c0_166 = arith.constant 0 : index
    %c0_167 = arith.constant 0 : index
    %118 = vector.load %arg7[%c0_166, %c0_167] : memref<1x128xf32, #tpu.memory_space<vmem>>, vector<1x128xf32>
    %119 = vector.broadcast %118 : vector<1x128xf32> to vector<256x128xf32>
    %120 = arith.addf %117, %119 : vector<256x128xf32>
    %121 = vector.shape_cast %120 : vector<256x128xf32> to vector<16x16x128xf32>
    %c1_168 = arith.constant 1 : index
    %c1_169 = arith.constant 1 : index
    %c0_170 = arith.constant 0 : index
    %122 = vector.load %arg17[%c1_168, %c1_169, %c0_170] : memref<18x18x128xf32, #tpu.memory_space<vmem>>, vector<16x16x128xf32>
    tpu.vector_store %arg17[%c1_168, %c1_169, %c0_170], %121 {strides = array<i32>} : memref<18x18x128xf32, #tpu.memory_space<vmem>>, vector<16x16x128xf32>,
    %c0_171 = arith.constant 0 : index
    %c0_172 = arith.constant 0 : index
    %c0_173 = arith.constant 0 : index
    %123 = vector.load %arg17[%c0_171, %c0_172, %c0_173] : memref<18x18x128xf32, #tpu.memory_space<vmem>>, vector<16x16x128xf32>
    %124 = vector.shape_cast %123 : vector<16x16x128xf32> to vector<256x128xf32>
    %c0_174 = arith.constant 0 : index
    %c0_175 = arith.constant 0 : index
    %125 = vector.load %arg19[%c0_174, %c0_175] : memref<256x2304xf32, #tpu.memory_space<vmem>>, vector<256x128xf32>
    tpu.vector_store %arg19[%c0_174, %c0_175], %124 {strides = array<i32>} : memref<256x2304xf32, #tpu.memory_space<vmem>>, vector<256x128xf32>,
    %c0_176 = arith.constant 0 : index
    %c1_177 = arith.constant 1 : index
    %c0_178 = arith.constant 0 : index
    %126 = vector.load %arg17[%c0_176, %c1_177, %c0_178] : memref<18x18x128xf32, #tpu.memory_space<vmem>>, vector<16x16x128xf32>
    %127 = vector.shape_cast %126 : vector<16x16x128xf32> to vector<256x128xf32>
    %c0_179 = arith.constant 0 : index
    %c128_180 = arith.constant 128 : index
    %128 = vector.load %arg19[%c0_179, %c128_180] : memref<256x2304xf32, #tpu.memory_space<vmem>>, vector<256x128xf32>
    tpu.vector_store %arg19[%c0_179, %c128_180], %127 {strides = array<i32>} : memref<256x2304xf32, #tpu.memory_space<vmem>>, vector<256x128xf32>,
    %c0_181 = arith.constant 0 : index
    %c2_182 = arith.constant 2 : index
    %c0_183 = arith.constant 0 : index
    %129 = vector.load %arg17[%c0_181, %c2_182, %c0_183] : memref<18x18x128xf32, #tpu.memory_space<vmem>>, vector<16x16x128xf32>
    %130 = vector.shape_cast %129 : vector<16x16x128xf32> to vector<256x128xf32>
    %c0_184 = arith.constant 0 : index
    %c256_185 = arith.constant 256 : index
    %131 = vector.load %arg19[%c0_184, %c256_185] : memref<256x2304xf32, #tpu.memory_space<vmem>>, vector<256x128xf32>
    tpu.vector_store %arg19[%c0_184, %c256_185], %130 {strides = array<i32>} : memref<256x2304xf32, #tpu.memory_space<vmem>>, vector<256x128xf32>,
    %c1_186 = arith.constant 1 : index
    %c0_187 = arith.constant 0 : index
    %c0_188 = arith.constant 0 : index
    %132 = vector.load %arg17[%c1_186, %c0_187, %c0_188] : memref<18x18x128xf32, #tpu.memory_space<vmem>>, vector<16x16x128xf32>
    %133 = vector.shape_cast %132 : vector<16x16x128xf32> to vector<256x128xf32>
    %c0_189 = arith.constant 0 : index
    %c384 = arith.constant 384 : index
    %134 = vector.load %arg19[%c0_189, %c384] : memref<256x2304xf32, #tpu.memory_space<vmem>>, vector<256x128xf32>
    tpu.vector_store %arg19[%c0_189, %c384], %133 {strides = array<i32>} : memref<256x2304xf32, #tpu.memory_space<vmem>>, vector<256x128xf32>,
    %c1_190 = arith.constant 1 : index
    %c1_191 = arith.constant 1 : index
    %c0_192 = arith.constant 0 : index
    %135 = vector.load %arg17[%c1_190, %c1_191, %c0_192] : memref<18x18x128xf32, #tpu.memory_space<vmem>>, vector<16x16x128xf32>
    %136 = vector.shape_cast %135 : vector<16x16x128xf32> to vector<256x128xf32>
    %c0_193 = arith.constant 0 : index
    %c512 = arith.constant 512 : index
    %137 = vector.load %arg19[%c0_193, %c512] : memref<256x2304xf32, #tpu.memory_space<vmem>>, vector<256x128xf32>
    tpu.vector_store %arg19[%c0_193, %c512], %136 {strides = array<i32>} : memref<256x2304xf32, #tpu.memory_space<vmem>>, vector<256x128xf32>,
    %c1_194 = arith.constant 1 : index
    %c2_195 = arith.constant 2 : index
    %c0_196 = arith.constant 0 : index
    %138 = vector.load %arg17[%c1_194, %c2_195, %c0_196] : memref<18x18x128xf32, #tpu.memory_space<vmem>>, vector<16x16x128xf32>
    %139 = vector.shape_cast %138 : vector<16x16x128xf32> to vector<256x128xf32>
    %c0_197 = arith.constant 0 : index
    %c640 = arith.constant 640 : index
    %140 = vector.load %arg19[%c0_197, %c640] : memref<256x2304xf32, #tpu.memory_space<vmem>>, vector<256x128xf32>
    tpu.vector_store %arg19[%c0_197, %c640], %139 {strides = array<i32>} : memref<256x2304xf32, #tpu.memory_space<vmem>>, vector<256x128xf32>,
    %c2_198 = arith.constant 2 : index
    %c0_199 = arith.constant 0 : index
    %c0_200 = arith.constant 0 : index
    %141 = vector.load %arg17[%c2_198, %c0_199, %c0_200] : memref<18x18x128xf32, #tpu.memory_space<vmem>>, vector<16x16x128xf32>
    %142 = vector.shape_cast %141 : vector<16x16x128xf32> to vector<256x128xf32>
    %c0_201 = arith.constant 0 : index
    %c768 = arith.constant 768 : index
    %143 = vector.load %arg19[%c0_201, %c768] : memref<256x2304xf32, #tpu.memory_space<vmem>>, vector<256x128xf32>
    tpu.vector_store %arg19[%c0_201, %c768], %142 {strides = array<i32>} : memref<256x2304xf32, #tpu.memory_space<vmem>>, vector<256x128xf32>,
    %c2_202 = arith.constant 2 : index
    %c1_203 = arith.constant 1 : index
    %c0_204 = arith.constant 0 : index
    %144 = vector.load %arg17[%c2_202, %c1_203, %c0_204] : memref<18x18x128xf32, #tpu.memory_space<vmem>>, vector<16x16x128xf32>
    %145 = vector.shape_cast %144 : vector<16x16x128xf32> to vector<256x128xf32>
    %c0_205 = arith.constant 0 : index
    %c896 = arith.constant 896 : index
    %146 = vector.load %arg19[%c0_205, %c896] : memref<256x2304xf32, #tpu.memory_space<vmem>>, vector<256x128xf32>
    tpu.vector_store %arg19[%c0_205, %c896], %145 {strides = array<i32>} : memref<256x2304xf32, #tpu.memory_space<vmem>>, vector<256x128xf32>,
    %c2_206 = arith.constant 2 : index
    %c2_207 = arith.constant 2 : index
    %c0_208 = arith.constant 0 : index
    %147 = vector.load %arg17[%c2_206, %c2_207, %c0_208] : memref<18x18x128xf32, #tpu.memory_space<vmem>>, vector<16x16x128xf32>
    %148 = vector.shape_cast %147 : vector<16x16x128xf32> to vector<256x128xf32>
    %c0_209 = arith.constant 0 : index
    %c1024 = arith.constant 1024 : index
    %149 = vector.load %arg19[%c0_209, %c1024] : memref<256x2304xf32, #tpu.memory_space<vmem>>, vector<256x128xf32>
    tpu.vector_store %arg19[%c0_209, %c1024], %148 {strides = array<i32>} : memref<256x2304xf32, #tpu.memory_space<vmem>>, vector<256x128xf32>,
    %c0_210 = arith.constant 0 : index
    %c0_211 = arith.constant 0 : index
    %c0_212 = arith.constant 0 : index
    %150 = vector.load %arg18[%c0_210, %c0_211, %c0_212] : memref<18x18x128xf32, #tpu.memory_space<vmem>>, vector<16x16x128xf32>
    %151 = vector.shape_cast %150 : vector<16x16x128xf32> to vector<256x128xf32>
    %c0_213 = arith.constant 0 : index
    %c1152 = arith.constant 1152 : index
    %152 = vector.load %arg19[%c0_213, %c1152] : memref<256x2304xf32, #tpu.memory_space<vmem>>, vector<256x128xf32>
    tpu.vector_store %arg19[%c0_213, %c1152], %151 {strides = array<i32>} : memref<256x2304xf32, #tpu.memory_space<vmem>>, vector<256x128xf32>,
    %c0_214 = arith.constant 0 : index
    %c1_215 = arith.constant 1 : index
    %c0_216 = arith.constant 0 : index
    %153 = vector.load %arg18[%c0_214, %c1_215, %c0_216] : memref<18x18x128xf32, #tpu.memory_space<vmem>>, vector<16x16x128xf32>
    %154 = vector.shape_cast %153 : vector<16x16x128xf32> to vector<256x128xf32>
    %c0_217 = arith.constant 0 : index
    %c1280 = arith.constant 1280 : index
    %155 = vector.load %arg19[%c0_217, %c1280] : memref<256x2304xf32, #tpu.memory_space<vmem>>, vector<256x128xf32>
    tpu.vector_store %arg19[%c0_217, %c1280], %154 {strides = array<i32>} : memref<256x2304xf32, #tpu.memory_space<vmem>>, vector<256x128xf32>,
    %c0_218 = arith.constant 0 : index
    %c2_219 = arith.constant 2 : index
    %c0_220 = arith.constant 0 : index
    %156 = vector.load %arg18[%c0_218, %c2_219, %c0_220] : memref<18x18x128xf32, #tpu.memory_space<vmem>>, vector<16x16x128xf32>
    %157 = vector.shape_cast %156 : vector<16x16x128xf32> to vector<256x128xf32>
    %c0_221 = arith.constant 0 : index
    %c1408 = arith.constant 1408 : index
    %158 = vector.load %arg19[%c0_221, %c1408] : memref<256x2304xf32, #tpu.memory_space<vmem>>, vector<256x128xf32>
    tpu.vector_store %arg19[%c0_221, %c1408], %157 {strides = array<i32>} : memref<256x2304xf32, #tpu.memory_space<vmem>>, vector<256x128xf32>,
    %c1_222 = arith.constant 1 : index
    %c0_223 = arith.constant 0 : index
    %c0_224 = arith.constant 0 : index
    %159 = vector.load %arg18[%c1_222, %c0_223, %c0_224] : memref<18x18x128xf32, #tpu.memory_space<vmem>>, vector<16x16x128xf32>
    %160 = vector.shape_cast %159 : vector<16x16x128xf32> to vector<256x128xf32>
    %c0_225 = arith.constant 0 : index
    %c1536 = arith.constant 1536 : index
    %161 = vector.load %arg19[%c0_225, %c1536] : memref<256x2304xf32, #tpu.memory_space<vmem>>, vector<256x128xf32>
    tpu.vector_store %arg19[%c0_225, %c1536], %160 {strides = array<i32>} : memref<256x2304xf32, #tpu.memory_space<vmem>>, vector<256x128xf32>,
    %c1_226 = arith.constant 1 : index
    %c1_227 = arith.constant 1 : index
    %c0_228 = arith.constant 0 : index
    %162 = vector.load %arg18[%c1_226, %c1_227, %c0_228] : memref<18x18x128xf32, #tpu.memory_space<vmem>>, vector<16x16x128xf32>
    %163 = vector.shape_cast %162 : vector<16x16x128xf32> to vector<256x128xf32>
    %c0_229 = arith.constant 0 : index
    %c1664 = arith.constant 1664 : index
    %164 = vector.load %arg19[%c0_229, %c1664] : memref<256x2304xf32, #tpu.memory_space<vmem>>, vector<256x128xf32>
    tpu.vector_store %arg19[%c0_229, %c1664], %163 {strides = array<i32>} : memref<256x2304xf32, #tpu.memory_space<vmem>>, vector<256x128xf32>,
    %c1_230 = arith.constant 1 : index
    %c2_231 = arith.constant 2 : index
    %c0_232 = arith.constant 0 : index
    %165 = vector.load %arg18[%c1_230, %c2_231, %c0_232] : memref<18x18x128xf32, #tpu.memory_space<vmem>>, vector<16x16x128xf32>
    %166 = vector.shape_cast %165 : vector<16x16x128xf32> to vector<256x128xf32>
    %c0_233 = arith.constant 0 : index
    %c1792 = arith.constant 1792 : index
    %167 = vector.load %arg19[%c0_233, %c1792] : memref<256x2304xf32, #tpu.memory_space<vmem>>, vector<256x128xf32>
    tpu.vector_store %arg19[%c0_233, %c1792], %166 {strides = array<i32>} : memref<256x2304xf32, #tpu.memory_space<vmem>>, vector<256x128xf32>,
    %c2_234 = arith.constant 2 : index
    %c0_235 = arith.constant 0 : index
    %c0_236 = arith.constant 0 : index
    %168 = vector.load %arg18[%c2_234, %c0_235, %c0_236] : memref<18x18x128xf32, #tpu.memory_space<vmem>>, vector<16x16x128xf32>
    %169 = vector.shape_cast %168 : vector<16x16x128xf32> to vector<256x128xf32>
    %c0_237 = arith.constant 0 : index
    %c1920 = arith.constant 1920 : index
    %170 = vector.load %arg19[%c0_237, %c1920] : memref<256x2304xf32, #tpu.memory_space<vmem>>, vector<256x128xf32>
    tpu.vector_store %arg19[%c0_237, %c1920], %169 {strides = array<i32>} : memref<256x2304xf32, #tpu.memory_space<vmem>>, vector<256x128xf32>,
    %c2_238 = arith.constant 2 : index
    %c1_239 = arith.constant 1 : index
    %c0_240 = arith.constant 0 : index
    %171 = vector.load %arg18[%c2_238, %c1_239, %c0_240] : memref<18x18x128xf32, #tpu.memory_space<vmem>>, vector<16x16x128xf32>
    %172 = vector.shape_cast %171 : vector<16x16x128xf32> to vector<256x128xf32>
    %c0_241 = arith.constant 0 : index
    %c2048 = arith.constant 2048 : index
    %173 = vector.load %arg19[%c0_241, %c2048] : memref<256x2304xf32, #tpu.memory_space<vmem>>, vector<256x128xf32>
    tpu.vector_store %arg19[%c0_241, %c2048], %172 {strides = array<i32>} : memref<256x2304xf32, #tpu.memory_space<vmem>>, vector<256x128xf32>,
    %c2_242 = arith.constant 2 : index
    %c2_243 = arith.constant 2 : index
    %c0_244 = arith.constant 0 : index
    %174 = vector.load %arg18[%c2_242, %c2_243, %c0_244] : memref<18x18x128xf32, #tpu.memory_space<vmem>>, vector<16x16x128xf32>
    %175 = vector.shape_cast %174 : vector<16x16x128xf32> to vector<256x128xf32>
    %c0_245 = arith.constant 0 : index
    %c2176 = arith.constant 2176 : index
    %176 = vector.load %arg19[%c0_245, %c2176] : memref<256x2304xf32, #tpu.memory_space<vmem>>, vector<256x128xf32>
    tpu.vector_store %arg19[%c0_245, %c2176], %175 {strides = array<i32>} : memref<256x2304xf32, #tpu.memory_space<vmem>>, vector<256x128xf32>,
    %c0_246 = arith.constant 0 : index
    %c0_247 = arith.constant 0 : index
    %177 = vector.load %arg19[%c0_246, %c0_247] : memref<256x2304xf32, #tpu.memory_space<vmem>>, vector<256x2304xf32>
    %c0_248 = arith.constant 0 : index
    %c0_249 = arith.constant 0 : index
    %178 = vector.load %arg8[%c0_248, %c0_249] : memref<2304x128xf32, #tpu.memory_space<vmem>>, vector<2304x128xf32>
    %cst_250 = arith.constant dense<0.000000e+00> : vector<256x128xf32>
    %179 = tpu.matmul %177, %178, %cst_250 {dimension_numbers = #tpu.dot_dimension_numbers<[1], [0], [0], [1], [0, 0, 1, 1], [], []>} : vector<256x2304xf32>, vector<2304x128xf32>, vector<256x128xf32> -> vector<256x128xf32>
    %c0_251 = arith.constant 0 : index
    %c0_252 = arith.constant 0 : index
    %180 = vector.load %arg9[%c0_251, %c0_252] : memref<1x128xf32, #tpu.memory_space<vmem>>, vector<1x128xf32>
    %181 = vector.broadcast %180 : vector<1x128xf32> to vector<256x128xf32>
    %182 = arith.addf %179, %181 : vector<256x128xf32>
    %cst_253 = arith.constant 0.000000e+00 : f32
    %183 = vector.broadcast %cst_253 : f32 to vector<256x128xf32>
    %184 = arith.maximumf %182, %183 : vector<256x128xf32>
    %c0_254 = arith.constant 0 : index
    %c0_255 = arith.constant 0 : index
    %185 = vector.load %arg10[%c0_254, %c0_255] : memref<128x4xf32, #tpu.memory_space<vmem>>, vector<128x4xf32>
    %cst_256 = arith.constant dense<0.000000e+00> : vector<256x4xf32>
    %186 = tpu.matmul %184, %185, %cst_256 {dimension_numbers = #tpu.dot_dimension_numbers<[1], [0], [0], [1], [0, 0, 1, 1], [], []>} : vector<256x128xf32>, vector<128x4xf32>, vector<256x4xf32> -> vector<256x4xf32>
    %c0_257 = arith.constant 0 : index
    %c0_258 = arith.constant 0 : index
    %187 = vector.load %arg11[%c0_257, %c0_258] : memref<1x4xf32, #tpu.memory_space<vmem>>, vector<1x4xf32>
    %188 = vector.broadcast %187 : vector<1x4xf32> to vector<256x4xf32>
    %189 = arith.addf %186, %188 : vector<256x4xf32>
    %190 = vector.shape_cast %189 : vector<256x4xf32> to vector<1x16x16x4xf32>
    %c0_259 = arith.constant 0 : index
    %c0_260 = arith.constant 0 : index
    %c0_261 = arith.constant 0 : index
    %c0_262 = arith.constant 0 : index
    %191 = vector.load %arg12[%c0_259, %c0_260, %c0_261, %c0_262] : memref<1x16x16x4xf32, #tpu.memory_space<vmem>>, vector<1x16x16x4xf32>
    tpu.vector_store %arg12[%c0_259, %c0_260, %c0_261, %c0_262], %190 {strides = array<i32>} : memref<1x16x16x4xf32, #tpu.memory_space<vmem>>, vector<1x16x16x4xf32>,
    return
  }
  func.func @transform_0(%arg0: i32) -> (i32, i32, i32, i32) {
    %c0_i32 = arith.constant 0 : i32
    %c0_i32_0 = arith.constant 0 : i32
    %c0_i32_1 = arith.constant 0 : i32
    %c0_i32_2 = arith.constant 0 : i32
    return %arg0, %c0_i32, %c0_i32_0, %c0_i32_1 : i32, i32, i32, i32
  }
  func.func @transform_1(%arg0: i32) -> (i32, i32) {
    %c0_i32 = arith.constant 0 : i32
    %c0_i32_0 = arith.constant 0 : i32
    %c0_i32_1 = arith.constant 0 : i32
    return %c0_i32, %c0_i32_0 : i32, i32
  }
  func.func @transform_2(%arg0: i32) -> (i32, i32) {
    %c0_i32 = arith.constant 0 : i32
    %c0_i32_0 = arith.constant 0 : i32
    %c0_i32_1 = arith.constant 0 : i32
    return %c0_i32, %c0_i32_0 : i32, i32
  }
  func.func @transform_3(%arg0: i32) -> (i32, i32) {
    %c0_i32 = arith.constant 0 : i32
    %c0_i32_0 = arith.constant 0 : i32
    %c0_i32_1 = arith.constant 0 : i32
    return %c0_i32, %c0_i32_0 : i32, i32
  }
  func.func @transform_4(%arg0: i32) -> (i32, i32) {
    %c0_i32 = arith.constant 0 : i32
    %c0_i32_0 = arith.constant 0 : i32
    %c0_i32_1 = arith.constant 0 : i32
    return %c0_i32, %c0_i32_0 : i32, i32
  }
  func.func @transform_5(%arg0: i32) -> (i32, i32) {
    %c0_i32 = arith.constant 0 : i32
    %c0_i32_0 = arith.constant 0 : i32
    %c0_i32_1 = arith.constant 0 : i32
    return %c0_i32, %c0_i32_0 : i32, i32
  }
  func.func @transform_6(%arg0: i32) -> (i32, i32) {
    %c0_i32 = arith.constant 0 : i32
    %c0_i32_0 = arith.constant 0 : i32
    %c0_i32_1 = arith.constant 0 : i32
    return %c0_i32, %c0_i32_0 : i32, i32
  }
  func.func @transform_7(%arg0: i32) -> (i32, i32) {
    %c0_i32 = arith.constant 0 : i32
    %c0_i32_0 = arith.constant 0 : i32
    %c0_i32_1 = arith.constant 0 : i32
    return %c0_i32, %c0_i32_0 : i32, i32
  }
  func.func @transform_8(%arg0: i32) -> (i32, i32) {
    %c0_i32 = arith.constant 0 : i32
    %c0_i32_0 = arith.constant 0 : i32
    %c0_i32_1 = arith.constant 0 : i32
    return %c0_i32, %c0_i32_0 : i32, i32
  }
  func.func @transform_9(%arg0: i32) -> (i32, i32) {
    %c0_i32 = arith.constant 0 : i32
    %c0_i32_0 = arith.constant 0 : i32
    %c0_i32_1 = arith.constant 0 : i32
    return %c0_i32, %c0_i32_0 : i32, i32
  }
  func.func @transform_10(%arg0: i32) -> (i32, i32) {
    %c0_i32 = arith.constant 0 : i32
    %c0_i32_0 = arith.constant 0 : i32
    %c0_i32_1 = arith.constant 0 : i32
    return %c0_i32, %c0_i32_0 : i32, i32
  }
  func.func @transform_11(%arg0: i32) -> (i32, i32, i32, i32) {
    %c0_i32 = arith.constant 0 : i32
    %c0_i32_0 = arith.constant 0 : i32
    %c0_i32_1 = arith.constant 0 : i32
    %c0_i32_2 = arith.constant 0 : i32
    return %arg0, %c0_i32, %c0_i32_0, %c0_i32_1 : i32, i32, i32, i32
  }
}

</mosaic_0001>

<llo_original>
// kernel: tile.24
$region0: #{tile.24}
  %s0 = inlined_call_operand.vmem [shape: f32[4,32], index: 0, kind: input, shape index: {}]
  %s1 = inlined_call_operand.vmem [shape: f32[1,128], index: 1, kind: output, shape index: {}]
  $region1: #{tile.24} parent=0
    #allocation0 [shape = 'u8[4096]{0}', space=vmem, size = 0x1000, scoped, tag = 'scoped mem for output reshape']
    #allocation1 [shape = 'u8[4096]{0}', space=vmem, size = 0x1000, scoped, tag = 'scoped mem for input reshape']
    %s3 = sshll.u32 1, 4
    %s4 = ssub.s32 %s3, 1
    %v5 = vld [vmem:[%s0] sm:%s4]
    %6 = vst [vmem:[#allocation1] sm:%s4] %v5
    %v7 = vld [vmem:[#allocation1] sm:$0x1]
    %vm8 = vcmask 261120
    %9 = vst.msk [vmem:[#allocation0] sm:$0x1] %vm8, %v7
    %s10 = scalar_lea.vmem [#allocation1], 3
    %v11 = vld [vmem:[%s10] sm:$0x1]
    %12 = vrot.lane.b32.xlu0 %v11, 96
    %v13 = vpop.permute.xlu0 %12
    %vm14 = vcmask 1048320
    %15 = vst.msk [vmem:[#allocation0] sm:$0x1] %vm14, %v13
    %s16 = scalar_lea.vmem [#allocation1], 2
    %v17 = vld [vmem:[%s16] sm:$0x1]
    %18 = vrot.lane.b32.xlu0 %v17, 64
    %v19 = vpop.permute.xlu0 %18
    %vm20 = vcmask 785920
    %21 = vst.msk [vmem:[#allocation0] sm:$0x1] %vm20, %v19
    %s22 = scalar_lea.vmem [#allocation1], 1
    %v23 = vld [vmem:[%s22] sm:$0x1]
    %24 = vrot.lane.b32.xlu0 %v23, 32
    %v25 = vpop.permute.xlu0 %24
    %vm26 = vcmask 523520
    %27 = vst.msk [vmem:[#allocation0] sm:$0x1] %vm26, %v25
    %s29 = sshll.u32 1, 1
    %s30 = ssub.s32 %s29, 1
    %v32 = vld [vmem:[#allocation0] sm:%s30]
    %s33 = sshll.u32 1, 1
    %s34 = ssub.s32 %s33, 1
    %35 = vst [vmem:[%s1] sm:%s34] %v32

// kernel: audio_model_forward.1
$region0: #{audio_model_forward.1}
  #allocation0 [shape = 'u32[]', space=smem, size = 0x4, offset = 0x4, fixed_abs, tag = 'smem constant byte address 0x4 - core index']
  #allocation1 [shape = 'u32[144,128]{1,0:T(1,128)}', space=vmem, size = 0x12000, scoped, tag = 'internal scratch']
  #allocation2 [shape = 'f32[18,18,4]{2,1,0:T(8,128)}', space=vmem, size = 0x36000, scoped, tag = 'scratch operand']
  #allocation3 [shape = 'f32[256,36]{1,0:T(8,128)}', space=vmem, size = 0x20000, scoped, tag = 'scratch operand']
  #allocation4 [shape = 'f32[18,18,32]{2,1,0:T(8,128)}', space=vmem, size = 0x36000, scoped, tag = 'scratch operand']
  #allocation5 [shape = 'f32[256,288]{1,0:T(8,128)}', space=vmem, size = 0x60000, scoped, tag = 'scratch operand']
  #allocation6 [shape = 'f32[18,18,128]{2,1,0:T(8,128)}', space=vmem, size = 0x36000, scoped, tag = 'scratch operand']
  #allocation7 [shape = 'f32[18,18,128]{2,1,0:T(8,128)}', space=vmem, size = 0x36000, scoped, tag = 'scratch operand']
  #allocation8 [shape = 'f32[256,2304]{1,0:T(8,128)}', space=vmem, size = 0x240000, scoped, tag = 'scratch operand']
  %s0 = inlined_call_operand.vmem [shape: f32[2,16,16,4], index: 0, kind: input, shape index: {}]
  %s1 = inlined_call_operand.vmem [shape: f32[36,128], index: 1, kind: input, shape index: {}]
  %s2 = inlined_call_operand.vmem [shape: f32[1,128], index: 2, kind: input, shape index: {}]
  %s3 = inlined_call_operand.vmem [shape: f32[288,64], index: 3, kind: input, shape index: {}]
  %s4 = inlined_call_operand.vmem [shape: f32[1,64], index: 4, kind: input, shape index: {}]
  %s5 = inlined_call_operand.vmem [shape: f32[64,128], index: 5, kind: input, shape index: {}]
  %s6 = inlined_call_operand.vmem [shape: f32[1,128], index: 6, kind: input, shape index: {}]
  %s7 = inlined_call_operand.vmem [shape: f32[2304,128], index: 7, kind: input, shape index: {}]
  %s8 = inlined_call_operand.vmem [shape: f32[1,128], index: 8, kind: input, shape index: {}]
  %s9 = inlined_call_operand.vmem [shape: f32[128,4], index: 9, kind: input, shape index: {}]
  %s10 = inlined_call_operand.vmem [shape: f32[1,4], index: 10, kind: input, shape index: {}]
  %s11 = inlined_call_operand.vmem [shape: f32[2,16,16,4], index: 11, kind: output, shape index: {}]
  %s12 = sld [smem:[#allocation0]]
  $region77: #{audio_model_forward.1} parent=0
    _
  %s14 = ssub.s32 1, %s12
  %s15 = scalar_select 0, %s14, %s12
  loop: start=0, step=1, limit=4
  $region2: #{audio_model_forward.1} parent=0 // loop_pre_header
    _
  $region3: #{audio_model_forward.1} parent=0 // loop_header
    %s17 = sphi 0, %s21
    %p18 = scmp.ge.s32.totalorder %s17, 4
    %s27 = sphi 0, %s29
    %s30 = sphi 0, %s27
    %s31 = sphi 0, %s30
    %s47 = sphi 0, %s31
    %s51 = sphi 0, %s51
    %s53 = sphi 0, %s51
    %s54 = sphi 0, %s53
    %s68 = sphi 0, %s54
    %s72 = sphi 0, %s72
    %s74 = sphi 0, %s72
    %s75 = sphi 0, %s74
    %s89 = sphi 0, %s75
    %s93 = sphi 0, %s93
    %s95 = sphi 0, %s93
    %s96 = sphi 0, %s95
    %s110 = sphi 0, %s96
    %s114 = sphi 0, %s114
    %s116 = sphi 0, %s114
    %s117 = sphi 0, %s116
    %s131 = sphi 0, %s117
    %s135 = sphi 0, %s135
    %s137 = sphi 0, %s135
    %s138 = sphi 0, %s137
    %s152 = sphi 0, %s138
    %s156 = sphi 0, %s156
    %s158 = sphi 0, %s156
    %s159 = sphi 0, %s158
    %s173 = sphi 0, %s159
    %s177 = sphi 0, %s177
    %s179 = sphi 0, %s177
    %s180 = sphi 0, %s179
    %s194 = sphi 0, %s180
    %s198 = sphi 0, %s198
    %s200 = sphi 0, %s198
    %s201 = sphi 0, %s200
    %s215 = sphi 0, %s201
    %s219 = sphi 0, %s219
    %s221 = sphi 0, %s219
    %s222 = sphi 0, %s221
    %s236 = sphi 0, %s222
    %s240 = sphi 0, %s240
    %s242 = sphi 0, %s240
    %s243 = sphi 0, %s242
    %s257 = sphi 0, %s243
    %s263 = sphi 0, %s265
    %s266 = sphi 0, %s263
    %s267 = sphi 0, %s266
    %s283 = sphi 0, %s267
  $region4: #{audio_model_forward.1} parent=0 // loop_header_branch
    %20 = sbr.rel (%p18) target = $region8
  $region5: #{audio_model_forward.1} parent=0 // loop_body
    %s22 = ssub.s32 %s17, 1
    %s23 = ssub.s32 %s17, 2
    %s24 = sadd.s32 %s17, 1
    %s25 = ssub.s32 %s17, %s24
    %p26 = scmp.eq.s32.totalorder %s25, 0
    %s28 = sadd.s32 %s27, 1
    %s29 = scalar_select %p26, %s27, %s28
    %p32 = pneg %p26
    %p33 = scmp.eq.s32.totalorder %s17, 1
    %p34 = por %p32, %p33
    %p35 = scmp.ne.s32.totalorder %s27, %s30
    %p36 = scmp.eq.s32.totalorder %s17, 0
    %p37 = por %p35, %p36
    %p38 = scmp.ne.s32.totalorder %s27, %s30
    %p39 = scmp.eq.s32.totalorder %s22, 1
    %p40 = por %p38, %p39
    %p41 = scmp.ne.s32.totalorder %s30, %s31
    %p42 = scmp.eq.s32.totalorder %s22, 0
    %p43 = por %p41, %p42
    %p44 = scmp.ne.s32.totalorder %s30, %s31
    %p45 = scmp.eq.s32.totalorder %s23, 1
    %p46 = por %p44, %p45
    %p48 = scmp.ne.s32.totalorder %s31, %s47
    %p49 = scmp.eq.s32.totalorder %s23, 0
    %p50 = por %p48, %p49
    %s52 = sadd.s32 %s51, 1
    %p55 = scmp.eq.s32.totalorder %s17, 1
    %p56 = scmp.ne.s32.totalorder %s51, %s53
    %p57 = scmp.eq.s32.totalorder %s17, 0
    %p58 = por %p56, %p57
    %p59 = scmp.ne.s32.totalorder %s51, %s53
    %p60 = scmp.eq.s32.totalorder %s22, 1
    %p61 = por %p59, %p60
    %p62 = scmp.ne.s32.totalorder %s53, %s54
    %p63 = scmp.eq.s32.totalorder %s22, 0
    %p64 = por %p62, %p63
    %p65 = scmp.ne.s32.totalorder %s53, %s54
    %p66 = scmp.eq.s32.totalorder %s23, 1
    %p67 = por %p65, %p66
    %p69 = scmp.ne.s32.totalorder %s54, %s68
    %p70 = scmp.eq.s32.totalorder %s23, 0
    %p71 = por %p69, %p70
    %s73 = sadd.s32 %s72, 1
    %p76 = scmp.eq.s32.totalorder %s17, 1
    %p77 = scmp.ne.s32.totalorder %s72, %s74
    %p78 = scmp.eq.s32.totalorder %s17, 0
    %p79 = por %p77, %p78
    %p80 = scmp.ne.s32.totalorder %s72, %s74
    %p81 = scmp.eq.s32.totalorder %s22, 1
    %p82 = por %p80, %p81
    %p83 = scmp.ne.s32.totalorder %s74, %s75
    %p84 = scmp.eq.s32.totalorder %s22, 0
    %p85 = por %p83, %p84
    %p86 = scmp.ne.s32.totalorder %s74, %s75
    %p87 = scmp.eq.s32.totalorder %s23, 1
    %p88 = por %p86, %p87
    %p90 = scmp.ne.s32.totalorder %s75, %s89
    %p91 = scmp.eq.s32.totalorder %s23, 0
    %p92 = por %p90, %p91
    %s94 = sadd.s32 %s93, 1
    %p97 = scmp.eq.s32.totalorder %s17, 1
    %p98 = scmp.ne.s32.totalorder %s93, %s95
    %p99 = scmp.eq.s32.totalorder %s17, 0
    %p100 = por %p98, %p99
    %p101 = scmp.ne.s32.totalorder %s93, %s95
    %p102 = scmp.eq.s32.totalorder %s22, 1
    %p103 = por %p101, %p102
    %p104 = scmp.ne.s32.totalorder %s95, %s96
    %p105 = scmp.eq.s32.totalorder %s22, 0
    %p106 = por %p104, %p105
    %p107 = scmp.ne.s32.totalorder %s95, %s96
    %p108 = scmp.eq.s32.totalorder %s23, 1
    %p109 = por %p107, %p108
    %p111 = scmp.ne.s32.totalorder %s96, %s110
    %p112 = scmp.eq.s32.totalorder %s23, 0
    %p113 = por %p111, %p112
    %s115 = sadd.s32 %s114, 1
    %p118 = scmp.eq.s32.totalorder %s17, 1
    %p119 = scmp.ne.s32.totalorder %s114, %s116
    %p120 = scmp.eq.s32.totalorder %s17, 0
    %p121 = por %p119, %p120
    %p122 = scmp.ne.s32.totalorder %s114, %s116
    %p123 = scmp.eq.s32.totalorder %s22, 1
    %p124 = por %p122, %p123
    %p125 = scmp.ne.s32.totalorder %s116, %s117
    %p126 = scmp.eq.s32.totalorder %s22, 0
    %p127 = por %p125, %p126
    %p128 = scmp.ne.s32.totalorder %s116, %s117
    %p129 = scmp.eq.s32.totalorder %s23, 1
    %p130 = por %p128, %p129
    %p132 = scmp.ne.s32.totalorder %s117, %s131
    %p133 = scmp.eq.s32.totalorder %s23, 0
    %p134 = por %p132, %p133
    %s136 = sadd.s32 %s135, 1
    %p139 = scmp.eq.s32.totalorder %s17, 1
    %p140 = scmp.ne.s32.totalorder %s135, %s137
    %p141 = scmp.eq.s32.totalorder %s17, 0
    %p142 = por %p140, %p141
    %p143 = scmp.ne.s32.totalorder %s135, %s137
    %p144 = scmp.eq.s32.totalorder %s22, 1
    %p145 = por %p143, %p144
    %p146 = scmp.ne.s32.totalorder %s137, %s138
    %p147 = scmp.eq.s32.totalorder %s22, 0
    %p148 = por %p146, %p147
    %p149 = scmp.ne.s32.totalorder %s137, %s138
    %p150 = scmp.eq.s32.totalorder %s23, 1
    %p151 = por %p149, %p150
    %p153 = scmp.ne.s32.totalorder %s138, %s152
    %p154 = scmp.eq.s32.totalorder %s23, 0
    %p155 = por %p153, %p154
    %s157 = sadd.s32 %s156, 1
    %p160 = scmp.eq.s32.totalorder %s17, 1
    %p161 = scmp.ne.s32.totalorder %s156, %s158
    %p162 = scmp.eq.s32.totalorder %s17, 0
    %p163 = por %p161, %p162
    %p164 = scmp.ne.s32.totalorder %s156, %s158
    %p165 = scmp.eq.s32.totalorder %s22, 1
    %p166 = por %p164, %p165
    %p167 = scmp.ne.s32.totalorder %s158, %s159
    %p168 = scmp.eq.s32.totalorder %s22, 0
    %p169 = por %p167, %p168
    %p170 = scmp.ne.s32.totalorder %s158, %s159
    %p171 = scmp.eq.s32.totalorder %s23, 1
    %p172 = por %p170, %p171
    %p174 = scmp.ne.s32.totalorder %s159, %s173
    %p175 = scmp.eq.s32.totalorder %s23, 0
    %p176 = por %p174, %p175
    %s178 = sadd.s32 %s177, 1
    %p181 = scmp.eq.s32.totalorder %s17, 1
    %p182 = scmp.ne.s32.totalorder %s177, %s179
    %p183 = scmp.eq.s32.totalorder %s17, 0
    %p184 = por %p182, %p183
    %p185 = scmp.ne.s32.totalorder %s177, %s179
    %p186 = scmp.eq.s32.totalorder %s22, 1
    %p187 = por %p185, %p186
    %p188 = scmp.ne.s32.totalorder %s179, %s180
    %p189 = scmp.eq.s32.totalorder %s22, 0
    %p190 = por %p188, %p189
    %p191 = scmp.ne.s32.totalorder %s179, %s180
    %p192 = scmp.eq.s32.totalorder %s23, 1
    %p193 = por %p191, %p192
    %p195 = scmp.ne.s32.totalorder %s180, %s194
    %p196 = scmp.eq.s32.totalorder %s23, 0
    %p197 = por %p195, %p196
    %s199 = sadd.s32 %s198, 1
    %p202 = scmp.eq.s32.totalorder %s17, 1
    %p203 = scmp.ne.s32.totalorder %s198, %s200
    %p204 = scmp.eq.s32.totalorder %s17, 0
    %p205 = por %p203, %p204
    %p206 = scmp.ne.s32.totalorder %s198, %s200
    %p207 = scmp.eq.s32.totalorder %s22, 1
    %p208 = por %p206, %p207
    %p209 = scmp.ne.s32.totalorder %s200, %s201
    %p210 = scmp.eq.s32.totalorder %s22, 0
    %p211 = por %p209, %p210
    %p212 = scmp.ne.s32.totalorder %s200, %s201
    %p213 = scmp.eq.s32.totalorder %s23, 1
    %p214 = por %p212, %p213
    %p216 = scmp.ne.s32.totalorder %s201, %s215
    %p217 = scmp.eq.s32.totalorder %s23, 0
    %p218 = por %p216, %p217
    %s220 = sadd.s32 %s219, 1
    %p223 = scmp.eq.s32.totalorder %s17, 1
    %p224 = scmp.ne.s32.totalorder %s219, %s221
    %p225 = scmp.eq.s32.totalorder %s17, 0
    %p226 = por %p224, %p225
    %p227 = scmp.ne.s32.totalorder %s219, %s221
    %p228 = scmp.eq.s32.totalorder %s22, 1
    %p229 = por %p227, %p228
    %p230 = scmp.ne.s32.totalorder %s221, %s222
    %p231 = scmp.eq.s32.totalorder %s22, 0
    %p232 = por %p230, %p231
    %p233 = scmp.ne.s32.totalorder %s221, %s222
    %p234 = scmp.eq.s32.totalorder %s23, 1
    %p235 = por %p233, %p234
    %p237 = scmp.ne.s32.totalorder %s222, %s236
    %p238 = scmp.eq.s32.totalorder %s23, 0
    %p239 = por %p237, %p238
    %s241 = sadd.s32 %s240, 1
    %p244 = scmp.eq.s32.totalorder %s17, 1
    %p245 = scmp.ne.s32.totalorder %s240, %s242
    %p246 = scmp.eq.s32.totalorder %s17, 0
    %p247 = por %p245, %p246
    %p248 = scmp.ne.s32.totalorder %s240, %s242
    %p249 = scmp.eq.s32.totalorder %s22, 1
    %p250 = por %p248, %p249
    %p251 = scmp.ne.s32.totalorder %s242, %s243
    %p252 = scmp.eq.s32.totalorder %s22, 0
    %p253 = por %p251, %p252
    %p254 = scmp.ne.s32.totalorder %s242, %s243
    %p255 = scmp.eq.s32.totalorder %s23, 1
    %p256 = por %p254, %p255
    %p258 = scmp.ne.s32.totalorder %s243, %s257
    %p259 = scmp.eq.s32.totalorder %s23, 0
    %p260 = por %p258, %p259
    %s261 = ssub.s32 %s17, %s24
    %p262 = scmp.eq.s32.totalorder %s261, 0
    %s264 = sadd.s32 %s263, 1
    %s265 = scalar_select %p262, %s263, %s264
    %p268 = pneg %p262
    %p269 = scmp.eq.s32.totalorder %s17, 1
    %p270 = por %p268, %p269
    %p271 = scmp.ne.s32.totalorder %s263, %s266
    %p272 = scmp.eq.s32.totalorder %s17, 0
    %p273 = por %p271, %p272
    %p274 = scmp.ne.s32.totalorder %s263, %s266
    %p275 = scmp.eq.s32.totalorder %s22, 1
    %p276 = por %p274, %p275
    %p277 = scmp.ne.s32.totalorder %s266, %s267
    %p278 = scmp.eq.s32.totalorder %s22, 0
    %p279 = por %p277, %p278
    %p280 = scmp.ne.s32.totalorder %s266, %s267
    %p281 = scmp.eq.s32.totalorder %s23, 1
    %p282 = por %p280, %p281
    %p284 = scmp.ne.s32.totalorder %s267, %s283
    %p285 = scmp.eq.s32.totalorder %s23, 0
    %p286 = por %p284, %p285
    %p287 = scmp.le.s32.totalorder 1, %s17
    %p288 = scmp.lt.s32.totalorder %s17, 3
    %p289 = pnand %p287, %p288
    %p290 = pneg %p289
    // Predicated region
    $region9: #{audio_model_forward.1} parent=5 // pred_check
      _
    $region10: #{audio_model_forward.1} parent=5 // pred_check_branch
      %292 = sbr.rel (%p289) target = $region12
    $region11: #{audio_model_forward.1} parent=5 // pred_region
      %s293 = ssub.s32 %s17, 1
      // Predicated region
      $region13: #{audio_model_forward.1} parent=11 // pred_check
        %p294 = pneg %p64
      $region14: #{audio_model_forward.1} parent=11 // pred_check_branch
        %296 = sbr.rel (%p294) target = $region16
      $region15: #{audio_model_forward.1} parent=11 // pred_region
        _
      $region16: #{audio_model_forward.1} parent=11 // pred_fallthru
        _
      // Predicated region
      $region17: #{audio_model_forward.1} parent=11 // pred_check
        %p297 = pneg %p85
      $region18: #{audio_model_forward.1} parent=11 // pred_check_branch
        %299 = sbr.rel (%p297) target = $region20
      $region19: #{audio_model_forward.1} parent=11 // pred_region
        _
      $region20: #{audio_model_forward.1} parent=11 // pred_fallthru
        _
      // Predicated region
      $region21: #{audio_model_forward.1} parent=11 // pred_check
        %p300 = pneg %p106
      $region22: #{audio_model_forward.1} parent=11 // pred_check_branch
        %302 = sbr.rel (%p300) target = $region24
      $region23: #{audio_model_forward.1} parent=11 // pred_region
        _
      $region24: #{audio_model_forward.1} parent=11 // pred_fallthru
        _
      // Predicated region
      $region25: #{audio_model_forward.1} parent=11 // pred_check
        %p303 = pneg %p127
      $region26: #{audio_model_forward.1} parent=11 // pred_check_branch
        %305 = sbr.rel (%p303) target = $region28
      $region27: #{audio_model_forward.1} parent=11 // pred_region
        _
      $region28: #{audio_model_forward.1} parent=11 // pred_fallthru
        _
      // Predicated region
      $region29: #{audio_model_forward.1} parent=11 // pred_check
        %p306 = pneg %p148
      $region30: #{audio_model_forward.1} parent=11 // pred_check_branch
        %308 = sbr.rel (%p306) target = $region32
      $region31: #{audio_model_forward.1} parent=11 // pred_region
        _
      $region32: #{audio_model_forward.1} parent=11 // pred_fallthru
        _
      // Predicated region
      $region33: #{audio_model_forward.1} parent=11 // pred_check
        %p309 = pneg %p169
      $region34: #{audio_model_forward.1} parent=11 // pred_check_branch
        %311 = sbr.rel (%p309) target = $region36
      $region35: #{audio_model_forward.1} parent=11 // pred_region
        _
      $region36: #{audio_model_forward.1} parent=11 // pred_fallthru
        _
      // Predicated region
      $region37: #{audio_model_forward.1} parent=11 // pred_check
        %p312 = pneg %p190
      $region38: #{audio_model_forward.1} parent=11 // pred_check_branch
        %314 = sbr.rel (%p312) target = $region40
      $region39: #{audio_model_forward.1} parent=11 // pred_region
        _
      $region40: #{audio_model_forward.1} parent=11 // pred_fallthru
        _
      // Predicated region
      $region41: #{audio_model_forward.1} parent=11 // pred_check
        %p315 = pneg %p211
      $region42: #{audio_model_forward.1} parent=11 // pred_check_branch
        %317 = sbr.rel (%p315) target = $region44
      $region43: #{audio_model_forward.1} parent=11 // pred_region
        _
      $region44: #{audio_model_forward.1} parent=11 // pred_fallthru
        _
      // Predicated region
      $region45: #{audio_model_forward.1} parent=11 // pred_check
        %p318 = pneg %p232
      $region46: #{audio_model_forward.1} parent=11 // pred_check_branch
        %320 = sbr.rel (%p318) target = $region48
      $region47: #{audio_model_forward.1} parent=11 // pred_region
        _
      $region48: #{audio_model_forward.1} parent=11 // pred_fallthru
        _
      // Predicated region
      $region49: #{audio_model_forward.1} parent=11 // pred_check
        %p321 = pneg %p253
      $region50: #{audio_model_forward.1} parent=11 // pred_check_branch
        %323 = sbr.rel (%p321) target = $region52
      $region51: #{audio_model_forward.1} parent=11 // pred_region
        _
      $region52: #{audio_model_forward.1} parent=11 // pred_fallthru
        _
    $region12: #{audio_model_forward.1} parent=5 // pred_fallthru
      _
    %p324 = scmp.lt.s32.totalorder %s17, 2
    // Predicated region
    $region53: #{audio_model_forward.1} parent=5 // pred_check
      %p325 = pneg %p324
    $region54: #{audio_model_forward.1} parent=5 // pred_check_branch
      %327 = sbr.rel (%p325) target = $region56
    $region55: #{audio_model_forward.1} parent=5 // pred_region
      // Predicated region
      $region57: #{audio_model_forward.1} parent=55 // pred_check
        %p328 = pneg %p37
      $region58: #{audio_model_forward.1} parent=55 // pred_check_branch
        %330 = sbr.rel (%p328) target = $region60
      $region59: #{audio_model_forward.1} parent=55 // pred_region
        %p331 = scmp.lt.s32.totalorder %s17, 1
        %s332 = scalar_select %p331, %s17, 1
        %s333 = smul.addr %s332, 32
        %s334 = smul.addr %s333, 8
        %s335 = scalar_lea.vmem %s0, %s334
      $region60: #{audio_model_forward.1} parent=55 // pred_fallthru
        _
    $region56: #{audio_model_forward.1} parent=5 // pred_fallthru
      _
    %p336 = scmp.le.s32.totalorder 1, %s17
    %p337 = scmp.lt.s32.totalorder %s17, 3
    %p338 = pnand %p336, %p337
    %p339 = pneg %p338
    // Predicated region
    $region61: #{audio_model_forward.1} parent=5 // pred_check
      _
    $region62: #{audio_model_forward.1} parent=5 // pred_check_branch
      %341 = sbr.rel (%p338) target = $region64
    $region63: #{audio_model_forward.1} parent=5 // pred_region
      %s342 = ssub.s32 %s17, 1
      %p343 = scmp.lt.s32.totalorder %s22, 1
      %s344 = scalar_select %p343, %s22, 1
      %s345 = smul.addr %s344, 32
      %s346 = smul.addr %s345, 8
      %s347 = scalar_lea.vmem %s0, %s346
      %p348 = pneg %p43
      %p349 = pneg %p40
      %p350 = pneg %p64
      %p351 = pneg %p61
      %p352 = pneg %p85
      %p353 = pneg %p82
      %p354 = pneg %p106
      %p355 = pneg %p103
      %p356 = pneg %p127
      %p357 = pneg %p124
      %p358 = pneg %p148
      %p359 = pneg %p145
      %p360 = pneg %p169
      %p361 = pneg %p166
      %p362 = pneg %p190
      %p363 = pneg %p187
      %p364 = pneg %p211
      %p365 = pneg %p208
      %p366 = pneg %p232
      %p367 = pneg %p229
      %p368 = pneg %p253
      %p369 = pneg %p250
      %p370 = pneg %p279
      %p371 = pneg %p276
      %p372 = scmp.lt.s32.totalorder %s22, 1
      %s373 = scalar_select %p372, %s22, 1
      %s374 = smul.addr %s373, 32
      %s375 = smul.addr %s374, 8
      %s376 = scalar_lea.vmem %s11, %s375
      %p377 = scmp.lt.s32.totalorder %s22, 1
      %s378 = scalar_select %p377, %s22, 1
      %s379 = smul.addr %s378, 32
      %s380 = smul.addr %s379, 8
      %s381 = scalar_lea.vmem %s0, %s380
      %p382 = scmp.lt.s32.totalorder %s22, 1
      %s383 = scalar_select %p382, %s22, 1
      %s384 = smul.addr %s383, 32
      %s385 = smul.addr %s384, 8
      %s386 = scalar_lea.vmem %s11, %s385
      %vm387 = vcmask 31744
      %388 = vst.msk [vmem:[#allocation2] sm:$0xff] %vm387, 0.0
      %389 = vst.msk [vmem:[#allocation2 + $0x8] sm:$0xff] %vm387, 0.0
      %vm390 = vcmask 25600
      %391 = vst.msk [vmem:[#allocation2 + $0x10] sm:$0x3] %vm390, 0.0
      %s392 = scalar_lea.vmem [#allocation2], 408
      %393 = vst.msk [vmem:[%s392] sm:$0xff] %vm387, 0.0
      %394 = vst.msk [vmem:[%s392 + $0x8] sm:$0xff] %vm387, 0.0
      %395 = vst.msk [vmem:[%s392 + $0x10] sm:$0x3] %vm390, 0.0
      %s396 = scalar_lea.vmem [#allocation2], 24
      %vm397 = vcmask 24576
      %398 = vst.msk [vmem:[%s396] sm:$0x1] %vm397, 0.0
      %399 = vst.msk [vmem:[%s396 + $0x18] sm:$0x1] %vm397, 0.0
      %400 = vst.msk [vmem:[%s396 + $0x30] sm:$0x1] %vm397, 0.0
      %401 = vst.msk [vmem:[%s396 + $0x48] sm:$0x1] %vm397, 0.0
      %402 = vst.msk [vmem:[%s396 + $0x60] sm:$0x1] %vm397, 0.0
      %403 = vst.msk [vmem:[%s396 + $0x78] sm:$0x1] %vm397, 0.0
      %404 = vst.msk [vmem:[%s396 + $0x90] sm:$0x1] %vm397, 0.0
      %405 = vst.msk [vmem:[%s396 + $0xa8] sm:$0x1] %vm397, 0.0
      %406 = vst.msk [vmem:[%s396 + $0xc0] sm:$0x1] %vm397, 0.0
      %407 = vst.msk [vmem:[%s396 + $0xd8] sm:$0x1] %vm397, 0.0
      %408 = vst.msk [vmem:[%s396 + $0xf0] sm:$0x1] %vm397, 0.0
      %409 = vst.msk [vmem:[%s396 + $0x108] sm:$0x1] %vm397, 0.0
      %410 = vst.msk [vmem:[%s396 + $0x120] sm:$0x1] %vm397, 0.0
      %411 = vst.msk [vmem:[%s396 + $0x138] sm:$0x1] %vm397, 0.0
      %412 = vst.msk [vmem:[%s396 + $0x150] sm:$0x1] %vm397, 0.0
      %413 = vst.msk [vmem:[%s396 + $0x168] sm:$0x1] %vm397, 0.0
      %414 = vst.msk [vmem:[%s396 + $0x11] sm:$0x1] %vm397, 0.0
      %415 = vst.msk [vmem:[%s396 + $0x29] sm:$0x1] %vm397, 0.0
      %416 = vst.msk [vmem:[%s396 + $0x41] sm:$0x1] %vm397, 0.0
      %417 = vst.msk [vmem:[%s396 + $0x59] sm:$0x1] %vm397, 0.0
      %418 = vst.msk [vmem:[%s396 + $0x71] sm:$0x1] %vm397, 0.0
      %419 = vst.msk [vmem:[%s396 + $0x89] sm:$0x1] %vm397, 0.0
      %420 = vst.msk [vmem:[%s396 + $0xa1] sm:$0x1] %vm397, 0.0
      %421 = vst.msk [vmem:[%s396 + $0xb9] sm:$0x1] %vm397, 0.0
      %422 = vst.msk [vmem:[%s396 + $0xd1] sm:$0x1] %vm397, 0.0
      %423 = vst.msk [vmem:[%s396 + $0xe9] sm:$0x1] %vm397, 0.0
      %424 = vst.msk [vmem:[%s396 + $0x101] sm:$0x1] %vm397, 0.0
      %425 = vst.msk [vmem:[%s396 + $0x119] sm:$0x1] %vm397, 0.0
      %426 = vst.msk [vmem:[%s396 + $0x131] sm:$0x1] %vm397, 0.0
      %427 = vst.msk [vmem:[%s396 + $0x149] sm:$0x1] %vm397, 0.0
      %428 = vst.msk [vmem:[%s396 + $0x161] sm:$0x1] %vm397, 0.0
      %429 = vst.msk [vmem:[%s396 + $0x179] sm:$0x1] %vm397, 0.0
      %vm430 = vcmask 261120
      %431 = vst.msk [vmem:[#allocation4] sm:$0xff] %vm430, 0.0
      %432 = vst.msk [vmem:[#allocation4 + $0x8] sm:$0xff] %vm430, 0.0
      %vm433 = vcmask 254976
      %434 = vst.msk [vmem:[#allocation4 + $0x10] sm:$0x3] %vm433, 0.0
      %s435 = scalar_lea.vmem [#allocation4], 408
      %436 = vst.msk [vmem:[%s435] sm:$0xff] %vm430, 0.0
      %437 = vst.msk [vmem:[%s435 + $0x8] sm:$0xff] %vm430, 0.0
      %438 = vst.msk [vmem:[%s435 + $0x10] sm:$0x3] %vm433, 0.0
      %s439 = scalar_lea.vmem [#allocation4], 24
      %vm440 = vcmask 253952
      %441 = vst.msk [vmem:[%s439] sm:$0x1] %vm440, 0.0
      %442 = vst.msk [vmem:[%s439 + $0x18] sm:$0x1] %vm440, 0.0
      %443 = vst.msk [vmem:[%s439 + $0x30] sm:$0x1] %vm440, 0.0
      %444 = vst.msk [vmem:[%s439 + $0x48] sm:$0x1] %vm440, 0.0
      %445 = vst.msk [vmem:[%s439 + $0x60] sm:$0x1] %vm440, 0.0
      %446 = vst.msk [vmem:[%s439 + $0x78] sm:$0x1] %vm440, 0.0
      %447 = vst.msk [vmem:[%s439 + $0x90] sm:$0x1] %vm440, 0.0
      %448 = vst.msk [vmem:[%s439 + $0xa8] sm:$0x1] %vm440, 0.0
      %449 = vst.msk [vmem:[%s439 + $0xc0] sm:$0x1] %vm440, 0.0
      %450 = vst.msk [vmem:[%s439 + $0xd8] sm:$0x1] %vm440, 0.0
      %451 = vst.msk [vmem:[%s439 + $0xf0] sm:$0x1] %vm440, 0.0
      %452 = vst.msk [vmem:[%s439 + $0x108] sm:$0x1] %vm440, 0.0
      %453 = vst.msk [vmem:[%s439 + $0x120] sm:$0x1] %vm440, 0.0
      %454 = vst.msk [vmem:[%s439 + $0x138] sm:$0x1] %vm440, 0.0
      %455 = vst.msk [vmem:[%s439 + $0x150] sm:$0x1] %vm440, 0.0
      %456 = vst.msk [vmem:[%s439 + $0x168] sm:$0x1] %vm440, 0.0
      %457 = vst.msk [vmem:[%s439 + $0x11] sm:$0x1] %vm440, 0.0
      %458 = vst.msk [vmem:[%s439 + $0x29] sm:$0x1] %vm440, 0.0
      %459 = vst.msk [vmem:[%s439 + $0x41] sm:$0x1] %vm440, 0.0
      %460 = vst.msk [vmem:[%s439 + $0x59] sm:$0x1] %vm440, 0.0
      %461 = vst.msk [vmem:[%s439 + $0x71] sm:$0x1] %vm440, 0.0
      %462 = vst.msk [vmem:[%s439 + $0x89] sm:$0x1] %vm440, 0.0
      %463 = vst.msk [vmem:[%s439 + $0xa1] sm:$0x1] %vm440, 0.0
      %464 = vst.msk [vmem:[%s439 + $0xb9] sm:$0x1] %vm440, 0.0
      %465 = vst.msk [vmem:[%s439 + $0xd1] sm:$0x1] %vm440, 0.0
      %466 = vst.msk [vmem:[%s439 + $0xe9] sm:$0x1] %vm440, 0.0
      %467 = vst.msk [vmem:[%s439 + $0x101] sm:$0x1] %vm440, 0.0
      %468 = vst.msk [vmem:[%s439 + $0x119] sm:$0x1] %vm440, 0.0
      %469 = vst.msk [vmem:[%s439 + $0x131] sm:$0x1] %vm440, 0.0
      %470 = vst.msk [vmem:[%s439 + $0x149] sm:$0x1] %vm440, 0.0
      %471 = vst.msk [vmem:[%s439 + $0x161] sm:$0x1] %vm440, 0.0
      %472 = vst.msk [vmem:[%s439 + $0x179] sm:$0x1] %vm440, 0.0
      %473 = vst [vmem:[#allocation6] sm:$0xff] 0.0
      %474 = vst [vmem:[#allocation6 + $0x8] sm:$0xff] 0.0
      %475 = vst [vmem:[#allocation6 + $0x10] sm:$0x3] 0.0
      %s476 = scalar_lea.vmem [#allocation6], 408
      %477 = vst [vmem:[%s476] sm:$0xff] 0.0
      %478 = vst [vmem:[%s476 + $0x8] sm:$0xff] 0.0
      %479 = vst [vmem:[%s476 + $0x10] sm:$0x3] 0.0
      %s480 = scalar_lea.vmem [#allocation6], 24
      %481 = vst [vmem:[%s480] sm:$0x1] 0.0
      %482 = vst [vmem:[%s480 + $0x18] sm:$0x1] 0.0
      %483 = vst [vmem:[%s480 + $0x30] sm:$0x1] 0.0
      %484 = vst [vmem:[%s480 + $0x48] sm:$0x1] 0.0
      %485 = vst [vmem:[%s480 + $0x60] sm:$0x1] 0.0
      %486 = vst [vmem:[%s480 + $0x78] sm:$0x1] 0.0
      %487 = vst [vmem:[%s480 + $0x90] sm:$0x1] 0.0
      %488 = vst [vmem:[%s480 + $0xa8] sm:$0x1] 0.0
      %489 = vst [vmem:[%s480 + $0xc0] sm:$0x1] 0.0
      %490 = vst [vmem:[%s480 + $0xd8] sm:$0x1] 0.0
      %491 = vst [vmem:[%s480 + $0xf0] sm:$0x1] 0.0
      %492 = vst [vmem:[%s480 + $0x108] sm:$0x1] 0.0
      %493 = vst [vmem:[%s480 + $0x120] sm:$0x1] 0.0
      %494 = vst [vmem:[%s480 + $0x138] sm:$0x1] 0.0
      %495 = vst [vmem:[%s480 + $0x150] sm:$0x1] 0.0
      %496 = vst [vmem:[%s480 + $0x168] sm:$0x1] 0.0
      %497 = vst [vmem:[%s480 + $0x11] sm:$0x1] 0.0
      %498 = vst [vmem:[%s480 + $0x29] sm:$0x1] 0.0
      %499 = vst [vmem:[%s480 + $0x41] sm:$0x1] 0.0
      %500 = vst [vmem:[%s480 + $0x59] sm:$0x1] 0.0
      %501 = vst [vmem:[%s480 + $0x71] sm:$0x1] 0.0
      %502 = vst [vmem:[%s480 + $0x89] sm:$0x1] 0.0
      %503 = vst [vmem:[%s480 + $0xa1] sm:$0x1] 0.0
      %504 = vst [vmem:[%s480 + $0xb9] sm:$0x1] 0.0
      %505 = vst [vmem:[%s480 + $0xd1] sm:$0x1] 0.0
      %506 = vst [vmem:[%s480 + $0xe9] sm:$0x1] 0.0
      %507 = vst [vmem:[%s480 + $0x101] sm:$0x1] 0.0
      %508 = vst [vmem:[%s480 + $0x119] sm:$0x1] 0.0
      %509 = vst [vmem:[%s480 + $0x131] sm:$0x1] 0.0
      %510 = vst [vmem:[%s480 + $0x149] sm:$0x1] 0.0
      %511 = vst [vmem:[%s480 + $0x161] sm:$0x1] 0.0
      %512 = vst [vmem:[%s480 + $0x179] sm:$0x1] 0.0
      %513 = vst [vmem:[#allocation7] sm:$0xff] 0.0
      %514 = vst [vmem:[#allocation7 + $0x8] sm:$0xff] 0.0
      %515 = vst [vmem:[#allocation7 + $0x10] sm:$0x3] 0.0
      %s516 = scalar_lea.vmem [#allocation7], 408
      %517 = vst [vmem:[%s516] sm:$0xff] 0.0
      %518 = vst [vmem:[%s516 + $0x8] sm:$0xff] 0.0
      %519 = vst [vmem:[%s516 + $0x10] sm:$0x3] 0.0
      %s520 = scalar_lea.vmem [#allocation7], 24
      %521 = vst [vmem:[%s520] sm:$0x1] 0.0
      %522 = vst [vmem:[%s520 + $0x18] sm:$0x1] 0.0
      %523 = vst [vmem:[%s520 + $0x30] sm:$0x1] 0.0
      %524 = vst [vmem:[%s520 + $0x48] sm:$0x1] 0.0
      %525 = vst [vmem:[%s520 + $0x60] sm:$0x1] 0.0
      %526 = vst [vmem:[%s520 + $0x78] sm:$0x1] 0.0
      %527 = vst [vmem:[%s520 + $0x90] sm:$0x1] 0.0
      %528 = vst [vmem:[%s520 + $0xa8] sm:$0x1] 0.0
      %529 = vst [vmem:[%s520 + $0xc0] sm:$0x1] 0.0
      %530 = vst [vmem:[%s520 + $0xd8] sm:$0x1] 0.0
      %531 = vst [vmem:[%s520 + $0xf0] sm:$0x1] 0.0
      %532 = vst [vmem:[%s520 + $0x108] sm:$0x1] 0.0
      %533 = vst [vmem:[%s520 + $0x120] sm:$0x1] 0.0
      %534 = vst [vmem:[%s520 + $0x138] sm:$0x1] 0.0
      %535 = vst [vmem:[%s520 + $0x150] sm:$0x1] 0.0
      %536 = vst [vmem:[%s520 + $0x168] sm:$0x1] 0.0
      %537 = vst [vmem:[%s520 + $0x11] sm:$0x1] 0.0
      %538 = vst [vmem:[%s520 + $0x29] sm:$0x1] 0.0
      %539 = vst [vmem:[%s520 + $0x41] sm:$0x1] 0.0
      %540 = vst [vmem:[%s520 + $0x59] sm:$0x1] 0.0
      %541 = vst [vmem:[%s520 + $0x71] sm:$0x1] 0.0
      %542 = vst [vmem:[%s520 + $0x89] sm:$0x1] 0.0
      %543 = vst [vmem:[%s520 + $0xa1] sm:$0x1] 0.0
      %544 = vst [vmem:[%s520 + $0xb9] sm:$0x1] 0.0
      %545 = vst [vmem:[%s520 + $0xd1] sm:$0x1] 0.0
      %546 = vst [vmem:[%s520 + $0xe9] sm:$0x1] 0.0
      %547 = vst [vmem:[%s520 + $0x101] sm:$0x1] 0.0
      %548 = vst [vmem:[%s520 + $0x119] sm:$0x1] 0.0
      %549 = vst [vmem:[%s520 + $0x131] sm:$0x1] 0.0
      %550 = vst [vmem:[%s520 + $0x149] sm:$0x1] 0.0
      %551 = vst [vmem:[%s520 + $0x161] sm:$0x1] 0.0
      %552 = vst [vmem:[%s520 + $0x179] sm:$0x1] 0.0
      %v553 = vld [vmem:[%s381] sm:$0xff]
      %v554 = vld [vmem:[%s381 + $0x8] sm:$0xff]
      %v555 = vld [vmem:[%s381 + $0x10] sm:$0xff]
      %v556 = vld [vmem:[%s381 + $0x18] sm:$0xff]
      %v557 = vld [vmem:[%s381 + $0x20] sm:$0xff]
      %v558 = vld [vmem:[%s381 + $0x28] sm:$0xff]
      %v559 = vld [vmem:[%s381 + $0x30] sm:$0xff]
      %v560 = vld [vmem:[%s381 + $0x38] sm:$0xff]
      %v561 = vld [vmem:[%s381 + $0x40] sm:$0xff]
      %v562 = vld [vmem:[%s381 + $0x48] sm:$0xff]
      %v563 = vld [vmem:[%s381 + $0x50] sm:$0xff]
      %v564 = vld [vmem:[%s381 + $0x58] sm:$0xff]
      %v565 = vld [vmem:[%s381 + $0x60] sm:$0xff]
      %v566 = vld [vmem:[%s381 + $0x68] sm:$0xff]
      %v567 = vld [vmem:[%s381 + $0x70] sm:$0xff]
      %v568 = vld [vmem:[%s381 + $0x78] sm:$0xff]
      %v569 = vld [vmem:[%s381 + $0x80] sm:$0xff]
      %v570 = vld [vmem:[%s381 + $0x88] sm:$0xff]
      %v571 = vld [vmem:[%s381 + $0x90] sm:$0xff]
      %v572 = vld [vmem:[%s381 + $0x98] sm:$0xff]
      %v573 = vld [vmem:[%s381 + $0xa0] sm:$0xff]
      %v574 = vld [vmem:[%s381 + $0xa8] sm:$0xff]
      %v575 = vld [vmem:[%s381 + $0xb0] sm:$0xff]
      %v576 = vld [vmem:[%s381 + $0xb8] sm:$0xff]
      %v577 = vld [vmem:[%s381 + $0xc0] sm:$0xff]
      %v578 = vld [vmem:[%s381 + $0xc8] sm:$0xff]
      %v579 = vld [vmem:[%s381 + $0xd0] sm:$0xff]
      %v580 = vld [vmem:[%s381 + $0xd8] sm:$0xff]
      %v581 = vld [vmem:[%s381 + $0xe0] sm:$0xff]
      %v582 = vld [vmem:[%s381 + $0xe8] sm:$0xff]
      %v583 = vld [vmem:[%s381 + $0xf0] sm:$0xff]
      %v584 = vld [vmem:[%s381 + $0xf8] sm:$0xff]
      %585 = vst.msk [vmem:[%s396 + $0x1] sm:$0xff] %vm387, %v553
      %586 = vst.msk [vmem:[%s396 + $0x9] sm:$0xff] %vm387, %v554
      %587 = vst.msk [vmem:[%s396 + $0x19] sm:$0xff] %vm387, %v555
      %588 = vst.msk [vmem:[%s396 + $0x21] sm:$0xff] %vm387, %v556
      %589 = vst.msk [vmem:[%s396 + $0x31] sm:$0xff] %vm387, %v557
      %590 = vst.msk [vmem:[%s396 + $0x39] sm:$0xff] %vm387, %v558
      %591 = vst.msk [vmem:[%s396 + $0x49] sm:$0xff] %vm387, %v559
      %592 = vst.msk [vmem:[%s396 + $0x51] sm:$0xff] %vm387, %v560
      %593 = vst.msk [vmem:[%s396 + $0x61] sm:$0xff] %vm387, %v561
      %594 = vst.msk [vmem:[%s396 + $0x69] sm:$0xff] %vm387, %v562
      %595 = vst.msk [vmem:[%s396 + $0x79] sm:$0xff] %vm387, %v563
      %596 = vst.msk [vmem:[%s396 + $0x81] sm:$0xff] %vm387, %v564
      %597 = vst.msk [vmem:[%s396 + $0x91] sm:$0xff] %vm387, %v565
      %598 = vst.msk [vmem:[%s396 + $0x99] sm:$0xff] %vm387, %v566
      %599 = vst.msk [vmem:[%s396 + $0xa9] sm:$0xff] %vm387, %v567
      %600 = vst.msk [vmem:[%s396 + $0xb1] sm:$0xff] %vm387, %v568
      %601 = vst.msk [vmem:[%s396 + $0xc1] sm:$0xff] %vm387, %v569
      %602 = vst.msk [vmem:[%s396 + $0xc9] sm:$0xff] %vm387, %v570
      %603 = vst.msk [vmem:[%s396 + $0xd9] sm:$0xff] %vm387, %v571
      %604 = vst.msk [vmem:[%s396 + $0xe1] sm:$0xff] %vm387, %v572
      %605 = vst.msk [vmem:[%s396 + $0xf1] sm:$0xff] %vm387, %v573
      %606 = vst.msk [vmem:[%s396 + $0xf9] sm:$0xff] %vm387, %v574
      %607 = vst.msk [vmem:[%s396 + $0x109] sm:$0xff] %vm387, %v575
      %608 = vst.msk [vmem:[%s396 + $0x111] sm:$0xff] %vm387, %v576
      %609 = vst.msk [vmem:[%s396 + $0x121] sm:$0xff] %vm387, %v577
      %610 = vst.msk [vmem:[%s396 + $0x129] sm:$0xff] %vm387, %v578
      %611 = vst.msk [vmem:[%s396 + $0x139] sm:$0xff] %vm387, %v579
      %612 = vst.msk [vmem:[%s396 + $0x141] sm:$0xff] %vm387, %v580
      %613 = vst.msk [vmem:[%s396 + $0x151] sm:$0xff] %vm387, %v581
      %614 = vst.msk [vmem:[%s396 + $0x159] sm:$0xff] %vm387, %v582
      %615 = vst.msk [vmem:[%s396 + $0x169] sm:$0xff] %vm387, %v583
      %616 = vst.msk [vmem:[%s396 + $0x171] sm:$0xff] %vm387, %v584
      %v617 = vld [vmem:[#allocation2] sm:$0xff]
      %v618 = vld [vmem:[#allocation2 + $0x8] sm:$0xff]
      %v619 = vld [vmem:[#allocation2 + $0x18] sm:$0xff]
      %v620 = vld [vmem:[#allocation2 + $0x20] sm:$0xff]
      %v621 = vld [vmem:[#allocation2 + $0x30] sm:$0xff]
      %v622 = vld [vmem:[#allocation2 + $0x38] sm:$0xff]
      %v623 = vld [vmem:[#allocation2 + $0x48] sm:$0xff]
      %v624 = vld [vmem:[#allocation2 + $0x50] sm:$0xff]
      %v625 = vld [vmem:[#allocation2 + $0x60] sm:$0xff]
      %v626 = vld [vmem:[#allocation2 + $0x68] sm:$0xff]
      %v627 = vld [vmem:[#allocation2 + $0x78] sm:$0xff]
      %v628 = vld [vmem:[#allocation2 + $0x80] sm:$0xff]
      %v629 = vld [vmem:[#allocation2 + $0x90] sm:$0xff]
      %v630 = vld [vmem:[#allocation2 + $0x98] sm:$0xff]
      %v631 = vld [vmem:[#allocation2 + $0xa8] sm:$0xff]
      %v632 = vld [vmem:[#allocation2 + $0xb0] sm:$0xff]
      %v633 = vld [vmem:[#allocation2 + $0xc0] sm:$0xff]
      %v634 = vld [vmem:[#allocation2 + $0xc8] sm:$0xff]
      %v635 = vld [vmem:[#allocation2 + $0xd8] sm:$0xff]
      %v636 = vld [vmem:[#allocation2 + $0xe0] sm:$0xff]
      %v637 = vld [vmem:[#allocation2 + $0xf0] sm:$0xff]
      %v638 = vld [vmem:[#allocation2 + $0xf8] sm:$0xff]
      %v639 = vld [vmem:[#allocation2 + $0x108] sm:$0xff]
      %v640 = vld [vmem:[#allocation2 + $0x110] sm:$0xff]
      %v641 = vld [vmem:[#allocation2 + $0x120] sm:$0xff]
      %v642 = vld [vmem:[#allocation2 + $0x128] sm:$0xff]
      %v643 = vld [vmem:[#allocation2 + $0x138] sm:$0xff]
      %v644 = vld [vmem:[#allocation2 + $0x140] sm:$0xff]
      %v645 = vld [vmem:[#allocation2 + $0x150] sm:$0xff]
      %v646 = vld [vmem:[#allocation2 + $0x158] sm:$0xff]
      %v647 = vld [vmem:[#allocation2 + $0x168] sm:$0xff]
      %v648 = vld [vmem:[#allocation2 + $0x170] sm:$0xff]
      %649 = vst.msk [vmem:[#allocation3] sm:$0xff] %vm387, %v617
      %650 = vst.msk [vmem:[#allocation3 + $0x8] sm:$0xff] %vm387, %v618
      %651 = vst.msk [vmem:[#allocation3 + $0x10] sm:$0xff] %vm387, %v619
      %652 = vst.msk [vmem:[#allocation3 + $0x18] sm:$0xff] %vm387, %v620
      %653 = vst.msk [vmem:[#allocation3 + $0x20] sm:$0xff] %vm387, %v621
      %654 = vst.msk [vmem:[#allocation3 + $0x28] sm:$0xff] %vm387, %v622
      %655 = vst.msk [vmem:[#allocation3 + $0x30] sm:$0xff] %vm387, %v623
      %656 = vst.msk [vmem:[#allocation3 + $0x38] sm:$0xff] %vm387, %v624
      %657 = vst.msk [vmem:[#allocation3 + $0x40] sm:$0xff] %vm387, %v625
      %658 = vst.msk [vmem:[#allocation3 + $0x48] sm:$0xff] %vm387, %v626
      %659 = vst.msk [vmem:[#allocation3 + $0x50] sm:$0xff] %vm387, %v627
      %660 = vst.msk [vmem:[#allocation3 + $0x58] sm:$0xff] %vm387, %v628
      %661 = vst.msk [vmem:[#allocation3 + $0x60] sm:$0xff] %vm387, %v629
      %662 = vst.msk [vmem:[#allocation3 + $0x68] sm:$0xff] %vm387, %v630
      %663 = vst.msk [vmem:[#allocation3 + $0x70] sm:$0xff] %vm387, %v631
      %664 = vst.msk [vmem:[#allocation3 + $0x78] sm:$0xff] %vm387, %v632
      %665 = vst.msk [vmem:[#allocation3 + $0x80] sm:$0xff] %vm387, %v633
      %666 = vst.msk [vmem:[#allocation3 + $0x88] sm:$0xff] %vm387, %v634
      %667 = vst.msk [vmem:[#allocation3 + $0x90] sm:$0xff] %vm387, %v635
      %668 = vst.msk [vmem:[#allocation3 + $0x98] sm:$0xff] %vm387, %v636
      %669 = vst.msk [vmem:[#allocation3 + $0xa0] sm:$0xff] %vm387, %v637
      %670 = vst.msk [vmem:[#allocation3 + $0xa8] sm:$0xff] %vm387, %v638
      %671 = vst.msk [vmem:[#allocation3 + $0xb0] sm:$0xff] %vm387, %v639
      %672 = vst.msk [vmem:[#allocation3 + $0xb8] sm:$0xff] %vm387, %v640
      %673 = vst.msk [vmem:[#allocation3 + $0xc0] sm:$0xff] %vm387, %v641
      %674 = vst.msk [vmem:[#allocation3 + $0xc8] sm:$0xff] %vm387, %v642
      %675 = vst.msk [vmem:[#allocation3 + $0xd0] sm:$0xff] %vm387, %v643
      %676 = vst.msk [vmem:[#allocation3 + $0xd8] sm:$0xff] %vm387, %v644
      %677 = vst.msk [vmem:[#allocation3 + $0xe0] sm:$0xff] %vm387, %v645
      %678 = vst.msk [vmem:[#allocation3 + $0xe8] sm:$0xff] %vm387, %v646
      %679 = vst.msk [vmem:[#allocation3 + $0xf0] sm:$0xff] %vm387, %v647
      %680 = vst.msk [vmem:[#allocation3 + $0xf8] sm:$0xff] %vm387, %v648
      %v681 = vld [vmem:[#allocation2 + $0x1] sm:$0xff]
      %v682 = vld [vmem:[#allocation2 + $0x9] sm:$0xff]
      %v683 = vld [vmem:[#allocation2 + $0x19] sm:$0xff]
      %v684 = vld [vmem:[#allocation2 + $0x21] sm:$0xff]
      %v685 = vld [vmem:[#allocation2 + $0x31] sm:$0xff]
      %v686 = vld [vmem:[#allocation2 + $0x39] sm:$0xff]
      %v687 = vld [vmem:[#allocation2 + $0x49] sm:$0xff]
      %v688 = vld [vmem:[#allocation2 + $0x51] sm:$0xff]
      %v689 = vld [vmem:[#allocation2 + $0x61] sm:$0xff]
      %v690 = vld [vmem:[#allocation2 + $0x69] sm:$0xff]
      %v691 = vld [vmem:[#allocation2 + $0x79] sm:$0xff]
      %v692 = vld [vmem:[#allocation2 + $0x81] sm:$0xff]
      %v693 = vld [vmem:[#allocation2 + $0x91] sm:$0xff]
      %v694 = vld [vmem:[#allocation2 + $0x99] sm:$0xff]
      %v695 = vld [vmem:[#allocation2 + $0xa9] sm:$0xff]
      %v696 = vld [vmem:[#allocation2 + $0xb1] sm:$0xff]
      %v697 = vld [vmem:[#allocation2 + $0xc1] sm:$0xff]
      %v698 = vld [vmem:[#allocation2 + $0xc9] sm:$0xff]
      %v699 = vld [vmem:[#allocation2 + $0xd9] sm:$0xff]
      %v700 = vld [vmem:[#allocation2 + $0xe1] sm:$0xff]
      %v701 = vld [vmem:[#allocation2 + $0xf1] sm:$0xff]
      %v702 = vld [vmem:[#allocation2 + $0xf9] sm:$0xff]
      %v703 = vld [vmem:[#allocation2 + $0x109] sm:$0xff]
      %v704 = vld [vmem:[#allocation2 + $0x111] sm:$0xff]
      %v705 = vld [vmem:[#allocation2 + $0x121] sm:$0xff]
      %v706 = vld [vmem:[#allocation2 + $0x129] sm:$0xff]
      %v707 = vld [vmem:[#allocation2 + $0x139] sm:$0xff]
      %v708 = vld [vmem:[#allocation2 + $0x141] sm:$0xff]
      %v709 = vld [vmem:[#allocation2 + $0x151] sm:$0xff]
      %v710 = vld [vmem:[#allocation2 + $0x159] sm:$0xff]
      %v711 = vld [vmem:[#allocation2 + $0x169] sm:$0xff]
      %v712 = vld [vmem:[#allocation2 + $0x171] sm:$0xff]
      %745 = vrot.lane.b32.xlu0 %v681, 4
      %v746 = vpop.permute.xlu0 %745
      %747 = vrot.lane.b32.xlu0 %v682, 4
      %v748 = vpop.permute.xlu0 %747
      %749 = vrot.lane.b32.xlu0 %v683, 4
      %v750 = vpop.permute.xlu0 %749
      %751 = vrot.lane.b32.xlu0 %v684, 4
      %v752 = vpop.permute.xlu0 %751
      %753 = vrot.lane.b32.xlu0 %v685, 4
      %v754 = vpop.permute.xlu0 %753
      %755 = vrot.lane.b32.xlu0 %v686, 4
      %v756 = vpop.permute.xlu0 %755
      %757 = vrot.lane.b32.xlu0 %v687, 4
      %v758 = vpop.permute.xlu0 %757
      %759 = vrot.lane.b32.xlu0 %v688, 4
      %v760 = vpop.permute.xlu0 %759
      %761 = vrot.lane.b32.xlu0 %v689, 4
      %v762 = vpop.permute.xlu0 %761
      %763 = vrot.lane.b32.xlu0 %v690, 4
      %v764 = vpop.permute.xlu0 %763
      %765 = vrot.lane.b32.xlu0 %v691, 4
      %v766 = vpop.permute.xlu0 %765
      %767 = vrot.lane.b32.xlu0 %v692, 4
      %v768 = vpop.permute.xlu0 %767
      %769 = vrot.lane.b32.xlu0 %v693, 4
      %v770 = vpop.permute.xlu0 %769
      %771 = vrot.lane.b32.xlu0 %v694, 4
      %v772 = vpop.permute.xlu0 %771
      %773 = vrot.lane.b32.xlu0 %v695, 4
      %v774 = vpop.permute.xlu0 %773
      %775 = vrot.lane.b32.xlu0 %v696, 4
      %v776 = vpop.permute.xlu0 %775
      %777 = vrot.lane.b32.xlu0 %v697, 4
      %v778 = vpop.permute.xlu0 %777
      %779 = vrot.lane.b32.xlu0 %v698, 4
      %v780 = vpop.permute.xlu0 %779
      %781 = vrot.lane.b32.xlu0 %v699, 4
      %v782 = vpop.permute.xlu0 %781
      %783 = vrot.lane.b32.xlu0 %v700, 4
      %v784 = vpop.permute.xlu0 %783
      %785 = vrot.lane.b32.xlu0 %v701, 4
      %v786 = vpop.permute.xlu0 %785
      %787 = vrot.lane.b32.xlu0 %v702, 4
      %v788 = vpop.permute.xlu0 %787
      %789 = vrot.lane.b32.xlu0 %v703, 4
      %v790 = vpop.permute.xlu0 %789
      %791 = vrot.lane.b32.xlu0 %v704, 4
      %v792 = vpop.permute.xlu0 %791
      %793 = vrot.lane.b32.xlu0 %v705, 4
      %v794 = vpop.permute.xlu0 %793
      %795 = vrot.lane.b32.xlu0 %v706, 4
      %v796 = vpop.permute.xlu0 %795
      %797 = vrot.lane.b32.xlu0 %v707, 4
      %v798 = vpop.permute.xlu0 %797
      %799 = vrot.lane.b32.xlu0 %v708, 4
      %v800 = vpop.permute.xlu0 %799
      %801 = vrot.lane.b32.xlu0 %v709, 4
      %v802 = vpop.permute.xlu0 %801
      %803 = vrot.lane.b32.xlu0 %v710, 4
      %v804 = vpop.permute.xlu0 %803
      %805 = vrot.lane.b32.xlu0 %v711, 4
      %v806 = vpop.permute.xlu0 %805
      %807 = vrot.lane.b32.xlu0 %v712, 4
      %v808 = vpop.permute.xlu0 %807
      %vm841 = vcmask 64544
      %842 = vst.msk [vmem:[#allocation3] sm:$0xff] %vm841, %v746
      %843 = vst.msk [vmem:[#allocation3 + $0x8] sm:$0xff] %vm841, %v748
      %844 = vst.msk [vmem:[#allocation3 + $0x10] sm:$0xff] %vm841, %v750
      %845 = vst.msk [vmem:[#allocation3 + $0x18] sm:$0xff] %vm841, %v752
      %846 = vst.msk [vmem:[#allocation3 + $0x20] sm:$0xff] %vm841, %v754
      %847 = vst.msk [vmem:[#allocation3 + $0x28] sm:$0xff] %vm841, %v756
      %848 = vst.msk [vmem:[#allocation3 + $0x30] sm:$0xff] %vm841, %v758
      %849 = vst.msk [vmem:[#allocation3 + $0x38] sm:$0xff] %vm841, %v760
      %850 = vst.msk [vmem:[#allocation3 + $0x40] sm:$0xff] %vm841, %v762
      %851 = vst.msk [vmem:[#allocation3 + $0x48] sm:$0xff] %vm841, %v764
      %852 = vst.msk [vmem:[#allocation3 + $0x50] sm:$0xff] %vm841, %v766
      %853 = vst.msk [vmem:[#allocation3 + $0x58] sm:$0xff] %vm841, %v768
      %854 = vst.msk [vmem:[#allocation3 + $0x60] sm:$0xff] %vm841, %v770
      %855 = vst.msk [vmem:[#allocation3 + $0x68] sm:$0xff] %vm841, %v772
      %856 = vst.msk [vmem:[#allocation3 + $0x70] sm:$0xff] %vm841, %v774
      %857 = vst.msk [vmem:[#allocation3 + $0x78] sm:$0xff] %vm841, %v776
      %858 = vst.msk [vmem:[#allocation3 + $0x80] sm:$0xff] %vm841, %v778
      %859 = vst.msk [vmem:[#allocation3 + $0x88] sm:$0xff] %vm841, %v780
      %860 = vst.msk [vmem:[#allocation3 + $0x90] sm:$0xff] %vm841, %v782
      %861 = vst.msk [vmem:[#allocation3 + $0x98] sm:$0xff] %vm841, %v784
      %862 = vst.msk [vmem:[#allocation3 + $0xa0] sm:$0xff] %vm841, %v786
      %863 = vst.msk [vmem:[#allocation3 + $0xa8] sm:$0xff] %vm841, %v788
      %864 = vst.msk [vmem:[#allocation3 + $0xb0] sm:$0xff] %vm841, %v790
      %865 = vst.msk [vmem:[#allocation3 + $0xb8] sm:$0xff] %vm841, %v792
      %866 = vst.msk [vmem:[#allocation3 + $0xc0] sm:$0xff] %vm841, %v794
      %867 = vst.msk [vmem:[#allocation3 + $0xc8] sm:$0xff] %vm841, %v796
      %868 = vst.msk [vmem:[#allocation3 + $0xd0] sm:$0xff] %vm841, %v798
      %869 = vst.msk [vmem:[#allocation3 + $0xd8] sm:$0xff] %vm841, %v800
      %870 = vst.msk [vmem:[#allocation3 + $0xe0] sm:$0xff] %vm841, %v802
      %871 = vst.msk [vmem:[#allocation3 + $0xe8] sm:$0xff] %vm841, %v804
      %872 = vst.msk [vmem:[#allocation3 + $0xf0] sm:$0xff] %vm841, %v806
      %873 = vst.msk [vmem:[#allocation3 + $0xf8] sm:$0xff] %vm841, %v808
      %v874 = vld [vmem:[#allocation2 + $0x2] sm:$0xff]
      %v875 = vld [vmem:[#allocation2 + $0xa] sm:$0xff]
      %v876 = vld [vmem:[#allocation2 + $0x1a] sm:$0xff]
      %v877 = vld [vmem:[#allocation2 + $0x22] sm:$0xff]
      %v878 = vld [vmem:[#allocation2 + $0x32] sm:$0xff]
      %v879 = vld [vmem:[#allocation2 + $0x3a] sm:$0xff]
      %v880 = vld [vmem:[#allocation2 + $0x4a] sm:$0xff]
      %v881 = vld [vmem:[#allocation2 + $0x52] sm:$0xff]
      %v882 = vld [vmem:[#allocation2 + $0x62] sm:$0xff]
      %v883 = vld [vmem:[#allocation2 + $0x6a] sm:$0xff]
      %v884 = vld [vmem:[#allocation2 + $0x7a] sm:$0xff]
      %v885 = vld [vmem:[#allocation2 + $0x82] sm:$0xff]
      %v886 = vld [vmem:[#allocation2 + $0x92] sm:$0xff]
      %v887 = vld [vmem:[#allocation2 + $0x9a] sm:$0xff]
      %v888 = vld [vmem:[#allocation2 + $0xaa] sm:$0xff]
      %v889 = vld [vmem:[#allocation2 + $0xb2] sm:$0xff]
      %v890 = vld [vmem:[#allocation2 + $0xc2] sm:$0xff]
      %v891 = vld [vmem:[#allocation2 + $0xca] sm:$0xff]
      %v892 = vld [vmem:[#allocation2 + $0xda] sm:$0xff]
      %v893 = vld [vmem:[#allocation2 + $0xe2] sm:$0xff]
      %v894 = vld [vmem:[#allocation2 + $0xf2] sm:$0xff]
      %v895 = vld [vmem:[#allocation2 + $0xfa] sm:$0xff]
      %v896 = vld [vmem:[#allocation2 + $0x10a] sm:$0xff]
      %v897 = vld [vmem:[#allocation2 + $0x112] sm:$0xff]
      %v898 = vld [vmem:[#allocation2 + $0x122] sm:$0xff]
      %v899 = vld [vmem:[#allocation2 + $0x12a] sm:$0xff]
      %v900 = vld [vmem:[#allocation2 + $0x13a] sm:$0xff]
      %v901 = vld [vmem:[#allocation2 + $0x142] sm:$0xff]
      %v902 = vld [vmem:[#allocation2 + $0x152] sm:$0xff]
      %v903 = vld [vmem:[#allocation2 + $0x15a] sm:$0xff]
      %v904 = vld [vmem:[#allocation2 + $0x16a] sm:$0xff]
      %v905 = vld [vmem:[#allocation2 + $0x172] sm:$0xff]
      %938 = vrot.lane.b32.xlu0 %v874, 8
      %v939 = vpop.permute.xlu0 %938
      %940 = vrot.lane.b32.xlu0 %v875, 8
      %v941 = vpop.permute.xlu0 %940
      %942 = vrot.lane.b32.xlu0 %v876, 8
      %v943 = vpop.permute.xlu0 %942
      %944 = vrot.lane.b32.xlu0 %v877, 8
      %v945 = vpop.permute.xlu0 %944
      %946 = vrot.lane.b32.xlu0 %v878, 8
      %v947 = vpop.permute.xlu0 %946
      %948 = vrot.lane.b32.xlu0 %v879, 8
      %v949 = vpop.permute.xlu0 %948
      %950 = vrot.lane.b32.xlu0 %v880, 8
      %v951 = vpop.permute.xlu0 %950
      %952 = vrot.lane.b32.xlu0 %v881, 8
      %v953 = vpop.permute.xlu0 %952
      %954 = vrot.lane.b32.xlu0 %v882, 8
      %v955 = vpop.permute.xlu0 %954
      %956 = vrot.lane.b32.xlu0 %v883, 8
      %v957 = vpop.permute.xlu0 %956
      %958 = vrot.lane.b32.xlu0 %v884, 8
      %v959 = vpop.permute.xlu0 %958
      %960 = vrot.lane.b32.xlu0 %v885, 8
      %v961 = vpop.permute.xlu0 %960
      %962 = vrot.lane.b32.xlu0 %v886, 8
      %v963 = vpop.permute.xlu0 %962
      %964 = vrot.lane.b32.xlu0 %v887, 8
      %v965 = vpop.permute.xlu0 %964
      %966 = vrot.lane.b32.xlu0 %v888, 8
      %v967 = vpop.permute.xlu0 %966
      %968 = vrot.lane.b32.xlu0 %v889, 8
      %v969 = vpop.permute.xlu0 %968
      %970 = vrot.lane.b32.xlu0 %v890, 8
      %v971 = vpop.permute.xlu0 %970
      %972 = vrot.lane.b32.xlu0 %v891, 8
      %v973 = vpop.permute.xlu0 %972
      %974 = vrot.lane.b32.xlu0 %v892, 8
      %v975 = vpop.permute.xlu0 %974
      %976 = vrot.lane.b32.xlu0 %v893, 8
      %v977 = vpop.permute.xlu0 %976
      %978 = vrot.lane.b32.xlu0 %v894, 8
      %v979 = vpop.permute.xlu0 %978
      %980 = vrot.lane.b32.xlu0 %v895, 8
      %v981 = vpop.permute.xlu0 %980
      %982 = vrot.lane.b32.xlu0 %v896, 8
      %v983 = vpop.permute.xlu0 %982
      %984 = vrot.lane.b32.xlu0 %v897, 8
      %v985 = vpop.permute.xlu0 %984
      %986 = vrot.lane.b32.xlu0 %v898, 8
      %v987 = vpop.permute.xlu0 %986
      %988 = vrot.lane.b32.xlu0 %v899, 8
      %v989 = vpop.permute.xlu0 %988
      %990 = vrot.lane.b32.xlu0 %v900, 8
      %v991 = vpop.permute.xlu0 %990
      %992 = vrot.lane.b32.xlu0 %v901, 8
      %v993 = vpop.permute.xlu0 %992
      %994 = vrot.lane.b32.xlu0 %v902, 8
      %v995 = vpop.permute.xlu0 %994
      %996 = vrot.lane.b32.xlu0 %v903, 8
      %v997 = vpop.permute.xlu0 %996
      %998 = vrot.lane.b32.xlu0 %v904, 8
      %v999 = vpop.permute.xlu0 %998
      %1000 = vrot.lane.b32.xlu0 %v905, 8
      %v1001 = vpop.permute.xlu0 %1000
      %vm1034 = vcmask 97344
      %1035 = vst.msk [vmem:[#allocation3] sm:$0xff] %vm1034, %v939
      %1036 = vst.msk [vmem:[#allocation3 + $0x8] sm:$0xff] %vm1034, %v941
      %1037 = vst.msk [vmem:[#allocation3 + $0x10] sm:$0xff] %vm1034, %v943
      %1038 = vst.msk [vmem:[#allocation3 + $0x18] sm:$0xff] %vm1034, %v945
      %1039 = vst.msk [vmem:[#allocation3 + $0x20] sm:$0xff] %vm1034, %v947
      %1040 = vst.msk [vmem:[#allocation3 + $0x28] sm:$0xff] %vm1034, %v949
      %1041 = vst.msk [vmem:[#allocation3 + $0x30] sm:$0xff] %vm1034, %v951
      %1042 = vst.msk [vmem:[#allocation3 + $0x38] sm:$0xff] %vm1034, %v953
      %1043 = vst.msk [vmem:[#allocation3 + $0x40] sm:$0xff] %vm1034, %v955
      %1044 = vst.msk [vmem:[#allocation3 + $0x48] sm:$0xff] %vm1034, %v957
      %1045 = vst.msk [vmem:[#allocation3 + $0x50] sm:$0xff] %vm1034, %v959
      %1046 = vst.msk [vmem:[#allocation3 + $0x58] sm:$0xff] %vm1034, %v961
      %1047 = vst.msk [vmem:[#allocation3 + $0x60] sm:$0xff] %vm1034, %v963
      %1048 = vst.msk [vmem:[#allocation3 + $0x68] sm:$0xff] %vm1034, %v965
      %1049 = vst.msk [vmem:[#allocation3 + $0x70] sm:$0xff] %vm1034, %v967
      %1050 = vst.msk [vmem:[#allocation3 + $0x78] sm:$0xff] %vm1034, %v969
      %1051 = vst.msk [vmem:[#allocation3 + $0x80] sm:$0xff] %vm1034, %v971
      %1052 = vst.msk [vmem:[#allocation3 + $0x88] sm:$0xff] %vm1034, %v973
      %1053 = vst.msk [vmem:[#allocation3 + $0x90] sm:$0xff] %vm1034, %v975
      %1054 = vst.msk [vmem:[#allocation3 + $0x98] sm:$0xff] %vm1034, %v977
      %1055 = vst.msk [vmem:[#allocation3 + $0xa0] sm:$0xff] %vm1034, %v979
      %1056 = vst.msk [vmem:[#allocation3 + $0xa8] sm:$0xff] %vm1034, %v981
      %1057 = vst.msk [vmem:[#allocation3 + $0xb0] sm:$0xff] %vm1034, %v983
      %1058 = vst.msk [vmem:[#allocation3 + $0xb8] sm:$0xff] %vm1034, %v985
      %1059 = vst.msk [vmem:[#allocation3 + $0xc0] sm:$0xff] %vm1034, %v987
      %1060 = vst.msk [vmem:[#allocation3 + $0xc8] sm:$0xff] %vm1034, %v989
      %1061 = vst.msk [vmem:[#allocation3 + $0xd0] sm:$0xff] %vm1034, %v991
      %1062 = vst.msk [vmem:[#allocation3 + $0xd8] sm:$0xff] %vm1034, %v993
      %1063 = vst.msk [vmem:[#allocation3 + $0xe0] sm:$0xff] %vm1034, %v995
      %1064 = vst.msk [vmem:[#allocation3 + $0xe8] sm:$0xff] %vm1034, %v997
      %1065 = vst.msk [vmem:[#allocation3 + $0xf0] sm:$0xff] %vm1034, %v999
      %1066 = vst.msk [vmem:[#allocation3 + $0xf8] sm:$0xff] %vm1034, %v1001
      %v1067 = vld [vmem:[%s396] sm:$0xff]
      %v1068 = vld [vmem:[%s396 + $0x8] sm:$0xff]
      %v1069 = vld [vmem:[%s396 + $0x18] sm:$0xff]
      %v1070 = vld [vmem:[%s396 + $0x20] sm:$0xff]
      %v1071 = vld [vmem:[%s396 + $0x30] sm:$0xff]
      %v1072 = vld [vmem:[%s396 + $0x38] sm:$0xff]
      %v1073 = vld [vmem:[%s396 + $0x48] sm:$0xff]
      %v1074 = vld [vmem:[%s396 + $0x50] sm:$0xff]
      %v1075 = vld [vmem:[%s396 + $0x60] sm:$0xff]
      %v1076 = vld [vmem:[%s396 + $0x68] sm:$0xff]
      %v1077 = vld [vmem:[%s396 + $0x78] sm:$0xff]
      %v1078 = vld [vmem:[%s396 + $0x80] sm:$0xff]
      %v1079 = vld [vmem:[%s396 + $0x90] sm:$0xff]
      %v1080 = vld [vmem:[%s396 + $0x98] sm:$0xff]
      %v1081 = vld [vmem:[%s396 + $0xa8] sm:$0xff]
      %v1082 = vld [vmem:[%s396 + $0xb0] sm:$0xff]
      %v1083 = vld [vmem:[%s396 + $0xc0] sm:$0xff]
      %v1084 = vld [vmem:[%s396 + $0xc8] sm:$0xff]
      %v1085 = vld [vmem:[%s396 + $0xd8] sm:$0xff]
      %v1086 = vld [vmem:[%s396 + $0xe0] sm:$0xff]
      %v1087 = vld [vmem:[%s396 + $0xf0] sm:$0xff]
      %v1088 = vld [vmem:[%s396 + $0xf8] sm:$0xff]
      %v1089 = vld [vmem:[%s396 + $0x108] sm:$0xff]
      %v1090 = vld [vmem:[%s396 + $0x110] sm:$0xff]
      %v1091 = vld [vmem:[%s396 + $0x120] sm:$0xff]
      %v1092 = vld [vmem:[%s396 + $0x128] sm:$0xff]
      %v1093 = vld [vmem:[%s396 + $0x138] sm:$0xff]
      %v1094 = vld [vmem:[%s396 + $0x140] sm:$0xff]
      %v1095 = vld [vmem:[%s396 + $0x150] sm:$0xff]
      %v1096 = vld [vmem:[%s396 + $0x158] sm:$0xff]
      %v1097 = vld [vmem:[%s396 + $0x168] sm:$0xff]
      %v1098 = vld [vmem:[%s396 + $0x170] sm:$0xff]
      %1131 = vrot.lane.b32.xlu0 %v1067, 12
      %v1132 = vpop.permute.xlu0 %1131
      %1133 = vrot.lane.b32.xlu0 %v1068, 12
      %v1134 = vpop.permute.xlu0 %1133
      %1135 = vrot.lane.b32.xlu0 %v1069, 12
      %v1136 = vpop.permute.xlu0 %1135
      %1137 = vrot.lane.b32.xlu0 %v1070, 12
      %v1138 = vpop.permute.xlu0 %1137
      %1139 = vrot.lane.b32.xlu0 %v1071, 12
      %v1140 = vpop.permute.xlu0 %1139
      %1141 = vrot.lane.b32.xlu0 %v1072, 12
      %v1142 = vpop.permute.xlu0 %1141
      %1143 = vrot.lane.b32.xlu0 %v1073, 12
      %v1144 = vpop.permute.xlu0 %1143
      %1145 = vrot.lane.b32.xlu0 %v1074, 12
      %v1146 = vpop.permute.xlu0 %1145
      %1147 = vrot.lane.b32.xlu0 %v1075, 12
      %v1148 = vpop.permute.xlu0 %1147
      %1149 = vrot.lane.b32.xlu0 %v1076, 12
      %v1150 = vpop.permute.xlu0 %1149
      %1151 = vrot.lane.b32.xlu0 %v1077, 12
      %v1152 = vpop.permute.xlu0 %1151
      %1153 = vrot.lane.b32.xlu0 %v1078, 12
      %v1154 = vpop.permute.xlu0 %1153
      %1155 = vrot.lane.b32.xlu0 %v1079, 12
      %v1156 = vpop.permute.xlu0 %1155
      %1157 = vrot.lane.b32.xlu0 %v1080, 12
      %v1158 = vpop.permute.xlu0 %1157
      %1159 = vrot.lane.b32.xlu0 %v1081, 12
      %v1160 = vpop.permute.xlu0 %1159
      %1161 = vrot.lane.b32.xlu0 %v1082, 12
      %v1162 = vpop.permute.xlu0 %1161
      %1163 = vrot.lane.b32.xlu0 %v1083, 12
      %v1164 = vpop.permute.xlu0 %1163
      %1165 = vrot.lane.b32.xlu0 %v1084, 12
      %v1166 = vpop.permute.xlu0 %1165
      %1167 = vrot.lane.b32.xlu0 %v1085, 12
      %v1168 = vpop.permute.xlu0 %1167
      %1169 = vrot.lane.b32.xlu0 %v1086, 12
      %v1170 = vpop.permute.xlu0 %1169
      %1171 = vrot.lane.b32.xlu0 %v1087, 12
      %v1172 = vpop.permute.xlu0 %1171
      %1173 = vrot.lane.b32.xlu0 %v1088, 12
      %v1174 = vpop.permute.xlu0 %1173
      %1175 = vrot.lane.b32.xlu0 %v1089, 12
      %v1176 = vpop.permute.xlu0 %1175
      %1177 = vrot.lane.b32.xlu0 %v1090, 12
      %v1178 = vpop.permute.xlu0 %1177
      %1179 = vrot.lane.b32.xlu0 %v1091, 12
      %v1180 = vpop.permute.xlu0 %1179
      %1181 = vrot.lane.b32.xlu0 %v1092, 12
      %v1182 = vpop.permute.xlu0 %1181
      %1183 = vrot.lane.b32.xlu0 %v1093, 12
      %v1184 = vpop.permute.xlu0 %1183
      %1185 = vrot.lane.b32.xlu0 %v1094, 12
      %v1186 = vpop.permute.xlu0 %1185
      %1187 = vrot.lane.b32.xlu0 %v1095, 12
      %v1188 = vpop.permute.xlu0 %1187
      %1189 = vrot.lane.b32.xlu0 %v1096, 12
      %v1190 = vpop.permute.xlu0 %1189
      %1191 = vrot.lane.b32.xlu0 %v1097, 12
      %v1192 = vpop.permute.xlu0 %1191
      %1193 = vrot.lane.b32.xlu0 %v1098, 12
      %v1194 = vpop.permute.xlu0 %1193
      %vm1227 = vcmask 130144
      %1228 = vst.msk [vmem:[#allocation3] sm:$0xff] %vm1227, %v1132
      %1229 = vst.msk [vmem:[#allocation3 + $0x8] sm:$0xff] %vm1227, %v1134
      %1230 = vst.msk [vmem:[#allocation3 + $0x10] sm:$0xff] %vm1227, %v1136
      %1231 = vst.msk [vmem:[#allocation3 + $0x18] sm:$0xff] %vm1227, %v1138
      %1232 = vst.msk [vmem:[#allocation3 + $0x20] sm:$0xff] %vm1227, %v1140
      %1233 = vst.msk [vmem:[#allocation3 + $0x28] sm:$0xff] %vm1227, %v1142
      %1234 = vst.msk [vmem:[#allocation3 + $0x30] sm:$0xff] %vm1227, %v1144
      %1235 = vst.msk [vmem:[#allocation3 + $0x38] sm:$0xff] %vm1227, %v1146
      %1236 = vst.msk [vmem:[#allocation3 + $0x40] sm:$0xff] %vm1227, %v1148
      %1237 = vst.msk [vmem:[#allocation3 + $0x48] sm:$0xff] %vm1227, %v1150
      %1238 = vst.msk [vmem:[#allocation3 + $0x50] sm:$0xff] %vm1227, %v1152
      %1239 = vst.msk [vmem:[#allocation3 + $0x58] sm:$0xff] %vm1227, %v1154
      %1240 = vst.msk [vmem:[#allocation3 + $0x60] sm:$0xff] %vm1227, %v1156
      %1241 = vst.msk [vmem:[#allocation3 + $0x68] sm:$0xff] %vm1227, %v1158
      %1242 = vst.msk [vmem:[#allocation3 + $0x70] sm:$0xff] %vm1227, %v1160
      %1243 = vst.msk [vmem:[#allocation3 + $0x78] sm:$0xff] %vm1227, %v1162
      %1244 = vst.msk [vmem:[#allocation3 + $0x80] sm:$0xff] %vm1227, %v1164
      %1245 = vst.msk [vmem:[#allocation3 + $0x88] sm:$0xff] %vm1227, %v1166
      %1246 = vst.msk [vmem:[#allocation3 + $0x90] sm:$0xff] %vm1227, %v1168
      %1247 = vst.msk [vmem:[#allocation3 + $0x98] sm:$0xff] %vm1227, %v1170
      %1248 = vst.msk [vmem:[#allocation3 + $0xa0] sm:$0xff] %vm1227, %v1172
      %1249 = vst.msk [vmem:[#allocation3 + $0xa8] sm:$0xff] %vm1227, %v1174
      %1250 = vst.msk [vmem:[#allocation3 + $0xb0] sm:$0xff] %vm1227, %v1176
      %1251 = vst.msk [vmem:[#allocation3 + $0xb8] sm:$0xff] %vm1227, %v1178
      %1252 = vst.msk [vmem:[#allocation3 + $0xc0] sm:$0xff] %vm1227, %v1180
      %1253 = vst.msk [vmem:[#allocation3 + $0xc8] sm:$0xff] %vm1227, %v1182
      %1254 = vst.msk [vmem:[#allocation3 + $0xd0] sm:$0xff] %vm1227, %v1184
      %1255 = vst.msk [vmem:[#allocation3 + $0xd8] sm:$0xff] %vm1227, %v1186
      %1256 = vst.msk [vmem:[#allocation3 + $0xe0] sm:$0xff] %vm1227, %v1188
      %1257 = vst.msk [vmem:[#allocation3 + $0xe8] sm:$0xff] %vm1227, %v1190
      %1258 = vst.msk [vmem:[#allocation3 + $0xf0] sm:$0xff] %vm1227, %v1192
      %1259 = vst.msk [vmem:[#allocation3 + $0xf8] sm:$0xff] %vm1227, %v1194
      %v1260 = vld [vmem:[%s396 + $0x1] sm:$0xff]
      %v1261 = vld [vmem:[%s396 + $0x9] sm:$0xff]
      %v1262 = vld [vmem:[%s396 + $0x19] sm:$0xff]
      %v1263 = vld [vmem:[%s396 + $0x21] sm:$0xff]
      %v1264 = vld [vmem:[%s396 + $0x31] sm:$0xff]
      %v1265 = vld [vmem:[%s396 + $0x39] sm:$0xff]
      %v1266 = vld [vmem:[%s396 + $0x49] sm:$0xff]
      %v1267 = vld [vmem:[%s396 + $0x51] sm:$0xff]
      %v1268 = vld [vmem:[%s396 + $0x61] sm:$0xff]
      %v1269 = vld [vmem:[%s396 + $0x69] sm:$0xff]
      %v1270 = vld [vmem:[%s396 + $0x79] sm:$0xff]
      %v1271 = vld [vmem:[%s396 + $0x81] sm:$0xff]
      %v1272 = vld [vmem:[%s396 + $0x91] sm:$0xff]
      %v1273 = vld [vmem:[%s396 + $0x99] sm:$0xff]
      %v1274 = vld [vmem:[%s396 + $0xa9] sm:$0xff]
      %v1275 = vld [vmem:[%s396 + $0xb1] sm:$0xff]
      %v1276 = vld [vmem:[%s396 + $0xc1] sm:$0xff]
      %v1277 = vld [vmem:[%s396 + $0xc9] sm:$0xff]
      %v1278 = vld [vmem:[%s396 + $0xd9] sm:$0xff]
      %v1279 = vld [vmem:[%s396 + $0xe1] sm:$0xff]
      %v1280 = vld [vmem:[%s396 + $0xf1] sm:$0xff]
      %v1281 = vld [vmem:[%s396 + $0xf9] sm:$0xff]
      %v1282 = vld [vmem:[%s396 + $0x109] sm:$0xff]
      %v1283 = vld [vmem:[%s396 + $0x111] sm:$0xff]
      %v1284 = vld [vmem:[%s396 + $0x121] sm:$0xff]
      %v1285 = vld [vmem:[%s396 + $0x129] sm:$0xff]
      %v1286 = vld [vmem:[%s396 + $0x139] sm:$0xff]
      %v1287 = vld [vmem:[%s396 + $0x141] sm:$0xff]
      %v1288 = vld [vmem:[%s396 + $0x151] sm:$0xff]
      %v1289 = vld [vmem:[%s396 + $0x159] sm:$0xff]
      %v1290 = vld [vmem:[%s396 + $0x169] sm:$0xff]
      %v1291 = vld [vmem:[%s396 + $0x171] sm:$0xff]
      %1324 = vrot.lane.b32.xlu0 %v1260, 16
      %v1325 = vpop.permute.xlu0 %1324
      %1326 = vrot.lane.b32.xlu0 %v1261, 16
      %v1327 = vpop.permute.xlu0 %1326
      %1328 = vrot.lane.b32.xlu0 %v1262, 16
      %v1329 = vpop.permute.xlu0 %1328
      %1330 = vrot.lane.b32.xlu0 %v1263, 16
      %v1331 = vpop.permute.xlu0 %1330
      %1332 = vrot.lane.b32.xlu0 %v1264, 16
      %v1333 = vpop.permute.xlu0 %1332
      %1334 = vrot.lane.b32.xlu0 %v1265, 16
      %v1335 = vpop.permute.xlu0 %1334
      %1336 = vrot.lane.b32.xlu0 %v1266, 16
      %v1337 = vpop.permute.xlu0 %1336
      %1338 = vrot.lane.b32.xlu0 %v1267, 16
      %v1339 = vpop.permute.xlu0 %1338
      %1340 = vrot.lane.b32.xlu0 %v1268, 16
      %v1341 = vpop.permute.xlu0 %1340
      %1342 = vrot.lane.b32.xlu0 %v1269, 16
      %v1343 = vpop.permute.xlu0 %1342
      %1344 = vrot.lane.b32.xlu0 %v1270, 16
      %v1345 = vpop.permute.xlu0 %1344
      %1346 = vrot.lane.b32.xlu0 %v1271, 16
      %v1347 = vpop.permute.xlu0 %1346
      %1348 = vrot.lane.b32.xlu0 %v1272, 16
      %v1349 = vpop.permute.xlu0 %1348
      %1350 = vrot.lane.b32.xlu0 %v1273, 16
      %v1351 = vpop.permute.xlu0 %1350
      %1352 = vrot.lane.b32.xlu0 %v1274, 16
      %v1353 = vpop.permute.xlu0 %1352
      %1354 = vrot.lane.b32.xlu0 %v1275, 16
      %v1355 = vpop.permute.xlu0 %1354
      %1356 = vrot.lane.b32.xlu0 %v1276, 16
      %v1357 = vpop.permute.xlu0 %1356
      %1358 = vrot.lane.b32.xlu0 %v1277, 16
      %v1359 = vpop.permute.xlu0 %1358
      %1360 = vrot.lane.b32.xlu0 %v1278, 16
      %v1361 = vpop.permute.xlu0 %1360
      %1362 = vrot.lane.b32.xlu0 %v1279, 16
      %v1363 = vpop.permute.xlu0 %1362
      %1364 = vrot.lane.b32.xlu0 %v1280, 16
      %v1365 = vpop.permute.xlu0 %1364
      %1366 = vrot.lane.b32.xlu0 %v1281, 16
      %v1367 = vpop.permute.xlu0 %1366
      %1368 = vrot.lane.b32.xlu0 %v1282, 16
      %v1369 = vpop.permute.xlu0 %1368
      %1370 = vrot.lane.b32.xlu0 %v1283, 16
      %v1371 = vpop.permute.xlu0 %1370
      %1372 = vrot.lane.b32.xlu0 %v1284, 16
      %v1373 = vpop.permute.xlu0 %1372
      %1374 = vrot.lane.b32.xlu0 %v1285, 16
      %v1375 = vpop.permute.xlu0 %1374
      %1376 = vrot.lane.b32.xlu0 %v1286, 16
      %v1377 = vpop.permute.xlu0 %1376
      %1378 = vrot.lane.b32.xlu0 %v1287, 16
      %v1379 = vpop.permute.xlu0 %1378
      %1380 = vrot.lane.b32.xlu0 %v1288, 16
      %v1381 = vpop.permute.xlu0 %1380
      %1382 = vrot.lane.b32.xlu0 %v1289, 16
      %v1383 = vpop.permute.xlu0 %1382
      %1384 = vrot.lane.b32.xlu0 %v1290, 16
      %v1385 = vpop.permute.xlu0 %1384
      %1386 = vrot.lane.b32.xlu0 %v1291, 16
      %v1387 = vpop.permute.xlu0 %1386
      %vm1420 = vcmask 162944
      %1421 = vst.msk [vmem:[#allocation3] sm:$0xff] %vm1420, %v1325
      %1422 = vst.msk [vmem:[#allocation3 + $0x8] sm:$0xff] %vm1420, %v1327
      %1423 = vst.msk [vmem:[#allocation3 + $0x10] sm:$0xff] %vm1420, %v1329
      %1424 = vst.msk [vmem:[#allocation3 + $0x18] sm:$0xff] %vm1420, %v1331
      %1425 = vst.msk [vmem:[#allocation3 + $0x20] sm:$0xff] %vm1420, %v1333
      %1426 = vst.msk [vmem:[#allocation3 + $0x28] sm:$0xff] %vm1420, %v1335
      %1427 = vst.msk [vmem:[#allocation3 + $0x30] sm:$0xff] %vm1420, %v1337
      %1428 = vst.msk [vmem:[#allocation3 + $0x38] sm:$0xff] %vm1420, %v1339
      %1429 = vst.msk [vmem:[#allocation3 + $0x40] sm:$0xff] %vm1420, %v1341
      %1430 = vst.msk [vmem:[#allocation3 + $0x48] sm:$0xff] %vm1420, %v1343
      %1431 = vst.msk [vmem:[#allocation3 + $0x50] sm:$0xff] %vm1420, %v1345
      %1432 = vst.msk [vmem:[#allocation3 + $0x58] sm:$0xff] %vm1420, %v1347
      %1433 = vst.msk [vmem:[#allocation3 + $0x60] sm:$0xff] %vm1420, %v1349
      %1434 = vst.msk [vmem:[#allocation3 + $0x68] sm:$0xff] %vm1420, %v1351
      %1435 = vst.msk [vmem:[#allocation3 + $0x70] sm:$0xff] %vm1420, %v1353
      %1436 = vst.msk [vmem:[#allocation3 + $0x78] sm:$0xff] %vm1420, %v1355
      %1437 = vst.msk [vmem:[#allocation3 + $0x80] sm:$0xff] %vm1420, %v1357
      %1438 = vst.msk [vmem:[#allocation3 + $0x88] sm:$0xff] %vm1420, %v1359
      %1439 = vst.msk [vmem:[#allocation3 + $0x90] sm:$0xff] %vm1420, %v1361
      %1440 = vst.msk [vmem:[#allocation3 + $0x98] sm:$0xff] %vm1420, %v1363
      %1441 = vst.msk [vmem:[#allocation3 + $0xa0] sm:$0xff] %vm1420, %v1365
      %1442 = vst.msk [vmem:[#allocation3 + $0xa8] sm:$0xff] %vm1420, %v1367
      %1443 = vst.msk [vmem:[#allocation3 + $0xb0] sm:$0xff] %vm1420, %v1369
      %1444 = vst.msk [vmem:[#allocation3 + $0xb8] sm:$0xff] %vm1420, %v1371
      %1445 = vst.msk [vmem:[#allocation3 + $0xc0] sm:$0xff] %vm1420, %v1373
      %1446 = vst.msk [vmem:[#allocation3 + $0xc8] sm:$0xff] %vm1420, %v1375
      %1447 = vst.msk [vmem:[#allocation3 + $0xd0] sm:$0xff] %vm1420, %v1377
      %1448 = vst.msk [vmem:[#allocation3 + $0xd8] sm:$0xff] %vm1420, %v1379
      %1449 = vst.msk [vmem:[#allocation3 + $0xe0] sm:$0xff] %vm1420, %v1381
      %1450 = vst.msk [vmem:[#allocation3 + $0xe8] sm:$0xff] %vm1420, %v1383
      %1451 = vst.msk [vmem:[#allocation3 + $0xf0] sm:$0xff] %vm1420, %v1385
      %1452 = vst.msk [vmem:[#allocation3 + $0xf8] sm:$0xff] %vm1420, %v1387
      %v1453 = vld [vmem:[%s396 + $0x2] sm:$0xff]
      %v1454 = vld [vmem:[%s396 + $0xa] sm:$0xff]
      %v1455 = vld [vmem:[%s396 + $0x1a] sm:$0xff]
      %v1456 = vld [vmem:[%s396 + $0x22] sm:$0xff]
      %v1457 = vld [vmem:[%s396 + $0x32] sm:$0xff]
      %v1458 = vld [vmem:[%s396 + $0x3a] sm:$0xff]
      %v1459 = vld [vmem:[%s396 + $0x4a] sm:$0xff]
      %v1460 = vld [vmem:[%s396 + $0x52] sm:$0xff]
      %v1461 = vld [vmem:[%s396 + $0x62] sm:$0xff]
      %v1462 = vld [vmem:[%s396 + $0x6a] sm:$0xff]
      %v1463 = vld [vmem:[%s396 + $0x7a] sm:$0xff]
      %v1464 = vld [vmem:[%s396 + $0x82] sm:$0xff]
      %v1465 = vld [vmem:[%s396 + $0x92] sm:$0xff]
      %v1466 = vld [vmem:[%s396 + $0x9a] sm:$0xff]
      %v1467 = vld [vmem:[%s396 + $0xaa] sm:$0xff]
      %v1468 = vld [vmem:[%s396 + $0xb2] sm:$0xff]
      %v1469 = vld [vmem:[%s396 + $0xc2] sm:$0xff]
      %v1470 = vld [vmem:[%s396 + $0xca] sm:$0xff]
      %v1471 = vld [vmem:[%s396 + $0xda] sm:$0xff]
      %v1472 = vld [vmem:[%s396 + $0xe2] sm:$0xff]
      %v1473 = vld [vmem:[%s396 + $0xf2] sm:$0xff]
      %v1474 = vld [vmem:[%s396 + $0xfa] sm:$0xff]
      %v1475 = vld [vmem:[%s396 + $0x10a] sm:$0xff]
      %v1476 = vld [vmem:[%s396 + $0x112] sm:$0xff]
      %v1477 = vld [vmem:[%s396 + $0x122] sm:$0xff]
      %v1478 = vld [vmem:[%s396 + $0x12a] sm:$0xff]
      %v1479 = vld [vmem:[%s396 + $0x13a] sm:$0xff]
      %v1480 = vld [vmem:[%s396 + $0x142] sm:$0xff]
      %v1481 = vld [vmem:[%s396 + $0x152] sm:$0xff]
      %v1482 = vld [vmem:[%s396 + $0x15a] sm:$0xff]
      %v1483 = vld [vmem:[%s396 + $0x16a] sm:$0xff]
      %v1484 = vld [vmem:[%s396 + $0x172] sm:$0xff]
      %1517 = vrot.lane.b32.xlu0 %v1453, 20
      %v1518 = vpop.permute.xlu0 %1517
      %1519 = vrot.lane.b32.xlu0 %v1454, 20
      %v1520 = vpop.permute.xlu0 %1519
      %1521 = vrot.lane.b32.xlu0 %v1455, 20
      %v1522 = vpop.permute.xlu0 %1521
      %1523 = vrot.lane.b32.xlu0 %v1456, 20
      %v1524 = vpop.permute.xlu0 %1523
      %1525 = vrot.lane.b32.xlu0 %v1457, 20
      %v1526 = vpop.permute.xlu0 %1525
      %1527 = vrot.lane.b32.xlu0 %v1458, 20
      %v1528 = vpop.permute.xlu0 %1527
      %1529 = vrot.lane.b32.xlu0 %v1459, 20
      %v1530 = vpop.permute.xlu0 %1529
      %1531 = vrot.lane.b32.xlu0 %v1460, 20
      %v1532 = vpop.permute.xlu0 %1531
      %1533 = vrot.lane.b32.xlu0 %v1461, 20
      %v1534 = vpop.permute.xlu0 %1533
      %1535 = vrot.lane.b32.xlu0 %v1462, 20
      %v1536 = vpop.permute.xlu0 %1535
      %1537 = vrot.lane.b32.xlu0 %v1463, 20
      %v1538 = vpop.permute.xlu0 %1537
      %1539 = vrot.lane.b32.xlu0 %v1464, 20
      %v1540 = vpop.permute.xlu0 %1539
      %1541 = vrot.lane.b32.xlu0 %v1465, 20
      %v1542 = vpop.permute.xlu0 %1541
      %1543 = vrot.lane.b32.xlu0 %v1466, 20
      %v1544 = vpop.permute.xlu0 %1543
      %1545 = vrot.lane.b32.xlu0 %v1467, 20
      %v1546 = vpop.permute.xlu0 %1545
      %1547 = vrot.lane.b32.xlu0 %v1468, 20
      %v1548 = vpop.permute.xlu0 %1547
      %1549 = vrot.lane.b32.xlu0 %v1469, 20
      %v1550 = vpop.permute.xlu0 %1549
      %1551 = vrot.lane.b32.xlu0 %v1470, 20
      %v1552 = vpop.permute.xlu0 %1551
      %1553 = vrot.lane.b32.xlu0 %v1471, 20
      %v1554 = vpop.permute.xlu0 %1553
      %1555 = vrot.lane.b32.xlu0 %v1472, 20
      %v1556 = vpop.permute.xlu0 %1555
      %1557 = vrot.lane.b32.xlu0 %v1473, 20
      %v1558 = vpop.permute.xlu0 %1557
      %1559 = vrot.lane.b32.xlu0 %v1474, 20
      %v1560 = vpop.permute.xlu0 %1559
      %1561 = vrot.lane.b32.xlu0 %v1475, 20
      %v1562 = vpop.permute.xlu0 %1561
      %1563 = vrot.lane.b32.xlu0 %v1476, 20
      %v1564 = vpop.permute.xlu0 %1563
      %1565 = vrot.lane.b32.xlu0 %v1477, 20
      %v1566 = vpop.permute.xlu0 %1565
      %1567 = vrot.lane.b32.xlu0 %v1478, 20
      %v1568 = vpop.permute.xlu0 %1567
      %1569 = vrot.lane.b32.xlu0 %v1479, 20
      %v1570 = vpop.permute.xlu0 %1569
      %1571 = vrot.lane.b32.xlu0 %v1480, 20
      %v1572 = vpop.permute.xlu0 %1571
      %1573 = vrot.lane.b32.xlu0 %v1481, 20
      %v1574 = vpop.permute.xlu0 %1573
      %1575 = vrot.lane.b32.xlu0 %v1482, 20
      %v1576 = vpop.permute.xlu0 %1575
      %1577 = vrot.lane.b32.xlu0 %v1483, 20
      %v1578 = vpop.permute.xlu0 %1577
      %1579 = vrot.lane.b32.xlu0 %v1484, 20
      %v1580 = vpop.permute.xlu0 %1579
      %vm1613 = vcmask 195744
      %1614 = vst.msk [vmem:[#allocation3] sm:$0xff] %vm1613, %v1518
      %1615 = vst.msk [vmem:[#allocation3 + $0x8] sm:$0xff] %vm1613, %v1520
      %1616 = vst.msk [vmem:[#allocation3 + $0x10] sm:$0xff] %vm1613, %v1522
      %1617 = vst.msk [vmem:[#allocation3 + $0x18] sm:$0xff] %vm1613, %v1524
      %1618 = vst.msk [vmem:[#allocation3 + $0x20] sm:$0xff] %vm1613, %v1526
      %1619 = vst.msk [vmem:[#allocation3 + $0x28] sm:$0xff] %vm1613, %v1528
      %1620 = vst.msk [vmem:[#allocation3 + $0x30] sm:$0xff] %vm1613, %v1530
      %1621 = vst.msk [vmem:[#allocation3 + $0x38] sm:$0xff] %vm1613, %v1532
      %1622 = vst.msk [vmem:[#allocation3 + $0x40] sm:$0xff] %vm1613, %v1534
      %1623 = vst.msk [vmem:[#allocation3 + $0x48] sm:$0xff] %vm1613, %v1536
      %1624 = vst.msk [vmem:[#allocation3 + $0x50] sm:$0xff] %vm1613, %v1538
      %1625 = vst.msk [vmem:[#allocation3 + $0x58] sm:$0xff] %vm1613, %v1540
      %1626 = vst.msk [vmem:[#allocation3 + $0x60] sm:$0xff] %vm1613, %v1542
      %1627 = vst.msk [vmem:[#allocation3 + $0x68] sm:$0xff] %vm1613, %v1544
      %1628 = vst.msk [vmem:[#allocation3 + $0x70] sm:$0xff] %vm1613, %v1546
      %1629 = vst.msk [vmem:[#allocation3 + $0x78] sm:$0xff] %vm1613, %v1548
      %1630 = vst.msk [vmem:[#allocation3 + $0x80] sm:$0xff] %vm1613, %v1550
      %1631 = vst.msk [vmem:[#allocation3 + $0x88] sm:$0xff] %vm1613, %v1552
      %1632 = vst.msk [vmem:[#allocation3 + $0x90] sm:$0xff] %vm1613, %v1554
      %1633 = vst.msk [vmem:[#allocation3 + $0x98] sm:$0xff] %vm1613, %v1556
      %1634 = vst.msk [vmem:[#allocation3 + $0xa0] sm:$0xff] %vm1613, %v1558
      %1635 = vst.msk [vmem:[#allocation3 + $0xa8] sm:$0xff] %vm1613, %v1560
      %1636 = vst.msk [vmem:[#allocation3 + $0xb0] sm:$0xff] %vm1613, %v1562
      %1637 = vst.msk [vmem:[#allocation3 + $0xb8] sm:$0xff] %vm1613, %v1564
      %1638 = vst.msk [vmem:[#allocation3 + $0xc0] sm:$0xff] %vm1613, %v1566
      %1639 = vst.msk [vmem:[#allocation3 + $0xc8] sm:$0xff] %vm1613, %v1568
      %1640 = vst.msk [vmem:[#allocation3 + $0xd0] sm:$0xff] %vm1613, %v1570
      %1641 = vst.msk [vmem:[#allocation3 + $0xd8] sm:$0xff] %vm1613, %v1572
      %1642 = vst.msk [vmem:[#allocation3 + $0xe0] sm:$0xff] %vm1613, %v1574
      %1643 = vst.msk [vmem:[#allocation3 + $0xe8] sm:$0xff] %vm1613, %v1576
      %1644 = vst.msk [vmem:[#allocation3 + $0xf0] sm:$0xff] %vm1613, %v1578
      %1645 = vst.msk [vmem:[#allocation3 + $0xf8] sm:$0xff] %vm1613, %v1580
      %s1646 = scalar_lea.vmem [#allocation2], 48
      %v1647 = vld [vmem:[%s1646] sm:$0xff]
      %v1648 = vld [vmem:[%s1646 + $0x8] sm:$0xff]
      %v1649 = vld [vmem:[%s1646 + $0x18] sm:$0xff]
      %v1650 = vld [vmem:[%s1646 + $0x20] sm:$0xff]
      %v1651 = vld [vmem:[%s1646 + $0x30] sm:$0xff]
      %v1652 = vld [vmem:[%s1646 + $0x38] sm:$0xff]
      %v1653 = vld [vmem:[%s1646 + $0x48] sm:$0xff]
      %v1654 = vld [vmem:[%s1646 + $0x50] sm:$0xff]
      %v1655 = vld [vmem:[%s1646 + $0x60] sm:$0xff]
      %v1656 = vld [vmem:[%s1646 + $0x68] sm:$0xff]
      %v1657 = vld [vmem:[%s1646 + $0x78] sm:$0xff]
      %v1658 = vld [vmem:[%s1646 + $0x80] sm:$0xff]
      %v1659 = vld [vmem:[%s1646 + $0x90] sm:$0xff]
      %v1660 = vld [vmem:[%s1646 + $0x98] sm:$0xff]
      %v1661 = vld [vmem:[%s1646 + $0xa8] sm:$0xff]
      %v1662 = vld [vmem:[%s1646 + $0xb0] sm:$0xff]
      %v1663 = vld [vmem:[%s1646 + $0xc0] sm:$0xff]
      %v1664 = vld [vmem:[%s1646 + $0xc8] sm:$0xff]
      %v1665 = vld [vmem:[%s1646 + $0xd8] sm:$0xff]
      %v1666 = vld [vmem:[%s1646 + $0xe0] sm:$0xff]
      %v1667 = vld [vmem:[%s1646 + $0xf0] sm:$0xff]
      %v1668 = vld [vmem:[%s1646 + $0xf8] sm:$0xff]
      %v1669 = vld [vmem:[%s1646 + $0x108] sm:$0xff]
      %v1670 = vld [vmem:[%s1646 + $0x110] sm:$0xff]
      %v1671 = vld [vmem:[%s1646 + $0x120] sm:$0xff]
      %v1672 = vld [vmem:[%s1646 + $0x128] sm:$0xff]
      %v1673 = vld [vmem:[%s1646 + $0x138] sm:$0xff]
      %v1674 = vld [vmem:[%s1646 + $0x140] sm:$0xff]
      %v1675 = vld [vmem:[%s1646 + $0x150] sm:$0xff]
      %v1676 = vld [vmem:[%s1646 + $0x158] sm:$0xff]
      %v1677 = vld [vmem:[%s1646 + $0x168] sm:$0xff]
      %v1678 = vld [vmem:[%s1646 + $0x170] sm:$0xff]
      %1711 = vrot.lane.b32.xlu0 %v1647, 24
      %v1712 = vpop.permute.xlu0 %1711
      %1713 = vrot.lane.b32.xlu0 %v1648, 24
      %v1714 = vpop.permute.xlu0 %1713
      %1715 = vrot.lane.b32.xlu0 %v1649, 24
      %v1716 = vpop.permute.xlu0 %1715
      %1717 = vrot.lane.b32.xlu0 %v1650, 24
      %v1718 = vpop.permute.xlu0 %1717
      %1719 = vrot.lane.b32.xlu0 %v1651, 24
      %v1720 = vpop.permute.xlu0 %1719
      %1721 = vrot.lane.b32.xlu0 %v1652, 24
      %v1722 = vpop.permute.xlu0 %1721
      %1723 = vrot.lane.b32.xlu0 %v1653, 24
      %v1724 = vpop.permute.xlu0 %1723
      %1725 = vrot.lane.b32.xlu0 %v1654, 24
      %v1726 = vpop.permute.xlu0 %1725
      %1727 = vrot.lane.b32.xlu0 %v1655, 24
      %v1728 = vpop.permute.xlu0 %1727
      %1729 = vrot.lane.b32.xlu0 %v1656, 24
      %v1730 = vpop.permute.xlu0 %1729
      %1731 = vrot.lane.b32.xlu0 %v1657, 24
      %v1732 = vpop.permute.xlu0 %1731
      %1733 = vrot.lane.b32.xlu0 %v1658, 24
      %v1734 = vpop.permute.xlu0 %1733
      %1735 = vrot.lane.b32.xlu0 %v1659, 24
      %v1736 = vpop.permute.xlu0 %1735
      %1737 = vrot.lane.b32.xlu0 %v1660, 24
      %v1738 = vpop.permute.xlu0 %1737
      %1739 = vrot.lane.b32.xlu0 %v1661, 24
      %v1740 = vpop.permute.xlu0 %1739
      %1741 = vrot.lane.b32.xlu0 %v1662, 24
      %v1742 = vpop.permute.xlu0 %1741
      %1743 = vrot.lane.b32.xlu0 %v1663, 24
      %v1744 = vpop.permute.xlu0 %1743
      %1745 = vrot.lane.b32.xlu0 %v1664, 24
      %v1746 = vpop.permute.xlu0 %1745
      %1747 = vrot.lane.b32.xlu0 %v1665, 24
      %v1748 = vpop.permute.xlu0 %1747
      %1749 = vrot.lane.b32.xlu0 %v1666, 24
      %v1750 = vpop.permute.xlu0 %1749
      %1751 = vrot.lane.b32.xlu0 %v1667, 24
      %v1752 = vpop.permute.xlu0 %1751
      %1753 = vrot.lane.b32.xlu0 %v1668, 24
      %v1754 = vpop.permute.xlu0 %1753
      %1755 = vrot.lane.b32.xlu0 %v1669, 24
      %v1756 = vpop.permute.xlu0 %1755
      %1757 = vrot.lane.b32.xlu0 %v1670, 24
      %v1758 = vpop.permute.xlu0 %1757
      %1759 = vrot.lane.b32.xlu0 %v1671, 24
      %v1760 = vpop.permute.xlu0 %1759
      %1761 = vrot.lane.b32.xlu0 %v1672, 24
      %v1762 = vpop.permute.xlu0 %1761
      %1763 = vrot.lane.b32.xlu0 %v1673, 24
      %v1764 = vpop.permute.xlu0 %1763
      %1765 = vrot.lane.b32.xlu0 %v1674, 24
      %v1766 = vpop.permute.xlu0 %1765
      %1767 = vrot.lane.b32.xlu0 %v1675, 24
      %v1768 = vpop.permute.xlu0 %1767
      %1769 = vrot.lane.b32.xlu0 %v1676, 24
      %v1770 = vpop.permute.xlu0 %1769
      %1771 = vrot.lane.b32.xlu0 %v1677, 24
      %v1772 = vpop.permute.xlu0 %1771
      %1773 = vrot.lane.b32.xlu0 %v1678, 24
      %v1774 = vpop.permute.xlu0 %1773
      %vm1807 = vcmask 228544
      %1808 = vst.msk [vmem:[#allocation3] sm:$0xff] %vm1807, %v1712
      %1809 = vst.msk [vmem:[#allocation3 + $0x8] sm:$0xff] %vm1807, %v1714
      %1810 = vst.msk [vmem:[#allocation3 + $0x10] sm:$0xff] %vm1807, %v1716
      %1811 = vst.msk [vmem:[#allocation3 + $0x18] sm:$0xff] %vm1807, %v1718
      %1812 = vst.msk [vmem:[#allocation3 + $0x20] sm:$0xff] %vm1807, %v1720
      %1813 = vst.msk [vmem:[#allocation3 + $0x28] sm:$0xff] %vm1807, %v1722
      %1814 = vst.msk [vmem:[#allocation3 + $0x30] sm:$0xff] %vm1807, %v1724
      %1815 = vst.msk [vmem:[#allocation3 + $0x38] sm:$0xff] %vm1807, %v1726
      %1816 = vst.msk [vmem:[#allocation3 + $0x40] sm:$0xff] %vm1807, %v1728
      %1817 = vst.msk [vmem:[#allocation3 + $0x48] sm:$0xff] %vm1807, %v1730
      %1818 = vst.msk [vmem:[#allocation3 + $0x50] sm:$0xff] %vm1807, %v1732
      %1819 = vst.msk [vmem:[#allocation3 + $0x58] sm:$0xff] %vm1807, %v1734
      %1820 = vst.msk [vmem:[#allocation3 + $0x60] sm:$0xff] %vm1807, %v1736
      %1821 = vst.msk [vmem:[#allocation3 + $0x68] sm:$0xff] %vm1807, %v1738
      %1822 = vst.msk [vmem:[#allocation3 + $0x70] sm:$0xff] %vm1807, %v1740
      %1823 = vst.msk [vmem:[#allocation3 + $0x78] sm:$0xff] %vm1807, %v1742
      %1824 = vst.msk [vmem:[#allocation3 + $0x80] sm:$0xff] %vm1807, %v1744
      %1825 = vst.msk [vmem:[#allocation3 + $0x88] sm:$0xff] %vm1807, %v1746
      %1826 = vst.msk [vmem:[#allocation3 + $0x90] sm:$0xff] %vm1807, %v1748
      %1827 = vst.msk [vmem:[#allocation3 + $0x98] sm:$0xff] %vm1807, %v1750
      %1828 = vst.msk [vmem:[#allocation3 + $0xa0] sm:$0xff] %vm1807, %v1752
      %1829 = vst.msk [vmem:[#allocation3 + $0xa8] sm:$0xff] %vm1807, %v1754
      %1830 = vst.msk [vmem:[#allocation3 + $0xb0] sm:$0xff] %vm1807, %v1756
      %1831 = vst.msk [vmem:[#allocation3 + $0xb8] sm:$0xff] %vm1807, %v1758
      %1832 = vst.msk [vmem:[#allocation3 + $0xc0] sm:$0xff] %vm1807, %v1760
      %1833 = vst.msk [vmem:[#allocation3 + $0xc8] sm:$0xff] %vm1807, %v1762
      %1834 = vst.msk [vmem:[#allocation3 + $0xd0] sm:$0xff] %vm1807, %v1764
      %1835 = vst.msk [vmem:[#allocation3 + $0xd8] sm:$0xff] %vm1807, %v1766
      %1836 = vst.msk [vmem:[#allocation3 + $0xe0] sm:$0xff] %vm1807, %v1768
      %1837 = vst.msk [vmem:[#allocation3 + $0xe8] sm:$0xff] %vm1807, %v1770
      %1838 = vst.msk [vmem:[#allocation3 + $0xf0] sm:$0xff] %vm1807, %v1772
      %1839 = vst.msk [vmem:[#allocation3 + $0xf8] sm:$0xff] %vm1807, %v1774
      %v1840 = vld [vmem:[%s1646 + $0x1] sm:$0xff]
      %v1841 = vld [vmem:[%s1646 + $0x9] sm:$0xff]
      %v1842 = vld [vmem:[%s1646 + $0x19] sm:$0xff]
      %v1843 = vld [vmem:[%s1646 + $0x21] sm:$0xff]
      %v1844 = vld [vmem:[%s1646 + $0x31] sm:$0xff]
      %v1845 = vld [vmem:[%s1646 + $0x39] sm:$0xff]
      %v1846 = vld [vmem:[%s1646 + $0x49] sm:$0xff]
      %v1847 = vld [vmem:[%s1646 + $0x51] sm:$0xff]
      %v1848 = vld [vmem:[%s1646 + $0x61] sm:$0xff]
      %v1849 = vld [vmem:[%s1646 + $0x69] sm:$0xff]
      %v1850 = vld [vmem:[%s1646 + $0x79] sm:$0xff]
      %v1851 = vld [vmem:[%s1646 + $0x81] sm:$0xff]
      %v1852 = vld [vmem:[%s1646 + $0x91] sm:$0xff]
      %v1853 = vld [vmem:[%s1646 + $0x99] sm:$0xff]
      %v1854 = vld [vmem:[%s1646 + $0xa9] sm:$0xff]
      %v1855 = vld [vmem:[%s1646 + $0xb1] sm:$0xff]
      %v1856 = vld [vmem:[%s1646 + $0xc1] sm:$0xff]
      %v1857 = vld [vmem:[%s1646 + $0xc9] sm:$0xff]
      %v1858 = vld [vmem:[%s1646 + $0xd9] sm:$0xff]
      %v1859 = vld [vmem:[%s1646 + $0xe1] sm:$0xff]
      %v1860 = vld [vmem:[%s1646 + $0xf1] sm:$0xff]
      %v1861 = vld [vmem:[%s1646 + $0xf9] sm:$0xff]
      %v1862 = vld [vmem:[%s1646 + $0x109] sm:$0xff]
      %v1863 = vld [vmem:[%s1646 + $0x111] sm:$0xff]
      %v1864 = vld [vmem:[%s1646 + $0x121] sm:$0xff]
      %v1865 = vld [vmem:[%s1646 + $0x129] sm:$0xff]
      %v1866 = vld [vmem:[%s1646 + $0x139] sm:$0xff]
      %v1867 = vld [vmem:[%s1646 + $0x141] sm:$0xff]
      %v1868 = vld [vmem:[%s1646 + $0x151] sm:$0xff]
      %v1869 = vld [vmem:[%s1646 + $0x159] sm:$0xff]
      %v1870 = vld [vmem:[%s1646 + $0x169] sm:$0xff]
      %v1871 = vld [vmem:[%s1646 + $0x171] sm:$0xff]
      %1904 = vrot.lane.b32.xlu0 %v1840, 28
      %v1905 = vpop.permute.xlu0 %1904
      %1906 = vrot.lane.b32.xlu0 %v1841, 28
      %v1907 = vpop.permute.xlu0 %1906
      %1908 = vrot.lane.b32.xlu0 %v1842, 28
      %v1909 = vpop.permute.xlu0 %1908
      %1910 = vrot.lane.b32.xlu0 %v1843, 28
      %v1911 = vpop.permute.xlu0 %1910
      %1912 = vrot.lane.b32.xlu0 %v1844, 28
      %v1913 = vpop.permute.xlu0 %1912
      %1914 = vrot.lane.b32.xlu0 %v1845, 28
      %v1915 = vpop.permute.xlu0 %1914
      %1916 = vrot.lane.b32.xlu0 %v1846, 28
      %v1917 = vpop.permute.xlu0 %1916
      %1918 = vrot.lane.b32.xlu0 %v1847, 28
      %v1919 = vpop.permute.xlu0 %1918
      %1920 = vrot.lane.b32.xlu0 %v1848, 28
      %v1921 = vpop.permute.xlu0 %1920
      %1922 = vrot.lane.b32.xlu0 %v1849, 28
      %v1923 = vpop.permute.xlu0 %1922
      %1924 = vrot.lane.b32.xlu0 %v1850, 28
      %v1925 = vpop.permute.xlu0 %1924
      %1926 = vrot.lane.b32.xlu0 %v1851, 28
      %v1927 = vpop.permute.xlu0 %1926
      %1928 = vrot.lane.b32.xlu0 %v1852, 28
      %v1929 = vpop.permute.xlu0 %1928
      %1930 = vrot.lane.b32.xlu0 %v1853, 28
      %v1931 = vpop.permute.xlu0 %1930
      %1932 = vrot.lane.b32.xlu0 %v1854, 28
      %v1933 = vpop.permute.xlu0 %1932
      %1934 = vrot.lane.b32.xlu0 %v1855, 28
      %v1935 = vpop.permute.xlu0 %1934
      %1936 = vrot.lane.b32.xlu0 %v1856, 28
      %v1937 = vpop.permute.xlu0 %1936
      %1938 = vrot.lane.b32.xlu0 %v1857, 28
      %v1939 = vpop.permute.xlu0 %1938
      %1940 = vrot.lane.b32.xlu0 %v1858, 28
      %v1941 = vpop.permute.xlu0 %1940
      %1942 = vrot.lane.b32.xlu0 %v1859, 28
      %v1943 = vpop.permute.xlu0 %1942
      %1944 = vrot.lane.b32.xlu0 %v1860, 28
      %v1945 = vpop.permute.xlu0 %1944
      %1946 = vrot.lane.b32.xlu0 %v1861, 28
      %v1947 = vpop.permute.xlu0 %1946
      %1948 = vrot.lane.b32.xlu0 %v1862, 28
      %v1949 = vpop.permute.xlu0 %1948
      %1950 = vrot.lane.b32.xlu0 %v1863, 28
      %v1951 = vpop.permute.xlu0 %1950
      %1952 = vrot.lane.b32.xlu0 %v1864, 28
      %v1953 = vpop.permute.xlu0 %1952
      %1954 = vrot.lane.b32.xlu0 %v1865, 28
      %v1955 = vpop.permute.xlu0 %1954
      %1956 = vrot.lane.b32.xlu0 %v1866, 28
      %v1957 = vpop.permute.xlu0 %1956
      %1958 = vrot.lane.b32.xlu0 %v1867, 28
      %v1959 = vpop.permute.xlu0 %1958
      %1960 = vrot.lane.b32.xlu0 %v1868, 28
      %v1961 = vpop.permute.xlu0 %1960
      %1962 = vrot.lane.b32.xlu0 %v1869, 28
      %v1963 = vpop.permute.xlu0 %1962
      %1964 = vrot.lane.b32.xlu0 %v1870, 28
      %v1965 = vpop.permute.xlu0 %1964
      %1966 = vrot.lane.b32.xlu0 %v1871, 28
      %v1967 = vpop.permute.xlu0 %1966
      %vm2000 = vcmask 261344
      %2001 = vst.msk [vmem:[#allocation3] sm:$0xff] %vm2000, %v1905
      %2002 = vst.msk [vmem:[#allocation3 + $0x8] sm:$0xff] %vm2000, %v1907
      %2003 = vst.msk [vmem:[#allocation3 + $0x10] sm:$0xff] %vm2000, %v1909
      %2004 = vst.msk [vmem:[#allocation3 + $0x18] sm:$0xff] %vm2000, %v1911
      %2005 = vst.msk [vmem:[#allocation3 + $0x20] sm:$0xff] %vm2000, %v1913
      %2006 = vst.msk [vmem:[#allocation3 + $0x28] sm:$0xff] %vm2000, %v1915
      %2007 = vst.msk [vmem:[#allocation3 + $0x30] sm:$0xff] %vm2000, %v1917
      %2008 = vst.msk [vmem:[#allocation3 + $0x38] sm:$0xff] %vm2000, %v1919
      %2009 = vst.msk [vmem:[#allocation3 + $0x40] sm:$0xff] %vm2000, %v1921
      %2010 = vst.msk [vmem:[#allocation3 + $0x48] sm:$0xff] %vm2000, %v1923
      %2011 = vst.msk [vmem:[#allocation3 + $0x50] sm:$0xff] %vm2000, %v1925
      %2012 = vst.msk [vmem:[#allocation3 + $0x58] sm:$0xff] %vm2000, %v1927
      %2013 = vst.msk [vmem:[#allocation3 + $0x60] sm:$0xff] %vm2000, %v1929
      %2014 = vst.msk [vmem:[#allocation3 + $0x68] sm:$0xff] %vm2000, %v1931
      %2015 = vst.msk [vmem:[#allocation3 + $0x70] sm:$0xff] %vm2000, %v1933
      %2016 = vst.msk [vmem:[#allocation3 + $0x78] sm:$0xff] %vm2000, %v1935
      %2017 = vst.msk [vmem:[#allocation3 + $0x80] sm:$0xff] %vm2000, %v1937
      %2018 = vst.msk [vmem:[#allocation3 + $0x88] sm:$0xff] %vm2000, %v1939
      %2019 = vst.msk [vmem:[#allocation3 + $0x90] sm:$0xff] %vm2000, %v1941
      %2020 = vst.msk [vmem:[#allocation3 + $0x98] sm:$0xff] %vm2000, %v1943
      %2021 = vst.msk [vmem:[#allocation3 + $0xa0] sm:$0xff] %vm2000, %v1945
      %2022 = vst.msk [vmem:[#allocation3 + $0xa8] sm:$0xff] %vm2000, %v1947
      %2023 = vst.msk [vmem:[#allocation3 + $0xb0] sm:$0xff] %vm2000, %v1949
      %2024 = vst.msk [vmem:[#allocation3 + $0xb8] sm:$0xff] %vm2000, %v1951
      %2025 = vst.msk [vmem:[#allocation3 + $0xc0] sm:$0xff] %vm2000, %v1953
      %2026 = vst.msk [vmem:[#allocation3 + $0xc8] sm:$0xff] %vm2000, %v1955
      %2027 = vst.msk [vmem:[#allocation3 + $0xd0] sm:$0xff] %vm2000, %v1957
      %2028 = vst.msk [vmem:[#allocation3 + $0xd8] sm:$0xff] %vm2000, %v1959
      %2029 = vst.msk [vmem:[#allocation3 + $0xe0] sm:$0xff] %vm2000, %v1961
      %2030 = vst.msk [vmem:[#allocation3 + $0xe8] sm:$0xff] %vm2000, %v1963
      %2031 = vst.msk [vmem:[#allocation3 + $0xf0] sm:$0xff] %vm2000, %v1965
      %2032 = vst.msk [vmem:[#allocation3 + $0xf8] sm:$0xff] %vm2000, %v1967
      %v2033 = vld [vmem:[%s1646 + $0x2] sm:$0xff]
      %v2034 = vld [vmem:[%s1646 + $0xa] sm:$0xff]
      %v2035 = vld [vmem:[%s1646 + $0x1a] sm:$0xff]
      %v2036 = vld [vmem:[%s1646 + $0x22] sm:$0xff]
      %v2037 = vld [vmem:[%s1646 + $0x32] sm:$0xff]
      %v2038 = vld [vmem:[%s1646 + $0x3a] sm:$0xff]
      %v2039 = vld [vmem:[%s1646 + $0x4a] sm:$0xff]
      %v2040 = vld [vmem:[%s1646 + $0x52] sm:$0xff]
      %v2041 = vld [vmem:[%s1646 + $0x62] sm:$0xff]
      %v2042 = vld [vmem:[%s1646 + $0x6a] sm:$0xff]
      %v2043 = vld [vmem:[%s1646 + $0x7a] sm:$0xff]
      %v2044 = vld [vmem:[%s1646 + $0x82] sm:$0xff]
      %v2045 = vld [vmem:[%s1646 + $0x92] sm:$0xff]
      %v2046 = vld [vmem:[%s1646 + $0x9a] sm:$0xff]
      %v2047 = vld [vmem:[%s1646 + $0xaa] sm:$0xff]
      %v2048 = vld [vmem:[%s1646 + $0xb2] sm:$0xff]
      %v2049 = vld [vmem:[%s1646 + $0xc2] sm:$0xff]
      %v2050 = vld [vmem:[%s1646 + $0xca] sm:$0xff]
      %v2051 = vld [vmem:[%s1646 + $0xda] sm:$0xff]
      %v2052 = vld [vmem:[%s1646 + $0xe2] sm:$0xff]
      %v2053 = vld [vmem:[%s1646 + $0xf2] sm:$0xff]
      %v2054 = vld [vmem:[%s1646 + $0xfa] sm:$0xff]
      %v2055 = vld [vmem:[%s1646 + $0x10a] sm:$0xff]
      %v2056 = vld [vmem:[%s1646 + $0x112] sm:$0xff]
      %v2057 = vld [vmem:[%s1646 + $0x122] sm:$0xff]
      %v2058 = vld [vmem:[%s1646 + $0x12a] sm:$0xff]
      %v2059 = vld [vmem:[%s1646 + $0x13a] sm:$0xff]
      %v2060 = vld [vmem:[%s1646 + $0x142] sm:$0xff]
      %v2061 = vld [vmem:[%s1646 + $0x152] sm:$0xff]
      %v2062 = vld [vmem:[%s1646 + $0x15a] sm:$0xff]
      %v2063 = vld [vmem:[%s1646 + $0x16a] sm:$0xff]
      %v2064 = vld [vmem:[%s1646 + $0x172] sm:$0xff]
      %2097 = vrot.lane.b32.xlu0 %v2033, 32
      %v2098 = vpop.permute.xlu0 %2097
      %2099 = vrot.lane.b32.xlu0 %v2034, 32
      %v2100 = vpop.permute.xlu0 %2099
      %2101 = vrot.lane.b32.xlu0 %v2035, 32
      %v2102 = vpop.permute.xlu0 %2101
      %2103 = vrot.lane.b32.xlu0 %v2036, 32
      %v2104 = vpop.permute.xlu0 %2103
      %2105 = vrot.lane.b32.xlu0 %v2037, 32
      %v2106 = vpop.permute.xlu0 %2105
      %2107 = vrot.lane.b32.xlu0 %v2038, 32
      %v2108 = vpop.permute.xlu0 %2107
      %2109 = vrot.lane.b32.xlu0 %v2039, 32
      %v2110 = vpop.permute.xlu0 %2109
      %2111 = vrot.lane.b32.xlu0 %v2040, 32
      %v2112 = vpop.permute.xlu0 %2111
      %2113 = vrot.lane.b32.xlu0 %v2041, 32
      %v2114 = vpop.permute.xlu0 %2113
      %2115 = vrot.lane.b32.xlu0 %v2042, 32
      %v2116 = vpop.permute.xlu0 %2115
      %2117 = vrot.lane.b32.xlu0 %v2043, 32
      %v2118 = vpop.permute.xlu0 %2117
      %2119 = vrot.lane.b32.xlu0 %v2044, 32
      %v2120 = vpop.permute.xlu0 %2119
      %2121 = vrot.lane.b32.xlu0 %v2045, 32
      %v2122 = vpop.permute.xlu0 %2121
      %2123 = vrot.lane.b32.xlu0 %v2046, 32
      %v2124 = vpop.permute.xlu0 %2123
      %2125 = vrot.lane.b32.xlu0 %v2047, 32
      %v2126 = vpop.permute.xlu0 %2125
      %2127 = vrot.lane.b32.xlu0 %v2048, 32
      %v2128 = vpop.permute.xlu0 %2127
      %2129 = vrot.lane.b32.xlu0 %v2049, 32
      %v2130 = vpop.permute.xlu0 %2129
      %2131 = vrot.lane.b32.xlu0 %v2050, 32
      %v2132 = vpop.permute.xlu0 %2131
      %2133 = vrot.lane.b32.xlu0 %v2051, 32
      %v2134 = vpop.permute.xlu0 %2133
      %2135 = vrot.lane.b32.xlu0 %v2052, 32
      %v2136 = vpop.permute.xlu0 %2135
      %2137 = vrot.lane.b32.xlu0 %v2053, 32
      %v2138 = vpop.permute.xlu0 %2137
      %2139 = vrot.lane.b32.xlu0 %v2054, 32
      %v2140 = vpop.permute.xlu0 %2139
      %2141 = vrot.lane.b32.xlu0 %v2055, 32
      %v2142 = vpop.permute.xlu0 %2141
      %2143 = vrot.lane.b32.xlu0 %v2056, 32
      %v2144 = vpop.permute.xlu0 %2143
      %2145 = vrot.lane.b32.xlu0 %v2057, 32
      %v2146 = vpop.permute.xlu0 %2145
      %2147 = vrot.lane.b32.xlu0 %v2058, 32
      %v2148 = vpop.permute.xlu0 %2147
      %2149 = vrot.lane.b32.xlu0 %v2059, 32
      %v2150 = vpop.permute.xlu0 %2149
      %2151 = vrot.lane.b32.xlu0 %v2060, 32
      %v2152 = vpop.permute.xlu0 %2151
      %2153 = vrot.lane.b32.xlu0 %v2061, 32
      %v2154 = vpop.permute.xlu0 %2153
      %2155 = vrot.lane.b32.xlu0 %v2062, 32
      %v2156 = vpop.permute.xlu0 %2155
      %2157 = vrot.lane.b32.xlu0 %v2063, 32
      %v2158 = vpop.permute.xlu0 %2157
      %2159 = vrot.lane.b32.xlu0 %v2064, 32
      %v2160 = vpop.permute.xlu0 %2159
      %vm2193 = vcmask 294144
      %2194 = vst.msk [vmem:[#allocation3] sm:$0xff] %vm2193, %v2098
      %2195 = vst.msk [vmem:[#allocation3 + $0x8] sm:$0xff] %vm2193, %v2100
      %2196 = vst.msk [vmem:[#allocation3 + $0x10] sm:$0xff] %vm2193, %v2102
      %2197 = vst.msk [vmem:[#allocation3 + $0x18] sm:$0xff] %vm2193, %v2104
      %2198 = vst.msk [vmem:[#allocation3 + $0x20] sm:$0xff] %vm2193, %v2106
      %2199 = vst.msk [vmem:[#allocation3 + $0x28] sm:$0xff] %vm2193, %v2108
      %2200 = vst.msk [vmem:[#allocation3 + $0x30] sm:$0xff] %vm2193, %v2110
      %2201 = vst.msk [vmem:[#allocation3 + $0x38] sm:$0xff] %vm2193, %v2112
      %2202 = vst.msk [vmem:[#allocation3 + $0x40] sm:$0xff] %vm2193, %v2114
      %2203 = vst.msk [vmem:[#allocation3 + $0x48] sm:$0xff] %vm2193, %v2116
      %2204 = vst.msk [vmem:[#allocation3 + $0x50] sm:$0xff] %vm2193, %v2118
      %2205 = vst.msk [vmem:[#allocation3 + $0x58] sm:$0xff] %vm2193, %v2120
      %2206 = vst.msk [vmem:[#allocation3 + $0x60] sm:$0xff] %vm2193, %v2122
      %2207 = vst.msk [vmem:[#allocation3 + $0x68] sm:$0xff] %vm2193, %v2124
      %2208 = vst.msk [vmem:[#allocation3 + $0x70] sm:$0xff] %vm2193, %v2126
      %2209 = vst.msk [vmem:[#allocation3 + $0x78] sm:$0xff] %vm2193, %v2128
      %2210 = vst.msk [vmem:[#allocation3 + $0x80] sm:$0xff] %vm2193, %v2130
      %2211 = vst.msk [vmem:[#allocation3 + $0x88] sm:$0xff] %vm2193, %v2132
      %2212 = vst.msk [vmem:[#allocation3 + $0x90] sm:$0xff] %vm2193, %v2134
      %2213 = vst.msk [vmem:[#allocation3 + $0x98] sm:$0xff] %vm2193, %v2136
      %2214 = vst.msk [vmem:[#allocation3 + $0xa0] sm:$0xff] %vm2193, %v2138
      %2215 = vst.msk [vmem:[#allocation3 + $0xa8] sm:$0xff] %vm2193, %v2140
      %2216 = vst.msk [vmem:[#allocation3 + $0xb0] sm:$0xff] %vm2193, %v2142
      %2217 = vst.msk [vmem:[#allocation3 + $0xb8] sm:$0xff] %vm2193, %v2144
      %2218 = vst.msk [vmem:[#allocation3 + $0xc0] sm:$0xff] %vm2193, %v2146
      %2219 = vst.msk [vmem:[#allocation3 + $0xc8] sm:$0xff] %vm2193, %v2148
      %2220 = vst.msk [vmem:[#allocation3 + $0xd0] sm:$0xff] %vm2193, %v2150
      %2221 = vst.msk [vmem:[#allocation3 + $0xd8] sm:$0xff] %vm2193, %v2152
      %2222 = vst.msk [vmem:[#allocation3 + $0xe0] sm:$0xff] %vm2193, %v2154
      %2223 = vst.msk [vmem:[#allocation3 + $0xe8] sm:$0xff] %vm2193, %v2156
      %2224 = vst.msk [vmem:[#allocation3 + $0xf0] sm:$0xff] %vm2193, %v2158
      %2225 = vst.msk [vmem:[#allocation3 + $0xf8] sm:$0xff] %vm2193, %v2160
      %v2226 = vld [vmem:[#allocation3] sm:$0xff]
      %v2227 = vld [vmem:[#allocation3 + $0x8] sm:$0xff]
      %v2228 = vld [vmem:[#allocation3 + $0x10] sm:$0xff]
      %v2229 = vld [vmem:[#allocation3 + $0x18] sm:$0xff]
      %v2230 = vld [vmem:[#allocation3 + $0x20] sm:$0xff]
      %v2231 = vld [vmem:[#allocation3 + $0x28] sm:$0xff]
      %v2232 = vld [vmem:[#allocation3 + $0x30] sm:$0xff]
      %v2233 = vld [vmem:[#allocation3 + $0x38] sm:$0xff]
      %v2234 = vld [vmem:[#allocation3 + $0x40] sm:$0xff]
      %v2235 = vld [vmem:[#allocation3 + $0x48] sm:$0xff]
      %v2236 = vld [vmem:[#allocation3 + $0x50] sm:$0xff]
      %v2237 = vld [vmem:[#allocation3 + $0x58] sm:$0xff]
      %v2238 = vld [vmem:[#allocation3 + $0x60] sm:$0xff]
      %v2239 = vld [vmem:[#allocation3 + $0x68] sm:$0xff]
      %v2240 = vld [vmem:[#allocation3 + $0x70] sm:$0xff]
      %v2241 = vld [vmem:[#allocation3 + $0x78] sm:$0xff]
      %v2242 = vld [vmem:[#allocation3 + $0x80] sm:$0xff]
      %v2243 = vld [vmem:[#allocation3 + $0x88] sm:$0xff]
      %v2244 = vld [vmem:[#allocation3 + $0x90] sm:$0xff]
      %v2245 = vld [vmem:[#allocation3 + $0x98] sm:$0xff]
      %v2246 = vld [vmem:[#allocation3 + $0xa0] sm:$0xff]
      %v2247 = vld [vmem:[#allocation3 + $0xa8] sm:$0xff]
      %v2248 = vld [vmem:[#allocation3 + $0xb0] sm:$0xff]
      %v2249 = vld [vmem:[#allocation3 + $0xb8] sm:$0xff]
      %v2250 = vld [vmem:[#allocation3 + $0xc0] sm:$0xff]
      %v2251 = vld [vmem:[#allocation3 + $0xc8] sm:$0xff]
      %v2252 = vld [vmem:[#allocation3 + $0xd0] sm:$0xff]
      %v2253 = vld [vmem:[#allocation3 + $0xd8] sm:$0xff]
      %v2254 = vld [vmem:[#allocation3 + $0xe0] sm:$0xff]
      %v2255 = vld [vmem:[#allocation3 + $0xe8] sm:$0xff]
      %v2256 = vld [vmem:[#allocation3 + $0xf0] sm:$0xff]
      %v2257 = vld [vmem:[#allocation3 + $0xf8] sm:$0xff]
      %v2258 = vld [vmem:[%s1] sm:$0xff]
      %v2259 = vld [vmem:[%s1 + $0x8] sm:$0xff]
      %v2260 = vld [vmem:[%s1 + $0x10] sm:$0xff]
      %v2261 = vld [vmem:[%s1 + $0x18] sm:$0xff]
      %v2262 = vld [vmem:[%s1 + $0x20] sm:$0xf]
      %v2263 = vld [vmem:[%s2] sm:$0x1]
      %v2265 = vlaneseq
      %v2266 = vshrl.u32 %v2265, 7
      %v2267 = vsub.s32 0, %v2266
      %v2268 = vrot.slane %v2263, %v2267
      %vm2270 = vcmask 293888
      %v2272 = vsel %vm2270, %v2226, 0
      %v2275 = vsel %vm2270, %v2227, 0
      %v2278 = vsel %vm2270, %v2228, 0
      %v2281 = vsel %vm2270, %v2229, 0
      %v2284 = vsel %vm2270, %v2230, 0
      %v2287 = vsel %vm2270, %v2231, 0
      %v2290 = vsel %vm2270, %v2232, 0
      %v2293 = vsel %vm2270, %v2233, 0
      %v2296 = vsel %vm2270, %v2234, 0
      %v2299 = vsel %vm2270, %v2235, 0
      %v2302 = vsel %vm2270, %v2236, 0
      %v2305 = vsel %vm2270, %v2237, 0
      %v2308 = vsel %vm2270, %v2238, 0
      %v2311 = vsel %vm2270, %v2239, 0
      %v2314 = vsel %vm2270, %v2240, 0
      %v2317 = vsel %vm2270, %v2241, 0
      %v2320 = vsel %vm2270, %v2242, 0
      %v2323 = vsel %vm2270, %v2243, 0
      %v2326 = vsel %vm2270, %v2244, 0
      %v2329 = vsel %vm2270, %v2245, 0
      %v2332 = vsel %vm2270, %v2246, 0
      %v2335 = vsel %vm2270, %v2247, 0
      %v2338 = vsel %vm2270, %v2248, 0
      %v2341 = vsel %vm2270, %v2249, 0
      %v2344 = vsel %vm2270, %v2250, 0
      %v2347 = vsel %vm2270, %v2251, 0
      %v2350 = vsel %vm2270, %v2252, 0
      %v2353 = vsel %vm2270, %v2253, 0
      %v2356 = vsel %vm2270, %v2254, 0
      %v2359 = vsel %vm2270, %v2255, 0
      %v2362 = vsel %vm2270, %v2256, 0
      %v2365 = vsel %vm2270, %v2257, 0
      %vm2367 = vcmask 1043456
      %v2369 = vsel %vm2367, %v2262, 0
      %2371 = vmatprep.subr.mxu0 0.0
      %2372 = vmatpush1.msra.mxu0 0.0
      %2373 = vmatprep.subr.mxu0 0.0
      %2374 = vmatpush1.msra.mxu0 0.0
      %2375 = vmatprep.subr.mxu0 0.0
      %2376 = vmatpush1.msra.mxu0 0.0
      %2377 = vmatprep.subr.mxu0 0.0
      %2378 = vmatpush1.msra.mxu0 0.0
      %2379 = vmatprep.subr.mxu0 0.0
      %2380 = vmatpush1.msra.mxu0 0.0
      %2381 = vmatprep.subr.mxu0 0.0
      %2382 = vmatpush1.msra.mxu0 0.0
      %2383 = vmatprep.subr.mxu0 0.0
      %2384 = vmatpush1.msra.mxu0 0.0
      %2385 = vmatprep.subr.mxu0 0.0
      %2386 = vmatpush1.msra.mxu0 0.0
      %2387 = vmatprep.subr.mxu0 0.0
      %2388 = vmatpush1.msra.mxu0 0.0
      %2389 = vmatprep.subr.mxu0 0.0
      %2390 = vmatpush1.msra.mxu0 0.0
      %2391 = vmatprep.subr.mxu0 0.0
      %2392 = vmatpush1.msra.mxu0 0.0
      %2393 = vmatprep.subr.mxu0 0.0
      %2394 = vmatpush1.msra.mxu0 %v2369
      %2395 = vmatprep.subr.mxu0 0.0
      %2396 = vmatpush1.msra.mxu0 %v2261
      %2397 = vmatprep.subr.mxu0 0.0
      %2398 = vmatpush1.msra.mxu0 %v2260
      %2399 = vmatprep.subr.mxu0 0.0
      %2400 = vmatpush1.msra.mxu0 %v2259
      %2401 = vmatprep.subr.mxu0 0.0
      %2402 = vmatpush1.msra.mxu0 %v2258
      %2403 = vmatprep.subr.mxu0 0.0
      %2404 = vmatpush2.msra.mxu0 0.0
      %2405 = vmatprep.subr.mxu0 0.0
      %2406 = vmatpush2.msra.mxu0 0.0
      %2407 = vmatprep.subr.mxu0 0.0
      %2408 = vmatpush2.msra.mxu0 0.0
      %2409 = vmatprep.subr.mxu0 0.0
      %2410 = vmatpush2.msra.mxu0 0.0
      %2411 = vmatprep.subr.mxu0 0.0
      %2412 = vmatpush2.msra.mxu0 0.0
      %2413 = vmatprep.subr.mxu0 0.0
      %2414 = vmatpush2.msra.mxu0 0.0
      %2415 = vmatprep.subr.mxu0 0.0
      %2416 = vmatpush2.msra.mxu0 0.0
      %2417 = vmatprep.subr.mxu0 0.0
      %2418 = vmatpush2.msra.mxu0 0.0
      %2419 = vmatprep.subr.mxu0 0.0
      %2420 = vmatpush2.msra.mxu0 0.0
      %2421 = vmatprep.subr.mxu0 0.0
      %2422 = vmatpush2.msra.mxu0 0.0
      %2423 = vmatprep.subr.mxu0 0.0
      %2424 = vmatpush2.msra.mxu0 0.0
      %2425 = vmatprep.subr.mxu0 0.0
      %2426 = vmatpush2.msra.mxu0 0.0
      %2427 = vmatprep.subr.mxu0 0.0
      %2428 = vmatpush2.msra.mxu0 0.0
      %2429 = vmatprep.subr.mxu0 0.0
      %2430 = vmatpush2.msra.mxu0 0.0
      %2431 = vmatprep.subr.mxu0 0.0
      %2432 = vmatpush2.msra.mxu0 0.0
      %2433 = vmatprep.subr.mxu0 0.0
      %2434 = vmatpush2.msra.mxu0 0.0
      %2435 = vmatprep.mubr.f32.mxu0 0.0
      %2436 = vmatmul.mubr.f32.gmra.mxu0 %v2272
      %v2437 = vpop.f32.mrf.mxu0
      %v2438 = vadd.f32 %v2268, %v2437
      %v2439 = vpop.f32.mrf.mxu0
      %2440 = vmatprep.mubr.f32.mxu0 0.0
      %2441 = vmatmul.mubr.f32.gmra.mxu0 %v2275
      %v2442 = vpop.f32.mrf.mxu0
      %v2443 = vadd.f32 %v2268, %v2442
      %v2444 = vpop.f32.mrf.mxu0
      %2445 = vmatprep.mubr.f32.mxu0 0.0
      %2446 = vmatmul.mubr.f32.gmra.mxu0 %v2278
      %v2447 = vpop.f32.mrf.mxu0
      %v2448 = vadd.f32 %v2268, %v2447
      %v2449 = vpop.f32.mrf.mxu0
      %2450 = vmatprep.mubr.f32.mxu0 0.0
      %2451 = vmatmul.mubr.f32.gmra.mxu0 %v2281
      %v2452 = vpop.f32.mrf.mxu0
      %v2453 = vadd.f32 %v2268, %v2452
      %v2454 = vpop.f32.mrf.mxu0
      %2455 = vmatprep.mubr.f32.mxu0 0.0
      %2456 = vmatmul.mubr.f32.gmra.mxu0 %v2284
      %v2457 = vpop.f32.mrf.mxu0
      %v2458 = vadd.f32 %v2268, %v2457
      %v2459 = vpop.f32.mrf.mxu0
      %2460 = vmatprep.mubr.f32.mxu0 0.0
      %2461 = vmatmul.mubr.f32.gmra.mxu0 %v2287
      %v2462 = vpop.f32.mrf.mxu0
      %v2463 = vadd.f32 %v2268, %v2462
      %v2464 = vpop.f32.mrf.mxu0
      %2465 = vmatprep.mubr.f32.mxu0 0.0
      %2466 = vmatmul.mubr.f32.gmra.mxu0 %v2290
      %v2467 = vpop.f32.mrf.mxu0
      %v2468 = vadd.f32 %v2268, %v2467
      %v2469 = vpop.f32.mrf.mxu0
      %2470 = vmatprep.mubr.f32.mxu0 0.0
      %2471 = vmatmul.mubr.f32.gmra.mxu0 %v2293
      %v2472 = vpop.f32.mrf.mxu0
      %v2473 = vadd.f32 %v2268, %v2472
      %v2474 = vpop.f32.mrf.mxu0
      %2475 = vmatprep.mubr.f32.mxu0 0.0
      %2476 = vmatmul.mubr.f32.gmra.mxu0 %v2296
      %v2477 = vpop.f32.mrf.mxu0
      %v2478 = vadd.f32 %v2268, %v2477
      %v2479 = vpop.f32.mrf.mxu0
      %2480 = vmatprep.mubr.f32.mxu0 0.0
      %2481 = vmatmul.mubr.f32.gmra.mxu0 %v2299
      %v2482 = vpop.f32.mrf.mxu0
      %v2483 = vadd.f32 %v2268, %v2482
      %v2484 = vpop.f32.mrf.mxu0
      %2485 = vmatprep.mubr.f32.mxu0 0.0
      %2486 = vmatmul.mubr.f32.gmra.mxu0 %v2302
      %v2487 = vpop.f32.mrf.mxu0
      %v2488 = vadd.f32 %v2268, %v2487
      %v2489 = vpop.f32.mrf.mxu0
      %2490 = vmatprep.mubr.f32.mxu0 0.0
      %2491 = vmatmul.mubr.f32.gmra.mxu0 %v2305
      %v2492 = vpop.f32.mrf.mxu0
      %v2493 = vadd.f32 %v2268, %v2492
      %v2494 = vpop.f32.mrf.mxu0
      %2495 = vmatprep.mubr.f32.mxu0 0.0
      %2496 = vmatmul.mubr.f32.gmra.mxu0 %v2308
      %v2497 = vpop.f32.mrf.mxu0
      %v2498 = vadd.f32 %v2268, %v2497
      %v2499 = vpop.f32.mrf.mxu0
      %2500 = vmatprep.mubr.f32.mxu0 0.0
      %2501 = vmatmul.mubr.f32.gmra.mxu0 %v2311
      %v2502 = vpop.f32.mrf.mxu0
      %v2503 = vadd.f32 %v2268, %v2502
      %v2504 = vpop.f32.mrf.mxu0
      %2505 = vmatprep.mubr.f32.mxu0 0.0
      %2506 = vmatmul.mubr.f32.gmra.mxu0 %v2314
      %v2507 = vpop.f32.mrf.mxu0
      %v2508 = vadd.f32 %v2268, %v2507
      %v2509 = vpop.f32.mrf.mxu0
      %2510 = vmatprep.mubr.f32.mxu0 0.0
      %2511 = vmatmul.mubr.f32.gmra.mxu0 %v2317
      %v2512 = vpop.f32.mrf.mxu0
      %v2513 = vadd.f32 %v2268, %v2512
      %v2514 = vpop.f32.mrf.mxu0
      %2515 = vmatprep.mubr.f32.mxu0 0.0
      %2516 = vmatmul.mubr.f32.gmra.mxu0 %v2320
      %v2517 = vpop.f32.mrf.mxu0
      %v2518 = vadd.f32 %v2268, %v2517
      %v2519 = vpop.f32.mrf.mxu0
      %2520 = vmatprep.mubr.f32.mxu0 0.0
      %2521 = vmatmul.mubr.f32.gmra.mxu0 %v2323
      %v2522 = vpop.f32.mrf.mxu0
      %v2523 = vadd.f32 %v2268, %v2522
      %v2524 = vpop.f32.mrf.mxu0
      %2525 = vmatprep.mubr.f32.mxu0 0.0
      %2526 = vmatmul.mubr.f32.gmra.mxu0 %v2326
      %v2527 = vpop.f32.mrf.mxu0
      %v2528 = vadd.f32 %v2268, %v2527
      %v2529 = vpop.f32.mrf.mxu0
      %2530 = vmatprep.mubr.f32.mxu0 0.0
      %2531 = vmatmul.mubr.f32.gmra.mxu0 %v2329
      %v2532 = vpop.f32.mrf.mxu0
      %v2533 = vadd.f32 %v2268, %v2532
      %v2534 = vpop.f32.mrf.mxu0
      %2535 = vmatprep.mubr.f32.mxu0 0.0
      %2536 = vmatmul.mubr.f32.gmra.mxu0 %v2332
      %v2537 = vpop.f32.mrf.mxu0
      %v2538 = vadd.f32 %v2268, %v2537
      %v2539 = vpop.f32.mrf.mxu0
      %2540 = vmatprep.mubr.f32.mxu0 0.0
      %2541 = vmatmul.mubr.f32.gmra.mxu0 %v2335
      %v2542 = vpop.f32.mrf.mxu0
      %v2543 = vadd.f32 %v2268, %v2542
      %v2544 = vpop.f32.mrf.mxu0
      %2545 = vmatprep.mubr.f32.mxu0 0.0
      %2546 = vmatmul.mubr.f32.gmra.mxu0 %v2338
      %v2547 = vpop.f32.mrf.mxu0
      %v2548 = vadd.f32 %v2268, %v2547
      %v2549 = vpop.f32.mrf.mxu0
      %2550 = vmatprep.mubr.f32.mxu0 0.0
      %2551 = vmatmul.mubr.f32.gmra.mxu0 %v2341
      %v2552 = vpop.f32.mrf.mxu0
      %v2553 = vadd.f32 %v2268, %v2552
      %v2554 = vpop.f32.mrf.mxu0
      %2555 = vmatprep.mubr.f32.mxu0 0.0
      %2556 = vmatmul.mubr.f32.gmra.mxu0 %v2344
      %v2557 = vpop.f32.mrf.mxu0
      %v2558 = vadd.f32 %v2268, %v2557
      %v2559 = vpop.f32.mrf.mxu0
      %2560 = vmatprep.mubr.f32.mxu0 0.0
      %2561 = vmatmul.mubr.f32.gmra.mxu0 %v2347
      %v2562 = vpop.f32.mrf.mxu0
      %v2563 = vadd.f32 %v2268, %v2562
      %v2564 = vpop.f32.mrf.mxu0
      %2565 = vmatprep.mubr.f32.mxu0 0.0
      %2566 = vmatmul.mubr.f32.gmra.mxu0 %v2350
      %v2567 = vpop.f32.mrf.mxu0
      %v2568 = vadd.f32 %v2268, %v2567
      %v2569 = vpop.f32.mrf.mxu0
      %2570 = vmatprep.mubr.f32.mxu0 0.0
      %2571 = vmatmul.mubr.f32.gmra.mxu0 %v2353
      %v2572 = vpop.f32.mrf.mxu0
      %v2573 = vadd.f32 %v2268, %v2572
      %v2574 = vpop.f32.mrf.mxu0
      %2575 = vmatprep.mubr.f32.mxu0 0.0
      %2576 = vmatmul.mubr.f32.gmra.mxu0 %v2356
      %v2577 = vpop.f32.mrf.mxu0
      %v2578 = vadd.f32 %v2268, %v2577
      %v2579 = vpop.f32.mrf.mxu0
      %2580 = vmatprep.mubr.f32.mxu0 0.0
      %2581 = vmatmul.mubr.f32.gmra.mxu0 %v2359
      %v2582 = vpop.f32.mrf.mxu0
      %v2583 = vadd.f32 %v2268, %v2582
      %v2584 = vpop.f32.mrf.mxu0
      %2585 = vmatprep.mubr.f32.mxu0 0.0
      %2586 = vmatmul.mubr.f32.gmra.mxu0 %v2362
      %v2587 = vpop.f32.mrf.mxu0
      %v2588 = vadd.f32 %v2268, %v2587
      %v2589 = vpop.f32.mrf.mxu0
      %2590 = vmatprep.mubr.f32.mxu0 0.0
      %2591 = vmatmul.mubr.f32.gmra.mxu0 %v2365
      %v2592 = vpop.f32.mrf.mxu0
      %v2593 = vadd.f32 %v2268, %v2592
      %v2594 = vpop.f32.mrf.mxu0
      %2595 = vdwg.mxu0
      %v2596 = vmax.f32 %v2438, 0.0
      %v2597 = vmax.f32 %v2443, 0.0
      %v2598 = vmax.f32 %v2448, 0.0
      %v2599 = vmax.f32 %v2453, 0.0
      %v2600 = vmax.f32 %v2458, 0.0
      %v2601 = vmax.f32 %v2463, 0.0
      %v2602 = vmax.f32 %v2468, 0.0
      %v2603 = vmax.f32 %v2473, 0.0
      %v2604 = vmax.f32 %v2478, 0.0
      %v2605 = vmax.f32 %v2483, 0.0
      %v2606 = vmax.f32 %v2488, 0.0
      %v2607 = vmax.f32 %v2493, 0.0
      %v2608 = vmax.f32 %v2498, 0.0
      %v2609 = vmax.f32 %v2503, 0.0
      %v2610 = vmax.f32 %v2508, 0.0
      %v2611 = vmax.f32 %v2513, 0.0
      %v2612 = vmax.f32 %v2518, 0.0
      %v2613 = vmax.f32 %v2523, 0.0
      %v2614 = vmax.f32 %v2528, 0.0
      %v2615 = vmax.f32 %v2533, 0.0
      %v2616 = vmax.f32 %v2538, 0.0
      %v2617 = vmax.f32 %v2543, 0.0
      %v2618 = vmax.f32 %v2548, 0.0
      %v2619 = vmax.f32 %v2553, 0.0
      %v2620 = vmax.f32 %v2558, 0.0
      %v2621 = vmax.f32 %v2563, 0.0
      %v2622 = vmax.f32 %v2568, 0.0
      %v2623 = vmax.f32 %v2573, 0.0
      %v2624 = vmax.f32 %v2578, 0.0
      %v2625 = vmax.f32 %v2583, 0.0
      %v2626 = vmax.f32 %v2588, 0.0
      %v2627 = vmax.f32 %v2593, 0.0
      %2628 = vst [vmem:[%s520 + $0x1] sm:$0xff] %v2596
      %2629 = vst [vmem:[%s520 + $0x9] sm:$0xff] %v2597
      %2630 = vst [vmem:[%s520 + $0x19] sm:$0xff] %v2598
      %2631 = vst [vmem:[%s520 + $0x21] sm:$0xff] %v2599
      %2632 = vst [vmem:[%s520 + $0x31] sm:$0xff] %v2600
      %2633 = vst [vmem:[%s520 + $0x39] sm:$0xff] %v2601
      %2634 = vst [vmem:[%s520 + $0x49] sm:$0xff] %v2602
      %2635 = vst [vmem:[%s520 + $0x51] sm:$0xff] %v2603
      %2636 = vst [vmem:[%s520 + $0x61] sm:$0xff] %v2604
      %2637 = vst [vmem:[%s520 + $0x69] sm:$0xff] %v2605
      %2638 = vst [vmem:[%s520 + $0x79] sm:$0xff] %v2606
      %2639 = vst [vmem:[%s520 + $0x81] sm:$0xff] %v2607
      %2640 = vst [vmem:[%s520 + $0x91] sm:$0xff] %v2608
      %2641 = vst [vmem:[%s520 + $0x99] sm:$0xff] %v2609
      %2642 = vst [vmem:[%s520 + $0xa9] sm:$0xff] %v2610
      %2643 = vst [vmem:[%s520 + $0xb1] sm:$0xff] %v2611
      %2644 = vst [vmem:[%s520 + $0xc1] sm:$0xff] %v2612
      %2645 = vst [vmem:[%s520 + $0xc9] sm:$0xff] %v2613
      %2646 = vst [vmem:[%s520 + $0xd9] sm:$0xff] %v2614
      %2647 = vst [vmem:[%s520 + $0xe1] sm:$0xff] %v2615
      %2648 = vst [vmem:[%s520 + $0xf1] sm:$0xff] %v2616
      %2649 = vst [vmem:[%s520 + $0xf9] sm:$0xff] %v2617
      %2650 = vst [vmem:[%s520 + $0x109] sm:$0xff] %v2618
      %2651 = vst [vmem:[%s520 + $0x111] sm:$0xff] %v2619
      %2652 = vst [vmem:[%s520 + $0x121] sm:$0xff] %v2620
      %2653 = vst [vmem:[%s520 + $0x129] sm:$0xff] %v2621
      %2654 = vst [vmem:[%s520 + $0x139] sm:$0xff] %v2622
      %2655 = vst [vmem:[%s520 + $0x141] sm:$0xff] %v2623
      %2656 = vst [vmem:[%s520 + $0x151] sm:$0xff] %v2624
      %2657 = vst [vmem:[%s520 + $0x159] sm:$0xff] %v2625
      %2658 = vst [vmem:[%s520 + $0x169] sm:$0xff] %v2626
      %2659 = vst [vmem:[%s520 + $0x171] sm:$0xff] %v2627
      %2692 = vrot.lane.b32.xlu0 %v2596, 96
      %v2693 = vpop.permute.xlu0 %2692
      %2694 = vrot.lane.b32.xlu0 %v2597, 96
      %v2695 = vpop.permute.xlu0 %2694
      %2696 = vrot.lane.b32.xlu0 %v2598, 96
      %v2697 = vpop.permute.xlu0 %2696
      %2698 = vrot.lane.b32.xlu0 %v2599, 96
      %v2699 = vpop.permute.xlu0 %2698
      %2700 = vrot.lane.b32.xlu0 %v2600, 96
      %v2701 = vpop.permute.xlu0 %2700
      %2702 = vrot.lane.b32.xlu0 %v2601, 96
      %v2703 = vpop.permute.xlu0 %2702
      %2704 = vrot.lane.b32.xlu0 %v2602, 96
      %v2705 = vpop.permute.xlu0 %2704
      %2706 = vrot.lane.b32.xlu0 %v2603, 96
      %v2707 = vpop.permute.xlu0 %2706
      %2708 = vrot.lane.b32.xlu0 %v2604, 96
      %v2709 = vpop.permute.xlu0 %2708
      %2710 = vrot.lane.b32.xlu0 %v2605, 96
      %v2711 = vpop.permute.xlu0 %2710
      %2712 = vrot.lane.b32.xlu0 %v2606, 96
      %v2713 = vpop.permute.xlu0 %2712
      %2714 = vrot.lane.b32.xlu0 %v2607, 96
      %v2715 = vpop.permute.xlu0 %2714
      %2716 = vrot.lane.b32.xlu0 %v2608, 96
      %v2717 = vpop.permute.xlu0 %2716
      %2718 = vrot.lane.b32.xlu0 %v2609, 96
      %v2719 = vpop.permute.xlu0 %2718
      %2720 = vrot.lane.b32.xlu0 %v2610, 96
      %v2721 = vpop.permute.xlu0 %2720
      %2722 = vrot.lane.b32.xlu0 %v2611, 96
      %v2723 = vpop.permute.xlu0 %2722
      %2724 = vrot.lane.b32.xlu0 %v2612, 96
      %v2725 = vpop.permute.xlu0 %2724
      %2726 = vrot.lane.b32.xlu0 %v2613, 96
      %v2727 = vpop.permute.xlu0 %2726
      %2728 = vrot.lane.b32.xlu0 %v2614, 96
      %v2729 = vpop.permute.xlu0 %2728
      %2730 = vrot.lane.b32.xlu0 %v2615, 96
      %v2731 = vpop.permute.xlu0 %2730
      %2732 = vrot.lane.b32.xlu0 %v2616, 96
      %v2733 = vpop.permute.xlu0 %2732
      %2734 = vrot.lane.b32.xlu0 %v2617, 96
      %v2735 = vpop.permute.xlu0 %2734
      %2736 = vrot.lane.b32.xlu0 %v2618, 96
      %v2737 = vpop.permute.xlu0 %2736
      %2738 = vrot.lane.b32.xlu0 %v2619, 96
      %v2739 = vpop.permute.xlu0 %2738
      %2740 = vrot.lane.b32.xlu0 %v2620, 96
      %v2741 = vpop.permute.xlu0 %2740
      %2742 = vrot.lane.b32.xlu0 %v2621, 96
      %v2743 = vpop.permute.xlu0 %2742
      %2744 = vrot.lane.b32.xlu0 %v2622, 96
      %v2745 = vpop.permute.xlu0 %2744
      %2746 = vrot.lane.b32.xlu0 %v2623, 96
      %v2747 = vpop.permute.xlu0 %2746
      %2748 = vrot.lane.b32.xlu0 %v2624, 96
      %v2749 = vpop.permute.xlu0 %2748
      %2750 = vrot.lane.b32.xlu0 %v2625, 96
      %v2751 = vpop.permute.xlu0 %2750
      %2752 = vrot.lane.b32.xlu0 %v2626, 96
      %v2753 = vpop.permute.xlu0 %2752
      %2754 = vrot.lane.b32.xlu0 %v2627, 96
      %v2755 = vpop.permute.xlu0 %2754
      %v2788 = vmax.f32 %v2596, %v2693
      %v2789 = vmax.f32 %v2597, %v2695
      %v2790 = vmax.f32 %v2598, %v2697
      %v2791 = vmax.f32 %v2599, %v2699
      %v2792 = vmax.f32 %v2600, %v2701
      %v2793 = vmax.f32 %v2601, %v2703
      %v2794 = vmax.f32 %v2602, %v2705
      %v2795 = vmax.f32 %v2603, %v2707
      %v2796 = vmax.f32 %v2604, %v2709
      %v2797 = vmax.f32 %v2605, %v2711
      %v2798 = vmax.f32 %v2606, %v2713
      %v2799 = vmax.f32 %v2607, %v2715
      %v2800 = vmax.f32 %v2608, %v2717
      %v2801 = vmax.f32 %v2609, %v2719
      %v2802 = vmax.f32 %v2610, %v2721
      %v2803 = vmax.f32 %v2611, %v2723
      %v2804 = vmax.f32 %v2612, %v2725
      %v2805 = vmax.f32 %v2613, %v2727
      %v2806 = vmax.f32 %v2614, %v2729
      %v2807 = vmax.f32 %v2615, %v2731
      %v2808 = vmax.f32 %v2616, %v2733
      %v2809 = vmax.f32 %v2617, %v2735
      %v2810 = vmax.f32 %v2618, %v2737
      %v2811 = vmax.f32 %v2619, %v2739
      %v2812 = vmax.f32 %v2620, %v2741
      %v2813 = vmax.f32 %v2621, %v2743
      %v2814 = vmax.f32 %v2622, %v2745
      %v2815 = vmax.f32 %v2623, %v2747
      %v2816 = vmax.f32 %v2624, %v2749
      %v2817 = vmax.f32 %v2625, %v2751
      %v2818 = vmax.f32 %v2626, %v2753
      %v2819 = vmax.f32 %v2627, %v2755
      %2852 = vrot.lane.b32.xlu0 %v2788, 64
      %v2853 = vpop.permute.xlu0 %2852
      %2854 = vrot.lane.b32.xlu0 %v2789, 64
      %v2855 = vpop.permute.xlu0 %2854
      %2856 = vrot.lane.b32.xlu0 %v2790, 64
      %v2857 = vpop.permute.xlu0 %2856
      %2858 = vrot.lane.b32.xlu0 %v2791, 64
      %v2859 = vpop.permute.xlu0 %2858
      %2860 = vrot.lane.b32.xlu0 %v2792, 64
      %v2861 = vpop.permute.xlu0 %2860
      %2862 = vrot.lane.b32.xlu0 %v2793, 64
      %v2863 = vpop.permute.xlu0 %2862
      %2864 = vrot.lane.b32.xlu0 %v2794, 64
      %v2865 = vpop.permute.xlu0 %2864
      %2866 = vrot.lane.b32.xlu0 %v2795, 64
      %v2867 = vpop.permute.xlu0 %2866
      %2868 = vrot.lane.b32.xlu0 %v2796, 64
      %v2869 = vpop.permute.xlu0 %2868
      %2870 = vrot.lane.b32.xlu0 %v2797, 64
      %v2871 = vpop.permute.xlu0 %2870
      %2872 = vrot.lane.b32.xlu0 %v2798, 64
      %v2873 = vpop.permute.xlu0 %2872
      %2874 = vrot.lane.b32.xlu0 %v2799, 64
      %v2875 = vpop.permute.xlu0 %2874
      %2876 = vrot.lane.b32.xlu0 %v2800, 64
      %v2877 = vpop.permute.xlu0 %2876
      %2878 = vrot.lane.b32.xlu0 %v2801, 64
      %v2879 = vpop.permute.xlu0 %2878
      %2880 = vrot.lane.b32.xlu0 %v2802, 64
      %v2881 = vpop.permute.xlu0 %2880
      %2882 = vrot.lane.b32.xlu0 %v2803, 64
      %v2883 = vpop.permute.xlu0 %2882
      %2884 = vrot.lane.b32.xlu0 %v2804, 64
      %v2885 = vpop.permute.xlu0 %2884
      %2886 = vrot.lane.b32.xlu0 %v2805, 64
      %v2887 = vpop.permute.xlu0 %2886
      %2888 = vrot.lane.b32.xlu0 %v2806, 64
      %v2889 = vpop.permute.xlu0 %2888
      %2890 = vrot.lane.b32.xlu0 %v2807, 64
      %v2891 = vpop.permute.xlu0 %2890
      %2892 = vrot.lane.b32.xlu0 %v2808, 64
      %v2893 = vpop.permute.xlu0 %2892
      %2894 = vrot.lane.b32.xlu0 %v2809, 64
      %v2895 = vpop.permute.xlu0 %2894
      %2896 = vrot.lane.b32.xlu0 %v2810, 64
      %v2897 = vpop.permute.xlu0 %2896
      %2898 = vrot.lane.b32.xlu0 %v2811, 64
      %v2899 = vpop.permute.xlu0 %2898
      %2900 = vrot.lane.b32.xlu0 %v2812, 64
      %v2901 = vpop.permute.xlu0 %2900
      %2902 = vrot.lane.b32.xlu0 %v2813, 64
      %v2903 = vpop.permute.xlu0 %2902
      %2904 = vrot.lane.b32.xlu0 %v2814, 64
      %v2905 = vpop.permute.xlu0 %2904
      %2906 = vrot.lane.b32.xlu0 %v2815, 64
      %v2907 = vpop.permute.xlu0 %2906
      %2908 = vrot.lane.b32.xlu0 %v2816, 64
      %v2909 = vpop.permute.xlu0 %2908
      %2910 = vrot.lane.b32.xlu0 %v2817, 64
      %v2911 = vpop.permute.xlu0 %2910
      %2912 = vrot.lane.b32.xlu0 %v2818, 64
      %v2913 = vpop.permute.xlu0 %2912
      %2914 = vrot.lane.b32.xlu0 %v2819, 64
      %v2915 = vpop.permute.xlu0 %2914
      %v2948 = vmax.f32 %v2788, %v2853
      %v2949 = vmax.f32 %v2789, %v2855
      %v2950 = vmax.f32 %v2790, %v2857
      %v2951 = vmax.f32 %v2791, %v2859
      %v2952 = vmax.f32 %v2792, %v2861
      %v2953 = vmax.f32 %v2793, %v2863
      %v2954 = vmax.f32 %v2794, %v2865
      %v2955 = vmax.f32 %v2795, %v2867
      %v2956 = vmax.f32 %v2796, %v2869
      %v2957 = vmax.f32 %v2797, %v2871
      %v2958 = vmax.f32 %v2798, %v2873
      %v2959 = vmax.f32 %v2799, %v2875
      %v2960 = vmax.f32 %v2800, %v2877
      %v2961 = vmax.f32 %v2801, %v2879
      %v2962 = vmax.f32 %v2802, %v2881
      %v2963 = vmax.f32 %v2803, %v2883
      %v2964 = vmax.f32 %v2804, %v2885
      %v2965 = vmax.f32 %v2805, %v2887
      %v2966 = vmax.f32 %v2806, %v2889
      %v2967 = vmax.f32 %v2807, %v2891
      %v2968 = vmax.f32 %v2808, %v2893
      %v2969 = vmax.f32 %v2809, %v2895
      %v2970 = vmax.f32 %v2810, %v2897
      %v2971 = vmax.f32 %v2811, %v2899
      %v2972 = vmax.f32 %v2812, %v2901
      %v2973 = vmax.f32 %v2813, %v2903
      %v2974 = vmax.f32 %v2814, %v2905
      %v2975 = vmax.f32 %v2815, %v2907
      %v2976 = vmax.f32 %v2816, %v2909
      %v2977 = vmax.f32 %v2817, %v2911
      %v2978 = vmax.f32 %v2818, %v2913
      %v2979 = vmax.f32 %v2819, %v2915
      %2980 = vst.msk [vmem:[%s439 + $0x1] sm:$0xff] %vm430, %v2948
      %2981 = vst.msk [vmem:[%s439 + $0x9] sm:$0xff] %vm430, %v2949
      %2982 = vst.msk [vmem:[%s439 + $0x19] sm:$0xff] %vm430, %v2950
      %2983 = vst.msk [vmem:[%s439 + $0x21] sm:$0xff] %vm430, %v2951
      %2984 = vst.msk [vmem:[%s439 + $0x31] sm:$0xff] %vm430, %v2952
      %2985 = vst.msk [vmem:[%s439 + $0x39] sm:$0xff] %vm430, %v2953
      %2986 = vst.msk [vmem:[%s439 + $0x49] sm:$0xff] %vm430, %v2954
      %2987 = vst.msk [vmem:[%s439 + $0x51] sm:$0xff] %vm430, %v2955
      %2988 = vst.msk [vmem:[%s439 + $0x61] sm:$0xff] %vm430, %v2956
      %2989 = vst.msk [vmem:[%s439 + $0x69] sm:$0xff] %vm430, %v2957
      %2990 = vst.msk [vmem:[%s439 + $0x79] sm:$0xff] %vm430, %v2958
      %2991 = vst.msk [vmem:[%s439 + $0x81] sm:$0xff] %vm430, %v2959
      %2992 = vst.msk [vmem:[%s439 + $0x91] sm:$0xff] %vm430, %v2960
      %2993 = vst.msk [vmem:[%s439 + $0x99] sm:$0xff] %vm430, %v2961
      %2994 = vst.msk [vmem:[%s439 + $0xa9] sm:$0xff] %vm430, %v2962
      %2995 = vst.msk [vmem:[%s439 + $0xb1] sm:$0xff] %vm430, %v2963
      %2996 = vst.msk [vmem:[%s439 + $0xc1] sm:$0xff] %vm430, %v2964
      %2997 = vst.msk [vmem:[%s439 + $0xc9] sm:$0xff] %vm430, %v2965
      %2998 = vst.msk [vmem:[%s439 + $0xd9] sm:$0xff] %vm430, %v2966
      %2999 = vst.msk [vmem:[%s439 + $0xe1] sm:$0xff] %vm430, %v2967
      %3000 = vst.msk [vmem:[%s439 + $0xf1] sm:$0xff] %vm430, %v2968
      %3001 = vst.msk [vmem:[%s439 + $0xf9] sm:$0xff] %vm430, %v2969
      %3002 = vst.msk [vmem:[%s439 + $0x109] sm:$0xff] %vm430, %v2970
      %3003 = vst.msk [vmem:[%s439 + $0x111] sm:$0xff] %vm430, %v2971
      %3004 = vst.msk [vmem:[%s439 + $0x121] sm:$0xff] %vm430, %v2972
      %3005 = vst.msk [vmem:[%s439 + $0x129] sm:$0xff] %vm430, %v2973
      %3006 = vst.msk [vmem:[%s439 + $0x139] sm:$0xff] %vm430, %v2974
      %3007 = vst.msk [vmem:[%s439 + $0x141] sm:$0xff] %vm430, %v2975
      %3008 = vst.msk [vmem:[%s439 + $0x151] sm:$0xff] %vm430, %v2976
      %3009 = vst.msk [vmem:[%s439 + $0x159] sm:$0xff] %vm430, %v2977
      %3010 = vst.msk [vmem:[%s439 + $0x169] sm:$0xff] %vm430, %v2978
      %3011 = vst.msk [vmem:[%s439 + $0x171] sm:$0xff] %vm430, %v2979
      %v3012 = vld [vmem:[#allocation4] sm:$0xff]
      %v3013 = vld [vmem:[#allocation4 + $0x8] sm:$0xff]
      %v3014 = vld [vmem:[#allocation4 + $0x18] sm:$0xff]
      %v3015 = vld [vmem:[#allocation4 + $0x20] sm:$0xff]
      %v3016 = vld [vmem:[#allocation4 + $0x30] sm:$0xff]
      %v3017 = vld [vmem:[#allocation4 + $0x38] sm:$0xff]
      %v3018 = vld [vmem:[#allocation4 + $0x48] sm:$0xff]
      %v3019 = vld [vmem:[#allocation4 + $0x50] sm:$0xff]
      %v3020 = vld [vmem:[#allocation4 + $0x60] sm:$0xff]
      %v3021 = vld [vmem:[#allocation4 + $0x68] sm:$0xff]
      %v3022 = vld [vmem:[#allocation4 + $0x78] sm:$0xff]
      %v3023 = vld [vmem:[#allocation4 + $0x80] sm:$0xff]
      %v3024 = vld [vmem:[#allocation4 + $0x90] sm:$0xff]
      %v3025 = vld [vmem:[#allocation4 + $0x98] sm:$0xff]
      %v3026 = vld [vmem:[#allocation4 + $0xa8] sm:$0xff]
      %v3027 = vld [vmem:[#allocation4 + $0xb0] sm:$0xff]
      %v3028 = vld [vmem:[#allocation4 + $0xc0] sm:$0xff]
      %v3029 = vld [vmem:[#allocation4 + $0xc8] sm:$0xff]
      %v3030 = vld [vmem:[#allocation4 + $0xd8] sm:$0xff]
      %v3031 = vld [vmem:[#allocation4 + $0xe0] sm:$0xff]
      %v3032 = vld [vmem:[#allocation4 + $0xf0] sm:$0xff]
      %v3033 = vld [vmem:[#allocation4 + $0xf8] sm:$0xff]
      %v3034 = vld [vmem:[#allocation4 + $0x108] sm:$0xff]
      %v3035 = vld [vmem:[#allocation4 + $0x110] sm:$0xff]
      %v3036 = vld [vmem:[#allocation4 + $0x120] sm:$0xff]
      %v3037 = vld [vmem:[#allocation4 + $0x128] sm:$0xff]
      %v3038 = vld [vmem:[#allocation4 + $0x138] sm:$0xff]
      %v3039 = vld [vmem:[#allocation4 + $0x140] sm:$0xff]
      %v3040 = vld [vmem:[#allocation4 + $0x150] sm:$0xff]
      %v3041 = vld [vmem:[#allocation4 + $0x158] sm:$0xff]
      %v3042 = vld [vmem:[#allocation4 + $0x168] sm:$0xff]
      %v3043 = vld [vmem:[#allocation4 + $0x170] sm:$0xff]
      %3044 = vst.msk [vmem:[#allocation5] sm:$0xff] %vm430, %v3012
      %3045 = vst.msk [vmem:[#allocation5 + $0x18] sm:$0xff] %vm430, %v3013
      %3046 = vst.msk [vmem:[#allocation5 + $0x30] sm:$0xff] %vm430, %v3014
      %3047 = vst.msk [vmem:[#allocation5 + $0x48] sm:$0xff] %vm430, %v3015
      %3048 = vst.msk [vmem:[#allocation5 + $0x60] sm:$0xff] %vm430, %v3016
      %3049 = vst.msk [vmem:[#allocation5 + $0x78] sm:$0xff] %vm430, %v3017
      %3050 = vst.msk [vmem:[#allocation5 + $0x90] sm:$0xff] %vm430, %v3018
      %3051 = vst.msk [vmem:[#allocation5 + $0xa8] sm:$0xff] %vm430, %v3019
      %3052 = vst.msk [vmem:[#allocation5 + $0xc0] sm:$0xff] %vm430, %v3020
      %3053 = vst.msk [vmem:[#allocation5 + $0xd8] sm:$0xff] %vm430, %v3021
      %3054 = vst.msk [vmem:[#allocation5 + $0xf0] sm:$0xff] %vm430, %v3022
      %3055 = vst.msk [vmem:[#allocation5 + $0x108] sm:$0xff] %vm430, %v3023
      %3056 = vst.msk [vmem:[#allocation5 + $0x120] sm:$0xff] %vm430, %v3024
      %3057 = vst.msk [vmem:[#allocation5 + $0x138] sm:$0xff] %vm430, %v3025
      %3058 = vst.msk [vmem:[#allocation5 + $0x150] sm:$0xff] %vm430, %v3026
      %3059 = vst.msk [vmem:[#allocation5 + $0x168] sm:$0xff] %vm430, %v3027
      %3060 = vst.msk [vmem:[#allocation5 + $0x180] sm:$0xff] %vm430, %v3028
      %3061 = vst.msk [vmem:[#allocation5 + $0x198] sm:$0xff] %vm430, %v3029
      %3062 = vst.msk [vmem:[#allocation5 + $0x1b0] sm:$0xff] %vm430, %v3030
      %3063 = vst.msk [vmem:[#allocation5 + $0x1c8] sm:$0xff] %vm430, %v3031
      %3064 = vst.msk [vmem:[#allocation5 + $0x1e0] sm:$0xff] %vm430, %v3032
      %3065 = vst.msk [vmem:[#allocation5 + $0x1f8] sm:$0xff] %vm430, %v3033
      %3066 = vst.msk [vmem:[#allocation5 + $0x210] sm:$0xff] %vm430, %v3034
      %3067 = vst.msk [vmem:[#allocation5 + $0x228] sm:$0xff] %vm430, %v3035
      %3068 = vst.msk [vmem:[#allocation5 + $0x240] sm:$0xff] %vm430, %v3036
      %3069 = vst.msk [vmem:[#allocation5 + $0x258] sm:$0xff] %vm430, %v3037
      %3070 = vst.msk [vmem:[#allocation5 + $0x270] sm:$0xff] %vm430, %v3038
      %3071 = vst.msk [vmem:[#allocation5 + $0x288] sm:$0xff] %vm430, %v3039
      %3072 = vst.msk [vmem:[#allocation5 + $0x2a0] sm:$0xff] %vm430, %v3040
      %3073 = vst.msk [vmem:[#allocation5 + $0x2b8] sm:$0xff] %vm430, %v3041
      %3074 = vst.msk [vmem:[#allocation5 + $0x2d0] sm:$0xff] %vm430, %v3042
      %3075 = vst.msk [vmem:[#allocation5 + $0x2e8] sm:$0xff] %vm430, %v3043
      %v3076 = vld [vmem:[#allocation4 + $0x1] sm:$0xff]
      %v3077 = vld [vmem:[#allocation4 + $0x9] sm:$0xff]
      %v3078 = vld [vmem:[#allocation4 + $0x19] sm:$0xff]
      %v3079 = vld [vmem:[#allocation4 + $0x21] sm:$0xff]
      %v3080 = vld [vmem:[#allocation4 + $0x31] sm:$0xff]
      %v3081 = vld [vmem:[#allocation4 + $0x39] sm:$0xff]
      %v3082 = vld [vmem:[#allocation4 + $0x49] sm:$0xff]
      %v3083 = vld [vmem:[#allocation4 + $0x51] sm:$0xff]
      %v3084 = vld [vmem:[#allocation4 + $0x61] sm:$0xff]
      %v3085 = vld [vmem:[#allocation4 + $0x69] sm:$0xff]
      %v3086 = vld [vmem:[#allocation4 + $0x79] sm:$0xff]
      %v3087 = vld [vmem:[#allocation4 + $0x81] sm:$0xff]
      %v3088 = vld [vmem:[#allocation4 + $0x91] sm:$0xff]
      %v3089 = vld [vmem:[#allocation4 + $0x99] sm:$0xff]
      %v3090 = vld [vmem:[#allocation4 + $0xa9] sm:$0xff]
      %v3091 = vld [vmem:[#allocation4 + $0xb1] sm:$0xff]
      %v3092 = vld [vmem:[#allocation4 + $0xc1] sm:$0xff]
      %v3093 = vld [vmem:[#allocation4 + $0xc9] sm:$0xff]
      %v3094 = vld [vmem:[#allocation4 + $0xd9] sm:$0xff]
      %v3095 = vld [vmem:[#allocation4 + $0xe1] sm:$0xff]
      %v3096 = vld [vmem:[#allocation4 + $0xf1] sm:$0xff]
      %v3097 = vld [vmem:[#allocation4 + $0xf9] sm:$0xff]
      %v3098 = vld [vmem:[#allocation4 + $0x109] sm:$0xff]
      %v3099 = vld [vmem:[#allocation4 + $0x111] sm:$0xff]
      %v3100 = vld [vmem:[#allocation4 + $0x121] sm:$0xff]
      %v3101 = vld [vmem:[#allocation4 + $0x129] sm:$0xff]
      %v3102 = vld [vmem:[#allocation4 + $0x139] sm:$0xff]
      %v3103 = vld [vmem:[#allocation4 + $0x141] sm:$0xff]
      %v3104 = vld [vmem:[#allocation4 + $0x151] sm:$0xff]
      %v3105 = vld [vmem:[#allocation4 + $0x159] sm:$0xff]
      %v3106 = vld [vmem:[#allocation4 + $0x169] sm:$0xff]
      %v3107 = vld [vmem:[#allocation4 + $0x171] sm:$0xff]
      %3140 = vrot.lane.b32.xlu0 %v3076, 32
      %v3141 = vpop.permute.xlu0 %3140
      %3142 = vrot.lane.b32.xlu0 %v3077, 32
      %v3143 = vpop.permute.xlu0 %3142
      %3144 = vrot.lane.b32.xlu0 %v3078, 32
      %v3145 = vpop.permute.xlu0 %3144
      %3146 = vrot.lane.b32.xlu0 %v3079, 32
      %v3147 = vpop.permute.xlu0 %3146
      %3148 = vrot.lane.b32.xlu0 %v3080, 32
      %v3149 = vpop.permute.xlu0 %3148
      %3150 = vrot.lane.b32.xlu0 %v3081, 32
      %v3151 = vpop.permute.xlu0 %3150
      %3152 = vrot.lane.b32.xlu0 %v3082, 32
      %v3153 = vpop.permute.xlu0 %3152
      %3154 = vrot.lane.b32.xlu0 %v3083, 32
      %v3155 = vpop.permute.xlu0 %3154
      %3156 = vrot.lane.b32.xlu0 %v3084, 32
      %v3157 = vpop.permute.xlu0 %3156
      %3158 = vrot.lane.b32.xlu0 %v3085, 32
      %v3159 = vpop.permute.xlu0 %3158
      %3160 = vrot.lane.b32.xlu0 %v3086, 32
      %v3161 = vpop.permute.xlu0 %3160
      %3162 = vrot.lane.b32.xlu0 %v3087, 32
      %v3163 = vpop.permute.xlu0 %3162
      %3164 = vrot.lane.b32.xlu0 %v3088, 32
      %v3165 = vpop.permute.xlu0 %3164
      %3166 = vrot.lane.b32.xlu0 %v3089, 32
      %v3167 = vpop.permute.xlu0 %3166
      %3168 = vrot.lane.b32.xlu0 %v3090, 32
      %v3169 = vpop.permute.xlu0 %3168
      %3170 = vrot.lane.b32.xlu0 %v3091, 32
      %v3171 = vpop.permute.xlu0 %3170
      %3172 = vrot.lane.b32.xlu0 %v3092, 32
      %v3173 = vpop.permute.xlu0 %3172
      %3174 = vrot.lane.b32.xlu0 %v3093, 32
      %v3175 = vpop.permute.xlu0 %3174
      %3176 = vrot.lane.b32.xlu0 %v3094, 32
      %v3177 = vpop.permute.xlu0 %3176
      %3178 = vrot.lane.b32.xlu0 %v3095, 32
      %v3179 = vpop.permute.xlu0 %3178
      %3180 = vrot.lane.b32.xlu0 %v3096, 32
      %v3181 = vpop.permute.xlu0 %3180
      %3182 = vrot.lane.b32.xlu0 %v3097, 32
      %v3183 = vpop.permute.xlu0 %3182
      %3184 = vrot.lane.b32.xlu0 %v3098, 32
      %v3185 = vpop.permute.xlu0 %3184
      %3186 = vrot.lane.b32.xlu0 %v3099, 32
      %v3187 = vpop.permute.xlu0 %3186
      %3188 = vrot.lane.b32.xlu0 %v3100, 32
      %v3189 = vpop.permute.xlu0 %3188
      %3190 = vrot.lane.b32.xlu0 %v3101, 32
      %v3191 = vpop.permute.xlu0 %3190
      %3192 = vrot.lane.b32.xlu0 %v3102, 32
      %v3193 = vpop.permute.xlu0 %3192
      %3194 = vrot.lane.b32.xlu0 %v3103, 32
      %v3195 = vpop.permute.xlu0 %3194
      %3196 = vrot.lane.b32.xlu0 %v3104, 32
      %v3197 = vpop.permute.xlu0 %3196
      %3198 = vrot.lane.b32.xlu0 %v3105, 32
      %v3199 = vpop.permute.xlu0 %3198
      %3200 = vrot.lane.b32.xlu0 %v3106, 32
      %v3201 = vpop.permute.xlu0 %3200
      %3202 = vrot.lane.b32.xlu0 %v3107, 32
      %v3203 = vpop.permute.xlu0 %3202
      %vm3236 = vcmask 523520
      %3237 = vst.msk [vmem:[#allocation5] sm:$0xff] %vm3236, %v3141
      %3238 = vst.msk [vmem:[#allocation5 + $0x18] sm:$0xff] %vm3236, %v3143
      %3239 = vst.msk [vmem:[#allocation5 + $0x30] sm:$0xff] %vm3236, %v3145
      %3240 = vst.msk [vmem:[#allocation5 + $0x48] sm:$0xff] %vm3236, %v3147
      %3241 = vst.msk [vmem:[#allocation5 + $0x60] sm:$0xff] %vm3236, %v3149
      %3242 = vst.msk [vmem:[#allocation5 + $0x78] sm:$0xff] %vm3236, %v3151
      %3243 = vst.msk [vmem:[#allocation5 + $0x90] sm:$0xff] %vm3236, %v3153
      %3244 = vst.msk [vmem:[#allocation5 + $0xa8] sm:$0xff] %vm3236, %v3155
      %3245 = vst.msk [vmem:[#allocation5 + $0xc0] sm:$0xff] %vm3236, %v3157
      %3246 = vst.msk [vmem:[#allocation5 + $0xd8] sm:$0xff] %vm3236, %v3159
      %3247 = vst.msk [vmem:[#allocation5 + $0xf0] sm:$0xff] %vm3236, %v3161
      %3248 = vst.msk [vmem:[#allocation5 + $0x108] sm:$0xff] %vm3236, %v3163
      %3249 = vst.msk [vmem:[#allocation5 + $0x120] sm:$0xff] %vm3236, %v3165
      %3250 = vst.msk [vmem:[#allocation5 + $0x138] sm:$0xff] %vm3236, %v3167
      %3251 = vst.msk [vmem:[#allocation5 + $0x150] sm:$0xff] %vm3236, %v3169
      %3252 = vst.msk [vmem:[#allocation5 + $0x168] sm:$0xff] %vm3236, %v3171
      %3253 = vst.msk [vmem:[#allocation5 + $0x180] sm:$0xff] %vm3236, %v3173
      %3254 = vst.msk [vmem:[#allocation5 + $0x198] sm:$0xff] %vm3236, %v3175
      %3255 = vst.msk [vmem:[#allocation5 + $0x1b0] sm:$0xff] %vm3236, %v3177
      %3256 = vst.msk [vmem:[#allocation5 + $0x1c8] sm:$0xff] %vm3236, %v3179
      %3257 = vst.msk [vmem:[#allocation5 + $0x1e0] sm:$0xff] %vm3236, %v3181
      %3258 = vst.msk [vmem:[#allocation5 + $0x1f8] sm:$0xff] %vm3236, %v3183
      %3259 = vst.msk [vmem:[#allocation5 + $0x210] sm:$0xff] %vm3236, %v3185
      %3260 = vst.msk [vmem:[#allocation5 + $0x228] sm:$0xff] %vm3236, %v3187
      %3261 = vst.msk [vmem:[#allocation5 + $0x240] sm:$0xff] %vm3236, %v3189
      %3262 = vst.msk [vmem:[#allocation5 + $0x258] sm:$0xff] %vm3236, %v3191
      %3263 = vst.msk [vmem:[#allocation5 + $0x270] sm:$0xff] %vm3236, %v3193
      %3264 = vst.msk [vmem:[#allocation5 + $0x288] sm:$0xff] %vm3236, %v3195
      %3265 = vst.msk [vmem:[#allocation5 + $0x2a0] sm:$0xff] %vm3236, %v3197
      %3266 = vst.msk [vmem:[#allocation5 + $0x2b8] sm:$0xff] %vm3236, %v3199
      %3267 = vst.msk [vmem:[#allocation5 + $0x2d0] sm:$0xff] %vm3236, %v3201
      %3268 = vst.msk [vmem:[#allocation5 + $0x2e8] sm:$0xff] %vm3236, %v3203
      %v3269 = vld [vmem:[#allocation4 + $0x2] sm:$0xff]
      %v3270 = vld [vmem:[#allocation4 + $0xa] sm:$0xff]
      %v3271 = vld [vmem:[#allocation4 + $0x1a] sm:$0xff]
      %v3272 = vld [vmem:[#allocation4 + $0x22] sm:$0xff]
      %v3273 = vld [vmem:[#allocation4 + $0x32] sm:$0xff]
      %v3274 = vld [vmem:[#allocation4 + $0x3a] sm:$0xff]
      %v3275 = vld [vmem:[#allocation4 + $0x4a] sm:$0xff]
      %v3276 = vld [vmem:[#allocation4 + $0x52] sm:$0xff]
      %v3277 = vld [vmem:[#allocation4 + $0x62] sm:$0xff]
      %v3278 = vld [vmem:[#allocation4 + $0x6a] sm:$0xff]
      %v3279 = vld [vmem:[#allocation4 + $0x7a] sm:$0xff]
      %v3280 = vld [vmem:[#allocation4 + $0x82] sm:$0xff]
      %v3281 = vld [vmem:[#allocation4 + $0x92] sm:$0xff]
      %v3282 = vld [vmem:[#allocation4 + $0x9a] sm:$0xff]
      %v3283 = vld [vmem:[#allocation4 + $0xaa] sm:$0xff]
      %v3284 = vld [vmem:[#allocation4 + $0xb2] sm:$0xff]
      %v3285 = vld [vmem:[#allocation4 + $0xc2] sm:$0xff]
      %v3286 = vld [vmem:[#allocation4 + $0xca] sm:$0xff]
      %v3287 = vld [vmem:[#allocation4 + $0xda] sm:$0xff]
      %v3288 = vld [vmem:[#allocation4 + $0xe2] sm:$0xff]
      %v3289 = vld [vmem:[#allocation4 + $0xf2] sm:$0xff]
      %v3290 = vld [vmem:[#allocation4 + $0xfa] sm:$0xff]
      %v3291 = vld [vmem:[#allocation4 + $0x10a] sm:$0xff]
      %v3292 = vld [vmem:[#allocation4 + $0x112] sm:$0xff]
      %v3293 = vld [vmem:[#allocation4 + $0x122] sm:$0xff]
      %v3294 = vld [vmem:[#allocation4 + $0x12a] sm:$0xff]
      %v3295 = vld [vmem:[#allocation4 + $0x13a] sm:$0xff]
      %v3296 = vld [vmem:[#allocation4 + $0x142] sm:$0xff]
      %v3297 = vld [vmem:[#allocation4 + $0x152] sm:$0xff]
      %v3298 = vld [vmem:[#allocation4 + $0x15a] sm:$0xff]
      %v3299 = vld [vmem:[#allocation4 + $0x16a] sm:$0xff]
      %v3300 = vld [vmem:[#allocation4 + $0x172] sm:$0xff]
      %3333 = vrot.lane.b32.xlu0 %v3269, 64
      %v3334 = vpop.permute.xlu0 %3333
      %3335 = vrot.lane.b32.xlu0 %v3270, 64
      %v3336 = vpop.permute.xlu0 %3335
      %3337 = vrot.lane.b32.xlu0 %v3271, 64
      %v3338 = vpop.permute.xlu0 %3337
      %3339 = vrot.lane.b32.xlu0 %v3272, 64
      %v3340 = vpop.permute.xlu0 %3339
      %3341 = vrot.lane.b32.xlu0 %v3273, 64
      %v3342 = vpop.permute.xlu0 %3341
      %3343 = vrot.lane.b32.xlu0 %v3274, 64
      %v3344 = vpop.permute.xlu0 %3343
      %3345 = vrot.lane.b32.xlu0 %v3275, 64
      %v3346 = vpop.permute.xlu0 %3345
      %3347 = vrot.lane.b32.xlu0 %v3276, 64
      %v3348 = vpop.permute.xlu0 %3347
      %3349 = vrot.lane.b32.xlu0 %v3277, 64
      %v3350 = vpop.permute.xlu0 %3349
      %3351 = vrot.lane.b32.xlu0 %v3278, 64
      %v3352 = vpop.permute.xlu0 %3351
      %3353 = vrot.lane.b32.xlu0 %v3279, 64
      %v3354 = vpop.permute.xlu0 %3353
      %3355 = vrot.lane.b32.xlu0 %v3280, 64
      %v3356 = vpop.permute.xlu0 %3355
      %3357 = vrot.lane.b32.xlu0 %v3281, 64
      %v3358 = vpop.permute.xlu0 %3357
      %3359 = vrot.lane.b32.xlu0 %v3282, 64
      %v3360 = vpop.permute.xlu0 %3359
      %3361 = vrot.lane.b32.xlu0 %v3283, 64
      %v3362 = vpop.permute.xlu0 %3361
      %3363 = vrot.lane.b32.xlu0 %v3284, 64
      %v3364 = vpop.permute.xlu0 %3363
      %3365 = vrot.lane.b32.xlu0 %v3285, 64
      %v3366 = vpop.permute.xlu0 %3365
      %3367 = vrot.lane.b32.xlu0 %v3286, 64
      %v3368 = vpop.permute.xlu0 %3367
      %3369 = vrot.lane.b32.xlu0 %v3287, 64
      %v3370 = vpop.permute.xlu0 %3369
      %3371 = vrot.lane.b32.xlu0 %v3288, 64
      %v3372 = vpop.permute.xlu0 %3371
      %3373 = vrot.lane.b32.xlu0 %v3289, 64
      %v3374 = vpop.permute.xlu0 %3373
      %3375 = vrot.lane.b32.xlu0 %v3290, 64
      %v3376 = vpop.permute.xlu0 %3375
      %3377 = vrot.lane.b32.xlu0 %v3291, 64
      %v3378 = vpop.permute.xlu0 %3377
      %3379 = vrot.lane.b32.xlu0 %v3292, 64
      %v3380 = vpop.permute.xlu0 %3379
      %3381 = vrot.lane.b32.xlu0 %v3293, 64
      %v3382 = vpop.permute.xlu0 %3381
      %3383 = vrot.lane.b32.xlu0 %v3294, 64
      %v3384 = vpop.permute.xlu0 %3383
      %3385 = vrot.lane.b32.xlu0 %v3295, 64
      %v3386 = vpop.permute.xlu0 %3385
      %3387 = vrot.lane.b32.xlu0 %v3296, 64
      %v3388 = vpop.permute.xlu0 %3387
      %3389 = vrot.lane.b32.xlu0 %v3297, 64
      %v3390 = vpop.permute.xlu0 %3389
      %3391 = vrot.lane.b32.xlu0 %v3298, 64
      %v3392 = vpop.permute.xlu0 %3391
      %3393 = vrot.lane.b32.xlu0 %v3299, 64
      %v3394 = vpop.permute.xlu0 %3393
      %3395 = vrot.lane.b32.xlu0 %v3300, 64
      %v3396 = vpop.permute.xlu0 %3395
      %vm3429 = vcmask 785920
      %3430 = vst.msk [vmem:[#allocation5] sm:$0xff] %vm3429, %v3334
      %3431 = vst.msk [vmem:[#allocation5 + $0x18] sm:$0xff] %vm3429, %v3336
      %3432 = vst.msk [vmem:[#allocation5 + $0x30] sm:$0xff] %vm3429, %v3338
      %3433 = vst.msk [vmem:[#allocation5 + $0x48] sm:$0xff] %vm3429, %v3340
      %3434 = vst.msk [vmem:[#allocation5 + $0x60] sm:$0xff] %vm3429, %v3342
      %3435 = vst.msk [vmem:[#allocation5 + $0x78] sm:$0xff] %vm3429, %v3344
      %3436 = vst.msk [vmem:[#allocation5 + $0x90] sm:$0xff] %vm3429, %v3346
      %3437 = vst.msk [vmem:[#allocation5 + $0xa8] sm:$0xff] %vm3429, %v3348
      %3438 = vst.msk [vmem:[#allocation5 + $0xc0] sm:$0xff] %vm3429, %v3350
      %3439 = vst.msk [vmem:[#allocation5 + $0xd8] sm:$0xff] %vm3429, %v3352
      %3440 = vst.msk [vmem:[#allocation5 + $0xf0] sm:$0xff] %vm3429, %v3354
      %3441 = vst.msk [vmem:[#allocation5 + $0x108] sm:$0xff] %vm3429, %v3356
      %3442 = vst.msk [vmem:[#allocation5 + $0x120] sm:$0xff] %vm3429, %v3358
      %3443 = vst.msk [vmem:[#allocation5 + $0x138] sm:$0xff] %vm3429, %v3360
      %3444 = vst.msk [vmem:[#allocation5 + $0x150] sm:$0xff] %vm3429, %v3362
      %3445 = vst.msk [vmem:[#allocation5 + $0x168] sm:$0xff] %vm3429, %v3364
      %3446 = vst.msk [vmem:[#allocation5 + $0x180] sm:$0xff] %vm3429, %v3366
      %3447 = vst.msk [vmem:[#allocation5 + $0x198] sm:$0xff] %vm3429, %v3368
      %3448 = vst.msk [vmem:[#allocation5 + $0x1b0] sm:$0xff] %vm3429, %v3370
      %3449 = vst.msk [vmem:[#allocation5 + $0x1c8] sm:$0xff] %vm3429, %v3372
      %3450 = vst.msk [vmem:[#allocation5 + $0x1e0] sm:$0xff] %vm3429, %v3374
      %3451 = vst.msk [vmem:[#allocation5 + $0x1f8] sm:$0xff] %vm3429, %v3376
      %3452 = vst.msk [vmem:[#allocation5 + $0x210] sm:$0xff] %vm3429, %v3378
      %3453 = vst.msk [vmem:[#allocation5 + $0x228] sm:$0xff] %vm3429, %v3380
      %3454 = vst.msk [vmem:[#allocation5 + $0x240] sm:$0xff] %vm3429, %v3382
      %3455 = vst.msk [vmem:[#allocation5 + $0x258] sm:$0xff] %vm3429, %v3384
      %3456 = vst.msk [vmem:[#allocation5 + $0x270] sm:$0xff] %vm3429, %v3386
      %3457 = vst.msk [vmem:[#allocation5 + $0x288] sm:$0xff] %vm3429, %v3388
      %3458 = vst.msk [vmem:[#allocation5 + $0x2a0] sm:$0xff] %vm3429, %v3390
      %3459 = vst.msk [vmem:[#allocation5 + $0x2b8] sm:$0xff] %vm3429, %v3392
      %3460 = vst.msk [vmem:[#allocation5 + $0x2d0] sm:$0xff] %vm3429, %v3394
      %3461 = vst.msk [vmem:[#allocation5 + $0x2e8] sm:$0xff] %vm3429, %v3396
      %v3462 = vld [vmem:[%s439] sm:$0xff]
      %v3463 = vld [vmem:[%s439 + $0x8] sm:$0xff]
      %v3464 = vld [vmem:[%s439 + $0x18] sm:$0xff]
      %v3465 = vld [vmem:[%s439 + $0x20] sm:$0xff]
      %v3466 = vld [vmem:[%s439 + $0x30] sm:$0xff]
      %v3467 = vld [vmem:[%s439 + $0x38] sm:$0xff]
      %v3468 = vld [vmem:[%s439 + $0x48] sm:$0xff]
      %v3469 = vld [vmem:[%s439 + $0x50] sm:$0xff]
      %v3470 = vld [vmem:[%s439 + $0x60] sm:$0xff]
      %v3471 = vld [vmem:[%s439 + $0x68] sm:$0xff]
      %v3472 = vld [vmem:[%s439 + $0x78] sm:$0xff]
      %v3473 = vld [vmem:[%s439 + $0x80] sm:$0xff]
      %v3474 = vld [vmem:[%s439 + $0x90] sm:$0xff]
      %v3475 = vld [vmem:[%s439 + $0x98] sm:$0xff]
      %v3476 = vld [vmem:[%s439 + $0xa8] sm:$0xff]
      %v3477 = vld [vmem:[%s439 + $0xb0] sm:$0xff]
      %v3478 = vld [vmem:[%s439 + $0xc0] sm:$0xff]
      %v3479 = vld [vmem:[%s439 + $0xc8] sm:$0xff]
      %v3480 = vld [vmem:[%s439 + $0xd8] sm:$0xff]
      %v3481 = vld [vmem:[%s439 + $0xe0] sm:$0xff]
      %v3482 = vld [vmem:[%s439 + $0xf0] sm:$0xff]
      %v3483 = vld [vmem:[%s439 + $0xf8] sm:$0xff]
      %v3484 = vld [vmem:[%s439 + $0x108] sm:$0xff]
      %v3485 = vld [vmem:[%s439 + $0x110] sm:$0xff]
      %v3486 = vld [vmem:[%s439 + $0x120] sm:$0xff]
      %v3487 = vld [vmem:[%s439 + $0x128] sm:$0xff]
      %v3488 = vld [vmem:[%s439 + $0x138] sm:$0xff]
      %v3489 = vld [vmem:[%s439 + $0x140] sm:$0xff]
      %v3490 = vld [vmem:[%s439 + $0x150] sm:$0xff]
      %v3491 = vld [vmem:[%s439 + $0x158] sm:$0xff]
      %v3492 = vld [vmem:[%s439 + $0x168] sm:$0xff]
      %v3493 = vld [vmem:[%s439 + $0x170] sm:$0xff]
      %3526 = vrot.lane.b32.xlu0 %v3462, 96
      %v3527 = vpop.permute.xlu0 %3526
      %3528 = vrot.lane.b32.xlu0 %v3463, 96
      %v3529 = vpop.permute.xlu0 %3528
      %3530 = vrot.lane.b32.xlu0 %v3464, 96
      %v3531 = vpop.permute.xlu0 %3530
      %3532 = vrot.lane.b32.xlu0 %v3465, 96
      %v3533 = vpop.permute.xlu0 %3532
      %3534 = vrot.lane.b32.xlu0 %v3466, 96
      %v3535 = vpop.permute.xlu0 %3534
      %3536 = vrot.lane.b32.xlu0 %v3467, 96
      %v3537 = vpop.permute.xlu0 %3536
      %3538 = vrot.lane.b32.xlu0 %v3468, 96
      %v3539 = vpop.permute.xlu0 %3538
      %3540 = vrot.lane.b32.xlu0 %v3469, 96
      %v3541 = vpop.permute.xlu0 %3540
      %3542 = vrot.lane.b32.xlu0 %v3470, 96
      %v3543 = vpop.permute.xlu0 %3542
      %3544 = vrot.lane.b32.xlu0 %v3471, 96
      %v3545 = vpop.permute.xlu0 %3544
      %3546 = vrot.lane.b32.xlu0 %v3472, 96
      %v3547 = vpop.permute.xlu0 %3546
      %3548 = vrot.lane.b32.xlu0 %v3473, 96
      %v3549 = vpop.permute.xlu0 %3548
      %3550 = vrot.lane.b32.xlu0 %v3474, 96
      %v3551 = vpop.permute.xlu0 %3550
      %3552 = vrot.lane.b32.xlu0 %v3475, 96
      %v3553 = vpop.permute.xlu0 %3552
      %3554 = vrot.lane.b32.xlu0 %v3476, 96
      %v3555 = vpop.permute.xlu0 %3554
      %3556 = vrot.lane.b32.xlu0 %v3477, 96
      %v3557 = vpop.permute.xlu0 %3556
      %3558 = vrot.lane.b32.xlu0 %v3478, 96
      %v3559 = vpop.permute.xlu0 %3558
      %3560 = vrot.lane.b32.xlu0 %v3479, 96
      %v3561 = vpop.permute.xlu0 %3560
      %3562 = vrot.lane.b32.xlu0 %v3480, 96
      %v3563 = vpop.permute.xlu0 %3562
      %3564 = vrot.lane.b32.xlu0 %v3481, 96
      %v3565 = vpop.permute.xlu0 %3564
      %3566 = vrot.lane.b32.xlu0 %v3482, 96
      %v3567 = vpop.permute.xlu0 %3566
      %3568 = vrot.lane.b32.xlu0 %v3483, 96
      %v3569 = vpop.permute.xlu0 %3568
      %3570 = vrot.lane.b32.xlu0 %v3484, 96
      %v3571 = vpop.permute.xlu0 %3570
      %3572 = vrot.lane.b32.xlu0 %v3485, 96
      %v3573 = vpop.permute.xlu0 %3572
      %3574 = vrot.lane.b32.xlu0 %v3486, 96
      %v3575 = vpop.permute.xlu0 %3574
      %3576 = vrot.lane.b32.xlu0 %v3487, 96
      %v3577 = vpop.permute.xlu0 %3576
      %3578 = vrot.lane.b32.xlu0 %v3488, 96
      %v3579 = vpop.permute.xlu0 %3578
      %3580 = vrot.lane.b32.xlu0 %v3489, 96
      %v3581 = vpop.permute.xlu0 %3580
      %3582 = vrot.lane.b32.xlu0 %v3490, 96
      %v3583 = vpop.permute.xlu0 %3582
      %3584 = vrot.lane.b32.xlu0 %v3491, 96
      %v3585 = vpop.permute.xlu0 %3584
      %3586 = vrot.lane.b32.xlu0 %v3492, 96
      %v3587 = vpop.permute.xlu0 %3586
      %3588 = vrot.lane.b32.xlu0 %v3493, 96
      %v3589 = vpop.permute.xlu0 %3588
      %vm3622 = vcmask 1048320
      %3623 = vst.msk [vmem:[#allocation5] sm:$0xff] %vm3622, %v3527
      %3624 = vst.msk [vmem:[#allocation5 + $0x18] sm:$0xff] %vm3622, %v3529
      %3625 = vst.msk [vmem:[#allocation5 + $0x30] sm:$0xff] %vm3622, %v3531
      %3626 = vst.msk [vmem:[#allocation5 + $0x48] sm:$0xff] %vm3622, %v3533
      %3627 = vst.msk [vmem:[#allocation5 + $0x60] sm:$0xff] %vm3622, %v3535
      %3628 = vst.msk [vmem:[#allocation5 + $0x78] sm:$0xff] %vm3622, %v3537
      %3629 = vst.msk [vmem:[#allocation5 + $0x90] sm:$0xff] %vm3622, %v3539
      %3630 = vst.msk [vmem:[#allocation5 + $0xa8] sm:$0xff] %vm3622, %v3541
      %3631 = vst.msk [vmem:[#allocation5 + $0xc0] sm:$0xff] %vm3622, %v3543
      %3632 = vst.msk [vmem:[#allocation5 + $0xd8] sm:$0xff] %vm3622, %v3545
      %3633 = vst.msk [vmem:[#allocation5 + $0xf0] sm:$0xff] %vm3622, %v3547
      %3634 = vst.msk [vmem:[#allocation5 + $0x108] sm:$0xff] %vm3622, %v3549
      %3635 = vst.msk [vmem:[#allocation5 + $0x120] sm:$0xff] %vm3622, %v3551
      %3636 = vst.msk [vmem:[#allocation5 + $0x138] sm:$0xff] %vm3622, %v3553
      %3637 = vst.msk [vmem:[#allocation5 + $0x150] sm:$0xff] %vm3622, %v3555
      %3638 = vst.msk [vmem:[#allocation5 + $0x168] sm:$0xff] %vm3622, %v3557
      %3639 = vst.msk [vmem:[#allocation5 + $0x180] sm:$0xff] %vm3622, %v3559
      %3640 = vst.msk [vmem:[#allocation5 + $0x198] sm:$0xff] %vm3622, %v3561
      %3641 = vst.msk [vmem:[#allocation5 + $0x1b0] sm:$0xff] %vm3622, %v3563
      %3642 = vst.msk [vmem:[#allocation5 + $0x1c8] sm:$0xff] %vm3622, %v3565
      %3643 = vst.msk [vmem:[#allocation5 + $0x1e0] sm:$0xff] %vm3622, %v3567
      %3644 = vst.msk [vmem:[#allocation5 + $0x1f8] sm:$0xff] %vm3622, %v3569
      %3645 = vst.msk [vmem:[#allocation5 + $0x210] sm:$0xff] %vm3622, %v3571
      %3646 = vst.msk [vmem:[#allocation5 + $0x228] sm:$0xff] %vm3622, %v3573
      %3647 = vst.msk [vmem:[#allocation5 + $0x240] sm:$0xff] %vm3622, %v3575
      %3648 = vst.msk [vmem:[#allocation5 + $0x258] sm:$0xff] %vm3622, %v3577
      %3649 = vst.msk [vmem:[#allocation5 + $0x270] sm:$0xff] %vm3622, %v3579
      %3650 = vst.msk [vmem:[#allocation5 + $0x288] sm:$0xff] %vm3622, %v3581
      %3651 = vst.msk [vmem:[#allocation5 + $0x2a0] sm:$0xff] %vm3622, %v3583
      %3652 = vst.msk [vmem:[#allocation5 + $0x2b8] sm:$0xff] %vm3622, %v3585
      %3653 = vst.msk [vmem:[#allocation5 + $0x2d0] sm:$0xff] %vm3622, %v3587
      %3654 = vst.msk [vmem:[#allocation5 + $0x2e8] sm:$0xff] %vm3622, %v3589
      %v3655 = vld [vmem:[%s439 + $0x1] sm:$0xff]
      %v3656 = vld [vmem:[%s439 + $0x9] sm:$0xff]
      %v3657 = vld [vmem:[%s439 + $0x19] sm:$0xff]
      %v3658 = vld [vmem:[%s439 + $0x21] sm:$0xff]
      %v3659 = vld [vmem:[%s439 + $0x31] sm:$0xff]
      %v3660 = vld [vmem:[%s439 + $0x39] sm:$0xff]
      %v3661 = vld [vmem:[%s439 + $0x49] sm:$0xff]
      %v3662 = vld [vmem:[%s439 + $0x51] sm:$0xff]
      %v3663 = vld [vmem:[%s439 + $0x61] sm:$0xff]
      %v3664 = vld [vmem:[%s439 + $0x69] sm:$0xff]
      %v3665 = vld [vmem:[%s439 + $0x79] sm:$0xff]
      %v3666 = vld [vmem:[%s439 + $0x81] sm:$0xff]
      %v3667 = vld [vmem:[%s439 + $0x91] sm:$0xff]
      %v3668 = vld [vmem:[%s439 + $0x99] sm:$0xff]
      %v3669 = vld [vmem:[%s439 + $0xa9] sm:$0xff]
      %v3670 = vld [vmem:[%s439 + $0xb1] sm:$0xff]
      %v3671 = vld [vmem:[%s439 + $0xc1] sm:$0xff]
      %v3672 = vld [vmem:[%s439 + $0xc9] sm:$0xff]
      %v3673 = vld [vmem:[%s439 + $0xd9] sm:$0xff]
      %v3674 = vld [vmem:[%s439 + $0xe1] sm:$0xff]
      %v3675 = vld [vmem:[%s439 + $0xf1] sm:$0xff]
      %v3676 = vld [vmem:[%s439 + $0xf9] sm:$0xff]
      %v3677 = vld [vmem:[%s439 + $0x109] sm:$0xff]
      %v3678 = vld [vmem:[%s439 + $0x111] sm:$0xff]
      %v3679 = vld [vmem:[%s439 + $0x121] sm:$0xff]
      %v3680 = vld [vmem:[%s439 + $0x129] sm:$0xff]
      %v3681 = vld [vmem:[%s439 + $0x139] sm:$0xff]
      %v3682 = vld [vmem:[%s439 + $0x141] sm:$0xff]
      %v3683 = vld [vmem:[%s439 + $0x151] sm:$0xff]
      %v3684 = vld [vmem:[%s439 + $0x159] sm:$0xff]
      %v3685 = vld [vmem:[%s439 + $0x169] sm:$0xff]
      %v3686 = vld [vmem:[%s439 + $0x171] sm:$0xff]
      %3687 = vst.msk [vmem:[#allocation5 + $0x8] sm:$0xff] %vm430, %v3655
      %3688 = vst.msk [vmem:[#allocation5 + $0x20] sm:$0xff] %vm430, %v3656
      %3689 = vst.msk [vmem:[#allocation5 + $0x38] sm:$0xff] %vm430, %v3657
      %3690 = vst.msk [vmem:[#allocation5 + $0x50] sm:$0xff] %vm430, %v3658
      %3691 = vst.msk [vmem:[#allocation5 + $0x68] sm:$0xff] %vm430, %v3659
      %3692 = vst.msk [vmem:[#allocation5 + $0x80] sm:$0xff] %vm430, %v3660
      %3693 = vst.msk [vmem:[#allocation5 + $0x98] sm:$0xff] %vm430, %v3661
      %3694 = vst.msk [vmem:[#allocation5 + $0xb0] sm:$0xff] %vm430, %v3662
      %3695 = vst.msk [vmem:[#allocation5 + $0xc8] sm:$0xff] %vm430, %v3663
      %3696 = vst.msk [vmem:[#allocation5 + $0xe0] sm:$0xff] %vm430, %v3664
      %3697 = vst.msk [vmem:[#allocation5 + $0xf8] sm:$0xff] %vm430, %v3665
      %3698 = vst.msk [vmem:[#allocation5 + $0x110] sm:$0xff] %vm430, %v3666
      %3699 = vst.msk [vmem:[#allocation5 + $0x128] sm:$0xff] %vm430, %v3667
      %3700 = vst.msk [vmem:[#allocation5 + $0x140] sm:$0xff] %vm430, %v3668
      %3701 = vst.msk [vmem:[#allocation5 + $0x158] sm:$0xff] %vm430, %v3669
      %3702 = vst.msk [vmem:[#allocation5 + $0x170] sm:$0xff] %vm430, %v3670
      %3703 = vst.msk [vmem:[#allocation5 + $0x188] sm:$0xff] %vm430, %v3671
      %3704 = vst.msk [vmem:[#allocation5 + $0x1a0] sm:$0xff] %vm430, %v3672
      %3705 = vst.msk [vmem:[#allocation5 + $0x1b8] sm:$0xff] %vm430, %v3673
      %3706 = vst.msk [vmem:[#allocation5 + $0x1d0] sm:$0xff] %vm430, %v3674
      %3707 = vst.msk [vmem:[#allocation5 + $0x1e8] sm:$0xff] %vm430, %v3675
      %3708 = vst.msk [vmem:[#allocation5 + $0x200] sm:$0xff] %vm430, %v3676
      %3709 = vst.msk [vmem:[#allocation5 + $0x218] sm:$0xff] %vm430, %v3677
      %3710 = vst.msk [vmem:[#allocation5 + $0x230] sm:$0xff] %vm430, %v3678
      %3711 = vst.msk [vmem:[#allocation5 + $0x248] sm:$0xff] %vm430, %v3679
      %3712 = vst.msk [vmem:[#allocation5 + $0x260] sm:$0xff] %vm430, %v3680
      %3713 = vst.msk [vmem:[#allocation5 + $0x278] sm:$0xff] %vm430, %v3681
      %3714 = vst.msk [vmem:[#allocation5 + $0x290] sm:$0xff] %vm430, %v3682
      %3715 = vst.msk [vmem:[#allocation5 + $0x2a8] sm:$0xff] %vm430, %v3683
      %3716 = vst.msk [vmem:[#allocation5 + $0x2c0] sm:$0xff] %vm430, %v3684
      %3717 = vst.msk [vmem:[#allocation5 + $0x2d8] sm:$0xff] %vm430, %v3685
      %3718 = vst.msk [vmem:[#allocation5 + $0x2f0] sm:$0xff] %vm430, %v3686
      %v3719 = vld [vmem:[%s439 + $0x2] sm:$0xff]
      %v3720 = vld [vmem:[%s439 + $0xa] sm:$0xff]
      %v3721 = vld [vmem:[%s439 + $0x1a] sm:$0xff]
      %v3722 = vld [vmem:[%s439 + $0x22] sm:$0xff]
      %v3723 = vld [vmem:[%s439 + $0x32] sm:$0xff]
      %v3724 = vld [vmem:[%s439 + $0x3a] sm:$0xff]
      %v3725 = vld [vmem:[%s439 + $0x4a] sm:$0xff]
      %v3726 = vld [vmem:[%s439 + $0x52] sm:$0xff]
      %v3727 = vld [vmem:[%s439 + $0x62] sm:$0xff]
      %v3728 = vld [vmem:[%s439 + $0x6a] sm:$0xff]
      %v3729 = vld [vmem:[%s439 + $0x7a] sm:$0xff]
      %v3730 = vld [vmem:[%s439 + $0x82] sm:$0xff]
      %v3731 = vld [vmem:[%s439 + $0x92] sm:$0xff]
      %v3732 = vld [vmem:[%s439 + $0x9a] sm:$0xff]
      %v3733 = vld [vmem:[%s439 + $0xaa] sm:$0xff]
      %v3734 = vld [vmem:[%s439 + $0xb2] sm:$0xff]
      %v3735 = vld [vmem:[%s439 + $0xc2] sm:$0xff]
      %v3736 = vld [vmem:[%s439 + $0xca] sm:$0xff]
      %v3737 = vld [vmem:[%s439 + $0xda] sm:$0xff]
      %v3738 = vld [vmem:[%s439 + $0xe2] sm:$0xff]
      %v3739 = vld [vmem:[%s439 + $0xf2] sm:$0xff]
      %v3740 = vld [vmem:[%s439 + $0xfa] sm:$0xff]
      %v3741 = vld [vmem:[%s439 + $0x10a] sm:$0xff]
      %v3742 = vld [vmem:[%s439 + $0x112] sm:$0xff]
      %v3743 = vld [vmem:[%s439 + $0x122] sm:$0xff]
      %v3744 = vld [vmem:[%s439 + $0x12a] sm:$0xff]
      %v3745 = vld [vmem:[%s439 + $0x13a] sm:$0xff]
      %v3746 = vld [vmem:[%s439 + $0x142] sm:$0xff]
      %v3747 = vld [vmem:[%s439 + $0x152] sm:$0xff]
      %v3748 = vld [vmem:[%s439 + $0x15a] sm:$0xff]
      %v3749 = vld [vmem:[%s439 + $0x16a] sm:$0xff]
      %v3750 = vld [vmem:[%s439 + $0x172] sm:$0xff]
      %3783 = vrot.lane.b32.xlu0 %v3719, 32
      %v3784 = vpop.permute.xlu0 %3783
      %3785 = vrot.lane.b32.xlu0 %v3720, 32
      %v3786 = vpop.permute.xlu0 %3785
      %3787 = vrot.lane.b32.xlu0 %v3721, 32
      %v3788 = vpop.permute.xlu0 %3787
      %3789 = vrot.lane.b32.xlu0 %v3722, 32
      %v3790 = vpop.permute.xlu0 %3789
      %3791 = vrot.lane.b32.xlu0 %v3723, 32
      %v3792 = vpop.permute.xlu0 %3791
      %3793 = vrot.lane.b32.xlu0 %v3724, 32
      %v3794 = vpop.permute.xlu0 %3793
      %3795 = vrot.lane.b32.xlu0 %v3725, 32
      %v3796 = vpop.permute.xlu0 %3795
      %3797 = vrot.lane.b32.xlu0 %v3726, 32
      %v3798 = vpop.permute.xlu0 %3797
      %3799 = vrot.lane.b32.xlu0 %v3727, 32
      %v3800 = vpop.permute.xlu0 %3799
      %3801 = vrot.lane.b32.xlu0 %v3728, 32
      %v3802 = vpop.permute.xlu0 %3801
      %3803 = vrot.lane.b32.xlu0 %v3729, 32
      %v3804 = vpop.permute.xlu0 %3803
      %3805 = vrot.lane.b32.xlu0 %v3730, 32
      %v3806 = vpop.permute.xlu0 %3805
      %3807 = vrot.lane.b32.xlu0 %v3731, 32
      %v3808 = vpop.permute.xlu0 %3807
      %3809 = vrot.lane.b32.xlu0 %v3732, 32
      %v3810 = vpop.permute.xlu0 %3809
      %3811 = vrot.lane.b32.xlu0 %v3733, 32
      %v3812 = vpop.permute.xlu0 %3811
      %3813 = vrot.lane.b32.xlu0 %v3734, 32
      %v3814 = vpop.permute.xlu0 %3813
      %3815 = vrot.lane.b32.xlu0 %v3735, 32
      %v3816 = vpop.permute.xlu0 %3815
      %3817 = vrot.lane.b32.xlu0 %v3736, 32
      %v3818 = vpop.permute.xlu0 %3817
      %3819 = vrot.lane.b32.xlu0 %v3737, 32
      %v3820 = vpop.permute.xlu0 %3819
      %3821 = vrot.lane.b32.xlu0 %v3738, 32
      %v3822 = vpop.permute.xlu0 %3821
      %3823 = vrot.lane.b32.xlu0 %v3739, 32
      %v3824 = vpop.permute.xlu0 %3823
      %3825 = vrot.lane.b32.xlu0 %v3740, 32
      %v3826 = vpop.permute.xlu0 %3825
      %3827 = vrot.lane.b32.xlu0 %v3741, 32
      %v3828 = vpop.permute.xlu0 %3827
      %3829 = vrot.lane.b32.xlu0 %v3742, 32
      %v3830 = vpop.permute.xlu0 %3829
      %3831 = vrot.lane.b32.xlu0 %v3743, 32
      %v3832 = vpop.permute.xlu0 %3831
      %3833 = vrot.lane.b32.xlu0 %v3744, 32
      %v3834 = vpop.permute.xlu0 %3833
      %3835 = vrot.lane.b32.xlu0 %v3745, 32
      %v3836 = vpop.permute.xlu0 %3835
      %3837 = vrot.lane.b32.xlu0 %v3746, 32
      %v3838 = vpop.permute.xlu0 %3837
      %3839 = vrot.lane.b32.xlu0 %v3747, 32
      %v3840 = vpop.permute.xlu0 %3839
      %3841 = vrot.lane.b32.xlu0 %v3748, 32
      %v3842 = vpop.permute.xlu0 %3841
      %3843 = vrot.lane.b32.xlu0 %v3749, 32
      %v3844 = vpop.permute.xlu0 %3843
      %3845 = vrot.lane.b32.xlu0 %v3750, 32
      %v3846 = vpop.permute.xlu0 %3845
      %3879 = vst.msk [vmem:[#allocation5 + $0x8] sm:$0xff] %vm3236, %v3784
      %3880 = vst.msk [vmem:[#allocation5 + $0x20] sm:$0xff] %vm3236, %v3786
      %3881 = vst.msk [vmem:[#allocation5 + $0x38] sm:$0xff] %vm3236, %v3788
      %3882 = vst.msk [vmem:[#allocation5 + $0x50] sm:$0xff] %vm3236, %v3790
      %3883 = vst.msk [vmem:[#allocation5 + $0x68] sm:$0xff] %vm3236, %v3792
      %3884 = vst.msk [vmem:[#allocation5 + $0x80] sm:$0xff] %vm3236, %v3794
      %3885 = vst.msk [vmem:[#allocation5 + $0x98] sm:$0xff] %vm3236, %v3796
      %3886 = vst.msk [vmem:[#allocation5 + $0xb0] sm:$0xff] %vm3236, %v3798
      %3887 = vst.msk [vmem:[#allocation5 + $0xc8] sm:$0xff] %vm3236, %v3800
      %3888 = vst.msk [vmem:[#allocation5 + $0xe0] sm:$0xff] %vm3236, %v3802
      %3889 = vst.msk [vmem:[#allocation5 + $0xf8] sm:$0xff] %vm3236, %v3804
      %3890 = vst.msk [vmem:[#allocation5 + $0x110] sm:$0xff] %vm3236, %v3806
      %3891 = vst.msk [vmem:[#allocation5 + $0x128] sm:$0xff] %vm3236, %v3808
      %3892 = vst.msk [vmem:[#allocation5 + $0x140] sm:$0xff] %vm3236, %v3810
      %3893 = vst.msk [vmem:[#allocation5 + $0x158] sm:$0xff] %vm3236, %v3812
      %3894 = vst.msk [vmem:[#allocation5 + $0x170] sm:$0xff] %vm3236, %v3814
      %3895 = vst.msk [vmem:[#allocation5 + $0x188] sm:$0xff] %vm3236, %v3816
      %3896 = vst.msk [vmem:[#allocation5 + $0x1a0] sm:$0xff] %vm3236, %v3818
      %3897 = vst.msk [vmem:[#allocation5 + $0x1b8] sm:$0xff] %vm3236, %v3820
      %3898 = vst.msk [vmem:[#allocation5 + $0x1d0] sm:$0xff] %vm3236, %v3822
      %3899 = vst.msk [vmem:[#allocation5 + $0x1e8] sm:$0xff] %vm3236, %v3824
      %3900 = vst.msk [vmem:[#allocation5 + $0x200] sm:$0xff] %vm3236, %v3826
      %3901 = vst.msk [vmem:[#allocation5 + $0x218] sm:$0xff] %vm3236, %v3828
      %3902 = vst.msk [vmem:[#allocation5 + $0x230] sm:$0xff] %vm3236, %v3830
      %3903 = vst.msk [vmem:[#allocation5 + $0x248] sm:$0xff] %vm3236, %v3832
      %3904 = vst.msk [vmem:[#allocation5 + $0x260] sm:$0xff] %vm3236, %v3834
      %3905 = vst.msk [vmem:[#allocation5 + $0x278] sm:$0xff] %vm3236, %v3836
      %3906 = vst.msk [vmem:[#allocation5 + $0x290] sm:$0xff] %vm3236, %v3838
      %3907 = vst.msk [vmem:[#allocation5 + $0x2a8] sm:$0xff] %vm3236, %v3840
      %3908 = vst.msk [vmem:[#allocation5 + $0x2c0] sm:$0xff] %vm3236, %v3842
      %3909 = vst.msk [vmem:[#allocation5 + $0x2d8] sm:$0xff] %vm3236, %v3844
      %3910 = vst.msk [vmem:[#allocation5 + $0x2f0] sm:$0xff] %vm3236, %v3846
      %s3911 = scalar_lea.vmem [#allocation4], 48
      %v3912 = vld [vmem:[%s3911] sm:$0xff]
      %v3913 = vld [vmem:[%s3911 + $0x8] sm:$0xff]
      %v3914 = vld [vmem:[%s3911 + $0x18] sm:$0xff]
      %v3915 = vld [vmem:[%s3911 + $0x20] sm:$0xff]
      %v3916 = vld [vmem:[%s3911 + $0x30] sm:$0xff]
      %v3917 = vld [vmem:[%s3911 + $0x38] sm:$0xff]
      %v3918 = vld [vmem:[%s3911 + $0x48] sm:$0xff]
      %v3919 = vld [vmem:[%s3911 + $0x50] sm:$0xff]
      %v3920 = vld [vmem:[%s3911 + $0x60] sm:$0xff]
      %v3921 = vld [vmem:[%s3911 + $0x68] sm:$0xff]
      %v3922 = vld [vmem:[%s3911 + $0x78] sm:$0xff]
      %v3923 = vld [vmem:[%s3911 + $0x80] sm:$0xff]
      %v3924 = vld [vmem:[%s3911 + $0x90] sm:$0xff]
      %v3925 = vld [vmem:[%s3911 + $0x98] sm:$0xff]
      %v3926 = vld [vmem:[%s3911 + $0xa8] sm:$0xff]
      %v3927 = vld [vmem:[%s3911 + $0xb0] sm:$0xff]
      %v3928 = vld [vmem:[%s3911 + $0xc0] sm:$0xff]
      %v3929 = vld [vmem:[%s3911 + $0xc8] sm:$0xff]
      %v3930 = vld [vmem:[%s3911 + $0xd8] sm:$0xff]
      %v3931 = vld [vmem:[%s3911 + $0xe0] sm:$0xff]
      %v3932 = vld [vmem:[%s3911 + $0xf0] sm:$0xff]
      %v3933 = vld [vmem:[%s3911 + $0xf8] sm:$0xff]
      %v3934 = vld [vmem:[%s3911 + $0x108] sm:$0xff]
      %v3935 = vld [vmem:[%s3911 + $0x110] sm:$0xff]
      %v3936 = vld [vmem:[%s3911 + $0x120] sm:$0xff]
      %v3937 = vld [vmem:[%s3911 + $0x128] sm:$0xff]
      %v3938 = vld [vmem:[%s3911 + $0x138] sm:$0xff]
      %v3939 = vld [vmem:[%s3911 + $0x140] sm:$0xff]
      %v3940 = vld [vmem:[%s3911 + $0x150] sm:$0xff]
      %v3941 = vld [vmem:[%s3911 + $0x158] sm:$0xff]
      %v3942 = vld [vmem:[%s3911 + $0x168] sm:$0xff]
      %v3943 = vld [vmem:[%s3911 + $0x170] sm:$0xff]
      %3976 = vrot.lane.b32.xlu0 %v3912, 64
      %v3977 = vpop.permute.xlu0 %3976
      %3978 = vrot.lane.b32.xlu0 %v3913, 64
      %v3979 = vpop.permute.xlu0 %3978
      %3980 = vrot.lane.b32.xlu0 %v3914, 64
      %v3981 = vpop.permute.xlu0 %3980
      %3982 = vrot.lane.b32.xlu0 %v3915, 64
      %v3983 = vpop.permute.xlu0 %3982
      %3984 = vrot.lane.b32.xlu0 %v3916, 64
      %v3985 = vpop.permute.xlu0 %3984
      %3986 = vrot.lane.b32.xlu0 %v3917, 64
      %v3987 = vpop.permute.xlu0 %3986
      %3988 = vrot.lane.b32.xlu0 %v3918, 64
      %v3989 = vpop.permute.xlu0 %3988
      %3990 = vrot.lane.b32.xlu0 %v3919, 64
      %v3991 = vpop.permute.xlu0 %3990
      %3992 = vrot.lane.b32.xlu0 %v3920, 64
      %v3993 = vpop.permute.xlu0 %3992
      %3994 = vrot.lane.b32.xlu0 %v3921, 64
      %v3995 = vpop.permute.xlu0 %3994
      %3996 = vrot.lane.b32.xlu0 %v3922, 64
      %v3997 = vpop.permute.xlu0 %3996
      %3998 = vrot.lane.b32.xlu0 %v3923, 64
      %v3999 = vpop.permute.xlu0 %3998
      %4000 = vrot.lane.b32.xlu0 %v3924, 64
      %v4001 = vpop.permute.xlu0 %4000
      %4002 = vrot.lane.b32.xlu0 %v3925, 64
      %v4003 = vpop.permute.xlu0 %4002
      %4004 = vrot.lane.b32.xlu0 %v3926, 64
      %v4005 = vpop.permute.xlu0 %4004
      %4006 = vrot.lane.b32.xlu0 %v3927, 64
      %v4007 = vpop.permute.xlu0 %4006
      %4008 = vrot.lane.b32.xlu0 %v3928, 64
      %v4009 = vpop.permute.xlu0 %4008
      %4010 = vrot.lane.b32.xlu0 %v3929, 64
      %v4011 = vpop.permute.xlu0 %4010
      %4012 = vrot.lane.b32.xlu0 %v3930, 64
      %v4013 = vpop.permute.xlu0 %4012
      %4014 = vrot.lane.b32.xlu0 %v3931, 64
      %v4015 = vpop.permute.xlu0 %4014
      %4016 = vrot.lane.b32.xlu0 %v3932, 64
      %v4017 = vpop.permute.xlu0 %4016
      %4018 = vrot.lane.b32.xlu0 %v3933, 64
      %v4019 = vpop.permute.xlu0 %4018
      %4020 = vrot.lane.b32.xlu0 %v3934, 64
      %v4021 = vpop.permute.xlu0 %4020
      %4022 = vrot.lane.b32.xlu0 %v3935, 64
      %v4023 = vpop.permute.xlu0 %4022
      %4024 = vrot.lane.b32.xlu0 %v3936, 64
      %v4025 = vpop.permute.xlu0 %4024
      %4026 = vrot.lane.b32.xlu0 %v3937, 64
      %v4027 = vpop.permute.xlu0 %4026
      %4028 = vrot.lane.b32.xlu0 %v3938, 64
      %v4029 = vpop.permute.xlu0 %4028
      %4030 = vrot.lane.b32.xlu0 %v3939, 64
      %v4031 = vpop.permute.xlu0 %4030
      %4032 = vrot.lane.b32.xlu0 %v3940, 64
      %v4033 = vpop.permute.xlu0 %4032
      %4034 = vrot.lane.b32.xlu0 %v3941, 64
      %v4035 = vpop.permute.xlu0 %4034
      %4036 = vrot.lane.b32.xlu0 %v3942, 64
      %v4037 = vpop.permute.xlu0 %4036
      %4038 = vrot.lane.b32.xlu0 %v3943, 64
      %v4039 = vpop.permute.xlu0 %4038
      %4072 = vst.msk [vmem:[#allocation5 + $0x8] sm:$0xff] %vm3429, %v3977
      %4073 = vst.msk [vmem:[#allocation5 + $0x20] sm:$0xff] %vm3429, %v3979
      %4074 = vst.msk [vmem:[#allocation5 + $0x38] sm:$0xff] %vm3429, %v3981
      %4075 = vst.msk [vmem:[#allocation5 + $0x50] sm:$0xff] %vm3429, %v3983
      %4076 = vst.msk [vmem:[#allocation5 + $0x68] sm:$0xff] %vm3429, %v3985
      %4077 = vst.msk [vmem:[#allocation5 + $0x80] sm:$0xff] %vm3429, %v3987
      %4078 = vst.msk [vmem:[#allocation5 + $0x98] sm:$0xff] %vm3429, %v3989
      %4079 = vst.msk [vmem:[#allocation5 + $0xb0] sm:$0xff] %vm3429, %v3991
      %4080 = vst.msk [vmem:[#allocation5 + $0xc8] sm:$0xff] %vm3429, %v3993
      %4081 = vst.msk [vmem:[#allocation5 + $0xe0] sm:$0xff] %vm3429, %v3995
      %4082 = vst.msk [vmem:[#allocation5 + $0xf8] sm:$0xff] %vm3429, %v3997
      %4083 = vst.msk [vmem:[#allocation5 + $0x110] sm:$0xff] %vm3429, %v3999
      %4084 = vst.msk [vmem:[#allocation5 + $0x128] sm:$0xff] %vm3429, %v4001
      %4085 = vst.msk [vmem:[#allocation5 + $0x140] sm:$0xff] %vm3429, %v4003
      %4086 = vst.msk [vmem:[#allocation5 + $0x158] sm:$0xff] %vm3429, %v4005
      %4087 = vst.msk [vmem:[#allocation5 + $0x170] sm:$0xff] %vm3429, %v4007
      %4088 = vst.msk [vmem:[#allocation5 + $0x188] sm:$0xff] %vm3429, %v4009
      %4089 = vst.msk [vmem:[#allocation5 + $0x1a0] sm:$0xff] %vm3429, %v4011
      %4090 = vst.msk [vmem:[#allocation5 + $0x1b8] sm:$0xff] %vm3429, %v4013
      %4091 = vst.msk [vmem:[#allocation5 + $0x1d0] sm:$0xff] %vm3429, %v4015
      %4092 = vst.msk [vmem:[#allocation5 + $0x1e8] sm:$0xff] %vm3429, %v4017
      %4093 = vst.msk [vmem:[#allocation5 + $0x200] sm:$0xff] %vm3429, %v4019
      %4094 = vst.msk [vmem:[#allocation5 + $0x218] sm:$0xff] %vm3429, %v4021
      %4095 = vst.msk [vmem:[#allocation5 + $0x230] sm:$0xff] %vm3429, %v4023
      %4096 = vst.msk [vmem:[#allocation5 + $0x248] sm:$0xff] %vm3429, %v4025
      %4097 = vst.msk [vmem:[#allocation5 + $0x260] sm:$0xff] %vm3429, %v4027
      %4098 = vst.msk [vmem:[#allocation5 + $0x278] sm:$0xff] %vm3429, %v4029
      %4099 = vst.msk [vmem:[#allocation5 + $0x290] sm:$0xff] %vm3429, %v4031
      %4100 = vst.msk [vmem:[#allocation5 + $0x2a8] sm:$0xff] %vm3429, %v4033
      %4101 = vst.msk [vmem:[#allocation5 + $0x2c0] sm:$0xff] %vm3429, %v4035
      %4102 = vst.msk [vmem:[#allocation5 + $0x2d8] sm:$0xff] %vm3429, %v4037
      %4103 = vst.msk [vmem:[#allocation5 + $0x2f0] sm:$0xff] %vm3429, %v4039
      %v4104 = vld [vmem:[%s3911 + $0x1] sm:$0xff]
      %v4105 = vld [vmem:[%s3911 + $0x9] sm:$0xff]
      %v4106 = vld [vmem:[%s3911 + $0x19] sm:$0xff]
      %v4107 = vld [vmem:[%s3911 + $0x21] sm:$0xff]
      %v4108 = vld [vmem:[%s3911 + $0x31] sm:$0xff]
      %v4109 = vld [vmem:[%s3911 + $0x39] sm:$0xff]
      %v4110 = vld [vmem:[%s3911 + $0x49] sm:$0xff]
      %v4111 = vld [vmem:[%s3911 + $0x51] sm:$0xff]
      %v4112 = vld [vmem:[%s3911 + $0x61] sm:$0xff]
      %v4113 = vld [vmem:[%s3911 + $0x69] sm:$0xff]
      %v4114 = vld [vmem:[%s3911 + $0x79] sm:$0xff]
      %v4115 = vld [vmem:[%s3911 + $0x81] sm:$0xff]
      %v4116 = vld [vmem:[%s3911 + $0x91] sm:$0xff]
      %v4117 = vld [vmem:[%s3911 + $0x99] sm:$0xff]
      %v4118 = vld [vmem:[%s3911 + $0xa9] sm:$0xff]
      %v4119 = vld [vmem:[%s3911 + $0xb1] sm:$0xff]
      %v4120 = vld [vmem:[%s3911 + $0xc1] sm:$0xff]
      %v4121 = vld [vmem:[%s3911 + $0xc9] sm:$0xff]
      %v4122 = vld [vmem:[%s3911 + $0xd9] sm:$0xff]
      %v4123 = vld [vmem:[%s3911 + $0xe1] sm:$0xff]
      %v4124 = vld [vmem:[%s3911 + $0xf1] sm:$0xff]
      %v4125 = vld [vmem:[%s3911 + $0xf9] sm:$0xff]
      %v4126 = vld [vmem:[%s3911 + $0x109] sm:$0xff]
      %v4127 = vld [vmem:[%s3911 + $0x111] sm:$0xff]
      %v4128 = vld [vmem:[%s3911 + $0x121] sm:$0xff]
      %v4129 = vld [vmem:[%s3911 + $0x129] sm:$0xff]
      %v4130 = vld [vmem:[%s3911 + $0x139] sm:$0xff]
      %v4131 = vld [vmem:[%s3911 + $0x141] sm:$0xff]
      %v4132 = vld [vmem:[%s3911 + $0x151] sm:$0xff]
      %v4133 = vld [vmem:[%s3911 + $0x159] sm:$0xff]
      %v4134 = vld [vmem:[%s3911 + $0x169] sm:$0xff]
      %v4135 = vld [vmem:[%s3911 + $0x171] sm:$0xff]
      %4168 = vrot.lane.b32.xlu0 %v4104, 96
      %v4169 = vpop.permute.xlu0 %4168
      %4170 = vrot.lane.b32.xlu0 %v4105, 96
      %v4171 = vpop.permute.xlu0 %4170
      %4172 = vrot.lane.b32.xlu0 %v4106, 96
      %v4173 = vpop.permute.xlu0 %4172
      %4174 = vrot.lane.b32.xlu0 %v4107, 96
      %v4175 = vpop.permute.xlu0 %4174
      %4176 = vrot.lane.b32.xlu0 %v4108, 96
      %v4177 = vpop.permute.xlu0 %4176
      %4178 = vrot.lane.b32.xlu0 %v4109, 96
      %v4179 = vpop.permute.xlu0 %4178
      %4180 = vrot.lane.b32.xlu0 %v4110, 96
      %v4181 = vpop.permute.xlu0 %4180
      %4182 = vrot.lane.b32.xlu0 %v4111, 96
      %v4183 = vpop.permute.xlu0 %4182
      %4184 = vrot.lane.b32.xlu0 %v4112, 96
      %v4185 = vpop.permute.xlu0 %4184
      %4186 = vrot.lane.b32.xlu0 %v4113, 96
      %v4187 = vpop.permute.xlu0 %4186
      %4188 = vrot.lane.b32.xlu0 %v4114, 96
      %v4189 = vpop.permute.xlu0 %4188
      %4190 = vrot.lane.b32.xlu0 %v4115, 96
      %v4191 = vpop.permute.xlu0 %4190
      %4192 = vrot.lane.b32.xlu0 %v4116, 96
      %v4193 = vpop.permute.xlu0 %4192
      %4194 = vrot.lane.b32.xlu0 %v4117, 96
      %v4195 = vpop.permute.xlu0 %4194
      %4196 = vrot.lane.b32.xlu0 %v4118, 96
      %v4197 = vpop.permute.xlu0 %4196
      %4198 = vrot.lane.b32.xlu0 %v4119, 96
      %v4199 = vpop.permute.xlu0 %4198
      %4200 = vrot.lane.b32.xlu0 %v4120, 96
      %v4201 = vpop.permute.xlu0 %4200
      %4202 = vrot.lane.b32.xlu0 %v4121, 96
      %v4203 = vpop.permute.xlu0 %4202
      %4204 = vrot.lane.b32.xlu0 %v4122, 96
      %v4205 = vpop.permute.xlu0 %4204
      %4206 = vrot.lane.b32.xlu0 %v4123, 96
      %v4207 = vpop.permute.xlu0 %4206
      %4208 = vrot.lane.b32.xlu0 %v4124, 96
      %v4209 = vpop.permute.xlu0 %4208
      %4210 = vrot.lane.b32.xlu0 %v4125, 96
      %v4211 = vpop.permute.xlu0 %4210
      %4212 = vrot.lane.b32.xlu0 %v4126, 96
      %v4213 = vpop.permute.xlu0 %4212
      %4214 = vrot.lane.b32.xlu0 %v4127, 96
      %v4215 = vpop.permute.xlu0 %4214
      %4216 = vrot.lane.b32.xlu0 %v4128, 96
      %v4217 = vpop.permute.xlu0 %4216
      %4218 = vrot.lane.b32.xlu0 %v4129, 96
      %v4219 = vpop.permute.xlu0 %4218
      %4220 = vrot.lane.b32.xlu0 %v4130, 96
      %v4221 = vpop.permute.xlu0 %4220
      %4222 = vrot.lane.b32.xlu0 %v4131, 96
      %v4223 = vpop.permute.xlu0 %4222
      %4224 = vrot.lane.b32.xlu0 %v4132, 96
      %v4225 = vpop.permute.xlu0 %4224
      %4226 = vrot.lane.b32.xlu0 %v4133, 96
      %v4227 = vpop.permute.xlu0 %4226
      %4228 = vrot.lane.b32.xlu0 %v4134, 96
      %v4229 = vpop.permute.xlu0 %4228
      %4230 = vrot.lane.b32.xlu0 %v4135, 96
      %v4231 = vpop.permute.xlu0 %4230
      %4264 = vst.msk [vmem:[#allocation5 + $0x8] sm:$0xff] %vm3622, %v4169
      %4265 = vst.msk [vmem:[#allocation5 + $0x20] sm:$0xff] %vm3622, %v4171
      %4266 = vst.msk [vmem:[#allocation5 + $0x38] sm:$0xff] %vm3622, %v4173
      %4267 = vst.msk [vmem:[#allocation5 + $0x50] sm:$0xff] %vm3622, %v4175
      %4268 = vst.msk [vmem:[#allocation5 + $0x68] sm:$0xff] %vm3622, %v4177
      %4269 = vst.msk [vmem:[#allocation5 + $0x80] sm:$0xff] %vm3622, %v4179
      %4270 = vst.msk [vmem:[#allocation5 + $0x98] sm:$0xff] %vm3622, %v4181
      %4271 = vst.msk [vmem:[#allocation5 + $0xb0] sm:$0xff] %vm3622, %v4183
      %4272 = vst.msk [vmem:[#allocation5 + $0xc8] sm:$0xff] %vm3622, %v4185
      %4273 = vst.msk [vmem:[#allocation5 + $0xe0] sm:$0xff] %vm3622, %v4187
      %4274 = vst.msk [vmem:[#allocation5 + $0xf8] sm:$0xff] %vm3622, %v4189
      %4275 = vst.msk [vmem:[#allocation5 + $0x110] sm:$0xff] %vm3622, %v4191
      %4276 = vst.msk [vmem:[#allocation5 + $0x128] sm:$0xff] %vm3622, %v4193
      %4277 = vst.msk [vmem:[#allocation5 + $0x140] sm:$0xff] %vm3622, %v4195
      %4278 = vst.msk [vmem:[#allocation5 + $0x158] sm:$0xff] %vm3622, %v4197
      %4279 = vst.msk [vmem:[#allocation5 + $0x170] sm:$0xff] %vm3622, %v4199
      %4280 = vst.msk [vmem:[#allocation5 + $0x188] sm:$0xff] %vm3622, %v4201
      %4281 = vst.msk [vmem:[#allocation5 + $0x1a0] sm:$0xff] %vm3622, %v4203
      %4282 = vst.msk [vmem:[#allocation5 + $0x1b8] sm:$0xff] %vm3622, %v4205
      %4283 = vst.msk [vmem:[#allocation5 + $0x1d0] sm:$0xff] %vm3622, %v4207
      %4284 = vst.msk [vmem:[#allocation5 + $0x1e8] sm:$0xff] %vm3622, %v4209
      %4285 = vst.msk [vmem:[#allocation5 + $0x200] sm:$0xff] %vm3622, %v4211
      %4286 = vst.msk [vmem:[#allocation5 + $0x218] sm:$0xff] %vm3622, %v4213
      %4287 = vst.msk [vmem:[#allocation5 + $0x230] sm:$0xff] %vm3622, %v4215
      %4288 = vst.msk [vmem:[#allocation5 + $0x248] sm:$0xff] %vm3622, %v4217
      %4289 = vst.msk [vmem:[#allocation5 + $0x260] sm:$0xff] %vm3622, %v4219
      %4290 = vst.msk [vmem:[#allocation5 + $0x278] sm:$0xff] %vm3622, %v4221
      %4291 = vst.msk [vmem:[#allocation5 + $0x290] sm:$0xff] %vm3622, %v4223
      %4292 = vst.msk [vmem:[#allocation5 + $0x2a8] sm:$0xff] %vm3622, %v4225
      %4293 = vst.msk [vmem:[#allocation5 + $0x2c0] sm:$0xff] %vm3622, %v4227
      %4294 = vst.msk [vmem:[#allocation5 + $0x2d8] sm:$0xff] %vm3622, %v4229
      %4295 = vst.msk [vmem:[#allocation5 + $0x2f0] sm:$0xff] %vm3622, %v4231
      %v4296 = vld [vmem:[%s3911 + $0x2] sm:$0xff]
      %v4297 = vld [vmem:[%s3911 + $0xa] sm:$0xff]
      %v4298 = vld [vmem:[%s3911 + $0x1a] sm:$0xff]
      %v4299 = vld [vmem:[%s3911 + $0x22] sm:$0xff]
      %v4300 = vld [vmem:[%s3911 + $0x32] sm:$0xff]
      %v4301 = vld [vmem:[%s3911 + $0x3a] sm:$0xff]
      %v4302 = vld [vmem:[%s3911 + $0x4a] sm:$0xff]
      %v4303 = vld [vmem:[%s3911 + $0x52] sm:$0xff]
      %v4304 = vld [vmem:[%s3911 + $0x62] sm:$0xff]
      %v4305 = vld [vmem:[%s3911 + $0x6a] sm:$0xff]
      %v4306 = vld [vmem:[%s3911 + $0x7a] sm:$0xff]
      %v4307 = vld [vmem:[%s3911 + $0x82] sm:$0xff]
      %v4308 = vld [vmem:[%s3911 + $0x92] sm:$0xff]
      %v4309 = vld [vmem:[%s3911 + $0x9a] sm:$0xff]
      %v4310 = vld [vmem:[%s3911 + $0xaa] sm:$0xff]
      %v4311 = vld [vmem:[%s3911 + $0xb2] sm:$0xff]
      %v4312 = vld [vmem:[%s3911 + $0xc2] sm:$0xff]
      %v4313 = vld [vmem:[%s3911 + $0xca] sm:$0xff]
      %v4314 = vld [vmem:[%s3911 + $0xda] sm:$0xff]
      %v4315 = vld [vmem:[%s3911 + $0xe2] sm:$0xff]
      %v4316 = vld [vmem:[%s3911 + $0xf2] sm:$0xff]
      %v4317 = vld [vmem:[%s3911 + $0xfa] sm:$0xff]
      %v4318 = vld [vmem:[%s3911 + $0x10a] sm:$0xff]
      %v4319 = vld [vmem:[%s3911 + $0x112] sm:$0xff]
      %v4320 = vld [vmem:[%s3911 + $0x122] sm:$0xff]
      %v4321 = vld [vmem:[%s3911 + $0x12a] sm:$0xff]
      %v4322 = vld [vmem:[%s3911 + $0x13a] sm:$0xff]
      %v4323 = vld [vmem:[%s3911 + $0x142] sm:$0xff]
      %v4324 = vld [vmem:[%s3911 + $0x152] sm:$0xff]
      %v4325 = vld [vmem:[%s3911 + $0x15a] sm:$0xff]
      %v4326 = vld [vmem:[%s3911 + $0x16a] sm:$0xff]
      %v4327 = vld [vmem:[%s3911 + $0x172] sm:$0xff]
      %4328 = vst.msk [vmem:[#allocation5 + $0x10] sm:$0xff] %vm430, %v4296
      %4329 = vst.msk [vmem:[#allocation5 + $0x28] sm:$0xff] %vm430, %v4297
      %4330 = vst.msk [vmem:[#allocation5 + $0x40] sm:$0xff] %vm430, %v4298
      %4331 = vst.msk [vmem:[#allocation5 + $0x58] sm:$0xff] %vm430, %v4299
      %4332 = vst.msk [vmem:[#allocation5 + $0x70] sm:$0xff] %vm430, %v4300
      %4333 = vst.msk [vmem:[#allocation5 + $0x88] sm:$0xff] %vm430, %v4301
      %4334 = vst.msk [vmem:[#allocation5 + $0xa0] sm:$0xff] %vm430, %v4302
      %4335 = vst.msk [vmem:[#allocation5 + $0xb8] sm:$0xff] %vm430, %v4303
      %4336 = vst.msk [vmem:[#allocation5 + $0xd0] sm:$0xff] %vm430, %v4304
      %4337 = vst.msk [vmem:[#allocation5 + $0xe8] sm:$0xff] %vm430, %v4305
      %4338 = vst.msk [vmem:[#allocation5 + $0x100] sm:$0xff] %vm430, %v4306
      %4339 = vst.msk [vmem:[#allocation5 + $0x118] sm:$0xff] %vm430, %v4307
      %4340 = vst.msk [vmem:[#allocation5 + $0x130] sm:$0xff] %vm430, %v4308
      %4341 = vst.msk [vmem:[#allocation5 + $0x148] sm:$0xff] %vm430, %v4309
      %4342 = vst.msk [vmem:[#allocation5 + $0x160] sm:$0xff] %vm430, %v4310
      %4343 = vst.msk [vmem:[#allocation5 + $0x178] sm:$0xff] %vm430, %v4311
      %4344 = vst.msk [vmem:[#allocation5 + $0x190] sm:$0xff] %vm430, %v4312
      %4345 = vst.msk [vmem:[#allocation5 + $0x1a8] sm:$0xff] %vm430, %v4313
      %4346 = vst.msk [vmem:[#allocation5 + $0x1c0] sm:$0xff] %vm430, %v4314
      %4347 = vst.msk [vmem:[#allocation5 + $0x1d8] sm:$0xff] %vm430, %v4315
      %4348 = vst.msk [vmem:[#allocation5 + $0x1f0] sm:$0xff] %vm430, %v4316
      %4349 = vst.msk [vmem:[#allocation5 + $0x208] sm:$0xff] %vm430, %v4317
      %4350 = vst.msk [vmem:[#allocation5 + $0x220] sm:$0xff] %vm430, %v4318
      %4351 = vst.msk [vmem:[#allocation5 + $0x238] sm:$0xff] %vm430, %v4319
      %4352 = vst.msk [vmem:[#allocation5 + $0x250] sm:$0xff] %vm430, %v4320
      %4353 = vst.msk [vmem:[#allocation5 + $0x268] sm:$0xff] %vm430, %v4321
      %4354 = vst.msk [vmem:[#allocation5 + $0x280] sm:$0xff] %vm430, %v4322
      %4355 = vst.msk [vmem:[#allocation5 + $0x298] sm:$0xff] %vm430, %v4323
      %4356 = vst.msk [vmem:[#allocation5 + $0x2b0] sm:$0xff] %vm430, %v4324
      %4357 = vst.msk [vmem:[#allocation5 + $0x2c8] sm:$0xff] %vm430, %v4325
      %4358 = vst.msk [vmem:[#allocation5 + $0x2e0] sm:$0xff] %vm430, %v4326
      %4359 = vst.msk [vmem:[#allocation5 + $0x2f8] sm:$0xff] %vm430, %v4327
      %v4360 = vld [vmem:[#allocation5] sm:$0xff]
      %v4361 = vld [vmem:[#allocation5 + $0x8] sm:$0xff]
      %v4362 = vld [vmem:[#allocation5 + $0x10] sm:$0xff]
      %v4363 = vld [vmem:[#allocation5 + $0x18] sm:$0xff]
      %v4364 = vld [vmem:[#allocation5 + $0x20] sm:$0xff]
      %v4365 = vld [vmem:[#allocation5 + $0x28] sm:$0xff]
      %v4366 = vld [vmem:[#allocation5 + $0x30] sm:$0xff]
      %v4367 = vld [vmem:[#allocation5 + $0x38] sm:$0xff]
      %v4368 = vld [vmem:[#allocation5 + $0x40] sm:$0xff]
      %v4369 = vld [vmem:[#allocation5 + $0x48] sm:$0xff]
      %v4370 = vld [vmem:[#allocation5 + $0x50] sm:$0xff]
      %v4371 = vld [vmem:[#allocation5 + $0x58] sm:$0xff]
      %v4372 = vld [vmem:[#allocation5 + $0x60] sm:$0xff]
      %v4373 = vld [vmem:[#allocation5 + $0x68] sm:$0xff]
      %v4374 = vld [vmem:[#allocation5 + $0x70] sm:$0xff]
      %v4375 = vld [vmem:[#allocation5 + $0x78] sm:$0xff]
      %v4376 = vld [vmem:[#allocation5 + $0x80] sm:$0xff]
      %v4377 = vld [vmem:[#allocation5 + $0x88] sm:$0xff]
      %v4378 = vld [vmem:[#allocation5 + $0x90] sm:$0xff]
      %v4379 = vld [vmem:[#allocation5 + $0x98] sm:$0xff]
      %v4380 = vld [vmem:[#allocation5 + $0xa0] sm:$0xff]
      %v4381 = vld [vmem:[#allocation5 + $0xa8] sm:$0xff]
      %v4382 = vld [vmem:[#allocation5 + $0xb0] sm:$0xff]
      %v4383 = vld [vmem:[#allocation5 + $0xb8] sm:$0xff]
      %v4384 = vld [vmem:[#allocation5 + $0xc0] sm:$0xff]
      %v4385 = vld [vmem:[#allocation5 + $0xc8] sm:$0xff]
      %v4386 = vld [vmem:[#allocation5 + $0xd0] sm:$0xff]
      %v4387 = vld [vmem:[#allocation5 + $0xd8] sm:$0xff]
      %v4388 = vld [vmem:[#allocation5 + $0xe0] sm:$0xff]
      %v4389 = vld [vmem:[#allocation5 + $0xe8] sm:$0xff]
      %v4390 = vld [vmem:[#allocation5 + $0xf0] sm:$0xff]
      %v4391 = vld [vmem:[#allocation5 + $0xf8] sm:$0xff]
      %v4392 = vld [vmem:[#allocation5 + $0x100] sm:$0xff]
      %v4393 = vld [vmem:[#allocation5 + $0x108] sm:$0xff]
      %v4394 = vld [vmem:[#allocation5 + $0x110] sm:$0xff]
      %v4395 = vld [vmem:[#allocation5 + $0x118] sm:$0xff]
      %v4396 = vld [vmem:[#allocation5 + $0x120] sm:$0xff]
      %v4397 = vld [vmem:[#allocation5 + $0x128] sm:$0xff]
      %v4398 = vld [vmem:[#allocation5 + $0x130] sm:$0xff]
      %v4399 = vld [vmem:[#allocation5 + $0x138] sm:$0xff]
      %v4400 = vld [vmem:[#allocation5 + $0x140] sm:$0xff]
      %v4401 = vld [vmem:[#allocation5 + $0x148] sm:$0xff]
      %v4402 = vld [vmem:[#allocation5 + $0x150] sm:$0xff]
      %v4403 = vld [vmem:[#allocation5 + $0x158] sm:$0xff]
      %v4404 = vld [vmem:[#allocation5 + $0x160] sm:$0xff]
      %v4405 = vld [vmem:[#allocation5 + $0x168] sm:$0xff]
      %v4406 = vld [vmem:[#allocation5 + $0x170] sm:$0xff]
      %v4407 = vld [vmem:[#allocation5 + $0x178] sm:$0xff]
      %v4408 = vld [vmem:[#allocation5 + $0x180] sm:$0xff]
      %v4409 = vld [vmem:[#allocation5 + $0x188] sm:$0xff]
      %v4410 = vld [vmem:[#allocation5 + $0x190] sm:$0xff]
      %v4411 = vld [vmem:[#allocation5 + $0x198] sm:$0xff]
      %v4412 = vld [vmem:[#allocation5 + $0x1a0] sm:$0xff]
      %v4413 = vld [vmem:[#allocation5 + $0x1a8] sm:$0xff]
      %v4414 = vld [vmem:[#allocation5 + $0x1b0] sm:$0xff]
      %v4415 = vld [vmem:[#allocation5 + $0x1b8] sm:$0xff]
      %v4416 = vld [vmem:[#allocation5 + $0x1c0] sm:$0xff]
      %v4417 = vld [vmem:[#allocation5 + $0x1c8] sm:$0xff]
      %v4418 = vld [vmem:[#allocation5 + $0x1d0] sm:$0xff]
      %v4419 = vld [vmem:[#allocation5 + $0x1d8] sm:$0xff]
      %v4420 = vld [vmem:[#allocation5 + $0x1e0] sm:$0xff]
      %v4421 = vld [vmem:[#allocation5 + $0x1e8] sm:$0xff]
      %v4422 = vld [vmem:[#allocation5 + $0x1f0] sm:$0xff]
      %v4423 = vld [vmem:[#allocation5 + $0x1f8] sm:$0xff]
      %v4424 = vld [vmem:[#allocation5 + $0x200] sm:$0xff]
      %v4425 = vld [vmem:[#allocation5 + $0x208] sm:$0xff]
      %v4426 = vld [vmem:[#allocation5 + $0x210] sm:$0xff]
      %v4427 = vld [vmem:[#allocation5 + $0x218] sm:$0xff]
      %v4428 = vld [vmem:[#allocation5 + $0x220] sm:$0xff]
      %v4429 = vld [vmem:[#allocation5 + $0x228] sm:$0xff]
      %v4430 = vld [vmem:[#allocation5 + $0x230] sm:$0xff]
      %v4431 = vld [vmem:[#allocation5 + $0x238] sm:$0xff]
      %v4432 = vld [vmem:[#allocation5 + $0x240] sm:$0xff]
      %v4433 = vld [vmem:[#allocation5 + $0x248] sm:$0xff]
      %v4434 = vld [vmem:[#allocation5 + $0x250] sm:$0xff]
      %v4435 = vld [vmem:[#allocation5 + $0x258] sm:$0xff]
      %v4436 = vld [vmem:[#allocation5 + $0x260] sm:$0xff]
      %v4437 = vld [vmem:[#allocation5 + $0x268] sm:$0xff]
      %v4438 = vld [vmem:[#allocation5 + $0x270] sm:$0xff]
      %v4439 = vld [vmem:[#allocation5 + $0x278] sm:$0xff]
      %v4440 = vld [vmem:[#allocation5 + $0x280] sm:$0xff]
      %v4441 = vld [vmem:[#allocation5 + $0x288] sm:$0xff]
      %v4442 = vld [vmem:[#allocation5 + $0x290] sm:$0xff]
      %v4443 = vld [vmem:[#allocation5 + $0x298] sm:$0xff]
      %v4444 = vld [vmem:[#allocation5 + $0x2a0] sm:$0xff]
      %v4445 = vld [vmem:[#allocation5 + $0x2a8] sm:$0xff]
      %v4446 = vld [vmem:[#allocation5 + $0x2b0] sm:$0xff]
      %v4447 = vld [vmem:[#allocation5 + $0x2b8] sm:$0xff]
      %v4448 = vld [vmem:[#allocation5 + $0x2c0] sm:$0xff]
      %v4449 = vld [vmem:[#allocation5 + $0x2c8] sm:$0xff]
      %v4450 = vld [vmem:[#allocation5 + $0x2d0] sm:$0xff]
      %v4451 = vld [vmem:[#allocation5 + $0x2d8] sm:$0xff]
      %v4452 = vld [vmem:[#allocation5 + $0x2e0] sm:$0xff]
      %v4453 = vld [vmem:[#allocation5 + $0x2e8] sm:$0xff]
      %v4454 = vld [vmem:[#allocation5 + $0x2f0] sm:$0xff]
      %v4455 = vld [vmem:[#allocation5 + $0x2f8] sm:$0xff]
      %v4456 = vld [vmem:[%s3] sm:$0xff]
      %v4457 = vld [vmem:[%s3 + $0x8] sm:$0xff]
      %v4458 = vld [vmem:[%s3 + $0x10] sm:$0xff]
      %v4459 = vld [vmem:[%s3 + $0x18] sm:$0xff]
      %v4460 = vld [vmem:[%s3 + $0x20] sm:$0xff]
      %v4461 = vld [vmem:[%s3 + $0x28] sm:$0xff]
      %v4462 = vld [vmem:[%s3 + $0x30] sm:$0xff]
      %v4463 = vld [vmem:[%s3 + $0x38] sm:$0xff]
      %v4464 = vld [vmem:[%s3 + $0x40] sm:$0xff]
      %v4465 = vld [vmem:[%s3 + $0x48] sm:$0xff]
      %v4466 = vld [vmem:[%s3 + $0x50] sm:$0xff]
      %v4467 = vld [vmem:[%s3 + $0x58] sm:$0xff]
      %v4468 = vld [vmem:[%s3 + $0x60] sm:$0xff]
      %v4469 = vld [vmem:[%s3 + $0x68] sm:$0xff]
      %v4470 = vld [vmem:[%s3 + $0x70] sm:$0xff]
      %v4471 = vld [vmem:[%s3 + $0x78] sm:$0xff]
      %v4472 = vld [vmem:[%s3 + $0x80] sm:$0xff]
      %v4473 = vld [vmem:[%s3 + $0x88] sm:$0xff]
      %v4474 = vld [vmem:[%s3 + $0x90] sm:$0xff]
      %v4475 = vld [vmem:[%s3 + $0x98] sm:$0xff]
      %v4476 = vld [vmem:[%s3 + $0xa0] sm:$0xff]
      %v4477 = vld [vmem:[%s3 + $0xa8] sm:$0xff]
      %v4478 = vld [vmem:[%s3 + $0xb0] sm:$0xff]
      %v4479 = vld [vmem:[%s3 + $0xb8] sm:$0xff]
      %v4480 = vld [vmem:[%s3 + $0xc0] sm:$0xff]
      %v4481 = vld [vmem:[%s3 + $0xc8] sm:$0xff]
      %v4482 = vld [vmem:[%s3 + $0xd0] sm:$0xff]
      %v4483 = vld [vmem:[%s3 + $0xd8] sm:$0xff]
      %v4484 = vld [vmem:[%s3 + $0xe0] sm:$0xff]
      %v4485 = vld [vmem:[%s3 + $0xe8] sm:$0xff]
      %v4486 = vld [vmem:[%s3 + $0xf0] sm:$0xff]
      %v4487 = vld [vmem:[%s3 + $0xf8] sm:$0xff]
      %v4488 = vld [vmem:[%s3 + $0x100] sm:$0xff]
      %v4489 = vld [vmem:[%s3 + $0x108] sm:$0xff]
      %v4490 = vld [vmem:[%s3 + $0x110] sm:$0xff]
      %v4491 = vld [vmem:[%s3 + $0x118] sm:$0xff]
      %v4492 = vld [vmem:[%s4] sm:$0x1]
      %v4494 = vlaneseq
      %v4495 = vshrl.u32 %v4494, 7
      %v4496 = vsub.s32 0, %v4495
      %v4497 = vrot.slane %v4492, %v4496
      %v4500 = vsel %vm430, %v4362, 0
      %v4503 = vsel %vm430, %v4365, 0
      %v4506 = vsel %vm430, %v4368, 0
      %v4509 = vsel %vm430, %v4371, 0
      %v4512 = vsel %vm430, %v4374, 0
      %v4515 = vsel %vm430, %v4377, 0
      %v4518 = vsel %vm430, %v4380, 0
      %v4521 = vsel %vm430, %v4383, 0
      %v4524 = vsel %vm430, %v4386, 0
      %v4527 = vsel %vm430, %v4389, 0
      %v4530 = vsel %vm430, %v4392, 0
      %v4533 = vsel %vm430, %v4395, 0
      %v4536 = vsel %vm430, %v4398, 0
      %v4539 = vsel %vm430, %v4401, 0
      %v4542 = vsel %vm430, %v4404, 0
      %v4545 = vsel %vm430, %v4407, 0
      %v4548 = vsel %vm430, %v4410, 0
      %v4551 = vsel %vm430, %v4413, 0
      %v4554 = vsel %vm430, %v4416, 0
      %v4557 = vsel %vm430, %v4419, 0
      %v4560 = vsel %vm430, %v4422, 0
      %v4563 = vsel %vm430, %v4425, 0
      %v4566 = vsel %vm430, %v4428, 0
      %v4569 = vsel %vm430, %v4431, 0
      %v4572 = vsel %vm430, %v4434, 0
      %v4575 = vsel %vm430, %v4437, 0
      %v4578 = vsel %vm430, %v4440, 0
      %v4581 = vsel %vm430, %v4443, 0
      %v4584 = vsel %vm430, %v4446, 0
      %v4587 = vsel %vm430, %v4449, 0
      %v4590 = vsel %vm430, %v4452, 0
      %v4593 = vsel %vm430, %v4455, 0
      %4595 = vmatprep.subr.mxu0 0.0
      %4596 = vmatpush1.msra.mxu0 %v4471
      %4597 = vmatprep.subr.mxu0 0.0
      %4598 = vmatpush1.msra.mxu0 %v4470
      %4599 = vmatprep.subr.mxu0 0.0
      %4600 = vmatpush1.msra.mxu0 %v4469
      %4601 = vmatprep.subr.mxu0 0.0
      %4602 = vmatpush1.msra.mxu0 %v4468
      %4603 = vmatprep.subr.mxu0 0.0
      %4604 = vmatpush1.msra.mxu0 %v4467
      %4605 = vmatprep.subr.mxu0 0.0
      %4606 = vmatpush1.msra.mxu0 %v4466
      %4607 = vmatprep.subr.mxu0 0.0
      %4608 = vmatpush1.msra.mxu0 %v4465
      %4609 = vmatprep.subr.mxu0 0.0
      %4610 = vmatpush1.msra.mxu0 %v4464
      %4611 = vmatprep.subr.mxu0 0.0
      %4612 = vmatpush1.msra.mxu0 %v4463
      %4613 = vmatprep.subr.mxu0 0.0
      %4614 = vmatpush1.msra.mxu0 %v4462
      %4615 = vmatprep.subr.mxu0 0.0
      %4616 = vmatpush1.msra.mxu0 %v4461
      %4617 = vmatprep.subr.mxu0 0.0
      %4618 = vmatpush1.msra.mxu0 %v4460
      %4619 = vmatprep.subr.mxu0 0.0
      %4620 = vmatpush1.msra.mxu0 %v4459
      %4621 = vmatprep.subr.mxu0 0.0
      %4622 = vmatpush1.msra.mxu0 %v4458
      %4623 = vmatprep.subr.mxu0 0.0
      %4624 = vmatpush1.msra.mxu0 %v4457
      %4625 = vmatprep.subr.mxu0 0.0
      %4626 = vmatpush1.msra.mxu0 %v4456
      %4627 = vmatprep.subr.mxu0 0.0
      %4628 = vmatpush2.msra.mxu0 %v4487
      %4629 = vmatprep.subr.mxu0 0.0
      %4630 = vmatpush2.msra.mxu0 %v4486
      %4631 = vmatprep.subr.mxu0 0.0
      %4632 = vmatpush2.msra.mxu0 %v4485
      %4633 = vmatprep.subr.mxu0 0.0
      %4634 = vmatpush2.msra.mxu0 %v4484
      %4635 = vmatprep.subr.mxu0 0.0
      %4636 = vmatpush2.msra.mxu0 %v4483
      %4637 = vmatprep.subr.mxu0 0.0
      %4638 = vmatpush2.msra.mxu0 %v4482
      %4639 = vmatprep.subr.mxu0 0.0
      %4640 = vmatpush2.msra.mxu0 %v4481
      %4641 = vmatprep.subr.mxu0 0.0
      %4642 = vmatpush2.msra.mxu0 %v4480
      %4643 = vmatprep.subr.mxu0 0.0
      %4644 = vmatpush2.msra.mxu0 %v4479
      %4645 = vmatprep.subr.mxu0 0.0
      %4646 = vmatpush2.msra.mxu0 %v4478
      %4647 = vmatprep.subr.mxu0 0.0
      %4648 = vmatpush2.msra.mxu0 %v4477
      %4649 = vmatprep.subr.mxu0 0.0
      %4650 = vmatpush2.msra.mxu0 %v4476
      %4651 = vmatprep.subr.mxu0 0.0
      %4652 = vmatpush2.msra.mxu0 %v4475
      %4653 = vmatprep.subr.mxu0 0.0
      %4654 = vmatpush2.msra.mxu0 %v4474
      %4655 = vmatprep.subr.mxu0 0.0
      %4656 = vmatpush2.msra.mxu0 %v4473
      %4657 = vmatprep.subr.mxu0 0.0
      %4658 = vmatpush2.msra.mxu0 %v4472
      %4659 = vmatprep.mubr.f32.mxu0 %v4361
      %4660 = vmatmul.mubr.f32.gmra.mxu0 %v4360
      %v4661 = vpop.f32.mrf.mxu0
      %v4662 = vadd.f32 %v4497, %v4661
      %v4663 = vpop.f32.mrf.mxu0
      %4664 = vmatprep.mubr.f32.mxu0 %v4364
      %4665 = vmatmul.mubr.f32.gmra.mxu0 %v4363
      %v4666 = vpop.f32.mrf.mxu0
      %v4667 = vadd.f32 %v4497, %v4666
      %v4668 = vpop.f32.mrf.mxu0
      %4669 = vmatprep.mubr.f32.mxu0 %v4367
      %4670 = vmatmul.mubr.f32.gmra.mxu0 %v4366
      %v4671 = vpop.f32.mrf.mxu0
      %v4672 = vadd.f32 %v4497, %v4671
      %v4673 = vpop.f32.mrf.mxu0
      %4674 = vmatprep.mubr.f32.mxu0 %v4370
      %4675 = vmatmul.mubr.f32.gmra.mxu0 %v4369
      %v4676 = vpop.f32.mrf.mxu0
      %v4677 = vadd.f32 %v4497, %v4676
      %v4678 = vpop.f32.mrf.mxu0
      %4679 = vmatprep.mubr.f32.mxu0 %v4373
      %4680 = vmatmul.mubr.f32.gmra.mxu0 %v4372
      %v4681 = vpop.f32.mrf.mxu0
      %v4682 = vadd.f32 %v4497, %v4681
      %v4683 = vpop.f32.mrf.mxu0
      %4684 = vmatprep.mubr.f32.mxu0 %v4376
      %4685 = vmatmul.mubr.f32.gmra.mxu0 %v4375
      %v4686 = vpop.f32.mrf.mxu0
      %v4687 = vadd.f32 %v4497, %v4686
      %v4688 = vpop.f32.mrf.mxu0
      %4689 = vmatprep.mubr.f32.mxu0 %v4379
      %4690 = vmatmul.mubr.f32.gmra.mxu0 %v4378
      %v4691 = vpop.f32.mrf.mxu0
      %v4692 = vadd.f32 %v4497, %v4691
      %v4693 = vpop.f32.mrf.mxu0
      %4694 = vmatprep.mubr.f32.mxu0 %v4382
      %4695 = vmatmul.mubr.f32.gmra.mxu0 %v4381
      %v4696 = vpop.f32.mrf.mxu0
      %v4697 = vadd.f32 %v4497, %v4696
      %v4698 = vpop.f32.mrf.mxu0
      %4699 = vmatprep.mubr.f32.mxu0 %v4385
      %4700 = vmatmul.mubr.f32.gmra.mxu0 %v4384
      %v4701 = vpop.f32.mrf.mxu0
      %v4702 = vadd.f32 %v4497, %v4701
      %v4703 = vpop.f32.mrf.mxu0
      %4704 = vmatprep.mubr.f32.mxu0 %v4388
      %4705 = vmatmul.mubr.f32.gmra.mxu0 %v4387
      %v4706 = vpop.f32.mrf.mxu0
      %v4707 = vadd.f32 %v4497, %v4706
      %v4708 = vpop.f32.mrf.mxu0
      %4709 = vmatprep.mubr.f32.mxu0 %v4391
      %4710 = vmatmul.mubr.f32.gmra.mxu0 %v4390
      %v4711 = vpop.f32.mrf.mxu0
      %v4712 = vadd.f32 %v4497, %v4711
      %v4713 = vpop.f32.mrf.mxu0
      %4714 = vmatprep.mubr.f32.mxu0 %v4394
      %4715 = vmatmul.mubr.f32.gmra.mxu0 %v4393
      %v4716 = vpop.f32.mrf.mxu0
      %v4717 = vadd.f32 %v4497, %v4716
      %v4718 = vpop.f32.mrf.mxu0
      %4719 = vmatprep.mubr.f32.mxu0 %v4397
      %4720 = vmatmul.mubr.f32.gmra.mxu0 %v4396
      %v4721 = vpop.f32.mrf.mxu0
      %v4722 = vadd.f32 %v4497, %v4721
      %v4723 = vpop.f32.mrf.mxu0
      %4724 = vmatprep.mubr.f32.mxu0 %v4400
      %4725 = vmatmul.mubr.f32.gmra.mxu0 %v4399
      %v4726 = vpop.f32.mrf.mxu0
      %v4727 = vadd.f32 %v4497, %v4726
      %v4728 = vpop.f32.mrf.mxu0
      %4729 = vmatprep.mubr.f32.mxu0 %v4403
      %4730 = vmatmul.mubr.f32.gmra.mxu0 %v4402
      %v4731 = vpop.f32.mrf.mxu0
      %v4732 = vadd.f32 %v4497, %v4731
      %v4733 = vpop.f32.mrf.mxu0
      %4734 = vmatprep.mubr.f32.mxu0 %v4406
      %4735 = vmatmul.mubr.f32.gmra.mxu0 %v4405
      %v4736 = vpop.f32.mrf.mxu0
      %v4737 = vadd.f32 %v4497, %v4736
      %v4738 = vpop.f32.mrf.mxu0
      %4739 = vmatprep.mubr.f32.mxu0 %v4409
      %4740 = vmatmul.mubr.f32.gmra.mxu0 %v4408
      %v4741 = vpop.f32.mrf.mxu0
      %v4742 = vadd.f32 %v4497, %v4741
      %v4743 = vpop.f32.mrf.mxu0
      %4744 = vmatprep.mubr.f32.mxu0 %v4412
      %4745 = vmatmul.mubr.f32.gmra.mxu0 %v4411
      %v4746 = vpop.f32.mrf.mxu0
      %v4747 = vadd.f32 %v4497, %v4746
      %v4748 = vpop.f32.mrf.mxu0
      %4749 = vmatprep.mubr.f32.mxu0 %v4415
      %4750 = vmatmul.mubr.f32.gmra.mxu0 %v4414
      %v4751 = vpop.f32.mrf.mxu0
      %v4752 = vadd.f32 %v4497, %v4751
      %v4753 = vpop.f32.mrf.mxu0
      %4754 = vmatprep.mubr.f32.mxu0 %v4418
      %4755 = vmatmul.mubr.f32.gmra.mxu0 %v4417
      %v4756 = vpop.f32.mrf.mxu0
      %v4757 = vadd.f32 %v4497, %v4756
      %v4758 = vpop.f32.mrf.mxu0
      %4759 = vmatprep.mubr.f32.mxu0 %v4421
      %4760 = vmatmul.mubr.f32.gmra.mxu0 %v4420
      %v4761 = vpop.f32.mrf.mxu0
      %v4762 = vadd.f32 %v4497, %v4761
      %v4763 = vpop.f32.mrf.mxu0
      %4764 = vmatprep.mubr.f32.mxu0 %v4424
      %4765 = vmatmul.mubr.f32.gmra.mxu0 %v4423
      %v4766 = vpop.f32.mrf.mxu0
      %v4767 = vadd.f32 %v4497, %v4766
      %v4768 = vpop.f32.mrf.mxu0
      %4769 = vmatprep.mubr.f32.mxu0 %v4427
      %4770 = vmatmul.mubr.f32.gmra.mxu0 %v4426
      %v4771 = vpop.f32.mrf.mxu0
      %v4772 = vadd.f32 %v4497, %v4771
      %v4773 = vpop.f32.mrf.mxu0
      %4774 = vmatprep.mubr.f32.mxu0 %v4430
      %4775 = vmatmul.mubr.f32.gmra.mxu0 %v4429
      %v4776 = vpop.f32.mrf.mxu0
      %v4777 = vadd.f32 %v4497, %v4776
      %v4778 = vpop.f32.mrf.mxu0
      %4779 = vmatprep.mubr.f32.mxu0 %v4433
      %4780 = vmatmul.mubr.f32.gmra.mxu0 %v4432
      %v4781 = vpop.f32.mrf.mxu0
      %v4782 = vadd.f32 %v4497, %v4781
      %v4783 = vpop.f32.mrf.mxu0
      %4784 = vmatprep.mubr.f32.mxu0 %v4436
      %4785 = vmatmul.mubr.f32.gmra.mxu0 %v4435
      %v4786 = vpop.f32.mrf.mxu0
      %v4787 = vadd.f32 %v4497, %v4786
      %v4788 = vpop.f32.mrf.mxu0
      %4789 = vmatprep.mubr.f32.mxu0 %v4439
      %4790 = vmatmul.mubr.f32.gmra.mxu0 %v4438
      %v4791 = vpop.f32.mrf.mxu0
      %v4792 = vadd.f32 %v4497, %v4791
      %v4793 = vpop.f32.mrf.mxu0
      %4794 = vmatprep.mubr.f32.mxu0 %v4442
      %4795 = vmatmul.mubr.f32.gmra.mxu0 %v4441
      %v4796 = vpop.f32.mrf.mxu0
      %v4797 = vadd.f32 %v4497, %v4796
      %v4798 = vpop.f32.mrf.mxu0
      %4799 = vmatprep.mubr.f32.mxu0 %v4445
      %4800 = vmatmul.mubr.f32.gmra.mxu0 %v4444
      %v4801 = vpop.f32.mrf.mxu0
      %v4802 = vadd.f32 %v4497, %v4801
      %v4803 = vpop.f32.mrf.mxu0
      %4804 = vmatprep.mubr.f32.mxu0 %v4448
      %4805 = vmatmul.mubr.f32.gmra.mxu0 %v4447
      %v4806 = vpop.f32.mrf.mxu0
      %v4807 = vadd.f32 %v4497, %v4806
      %v4808 = vpop.f32.mrf.mxu0
      %4809 = vmatprep.mubr.f32.mxu0 %v4451
      %4810 = vmatmul.mubr.f32.gmra.mxu0 %v4450
      %v4811 = vpop.f32.mrf.mxu0
      %v4812 = vadd.f32 %v4497, %v4811
      %v4813 = vpop.f32.mrf.mxu0
      %4814 = vmatprep.mubr.f32.mxu0 %v4454
      %4815 = vmatmul.mubr.f32.gmra.mxu0 %v4453
      %v4816 = vpop.f32.mrf.mxu0
      %v4817 = vadd.f32 %v4497, %v4816
      %v4818 = vpop.f32.mrf.mxu0
      %4819 = vdwg.mxu0
      %4820 = vmatprep.subr.mxu0 0.0
      %4821 = vmatpush1.msra.mxu0 0.0
      %4822 = vmatprep.subr.mxu0 0.0
      %4823 = vmatpush1.msra.mxu0 0.0
      %4824 = vmatprep.subr.mxu0 0.0
      %4825 = vmatpush1.msra.mxu0 0.0
      %4826 = vmatprep.subr.mxu0 0.0
      %4827 = vmatpush1.msra.mxu0 0.0
      %4828 = vmatprep.subr.mxu0 0.0
      %4829 = vmatpush1.msra.mxu0 0.0
      %4830 = vmatprep.subr.mxu0 0.0
      %4831 = vmatpush1.msra.mxu0 0.0
      %4832 = vmatprep.subr.mxu0 0.0
      %4833 = vmatpush1.msra.mxu0 0.0
      %4834 = vmatprep.subr.mxu0 0.0
      %4835 = vmatpush1.msra.mxu0 0.0
      %4836 = vmatprep.subr.mxu0 0.0
      %4837 = vmatpush1.msra.mxu0 0.0
      %4838 = vmatprep.subr.mxu0 0.0
      %4839 = vmatpush1.msra.mxu0 0.0
      %4840 = vmatprep.subr.mxu0 0.0
      %4841 = vmatpush1.msra.mxu0 0.0
      %4842 = vmatprep.subr.mxu0 0.0
      %4843 = vmatpush1.msra.mxu0 0.0
      %4844 = vmatprep.subr.mxu0 0.0
      %4845 = vmatpush1.msra.mxu0 %v4491
      %4846 = vmatprep.subr.mxu0 0.0
      %4847 = vmatpush1.msra.mxu0 %v4490
      %4848 = vmatprep.subr.mxu0 0.0
      %4849 = vmatpush1.msra.mxu0 %v4489
      %4850 = vmatprep.subr.mxu0 0.0
      %4851 = vmatpush1.msra.mxu0 %v4488
      %4852 = vmatprep.subr.mxu0 0.0
      %4853 = vmatpush2.msra.mxu0 0.0
      %4854 = vmatprep.subr.mxu0 0.0
      %4855 = vmatpush2.msra.mxu0 0.0
      %4856 = vmatprep.subr.mxu0 0.0
      %4857 = vmatpush2.msra.mxu0 0.0
      %4858 = vmatprep.subr.mxu0 0.0
      %4859 = vmatpush2.msra.mxu0 0.0
      %4860 = vmatprep.subr.mxu0 0.0
      %4861 = vmatpush2.msra.mxu0 0.0
      %4862 = vmatprep.subr.mxu0 0.0
      %4863 = vmatpush2.msra.mxu0 0.0
      %4864 = vmatprep.subr.mxu0 0.0
      %4865 = vmatpush2.msra.mxu0 0.0
      %4866 = vmatprep.subr.mxu0 0.0
      %4867 = vmatpush2.msra.mxu0 0.0
      %4868 = vmatprep.subr.mxu0 0.0
      %4869 = vmatpush2.msra.mxu0 0.0
      %4870 = vmatprep.subr.mxu0 0.0
      %4871 = vmatpush2.msra.mxu0 0.0
      %4872 = vmatprep.subr.mxu0 0.0
      %4873 = vmatpush2.msra.mxu0 0.0
      %4874 = vmatprep.subr.mxu0 0.0
      %4875 = vmatpush2.msra.mxu0 0.0
      %4876 = vmatprep.subr.mxu0 0.0
      %4877 = vmatpush2.msra.mxu0 0.0
      %4878 = vmatprep.subr.mxu0 0.0
      %4879 = vmatpush2.msra.mxu0 0.0
      %4880 = vmatprep.subr.mxu0 0.0
      %4881 = vmatpush2.msra.mxu0 0.0
      %4882 = vmatprep.subr.mxu0 0.0
      %4883 = vmatpush2.msra.mxu0 0.0
      %4884 = vmatprep.mubr.f32.mxu0 0.0
      %4885 = vmatmul.mubr.f32.gmra.mxu0 %v4500
      %v4886 = vpop.f32.mrf.mxu0
      %v4887 = vadd.f32 %v4662, %v4886
      %v4888 = vpop.f32.mrf.mxu0
      %4889 = vmatprep.mubr.f32.mxu0 0.0
      %4890 = vmatmul.mubr.f32.gmra.mxu0 %v4503
      %v4891 = vpop.f32.mrf.mxu0
      %v4892 = vadd.f32 %v4667, %v4891
      %v4893 = vpop.f32.mrf.mxu0
      %4894 = vmatprep.mubr.f32.mxu0 0.0
      %4895 = vmatmul.mubr.f32.gmra.mxu0 %v4506
      %v4896 = vpop.f32.mrf.mxu0
      %v4897 = vadd.f32 %v4672, %v4896
      %v4898 = vpop.f32.mrf.mxu0
      %4899 = vmatprep.mubr.f32.mxu0 0.0
      %4900 = vmatmul.mubr.f32.gmra.mxu0 %v4509
      %v4901 = vpop.f32.mrf.mxu0
      %v4902 = vadd.f32 %v4677, %v4901
      %v4903 = vpop.f32.mrf.mxu0
      %4904 = vmatprep.mubr.f32.mxu0 0.0
      %4905 = vmatmul.mubr.f32.gmra.mxu0 %v4512
      %v4906 = vpop.f32.mrf.mxu0
      %v4907 = vadd.f32 %v4682, %v4906
      %v4908 = vpop.f32.mrf.mxu0
      %4909 = vmatprep.mubr.f32.mxu0 0.0
      %4910 = vmatmul.mubr.f32.gmra.mxu0 %v4515
      %v4911 = vpop.f32.mrf.mxu0
      %v4912 = vadd.f32 %v4687, %v4911
      %v4913 = vpop.f32.mrf.mxu0
      %4914 = vmatprep.mubr.f32.mxu0 0.0
      %4915 = vmatmul.mubr.f32.gmra.mxu0 %v4518
      %v4916 = vpop.f32.mrf.mxu0
      %v4917 = vadd.f32 %v4692, %v4916
      %v4918 = vpop.f32.mrf.mxu0
      %4919 = vmatprep.mubr.f32.mxu0 0.0
      %4920 = vmatmul.mubr.f32.gmra.mxu0 %v4521
      %v4921 = vpop.f32.mrf.mxu0
      %v4922 = vadd.f32 %v4697, %v4921
      %v4923 = vpop.f32.mrf.mxu0
      %4924 = vmatprep.mubr.f32.mxu0 0.0
      %4925 = vmatmul.mubr.f32.gmra.mxu0 %v4524
      %v4926 = vpop.f32.mrf.mxu0
      %v4927 = vadd.f32 %v4702, %v4926
      %v4928 = vpop.f32.mrf.mxu0
      %4929 = vmatprep.mubr.f32.mxu0 0.0
      %4930 = vmatmul.mubr.f32.gmra.mxu0 %v4527
      %v4931 = vpop.f32.mrf.mxu0
      %v4932 = vadd.f32 %v4707, %v4931
      %v4933 = vpop.f32.mrf.mxu0
      %4934 = vmatprep.mubr.f32.mxu0 0.0
      %4935 = vmatmul.mubr.f32.gmra.mxu0 %v4530
      %v4936 = vpop.f32.mrf.mxu0
      %v4937 = vadd.f32 %v4712, %v4936
      %v4938 = vpop.f32.mrf.mxu0
      %4939 = vmatprep.mubr.f32.mxu0 0.0
      %4940 = vmatmul.mubr.f32.gmra.mxu0 %v4533
      %v4941 = vpop.f32.mrf.mxu0
      %v4942 = vadd.f32 %v4717, %v4941
      %v4943 = vpop.f32.mrf.mxu0
      %4944 = vmatprep.mubr.f32.mxu0 0.0
      %4945 = vmatmul.mubr.f32.gmra.mxu0 %v4536
      %v4946 = vpop.f32.mrf.mxu0
      %v4947 = vadd.f32 %v4722, %v4946
      %v4948 = vpop.f32.mrf.mxu0
      %4949 = vmatprep.mubr.f32.mxu0 0.0
      %4950 = vmatmul.mubr.f32.gmra.mxu0 %v4539
      %v4951 = vpop.f32.mrf.mxu0
      %v4952 = vadd.f32 %v4727, %v4951
      %v4953 = vpop.f32.mrf.mxu0
      %4954 = vmatprep.mubr.f32.mxu0 0.0
      %4955 = vmatmul.mubr.f32.gmra.mxu0 %v4542
      %v4956 = vpop.f32.mrf.mxu0
      %v4957 = vadd.f32 %v4732, %v4956
      %v4958 = vpop.f32.mrf.mxu0
      %4959 = vmatprep.mubr.f32.mxu0 0.0
      %4960 = vmatmul.mubr.f32.gmra.mxu0 %v4545
      %v4961 = vpop.f32.mrf.mxu0
      %v4962 = vadd.f32 %v4737, %v4961
      %v4963 = vpop.f32.mrf.mxu0
      %4964 = vmatprep.mubr.f32.mxu0 0.0
      %4965 = vmatmul.mubr.f32.gmra.mxu0 %v4548
      %v4966 = vpop.f32.mrf.mxu0
      %v4967 = vadd.f32 %v4742, %v4966
      %v4968 = vpop.f32.mrf.mxu0
      %4969 = vmatprep.mubr.f32.mxu0 0.0
      %4970 = vmatmul.mubr.f32.gmra.mxu0 %v4551
      %v4971 = vpop.f32.mrf.mxu0
      %v4972 = vadd.f32 %v4747, %v4971
      %v4973 = vpop.f32.mrf.mxu0
      %4974 = vmatprep.mubr.f32.mxu0 0.0
      %4975 = vmatmul.mubr.f32.gmra.mxu0 %v4554
      %v4976 = vpop.f32.mrf.mxu0
      %v4977 = vadd.f32 %v4752, %v4976
      %v4978 = vpop.f32.mrf.mxu0
      %4979 = vmatprep.mubr.f32.mxu0 0.0
      %4980 = vmatmul.mubr.f32.gmra.mxu0 %v4557
      %v4981 = vpop.f32.mrf.mxu0
      %v4982 = vadd.f32 %v4757, %v4981
      %v4983 = vpop.f32.mrf.mxu0
      %4984 = vmatprep.mubr.f32.mxu0 0.0
      %4985 = vmatmul.mubr.f32.gmra.mxu0 %v4560
      %v4986 = vpop.f32.mrf.mxu0
      %v4987 = vadd.f32 %v4762, %v4986
      %v4988 = vpop.f32.mrf.mxu0
      %4989 = vmatprep.mubr.f32.mxu0 0.0
      %4990 = vmatmul.mubr.f32.gmra.mxu0 %v4563
      %v4991 = vpop.f32.mrf.mxu0
      %v4992 = vadd.f32 %v4767, %v4991
      %v4993 = vpop.f32.mrf.mxu0
      %4994 = vmatprep.mubr.f32.mxu0 0.0
      %4995 = vmatmul.mubr.f32.gmra.mxu0 %v4566
      %v4996 = vpop.f32.mrf.mxu0
      %v4997 = vadd.f32 %v4772, %v4996
      %v4998 = vpop.f32.mrf.mxu0
      %4999 = vmatprep.mubr.f32.mxu0 0.0
      %5000 = vmatmul.mubr.f32.gmra.mxu0 %v4569
      %v5001 = vpop.f32.mrf.mxu0
      %v5002 = vadd.f32 %v4777, %v5001
      %v5003 = vpop.f32.mrf.mxu0
      %5004 = vmatprep.mubr.f32.mxu0 0.0
      %5005 = vmatmul.mubr.f32.gmra.mxu0 %v4572
      %v5006 = vpop.f32.mrf.mxu0
      %v5007 = vadd.f32 %v4782, %v5006
      %v5008 = vpop.f32.mrf.mxu0
      %5009 = vmatprep.mubr.f32.mxu0 0.0
      %5010 = vmatmul.mubr.f32.gmra.mxu0 %v4575
      %v5011 = vpop.f32.mrf.mxu0
      %v5012 = vadd.f32 %v4787, %v5011
      %v5013 = vpop.f32.mrf.mxu0
      %5014 = vmatprep.mubr.f32.mxu0 0.0
      %5015 = vmatmul.mubr.f32.gmra.mxu0 %v4578
      %v5016 = vpop.f32.mrf.mxu0
      %v5017 = vadd.f32 %v4792, %v5016
      %v5018 = vpop.f32.mrf.mxu0
      %5019 = vmatprep.mubr.f32.mxu0 0.0
      %5020 = vmatmul.mubr.f32.gmra.mxu0 %v4581
      %v5021 = vpop.f32.mrf.mxu0
      %v5022 = vadd.f32 %v4797, %v5021
      %v5023 = vpop.f32.mrf.mxu0
      %5024 = vmatprep.mubr.f32.mxu0 0.0
      %5025 = vmatmul.mubr.f32.gmra.mxu0 %v4584
      %v5026 = vpop.f32.mrf.mxu0
      %v5027 = vadd.f32 %v4802, %v5026
      %v5028 = vpop.f32.mrf.mxu0
      %5029 = vmatprep.mubr.f32.mxu0 0.0
      %5030 = vmatmul.mubr.f32.gmra.mxu0 %v4587
      %v5031 = vpop.f32.mrf.mxu0
      %v5032 = vadd.f32 %v4807, %v5031
      %v5033 = vpop.f32.mrf.mxu0
      %5034 = vmatprep.mubr.f32.mxu0 0.0
      %5035 = vmatmul.mubr.f32.gmra.mxu0 %v4590
      %v5036 = vpop.f32.mrf.mxu0
      %v5037 = vadd.f32 %v4812, %v5036
      %v5038 = vpop.f32.mrf.mxu0
      %5039 = vmatprep.mubr.f32.mxu0 0.0
      %5040 = vmatmul.mubr.f32.gmra.mxu0 %v4593
      %v5041 = vpop.f32.mrf.mxu0
      %v5042 = vadd.f32 %v4817, %v5041
      %v5043 = vpop.f32.mrf.mxu0
      %5044 = vdwg.mxu0
      %v5045 = vmax.f32 %v4887, 0.0
      %v5046 = vmax.f32 %v4892, 0.0
      %v5047 = vmax.f32 %v4897, 0.0
      %v5048 = vmax.f32 %v4902, 0.0
      %v5049 = vmax.f32 %v4907, 0.0
      %v5050 = vmax.f32 %v4912, 0.0
      %v5051 = vmax.f32 %v4917, 0.0
      %v5052 = vmax.f32 %v4922, 0.0
      %v5053 = vmax.f32 %v4927, 0.0
      %v5054 = vmax.f32 %v4932, 0.0
      %v5055 = vmax.f32 %v4937, 0.0
      %v5056 = vmax.f32 %v4942, 0.0
      %v5057 = vmax.f32 %v4947, 0.0
      %v5058 = vmax.f32 %v4952, 0.0
      %v5059 = vmax.f32 %v4957, 0.0
      %v5060 = vmax.f32 %v4962, 0.0
      %v5061 = vmax.f32 %v4967, 0.0
      %v5062 = vmax.f32 %v4972, 0.0
      %v5063 = vmax.f32 %v4977, 0.0
      %v5064 = vmax.f32 %v4982, 0.0
      %v5065 = vmax.f32 %v4987, 0.0
      %v5066 = vmax.f32 %v4992, 0.0
      %v5067 = vmax.f32 %v4997, 0.0
      %v5068 = vmax.f32 %v5002, 0.0
      %v5069 = vmax.f32 %v5007, 0.0
      %v5070 = vmax.f32 %v5012, 0.0
      %v5071 = vmax.f32 %v5017, 0.0
      %v5072 = vmax.f32 %v5022, 0.0
      %v5073 = vmax.f32 %v5027, 0.0
      %v5074 = vmax.f32 %v5032, 0.0
      %v5075 = vmax.f32 %v5037, 0.0
      %v5076 = vmax.f32 %v5042, 0.0
      %v5077 = vld [vmem:[%s5] sm:$0xff]
      %v5078 = vld [vmem:[%s5 + $0x8] sm:$0xff]
      %v5079 = vld [vmem:[%s5 + $0x10] sm:$0xff]
      %v5080 = vld [vmem:[%s5 + $0x18] sm:$0xff]
      %v5081 = vld [vmem:[%s5 + $0x20] sm:$0xff]
      %v5082 = vld [vmem:[%s5 + $0x28] sm:$0xff]
      %v5083 = vld [vmem:[%s5 + $0x30] sm:$0xff]
      %v5084 = vld [vmem:[%s5 + $0x38] sm:$0xff]
      %v5085 = vld [vmem:[%s6] sm:$0x1]
      %v5087 = vlaneseq
      %v5088 = vshrl.u32 %v5087, 7
      %v5089 = vsub.s32 0, %v5088
      %v5090 = vrot.slane %v5085, %v5089
      %vm5092 = vcmask 523264
      %v5094 = vsel %vm5092, %v5045, 0
      %v5097 = vsel %vm5092, %v5046, 0
      %v5100 = vsel %vm5092, %v5047, 0
      %v5103 = vsel %vm5092, %v5048, 0
      %v5106 = vsel %vm5092, %v5049, 0
      %v5109 = vsel %vm5092, %v5050, 0
      %v5112 = vsel %vm5092, %v5051, 0
      %v5115 = vsel %vm5092, %v5052, 0
      %v5118 = vsel %vm5092, %v5053, 0
      %v5121 = vsel %vm5092, %v5054, 0
      %v5124 = vsel %vm5092, %v5055, 0
      %v5127 = vsel %vm5092, %v5056, 0
      %v5130 = vsel %vm5092, %v5057, 0
      %v5133 = vsel %vm5092, %v5058, 0
      %v5136 = vsel %vm5092, %v5059, 0
      %v5139 = vsel %vm5092, %v5060, 0
      %v5142 = vsel %vm5092, %v5061, 0
      %v5145 = vsel %vm5092, %v5062, 0
      %v5148 = vsel %vm5092, %v5063, 0
      %v5151 = vsel %vm5092, %v5064, 0
      %v5154 = vsel %vm5092, %v5065, 0
      %v5157 = vsel %vm5092, %v5066, 0
      %v5160 = vsel %vm5092, %v5067, 0
      %v5163 = vsel %vm5092, %v5068, 0
      %v5166 = vsel %vm5092, %v5069, 0
      %v5169 = vsel %vm5092, %v5070, 0
      %v5172 = vsel %vm5092, %v5071, 0
      %v5175 = vsel %vm5092, %v5072, 0
      %v5178 = vsel %vm5092, %v5073, 0
      %v5181 = vsel %vm5092, %v5074, 0
      %v5184 = vsel %vm5092, %v5075, 0
      %v5187 = vsel %vm5092, %v5076, 0
      %5189 = vmatprep.subr.mxu0 0.0
      %5190 = vmatpush1.msra.mxu0 0.0
      %5191 = vmatprep.subr.mxu0 0.0
      %5192 = vmatpush1.msra.mxu0 0.0
      %5193 = vmatprep.subr.mxu0 0.0
      %5194 = vmatpush1.msra.mxu0 0.0
      %5195 = vmatprep.subr.mxu0 0.0
      %5196 = vmatpush1.msra.mxu0 0.0
      %5197 = vmatprep.subr.mxu0 0.0
      %5198 = vmatpush1.msra.mxu0 0.0
      %5199 = vmatprep.subr.mxu0 0.0
      %5200 = vmatpush1.msra.mxu0 0.0
      %5201 = vmatprep.subr.mxu0 0.0
      %5202 = vmatpush1.msra.mxu0 0.0
      %5203 = vmatprep.subr.mxu0 0.0
      %5204 = vmatpush1.msra.mxu0 0.0
      %5205 = vmatprep.subr.mxu0 0.0
      %5206 = vmatpush1.msra.mxu0 %v5084
      %5207 = vmatprep.subr.mxu0 0.0
      %5208 = vmatpush1.msra.mxu0 %v5083
      %5209 = vmatprep.subr.mxu0 0.0
      %5210 = vmatpush1.msra.mxu0 %v5082
      %5211 = vmatprep.subr.mxu0 0.0
      %5212 = vmatpush1.msra.mxu0 %v5081
      %5213 = vmatprep.subr.mxu0 0.0
      %5214 = vmatpush1.msra.mxu0 %v5080
      %5215 = vmatprep.subr.mxu0 0.0
      %5216 = vmatpush1.msra.mxu0 %v5079
      %5217 = vmatprep.subr.mxu0 0.0
      %5218 = vmatpush1.msra.mxu0 %v5078
      %5219 = vmatprep.subr.mxu0 0.0
      %5220 = vmatpush1.msra.mxu0 %v5077
      %5221 = vmatprep.subr.mxu0 0.0
      %5222 = vmatpush2.msra.mxu0 0.0
      %5223 = vmatprep.subr.mxu0 0.0
      %5224 = vmatpush2.msra.mxu0 0.0
      %5225 = vmatprep.subr.mxu0 0.0
      %5226 = vmatpush2.msra.mxu0 0.0
      %5227 = vmatprep.subr.mxu0 0.0
      %5228 = vmatpush2.msra.mxu0 0.0
      %5229 = vmatprep.subr.mxu0 0.0
      %5230 = vmatpush2.msra.mxu0 0.0
      %5231 = vmatprep.subr.mxu0 0.0
      %5232 = vmatpush2.msra.mxu0 0.0
      %5233 = vmatprep.subr.mxu0 0.0
      %5234 = vmatpush2.msra.mxu0 0.0
      %5235 = vmatprep.subr.mxu0 0.0
      %5236 = vmatpush2.msra.mxu0 0.0
      %5237 = vmatprep.subr.mxu0 0.0
      %5238 = vmatpush2.msra.mxu0 0.0
      %5239 = vmatprep.subr.mxu0 0.0
      %5240 = vmatpush2.msra.mxu0 0.0
      %5241 = vmatprep.subr.mxu0 0.0
      %5242 = vmatpush2.msra.mxu0 0.0
      %5243 = vmatprep.subr.mxu0 0.0
      %5244 = vmatpush2.msra.mxu0 0.0
      %5245 = vmatprep.subr.mxu0 0.0
      %5246 = vmatpush2.msra.mxu0 0.0
      %5247 = vmatprep.subr.mxu0 0.0
      %5248 = vmatpush2.msra.mxu0 0.0
      %5249 = vmatprep.subr.mxu0 0.0
      %5250 = vmatpush2.msra.mxu0 0.0
      %5251 = vmatprep.subr.mxu0 0.0
      %5252 = vmatpush2.msra.mxu0 0.0
      %5253 = vmatprep.mubr.f32.mxu0 0.0
      %5254 = vmatmul.mubr.f32.gmra.mxu0 %v5094
      %v5255 = vpop.f32.mrf.mxu0
      %v5256 = vadd.f32 %v5090, %v5255
      %v5257 = vpop.f32.mrf.mxu0
      %5258 = vmatprep.mubr.f32.mxu0 0.0
      %5259 = vmatmul.mubr.f32.gmra.mxu0 %v5097
      %v5260 = vpop.f32.mrf.mxu0
      %v5261 = vadd.f32 %v5090, %v5260
      %v5262 = vpop.f32.mrf.mxu0
      %5263 = vmatprep.mubr.f32.mxu0 0.0
      %5264 = vmatmul.mubr.f32.gmra.mxu0 %v5100
      %v5265 = vpop.f32.mrf.mxu0
      %v5266 = vadd.f32 %v5090, %v5265
      %v5267 = vpop.f32.mrf.mxu0
      %5268 = vmatprep.mubr.f32.mxu0 0.0
      %5269 = vmatmul.mubr.f32.gmra.mxu0 %v5103
      %v5270 = vpop.f32.mrf.mxu0
      %v5271 = vadd.f32 %v5090, %v5270
      %v5272 = vpop.f32.mrf.mxu0
      %5273 = vmatprep.mubr.f32.mxu0 0.0
      %5274 = vmatmul.mubr.f32.gmra.mxu0 %v5106
      %v5275 = vpop.f32.mrf.mxu0
      %v5276 = vadd.f32 %v5090, %v5275
      %v5277 = vpop.f32.mrf.mxu0
      %5278 = vmatprep.mubr.f32.mxu0 0.0
      %5279 = vmatmul.mubr.f32.gmra.mxu0 %v5109
      %v5280 = vpop.f32.mrf.mxu0
      %v5281 = vadd.f32 %v5090, %v5280
      %v5282 = vpop.f32.mrf.mxu0
      %5283 = vmatprep.mubr.f32.mxu0 0.0
      %5284 = vmatmul.mubr.f32.gmra.mxu0 %v5112
      %v5285 = vpop.f32.mrf.mxu0
      %v5286 = vadd.f32 %v5090, %v5285
      %v5287 = vpop.f32.mrf.mxu0
      %5288 = vmatprep.mubr.f32.mxu0 0.0
      %5289 = vmatmul.mubr.f32.gmra.mxu0 %v5115
      %v5290 = vpop.f32.mrf.mxu0
      %v5291 = vadd.f32 %v5090, %v5290
      %v5292 = vpop.f32.mrf.mxu0
      %5293 = vmatprep.mubr.f32.mxu0 0.0
      %5294 = vmatmul.mubr.f32.gmra.mxu0 %v5118
      %v5295 = vpop.f32.mrf.mxu0
      %v5296 = vadd.f32 %v5090, %v5295
      %v5297 = vpop.f32.mrf.mxu0
      %5298 = vmatprep.mubr.f32.mxu0 0.0
      %5299 = vmatmul.mubr.f32.gmra.mxu0 %v5121
      %v5300 = vpop.f32.mrf.mxu0
      %v5301 = vadd.f32 %v5090, %v5300
      %v5302 = vpop.f32.mrf.mxu0
      %5303 = vmatprep.mubr.f32.mxu0 0.0
      %5304 = vmatmul.mubr.f32.gmra.mxu0 %v5124
      %v5305 = vpop.f32.mrf.mxu0
      %v5306 = vadd.f32 %v5090, %v5305
      %v5307 = vpop.f32.mrf.mxu0
      %5308 = vmatprep.mubr.f32.mxu0 0.0
      %5309 = vmatmul.mubr.f32.gmra.mxu0 %v5127
      %v5310 = vpop.f32.mrf.mxu0
      %v5311 = vadd.f32 %v5090, %v5310
      %v5312 = vpop.f32.mrf.mxu0
      %5313 = vmatprep.mubr.f32.mxu0 0.0
      %5314 = vmatmul.mubr.f32.gmra.mxu0 %v5130
      %v5315 = vpop.f32.mrf.mxu0
      %v5316 = vadd.f32 %v5090, %v5315
      %v5317 = vpop.f32.mrf.mxu0
      %5318 = vmatprep.mubr.f32.mxu0 0.0
      %5319 = vmatmul.mubr.f32.gmra.mxu0 %v5133
      %v5320 = vpop.f32.mrf.mxu0
      %v5321 = vadd.f32 %v5090, %v5320
      %v5322 = vpop.f32.mrf.mxu0
      %5323 = vmatprep.mubr.f32.mxu0 0.0
      %5324 = vmatmul.mubr.f32.gmra.mxu0 %v5136
      %v5325 = vpop.f32.mrf.mxu0
      %v5326 = vadd.f32 %v5090, %v5325
      %v5327 = vpop.f32.mrf.mxu0
      %5328 = vmatprep.mubr.f32.mxu0 0.0
      %5329 = vmatmul.mubr.f32.gmra.mxu0 %v5139
      %v5330 = vpop.f32.mrf.mxu0
      %v5331 = vadd.f32 %v5090, %v5330
      %v5332 = vpop.f32.mrf.mxu0
      %5333 = vmatprep.mubr.f32.mxu0 0.0
      %5334 = vmatmul.mubr.f32.gmra.mxu0 %v5142
      %v5335 = vpop.f32.mrf.mxu0
      %v5336 = vadd.f32 %v5090, %v5335
      %v5337 = vpop.f32.mrf.mxu0
      %5338 = vmatprep.mubr.f32.mxu0 0.0
      %5339 = vmatmul.mubr.f32.gmra.mxu0 %v5145
      %v5340 = vpop.f32.mrf.mxu0
      %v5341 = vadd.f32 %v5090, %v5340
      %v5342 = vpop.f32.mrf.mxu0
      %5343 = vmatprep.mubr.f32.mxu0 0.0
      %5344 = vmatmul.mubr.f32.gmra.mxu0 %v5148
      %v5345 = vpop.f32.mrf.mxu0
      %v5346 = vadd.f32 %v5090, %v5345
      %v5347 = vpop.f32.mrf.mxu0
      %5348 = vmatprep.mubr.f32.mxu0 0.0
      %5349 = vmatmul.mubr.f32.gmra.mxu0 %v5151
      %v5350 = vpop.f32.mrf.mxu0
      %v5351 = vadd.f32 %v5090, %v5350
      %v5352 = vpop.f32.mrf.mxu0
      %5353 = vmatprep.mubr.f32.mxu0 0.0
      %5354 = vmatmul.mubr.f32.gmra.mxu0 %v5154
      %v5355 = vpop.f32.mrf.mxu0
      %v5356 = vadd.f32 %v5090, %v5355
      %v5357 = vpop.f32.mrf.mxu0
      %5358 = vmatprep.mubr.f32.mxu0 0.0
      %5359 = vmatmul.mubr.f32.gmra.mxu0 %v5157
      %v5360 = vpop.f32.mrf.mxu0
      %v5361 = vadd.f32 %v5090, %v5360
      %v5362 = vpop.f32.mrf.mxu0
      %5363 = vmatprep.mubr.f32.mxu0 0.0
      %5364 = vmatmul.mubr.f32.gmra.mxu0 %v5160
      %v5365 = vpop.f32.mrf.mxu0
      %v5366 = vadd.f32 %v5090, %v5365
      %v5367 = vpop.f32.mrf.mxu0
      %5368 = vmatprep.mubr.f32.mxu0 0.0
      %5369 = vmatmul.mubr.f32.gmra.mxu0 %v5163
      %v5370 = vpop.f32.mrf.mxu0
      %v5371 = vadd.f32 %v5090, %v5370
      %v5372 = vpop.f32.mrf.mxu0
      %5373 = vmatprep.mubr.f32.mxu0 0.0
      %5374 = vmatmul.mubr.f32.gmra.mxu0 %v5166
      %v5375 = vpop.f32.mrf.mxu0
      %v5376 = vadd.f32 %v5090, %v5375
      %v5377 = vpop.f32.mrf.mxu0
      %5378 = vmatprep.mubr.f32.mxu0 0.0
      %5379 = vmatmul.mubr.f32.gmra.mxu0 %v5169
      %v5380 = vpop.f32.mrf.mxu0
      %v5381 = vadd.f32 %v5090, %v5380
      %v5382 = vpop.f32.mrf.mxu0
      %5383 = vmatprep.mubr.f32.mxu0 0.0
      %5384 = vmatmul.mubr.f32.gmra.mxu0 %v5172
      %v5385 = vpop.f32.mrf.mxu0
      %v5386 = vadd.f32 %v5090, %v5385
      %v5387 = vpop.f32.mrf.mxu0
      %5388 = vmatprep.mubr.f32.mxu0 0.0
      %5389 = vmatmul.mubr.f32.gmra.mxu0 %v5175
      %v5390 = vpop.f32.mrf.mxu0
      %v5391 = vadd.f32 %v5090, %v5390
      %v5392 = vpop.f32.mrf.mxu0
      %5393 = vmatprep.mubr.f32.mxu0 0.0
      %5394 = vmatmul.mubr.f32.gmra.mxu0 %v5178
      %v5395 = vpop.f32.mrf.mxu0
      %v5396 = vadd.f32 %v5090, %v5395
      %v5397 = vpop.f32.mrf.mxu0
      %5398 = vmatprep.mubr.f32.mxu0 0.0
      %5399 = vmatmul.mubr.f32.gmra.mxu0 %v5181
      %v5400 = vpop.f32.mrf.mxu0
      %v5401 = vadd.f32 %v5090, %v5400
      %v5402 = vpop.f32.mrf.mxu0
      %5403 = vmatprep.mubr.f32.mxu0 0.0
      %5404 = vmatmul.mubr.f32.gmra.mxu0 %v5184
      %v5405 = vpop.f32.mrf.mxu0
      %v5406 = vadd.f32 %v5090, %v5405
      %v5407 = vpop.f32.mrf.mxu0
      %5408 = vmatprep.mubr.f32.mxu0 0.0
      %5409 = vmatmul.mubr.f32.gmra.mxu0 %v5187
      %v5410 = vpop.f32.mrf.mxu0
      %v5411 = vadd.f32 %v5090, %v5410
      %v5412 = vpop.f32.mrf.mxu0
      %5413 = vdwg.mxu0
      %5414 = vst [vmem:[%s480 + $0x1] sm:$0xff] %v5256
      %5415 = vst [vmem:[%s480 + $0x9] sm:$0xff] %v5261
      %5416 = vst [vmem:[%s480 + $0x19] sm:$0xff] %v5266
      %5417 = vst [vmem:[%s480 + $0x21] sm:$0xff] %v5271
      %5418 = vst [vmem:[%s480 + $0x31] sm:$0xff] %v5276
      %5419 = vst [vmem:[%s480 + $0x39] sm:$0xff] %v5281
      %5420 = vst [vmem:[%s480 + $0x49] sm:$0xff] %v5286
      %5421 = vst [vmem:[%s480 + $0x51] sm:$0xff] %v5291
      %5422 = vst [vmem:[%s480 + $0x61] sm:$0xff] %v5296
      %5423 = vst [vmem:[%s480 + $0x69] sm:$0xff] %v5301
      %5424 = vst [vmem:[%s480 + $0x79] sm:$0xff] %v5306
      %5425 = vst [vmem:[%s480 + $0x81] sm:$0xff] %v5311
      %5426 = vst [vmem:[%s480 + $0x91] sm:$0xff] %v5316
      %5427 = vst [vmem:[%s480 + $0x99] sm:$0xff] %v5321
      %5428 = vst [vmem:[%s480 + $0xa9] sm:$0xff] %v5326
      %5429 = vst [vmem:[%s480 + $0xb1] sm:$0xff] %v5331
      %5430 = vst [vmem:[%s480 + $0xc1] sm:$0xff] %v5336
      %5431 = vst [vmem:[%s480 + $0xc9] sm:$0xff] %v5341
      %5432 = vst [vmem:[%s480 + $0xd9] sm:$0xff] %v5346
      %5433 = vst [vmem:[%s480 + $0xe1] sm:$0xff] %v5351
      %5434 = vst [vmem:[%s480 + $0xf1] sm:$0xff] %v5356
      %5435 = vst [vmem:[%s480 + $0xf9] sm:$0xff] %v5361
      %5436 = vst [vmem:[%s480 + $0x109] sm:$0xff] %v5366
      %5437 = vst [vmem:[%s480 + $0x111] sm:$0xff] %v5371
      %5438 = vst [vmem:[%s480 + $0x121] sm:$0xff] %v5376
      %5439 = vst [vmem:[%s480 + $0x129] sm:$0xff] %v5381
      %5440 = vst [vmem:[%s480 + $0x139] sm:$0xff] %v5386
      %5441 = vst [vmem:[%s480 + $0x141] sm:$0xff] %v5391
      %5442 = vst [vmem:[%s480 + $0x151] sm:$0xff] %v5396
      %5443 = vst [vmem:[%s480 + $0x159] sm:$0xff] %v5401
      %5444 = vst [vmem:[%s480 + $0x169] sm:$0xff] %v5406
      %5445 = vst [vmem:[%s480 + $0x171] sm:$0xff] %v5411
      %v5446 = vld [vmem:[#allocation6] sm:$0xff]
      %v5447 = vld [vmem:[#allocation6 + $0x8] sm:$0xff]
      %v5448 = vld [vmem:[#allocation6 + $0x18] sm:$0xff]
      %v5449 = vld [vmem:[#allocation6 + $0x20] sm:$0xff]
      %v5450 = vld [vmem:[#allocation6 + $0x30] sm:$0xff]
      %v5451 = vld [vmem:[#allocation6 + $0x38] sm:$0xff]
      %v5452 = vld [vmem:[#allocation6 + $0x48] sm:$0xff]
      %v5453 = vld [vmem:[#allocation6 + $0x50] sm:$0xff]
      %v5454 = vld [vmem:[#allocation6 + $0x60] sm:$0xff]
      %v5455 = vld [vmem:[#allocation6 + $0x68] sm:$0xff]
      %v5456 = vld [vmem:[#allocation6 + $0x78] sm:$0xff]
      %v5457 = vld [vmem:[#allocation6 + $0x80] sm:$0xff]
      %v5458 = vld [vmem:[#allocation6 + $0x90] sm:$0xff]
      %v5459 = vld [vmem:[#allocation6 + $0x98] sm:$0xff]
      %v5460 = vld [vmem:[#allocation6 + $0xa8] sm:$0xff]
      %v5461 = vld [vmem:[#allocation6 + $0xb0] sm:$0xff]
      %v5462 = vld [vmem:[#allocation6 + $0xc0] sm:$0xff]
      %v5463 = vld [vmem:[#allocation6 + $0xc8] sm:$0xff]
      %v5464 = vld [vmem:[#allocation6 + $0xd8] sm:$0xff]
      %v5465 = vld [vmem:[#allocation6 + $0xe0] sm:$0xff]
      %v5466 = vld [vmem:[#allocation6 + $0xf0] sm:$0xff]
      %v5467 = vld [vmem:[#allocation6 + $0xf8] sm:$0xff]
      %v5468 = vld [vmem:[#allocation6 + $0x108] sm:$0xff]
      %v5469 = vld [vmem:[#allocation6 + $0x110] sm:$0xff]
      %v5470 = vld [vmem:[#allocation6 + $0x120] sm:$0xff]
      %v5471 = vld [vmem:[#allocation6 + $0x128] sm:$0xff]
      %v5472 = vld [vmem:[#allocation6 + $0x138] sm:$0xff]
      %v5473 = vld [vmem:[#allocation6 + $0x140] sm:$0xff]
      %v5474 = vld [vmem:[#allocation6 + $0x150] sm:$0xff]
      %v5475 = vld [vmem:[#allocation6 + $0x158] sm:$0xff]
      %v5476 = vld [vmem:[#allocation6 + $0x168] sm:$0xff]
      %v5477 = vld [vmem:[#allocation6 + $0x170] sm:$0xff]
      %5478 = vst [vmem:[#allocation8] sm:$0xff] %v5446
      %5479 = vst [vmem:[#allocation8 + $0x90] sm:$0xff] %v5447
      %5480 = vst [vmem:[#allocation8 + $0x120] sm:$0xff] %v5448
      %5481 = vst [vmem:[#allocation8 + $0x1b0] sm:$0xff] %v5449
      %5482 = vst [vmem:[#allocation8 + $0x240] sm:$0xff] %v5450
      %5483 = vst [vmem:[#allocation8 + $0x2d0] sm:$0xff] %v5451
      %5484 = vst [vmem:[#allocation8 + $0x360] sm:$0xff] %v5452
      %5485 = vst [vmem:[#allocation8 + $0x3f0] sm:$0xff] %v5453
      %5486 = vst [vmem:[#allocation8 + $0x480] sm:$0xff] %v5454
      %5487 = vst [vmem:[#allocation8 + $0x510] sm:$0xff] %v5455
      %5488 = vst [vmem:[#allocation8 + $0x5a0] sm:$0xff] %v5456
      %5489 = vst [vmem:[#allocation8 + $0x630] sm:$0xff] %v5457
      %5490 = vst [vmem:[#allocation8 + $0x6c0] sm:$0xff] %v5458
      %5491 = vst [vmem:[#allocation8 + $0x750] sm:$0xff] %v5459
      %5492 = vst [vmem:[#allocation8 + $0x7e0] sm:$0xff] %v5460
      %5493 = vst [vmem:[#allocation8 + $0x870] sm:$0xff] %v5461
      %5494 = vst [vmem:[#allocation8 + $0x900] sm:$0xff] %v5462
      %5495 = vst [vmem:[#allocation8 + $0x990] sm:$0xff] %v5463
      %5496 = vst [vmem:[#allocation8 + $0xa20] sm:$0xff] %v5464
      %5497 = vst [vmem:[#allocation8 + $0xab0] sm:$0xff] %v5465
      %5498 = vst [vmem:[#allocation8 + $0xb40] sm:$0xff] %v5466
      %5499 = vst [vmem:[#allocation8 + $0xbd0] sm:$0xff] %v5467
      %5500 = vst [vmem:[#allocation8 + $0xc60] sm:$0xff] %v5468
      %5501 = vst [vmem:[#allocation8 + $0xcf0] sm:$0xff] %v5469
      %5502 = vst [vmem:[#allocation8 + $0xd80] sm:$0xff] %v5470
      %5503 = vst [vmem:[#allocation8 + $0xe10] sm:$0xff] %v5471
      %5504 = vst [vmem:[#allocation8 + $0xea0] sm:$0xff] %v5472
      %5505 = vst [vmem:[#allocation8 + $0xf30] sm:$0xff] %v5473
      %5506 = vst [vmem:[#allocation8 + $0xfc0] sm:$0xff] %v5474
      %5507 = vst [vmem:[#allocation8 + $0x1050] sm:$0xff] %v5475
      %5508 = vst [vmem:[#allocation8 + $0x10e0] sm:$0xff] %v5476
      %5509 = vst [vmem:[#allocation8 + $0x1170] sm:$0xff] %v5477
      %v5510 = vld [vmem:[#allocation6 + $0x1] sm:$0xff]
      %v5511 = vld [vmem:[#allocation6 + $0x9] sm:$0xff]
      %v5512 = vld [vmem:[#allocation6 + $0x19] sm:$0xff]
      %v5513 = vld [vmem:[#allocation6 + $0x21] sm:$0xff]
      %v5514 = vld [vmem:[#allocation6 + $0x31] sm:$0xff]
      %v5515 = vld [vmem:[#allocation6 + $0x39] sm:$0xff]
      %v5516 = vld [vmem:[#allocation6 + $0x49] sm:$0xff]
      %v5517 = vld [vmem:[#allocation6 + $0x51] sm:$0xff]
      %v5518 = vld [vmem:[#allocation6 + $0x61] sm:$0xff]
      %v5519 = vld [vmem:[#allocation6 + $0x69] sm:$0xff]
      %v5520 = vld [vmem:[#allocation6 + $0x79] sm:$0xff]
      %v5521 = vld [vmem:[#allocation6 + $0x81] sm:$0xff]
      %v5522 = vld [vmem:[#allocation6 + $0x91] sm:$0xff]
      %v5523 = vld [vmem:[#allocation6 + $0x99] sm:$0xff]
      %v5524 = vld [vmem:[#allocation6 + $0xa9] sm:$0xff]
      %v5525 = vld [vmem:[#allocation6 + $0xb1] sm:$0xff]
      %v5526 = vld [vmem:[#allocation6 + $0xc1] sm:$0xff]
      %v5527 = vld [vmem:[#allocation6 + $0xc9] sm:$0xff]
      %v5528 = vld [vmem:[#allocation6 + $0xd9] sm:$0xff]
      %v5529 = vld [vmem:[#allocation6 + $0xe1] sm:$0xff]
      %v5530 = vld [vmem:[#allocation6 + $0xf1] sm:$0xff]
      %v5531 = vld [vmem:[#allocation6 + $0xf9] sm:$0xff]
      %v5532 = vld [vmem:[#allocation6 + $0x109] sm:$0xff]
      %v5533 = vld [vmem:[#allocation6 + $0x111] sm:$0xff]
      %v5534 = vld [vmem:[#allocation6 + $0x121] sm:$0xff]
      %v5535 = vld [vmem:[#allocation6 + $0x129] sm:$0xff]
      %v5536 = vld [vmem:[#allocation6 + $0x139] sm:$0xff]
      %v5537 = vld [vmem:[#allocation6 + $0x141] sm:$0xff]
      %v5538 = vld [vmem:[#allocation6 + $0x151] sm:$0xff]
      %v5539 = vld [vmem:[#allocation6 + $0x159] sm:$0xff]
      %v5540 = vld [vmem:[#allocation6 + $0x169] sm:$0xff]
      %v5541 = vld [vmem:[#allocation6 + $0x171] sm:$0xff]
      %5542 = vst [vmem:[#allocation8 + $0x8] sm:$0xff] %v5510
      %5543 = vst [vmem:[#allocation8 + $0x98] sm:$0xff] %v5511
      %5544 = vst [vmem:[#allocation8 + $0x128] sm:$0xff] %v5512
      %5545 = vst [vmem:[#allocation8 + $0x1b8] sm:$0xff] %v5513
      %5546 = vst [vmem:[#allocation8 + $0x248] sm:$0xff] %v5514
      %5547 = vst [vmem:[#allocation8 + $0x2d8] sm:$0xff] %v5515
      %5548 = vst [vmem:[#allocation8 + $0x368] sm:$0xff] %v5516
      %5549 = vst [vmem:[#allocation8 + $0x3f8] sm:$0xff] %v5517
      %5550 = vst [vmem:[#allocation8 + $0x488] sm:$0xff] %v5518
      %5551 = vst [vmem:[#allocation8 + $0x518] sm:$0xff] %v5519
      %5552 = vst [vmem:[#allocation8 + $0x5a8] sm:$0xff] %v5520
      %5553 = vst [vmem:[#allocation8 + $0x638] sm:$0xff] %v5521
      %5554 = vst [vmem:[#allocation8 + $0x6c8] sm:$0xff] %v5522
      %5555 = vst [vmem:[#allocation8 + $0x758] sm:$0xff] %v5523
      %5556 = vst [vmem:[#allocation8 + $0x7e8] sm:$0xff] %v5524
      %5557 = vst [vmem:[#allocation8 + $0x878] sm:$0xff] %v5525
      %5558 = vst [vmem:[#allocation8 + $0x908] sm:$0xff] %v5526
      %5559 = vst [vmem:[#allocation8 + $0x998] sm:$0xff] %v5527
      %5560 = vst [vmem:[#allocation8 + $0xa28] sm:$0xff] %v5528
      %5561 = vst [vmem:[#allocation8 + $0xab8] sm:$0xff] %v5529
      %5562 = vst [vmem:[#allocation8 + $0xb48] sm:$0xff] %v5530
      %5563 = vst [vmem:[#allocation8 + $0xbd8] sm:$0xff] %v5531
      %5564 = vst [vmem:[#allocation8 + $0xc68] sm:$0xff] %v5532
      %5565 = vst [vmem:[#allocation8 + $0xcf8] sm:$0xff] %v5533
      %5566 = vst [vmem:[#allocation8 + $0xd88] sm:$0xff] %v5534
      %5567 = vst [vmem:[#allocation8 + $0xe18] sm:$0xff] %v5535
      %5568 = vst [vmem:[#allocation8 + $0xea8] sm:$0xff] %v5536
      %5569 = vst [vmem:[#allocation8 + $0xf38] sm:$0xff] %v5537
      %5570 = vst [vmem:[#allocation8 + $0xfc8] sm:$0xff] %v5538
      %5571 = vst [vmem:[#allocation8 + $0x1058] sm:$0xff] %v5539
      %5572 = vst [vmem:[#allocation8 + $0x10e8] sm:$0xff] %v5540
      %5573 = vst [vmem:[#allocation8 + $0x1178] sm:$0xff] %v5541
      %v5574 = vld [vmem:[#allocation6 + $0x2] sm:$0xff]
      %v5575 = vld [vmem:[#allocation6 + $0xa] sm:$0xff]
      %v5576 = vld [vmem:[#allocation6 + $0x1a] sm:$0xff]
      %v5577 = vld [vmem:[#allocation6 + $0x22] sm:$0xff]
      %v5578 = vld [vmem:[#allocation6 + $0x32] sm:$0xff]
      %v5579 = vld [vmem:[#allocation6 + $0x3a] sm:$0xff]
      %v5580 = vld [vmem:[#allocation6 + $0x4a] sm:$0xff]
      %v5581 = vld [vmem:[#allocation6 + $0x52] sm:$0xff]
      %v5582 = vld [vmem:[#allocation6 + $0x62] sm:$0xff]
      %v5583 = vld [vmem:[#allocation6 + $0x6a] sm:$0xff]
      %v5584 = vld [vmem:[#allocation6 + $0x7a] sm:$0xff]
      %v5585 = vld [vmem:[#allocation6 + $0x82] sm:$0xff]
      %v5586 = vld [vmem:[#allocation6 + $0x92] sm:$0xff]
      %v5587 = vld [vmem:[#allocation6 + $0x9a] sm:$0xff]
      %v5588 = vld [vmem:[#allocation6 + $0xaa] sm:$0xff]
      %v5589 = vld [vmem:[#allocation6 + $0xb2] sm:$0xff]
      %v5590 = vld [vmem:[#allocation6 + $0xc2] sm:$0xff]
      %v5591 = vld [vmem:[#allocation6 + $0xca] sm:$0xff]
      %v5592 = vld [vmem:[#allocation6 + $0xda] sm:$0xff]
      %v5593 = vld [vmem:[#allocation6 + $0xe2] sm:$0xff]
      %v5594 = vld [vmem:[#allocation6 + $0xf2] sm:$0xff]
      %v5595 = vld [vmem:[#allocation6 + $0xfa] sm:$0xff]
      %v5596 = vld [vmem:[#allocation6 + $0x10a] sm:$0xff]
      %v5597 = vld [vmem:[#allocation6 + $0x112] sm:$0xff]
      %v5598 = vld [vmem:[#allocation6 + $0x122] sm:$0xff]
      %v5599 = vld [vmem:[#allocation6 + $0x12a] sm:$0xff]
      %v5600 = vld [vmem:[#allocation6 + $0x13a] sm:$0xff]
      %v5601 = vld [vmem:[#allocation6 + $0x142] sm:$0xff]
      %v5602 = vld [vmem:[#allocation6 + $0x152] sm:$0xff]
      %v5603 = vld [vmem:[#allocation6 + $0x15a] sm:$0xff]
      %v5604 = vld [vmem:[#allocation6 + $0x16a] sm:$0xff]
      %v5605 = vld [vmem:[#allocation6 + $0x172] sm:$0xff]
      %5606 = vst [vmem:[#allocation8 + $0x10] sm:$0xff] %v5574
      %5607 = vst [vmem:[#allocation8 + $0xa0] sm:$0xff] %v5575
      %5608 = vst [vmem:[#allocation8 + $0x130] sm:$0xff] %v5576
      %5609 = vst [vmem:[#allocation8 + $0x1c0] sm:$0xff] %v5577
      %5610 = vst [vmem:[#allocation8 + $0x250] sm:$0xff] %v5578
      %5611 = vst [vmem:[#allocation8 + $0x2e0] sm:$0xff] %v5579
      %5612 = vst [vmem:[#allocation8 + $0x370] sm:$0xff] %v5580
      %5613 = vst [vmem:[#allocation8 + $0x400] sm:$0xff] %v5581
      %5614 = vst [vmem:[#allocation8 + $0x490] sm:$0xff] %v5582
      %5615 = vst [vmem:[#allocation8 + $0x520] sm:$0xff] %v5583
      %5616 = vst [vmem:[#allocation8 + $0x5b0] sm:$0xff] %v5584
      %5617 = vst [vmem:[#allocation8 + $0x640] sm:$0xff] %v5585
      %5618 = vst [vmem:[#allocation8 + $0x6d0] sm:$0xff] %v5586
      %5619 = vst [vmem:[#allocation8 + $0x760] sm:$0xff] %v5587
      %5620 = vst [vmem:[#allocation8 + $0x7f0] sm:$0xff] %v5588
      %5621 = vst [vmem:[#allocation8 + $0x880] sm:$0xff] %v5589
      %5622 = vst [vmem:[#allocation8 + $0x910] sm:$0xff] %v5590
      %5623 = vst [vmem:[#allocation8 + $0x9a0] sm:$0xff] %v5591
      %5624 = vst [vmem:[#allocation8 + $0xa30] sm:$0xff] %v5592
      %5625 = vst [vmem:[#allocation8 + $0xac0] sm:$0xff] %v5593
      %5626 = vst [vmem:[#allocation8 + $0xb50] sm:$0xff] %v5594
      %5627 = vst [vmem:[#allocation8 + $0xbe0] sm:$0xff] %v5595
      %5628 = vst [vmem:[#allocation8 + $0xc70] sm:$0xff] %v5596
      %5629 = vst [vmem:[#allocation8 + $0xd00] sm:$0xff] %v5597
      %5630 = vst [vmem:[#allocation8 + $0xd90] sm:$0xff] %v5598
      %5631 = vst [vmem:[#allocation8 + $0xe20] sm:$0xff] %v5599
      %5632 = vst [vmem:[#allocation8 + $0xeb0] sm:$0xff] %v5600
      %5633 = vst [vmem:[#allocation8 + $0xf40] sm:$0xff] %v5601
      %5634 = vst [vmem:[#allocation8 + $0xfd0] sm:$0xff] %v5602
      %5635 = vst [vmem:[#allocation8 + $0x1060] sm:$0xff] %v5603
      %5636 = vst [vmem:[#allocation8 + $0x10f0] sm:$0xff] %v5604
      %5637 = vst [vmem:[#allocation8 + $0x1180] sm:$0xff] %v5605
      %v5638 = vld [vmem:[%s480] sm:$0xff]
      %v5639 = vld [vmem:[%s480 + $0x8] sm:$0xff]
      %v5640 = vld [vmem:[%s480 + $0x18] sm:$0xff]
      %v5641 = vld [vmem:[%s480 + $0x20] sm:$0xff]
      %v5642 = vld [vmem:[%s480 + $0x30] sm:$0xff]
      %v5643 = vld [vmem:[%s480 + $0x38] sm:$0xff]
      %v5644 = vld [vmem:[%s480 + $0x48] sm:$0xff]
      %v5645 = vld [vmem:[%s480 + $0x50] sm:$0xff]
      %v5646 = vld [vmem:[%s480 + $0x60] sm:$0xff]
      %v5647 = vld [vmem:[%s480 + $0x68] sm:$0xff]
      %v5648 = vld [vmem:[%s480 + $0x78] sm:$0xff]
      %v5649 = vld [vmem:[%s480 + $0x80] sm:$0xff]
      %v5650 = vld [vmem:[%s480 + $0x90] sm:$0xff]
      %v5651 = vld [vmem:[%s480 + $0x98] sm:$0xff]
      %v5652 = vld [vmem:[%s480 + $0xa8] sm:$0xff]
      %v5653 = vld [vmem:[%s480 + $0xb0] sm:$0xff]
      %v5654 = vld [vmem:[%s480 + $0xc0] sm:$0xff]
      %v5655 = vld [vmem:[%s480 + $0xc8] sm:$0xff]
      %v5656 = vld [vmem:[%s480 + $0xd8] sm:$0xff]
      %v5657 = vld [vmem:[%s480 + $0xe0] sm:$0xff]
      %v5658 = vld [vmem:[%s480 + $0xf0] sm:$0xff]
      %v5659 = vld [vmem:[%s480 + $0xf8] sm:$0xff]
      %v5660 = vld [vmem:[%s480 + $0x108] sm:$0xff]
      %v5661 = vld [vmem:[%s480 + $0x110] sm:$0xff]
      %v5662 = vld [vmem:[%s480 + $0x120] sm:$0xff]
      %v5663 = vld [vmem:[%s480 + $0x128] sm:$0xff]
      %v5664 = vld [vmem:[%s480 + $0x138] sm:$0xff]
      %v5665 = vld [vmem:[%s480 + $0x140] sm:$0xff]
      %v5666 = vld [vmem:[%s480 + $0x150] sm:$0xff]
      %v5667 = vld [vmem:[%s480 + $0x158] sm:$0xff]
      %v5668 = vld [vmem:[%s480 + $0x168] sm:$0xff]
      %v5669 = vld [vmem:[%s480 + $0x170] sm:$0xff]
      %5670 = vst [vmem:[#allocation8 + $0x18] sm:$0xff] %v5638
      %5671 = vst [vmem:[#allocation8 + $0xa8] sm:$0xff] %v5639
      %5672 = vst [vmem:[#allocation8 + $0x138] sm:$0xff] %v5640
      %5673 = vst [vmem:[#allocation8 + $0x1c8] sm:$0xff] %v5641
      %5674 = vst [vmem:[#allocation8 + $0x258] sm:$0xff] %v5642
      %5675 = vst [vmem:[#allocation8 + $0x2e8] sm:$0xff] %v5643
      %5676 = vst [vmem:[#allocation8 + $0x378] sm:$0xff] %v5644
      %5677 = vst [vmem:[#allocation8 + $0x408] sm:$0xff] %v5645
      %5678 = vst [vmem:[#allocation8 + $0x498] sm:$0xff] %v5646
      %5679 = vst [vmem:[#allocation8 + $0x528] sm:$0xff] %v5647
      %5680 = vst [vmem:[#allocation8 + $0x5b8] sm:$0xff] %v5648
      %5681 = vst [vmem:[#allocation8 + $0x648] sm:$0xff] %v5649
      %5682 = vst [vmem:[#allocation8 + $0x6d8] sm:$0xff] %v5650
      %5683 = vst [vmem:[#allocation8 + $0x768] sm:$0xff] %v5651
      %5684 = vst [vmem:[#allocation8 + $0x7f8] sm:$0xff] %v5652
      %5685 = vst [vmem:[#allocation8 + $0x888] sm:$0xff] %v5653
      %5686 = vst [vmem:[#allocation8 + $0x918] sm:$0xff] %v5654
      %5687 = vst [vmem:[#allocation8 + $0x9a8] sm:$0xff] %v5655
      %5688 = vst [vmem:[#allocation8 + $0xa38] sm:$0xff] %v5656
      %5689 = vst [vmem:[#allocation8 + $0xac8] sm:$0xff] %v5657
      %5690 = vst [vmem:[#allocation8 + $0xb58] sm:$0xff] %v5658
      %5691 = vst [vmem:[#allocation8 + $0xbe8] sm:$0xff] %v5659
      %5692 = vst [vmem:[#allocation8 + $0xc78] sm:$0xff] %v5660
      %5693 = vst [vmem:[#allocation8 + $0xd08] sm:$0xff] %v5661
      %5694 = vst [vmem:[#allocation8 + $0xd98] sm:$0xff] %v5662
      %5695 = vst [vmem:[#allocation8 + $0xe28] sm:$0xff] %v5663
      %5696 = vst [vmem:[#allocation8 + $0xeb8] sm:$0xff] %v5664
      %5697 = vst [vmem:[#allocation8 + $0xf48] sm:$0xff] %v5665
      %5698 = vst [vmem:[#allocation8 + $0xfd8] sm:$0xff] %v5666
      %5699 = vst [vmem:[#allocation8 + $0x1068] sm:$0xff] %v5667
      %5700 = vst [vmem:[#allocation8 + $0x10f8] sm:$0xff] %v5668
      %5701 = vst [vmem:[#allocation8 + $0x1188] sm:$0xff] %v5669
      %v5702 = vld [vmem:[%s480 + $0x1] sm:$0xff]
      %v5703 = vld [vmem:[%s480 + $0x9] sm:$0xff]
      %v5704 = vld [vmem:[%s480 + $0x19] sm:$0xff]
      %v5705 = vld [vmem:[%s480 + $0x21] sm:$0xff]
      %v5706 = vld [vmem:[%s480 + $0x31] sm:$0xff]
      %v5707 = vld [vmem:[%s480 + $0x39] sm:$0xff]
      %v5708 = vld [vmem:[%s480 + $0x49] sm:$0xff]
      %v5709 = vld [vmem:[%s480 + $0x51] sm:$0xff]
      %v5710 = vld [vmem:[%s480 + $0x61] sm:$0xff]
      %v5711 = vld [vmem:[%s480 + $0x69] sm:$0xff]
      %v5712 = vld [vmem:[%s480 + $0x79] sm:$0xff]
      %v5713 = vld [vmem:[%s480 + $0x81] sm:$0xff]
      %v5714 = vld [vmem:[%s480 + $0x91] sm:$0xff]
      %v5715 = vld [vmem:[%s480 + $0x99] sm:$0xff]
      %v5716 = vld [vmem:[%s480 + $0xa9] sm:$0xff]
      %v5717 = vld [vmem:[%s480 + $0xb1] sm:$0xff]
      %v5718 = vld [vmem:[%s480 + $0xc1] sm:$0xff]
      %v5719 = vld [vmem:[%s480 + $0xc9] sm:$0xff]
      %v5720 = vld [vmem:[%s480 + $0xd9] sm:$0xff]
      %v5721 = vld [vmem:[%s480 + $0xe1] sm:$0xff]
      %v5722 = vld [vmem:[%s480 + $0xf1] sm:$0xff]
      %v5723 = vld [vmem:[%s480 + $0xf9] sm:$0xff]
      %v5724 = vld [vmem:[%s480 + $0x109] sm:$0xff]
      %v5725 = vld [vmem:[%s480 + $0x111] sm:$0xff]
      %v5726 = vld [vmem:[%s480 + $0x121] sm:$0xff]
      %v5727 = vld [vmem:[%s480 + $0x129] sm:$0xff]
      %v5728 = vld [vmem:[%s480 + $0x139] sm:$0xff]
      %v5729 = vld [vmem:[%s480 + $0x141] sm:$0xff]
      %v5730 = vld [vmem:[%s480 + $0x151] sm:$0xff]
      %v5731 = vld [vmem:[%s480 + $0x159] sm:$0xff]
      %v5732 = vld [vmem:[%s480 + $0x169] sm:$0xff]
      %v5733 = vld [vmem:[%s480 + $0x171] sm:$0xff]
      %5734 = vst [vmem:[#allocation8 + $0x20] sm:$0xff] %v5702
      %5735 = vst [vmem:[#allocation8 + $0xb0] sm:$0xff] %v5703
      %5736 = vst [vmem:[#allocation8 + $0x140] sm:$0xff] %v5704
      %5737 = vst [vmem:[#allocation8 + $0x1d0] sm:$0xff] %v5705
      %5738 = vst [vmem:[#allocation8 + $0x260] sm:$0xff] %v5706
      %5739 = vst [vmem:[#allocation8 + $0x2f0] sm:$0xff] %v5707
      %5740 = vst [vmem:[#allocation8 + $0x380] sm:$0xff] %v5708
      %5741 = vst [vmem:[#allocation8 + $0x410] sm:$0xff] %v5709
      %5742 = vst [vmem:[#allocation8 + $0x4a0] sm:$0xff] %v5710
      %5743 = vst [vmem:[#allocation8 + $0x530] sm:$0xff] %v5711
      %5744 = vst [vmem:[#allocation8 + $0x5c0] sm:$0xff] %v5712
      %5745 = vst [vmem:[#allocation8 + $0x650] sm:$0xff] %v5713
      %5746 = vst [vmem:[#allocation8 + $0x6e0] sm:$0xff] %v5714
      %5747 = vst [vmem:[#allocation8 + $0x770] sm:$0xff] %v5715
      %5748 = vst [vmem:[#allocation8 + $0x800] sm:$0xff] %v5716
      %5749 = vst [vmem:[#allocation8 + $0x890] sm:$0xff] %v5717
      %5750 = vst [vmem:[#allocation8 + $0x920] sm:$0xff] %v5718
      %5751 = vst [vmem:[#allocation8 + $0x9b0] sm:$0xff] %v5719
      %5752 = vst [vmem:[#allocation8 + $0xa40] sm:$0xff] %v5720
      %5753 = vst [vmem:[#allocation8 + $0xad0] sm:$0xff] %v5721
      %5754 = vst [vmem:[#allocation8 + $0xb60] sm:$0xff] %v5722
      %5755 = vst [vmem:[#allocation8 + $0xbf0] sm:$0xff] %v5723
      %5756 = vst [vmem:[#allocation8 + $0xc80] sm:$0xff] %v5724
      %5757 = vst [vmem:[#allocation8 + $0xd10] sm:$0xff] %v5725
      %5758 = vst [vmem:[#allocation8 + $0xda0] sm:$0xff] %v5726
      %5759 = vst [vmem:[#allocation8 + $0xe30] sm:$0xff] %v5727
      %5760 = vst [vmem:[#allocation8 + $0xec0] sm:$0xff] %v5728
      %5761 = vst [vmem:[#allocation8 + $0xf50] sm:$0xff] %v5729
      %5762 = vst [vmem:[#allocation8 + $0xfe0] sm:$0xff] %v5730
      %5763 = vst [vmem:[#allocation8 + $0x1070] sm:$0xff] %v5731
      %5764 = vst [vmem:[#allocation8 + $0x1100] sm:$0xff] %v5732
      %5765 = vst [vmem:[#allocation8 + $0x1190] sm:$0xff] %v5733
      %v5766 = vld [vmem:[%s480 + $0x2] sm:$0xff]
      %v5767 = vld [vmem:[%s480 + $0xa] sm:$0xff]
      %v5768 = vld [vmem:[%s480 + $0x1a] sm:$0xff]
      %v5769 = vld [vmem:[%s480 + $0x22] sm:$0xff]
      %v5770 = vld [vmem:[%s480 + $0x32] sm:$0xff]
      %v5771 = vld [vmem:[%s480 + $0x3a] sm:$0xff]
      %v5772 = vld [vmem:[%s480 + $0x4a] sm:$0xff]
      %v5773 = vld [vmem:[%s480 + $0x52] sm:$0xff]
      %v5774 = vld [vmem:[%s480 + $0x62] sm:$0xff]
      %v5775 = vld [vmem:[%s480 + $0x6a] sm:$0xff]
      %v5776 = vld [vmem:[%s480 + $0x7a] sm:$0xff]
      %v5777 = vld [vmem:[%s480 + $0x82] sm:$0xff]
      %v5778 = vld [vmem:[%s480 + $0x92] sm:$0xff]
      %v5779 = vld [vmem:[%s480 + $0x9a] sm:$0xff]
      %v5780 = vld [vmem:[%s480 + $0xaa] sm:$0xff]
      %v5781 = vld [vmem:[%s480 + $0xb2] sm:$0xff]
      %v5782 = vld [vmem:[%s480 + $0xc2] sm:$0xff]
      %v5783 = vld [vmem:[%s480 + $0xca] sm:$0xff]
      %v5784 = vld [vmem:[%s480 + $0xda] sm:$0xff]
      %v5785 = vld [vmem:[%s480 + $0xe2] sm:$0xff]
      %v5786 = vld [vmem:[%s480 + $0xf2] sm:$0xff]
      %v5787 = vld [vmem:[%s480 + $0xfa] sm:$0xff]
      %v5788 = vld [vmem:[%s480 + $0x10a] sm:$0xff]
      %v5789 = vld [vmem:[%s480 + $0x112] sm:$0xff]
      %v5790 = vld [vmem:[%s480 + $0x122] sm:$0xff]
      %v5791 = vld [vmem:[%s480 + $0x12a] sm:$0xff]
      %v5792 = vld [vmem:[%s480 + $0x13a] sm:$0xff]
      %v5793 = vld [vmem:[%s480 + $0x142] sm:$0xff]
      %v5794 = vld [vmem:[%s480 + $0x152] sm:$0xff]
      %v5795 = vld [vmem:[%s480 + $0x15a] sm:$0xff]
      %v5796 = vld [vmem:[%s480 + $0x16a] sm:$0xff]
      %v5797 = vld [vmem:[%s480 + $0x172] sm:$0xff]
      %5798 = vst [vmem:[#allocation8 + $0x28] sm:$0xff] %v5766
      %5799 = vst [vmem:[#allocation8 + $0xb8] sm:$0xff] %v5767
      %5800 = vst [vmem:[#allocation8 + $0x148] sm:$0xff] %v5768
      %5801 = vst [vmem:[#allocation8 + $0x1d8] sm:$0xff] %v5769
      %5802 = vst [vmem:[#allocation8 + $0x268] sm:$0xff] %v5770
      %5803 = vst [vmem:[#allocation8 + $0x2f8] sm:$0xff] %v5771
      %5804 = vst [vmem:[#allocation8 + $0x388] sm:$0xff] %v5772
      %5805 = vst [vmem:[#allocation8 + $0x418] sm:$0xff] %v5773
      %5806 = vst [vmem:[#allocation8 + $0x4a8] sm:$0xff] %v5774
      %5807 = vst [vmem:[#allocation8 + $0x538] sm:$0xff] %v5775
      %5808 = vst [vmem:[#allocation8 + $0x5c8] sm:$0xff] %v5776
      %5809 = vst [vmem:[#allocation8 + $0x658] sm:$0xff] %v5777
      %5810 = vst [vmem:[#allocation8 + $0x6e8] sm:$0xff] %v5778
      %5811 = vst [vmem:[#allocation8 + $0x778] sm:$0xff] %v5779
      %5812 = vst [vmem:[#allocation8 + $0x808] sm:$0xff] %v5780
      %5813 = vst [vmem:[#allocation8 + $0x898] sm:$0xff] %v5781
      %5814 = vst [vmem:[#allocation8 + $0x928] sm:$0xff] %v5782
      %5815 = vst [vmem:[#allocation8 + $0x9b8] sm:$0xff] %v5783
      %5816 = vst [vmem:[#allocation8 + $0xa48] sm:$0xff] %v5784
      %5817 = vst [vmem:[#allocation8 + $0xad8] sm:$0xff] %v5785
      %5818 = vst [vmem:[#allocation8 + $0xb68] sm:$0xff] %v5786
      %5819 = vst [vmem:[#allocation8 + $0xbf8] sm:$0xff] %v5787
      %5820 = vst [vmem:[#allocation8 + $0xc88] sm:$0xff] %v5788
      %5821 = vst [vmem:[#allocation8 + $0xd18] sm:$0xff] %v5789
      %5822 = vst [vmem:[#allocation8 + $0xda8] sm:$0xff] %v5790
      %5823 = vst [vmem:[#allocation8 + $0xe38] sm:$0xff] %v5791
      %5824 = vst [vmem:[#allocation8 + $0xec8] sm:$0xff] %v5792
      %5825 = vst [vmem:[#allocation8 + $0xf58] sm:$0xff] %v5793
      %5826 = vst [vmem:[#allocation8 + $0xfe8] sm:$0xff] %v5794
      %5827 = vst [vmem:[#allocation8 + $0x1078] sm:$0xff] %v5795
      %5828 = vst [vmem:[#allocation8 + $0x1108] sm:$0xff] %v5796
      %5829 = vst [vmem:[#allocation8 + $0x1198] sm:$0xff] %v5797
      %s5830 = scalar_lea.vmem [#allocation6], 48
      %v5831 = vld [vmem:[%s5830] sm:$0xff]
      %v5832 = vld [vmem:[%s5830 + $0x8] sm:$0xff]
      %v5833 = vld [vmem:[%s5830 + $0x18] sm:$0xff]
      %v5834 = vld [vmem:[%s5830 + $0x20] sm:$0xff]
      %v5835 = vld [vmem:[%s5830 + $0x30] sm:$0xff]
      %v5836 = vld [vmem:[%s5830 + $0x38] sm:$0xff]
      %v5837 = vld [vmem:[%s5830 + $0x48] sm:$0xff]
      %v5838 = vld [vmem:[%s5830 + $0x50] sm:$0xff]
      %v5839 = vld [vmem:[%s5830 + $0x60] sm:$0xff]
      %v5840 = vld [vmem:[%s5830 + $0x68] sm:$0xff]
      %v5841 = vld [vmem:[%s5830 + $0x78] sm:$0xff]
      %v5842 = vld [vmem:[%s5830 + $0x80] sm:$0xff]
      %v5843 = vld [vmem:[%s5830 + $0x90] sm:$0xff]
      %v5844 = vld [vmem:[%s5830 + $0x98] sm:$0xff]
      %v5845 = vld [vmem:[%s5830 + $0xa8] sm:$0xff]
      %v5846 = vld [vmem:[%s5830 + $0xb0] sm:$0xff]
      %v5847 = vld [vmem:[%s5830 + $0xc0] sm:$0xff]
      %v5848 = vld [vmem:[%s5830 + $0xc8] sm:$0xff]
      %v5849 = vld [vmem:[%s5830 + $0xd8] sm:$0xff]
      %v5850 = vld [vmem:[%s5830 + $0xe0] sm:$0xff]
      %v5851 = vld [vmem:[%s5830 + $0xf0] sm:$0xff]
      %v5852 = vld [vmem:[%s5830 + $0xf8] sm:$0xff]
      %v5853 = vld [vmem:[%s5830 + $0x108] sm:$0xff]
      %v5854 = vld [vmem:[%s5830 + $0x110] sm:$0xff]
      %v5855 = vld [vmem:[%s5830 + $0x120] sm:$0xff]
      %v5856 = vld [vmem:[%s5830 + $0x128] sm:$0xff]
      %v5857 = vld [vmem:[%s5830 + $0x138] sm:$0xff]
      %v5858 = vld [vmem:[%s5830 + $0x140] sm:$0xff]
      %v5859 = vld [vmem:[%s5830 + $0x150] sm:$0xff]
      %v5860 = vld [vmem:[%s5830 + $0x158] sm:$0xff]
      %v5861 = vld [vmem:[%s5830 + $0x168] sm:$0xff]
      %v5862 = vld [vmem:[%s5830 + $0x170] sm:$0xff]
      %5863 = vst [vmem:[#allocation8 + $0x30] sm:$0xff] %v5831
      %5864 = vst [vmem:[#allocation8 + $0xc0] sm:$0xff] %v5832
      %5865 = vst [vmem:[#allocation8 + $0x150] sm:$0xff] %v5833
      %5866 = vst [vmem:[#allocation8 + $0x1e0] sm:$0xff] %v5834
      %5867 = vst [vmem:[#allocation8 + $0x270] sm:$0xff] %v5835
      %5868 = vst [vmem:[#allocation8 + $0x300] sm:$0xff] %v5836
      %5869 = vst [vmem:[#allocation8 + $0x390] sm:$0xff] %v5837
      %5870 = vst [vmem:[#allocation8 + $0x420] sm:$0xff] %v5838
      %5871 = vst [vmem:[#allocation8 + $0x4b0] sm:$0xff] %v5839
      %5872 = vst [vmem:[#allocation8 + $0x540] sm:$0xff] %v5840
      %5873 = vst [vmem:[#allocation8 + $0x5d0] sm:$0xff] %v5841
      %5874 = vst [vmem:[#allocation8 + $0x660] sm:$0xff] %v5842
      %5875 = vst [vmem:[#allocation8 + $0x6f0] sm:$0xff] %v5843
      %5876 = vst [vmem:[#allocation8 + $0x780] sm:$0xff] %v5844
      %5877 = vst [vmem:[#allocation8 + $0x810] sm:$0xff] %v5845
      %5878 = vst [vmem:[#allocation8 + $0x8a0] sm:$0xff] %v5846
      %5879 = vst [vmem:[#allocation8 + $0x930] sm:$0xff] %v5847
      %5880 = vst [vmem:[#allocation8 + $0x9c0] sm:$0xff] %v5848
      %5881 = vst [vmem:[#allocation8 + $0xa50] sm:$0xff] %v5849
      %5882 = vst [vmem:[#allocation8 + $0xae0] sm:$0xff] %v5850
      %5883 = vst [vmem:[#allocation8 + $0xb70] sm:$0xff] %v5851
      %5884 = vst [vmem:[#allocation8 + $0xc00] sm:$0xff] %v5852
      %5885 = vst [vmem:[#allocation8 + $0xc90] sm:$0xff] %v5853
      %5886 = vst [vmem:[#allocation8 + $0xd20] sm:$0xff] %v5854
      %5887 = vst [vmem:[#allocation8 + $0xdb0] sm:$0xff] %v5855
      %5888 = vst [vmem:[#allocation8 + $0xe40] sm:$0xff] %v5856
      %5889 = vst [vmem:[#allocation8 + $0xed0] sm:$0xff] %v5857
      %5890 = vst [vmem:[#allocation8 + $0xf60] sm:$0xff] %v5858
      %5891 = vst [vmem:[#allocation8 + $0xff0] sm:$0xff] %v5859
      %5892 = vst [vmem:[#allocation8 + $0x1080] sm:$0xff] %v5860
      %5893 = vst [vmem:[#allocation8 + $0x1110] sm:$0xff] %v5861
      %5894 = vst [vmem:[#allocation8 + $0x11a0] sm:$0xff] %v5862
      %v5895 = vld [vmem:[%s5830 + $0x1] sm:$0xff]
      %v5896 = vld [vmem:[%s5830 + $0x9] sm:$0xff]
      %v5897 = vld [vmem:[%s5830 + $0x19] sm:$0xff]
      %v5898 = vld [vmem:[%s5830 + $0x21] sm:$0xff]
      %v5899 = vld [vmem:[%s5830 + $0x31] sm:$0xff]
      %v5900 = vld [vmem:[%s5830 + $0x39] sm:$0xff]
      %v5901 = vld [vmem:[%s5830 + $0x49] sm:$0xff]
      %v5902 = vld [vmem:[%s5830 + $0x51] sm:$0xff]
      %v5903 = vld [vmem:[%s5830 + $0x61] sm:$0xff]
      %v5904 = vld [vmem:[%s5830 + $0x69] sm:$0xff]
      %v5905 = vld [vmem:[%s5830 + $0x79] sm:$0xff]
      %v5906 = vld [vmem:[%s5830 + $0x81] sm:$0xff]
      %v5907 = vld [vmem:[%s5830 + $0x91] sm:$0xff]
      %v5908 = vld [vmem:[%s5830 + $0x99] sm:$0xff]
      %v5909 = vld [vmem:[%s5830 + $0xa9] sm:$0xff]
      %v5910 = vld [vmem:[%s5830 + $0xb1] sm:$0xff]
      %v5911 = vld [vmem:[%s5830 + $0xc1] sm:$0xff]
      %v5912 = vld [vmem:[%s5830 + $0xc9] sm:$0xff]
      %v5913 = vld [vmem:[%s5830 + $0xd9] sm:$0xff]
      %v5914 = vld [vmem:[%s5830 + $0xe1] sm:$0xff]
      %v5915 = vld [vmem:[%s5830 + $0xf1] sm:$0xff]
      %v5916 = vld [vmem:[%s5830 + $0xf9] sm:$0xff]
      %v5917 = vld [vmem:[%s5830 + $0x109] sm:$0xff]
      %v5918 = vld [vmem:[%s5830 + $0x111] sm:$0xff]
      %v5919 = vld [vmem:[%s5830 + $0x121] sm:$0xff]
      %v5920 = vld [vmem:[%s5830 + $0x129] sm:$0xff]
      %v5921 = vld [vmem:[%s5830 + $0x139] sm:$0xff]
      %v5922 = vld [vmem:[%s5830 + $0x141] sm:$0xff]
      %v5923 = vld [vmem:[%s5830 + $0x151] sm:$0xff]
      %v5924 = vld [vmem:[%s5830 + $0x159] sm:$0xff]
      %v5925 = vld [vmem:[%s5830 + $0x169] sm:$0xff]
      %v5926 = vld [vmem:[%s5830 + $0x171] sm:$0xff]
      %5927 = vst [vmem:[#allocation8 + $0x38] sm:$0xff] %v5895
      %5928 = vst [vmem:[#allocation8 + $0xc8] sm:$0xff] %v5896
      %5929 = vst [vmem:[#allocation8 + $0x158] sm:$0xff] %v5897
      %5930 = vst [vmem:[#allocation8 + $0x1e8] sm:$0xff] %v5898
      %5931 = vst [vmem:[#allocation8 + $0x278] sm:$0xff] %v5899
      %5932 = vst [vmem:[#allocation8 + $0x308] sm:$0xff] %v5900
      %5933 = vst [vmem:[#allocation8 + $0x398] sm:$0xff] %v5901
      %5934 = vst [vmem:[#allocation8 + $0x428] sm:$0xff] %v5902
      %5935 = vst [vmem:[#allocation8 + $0x4b8] sm:$0xff] %v5903
      %5936 = vst [vmem:[#allocation8 + $0x548] sm:$0xff] %v5904
      %5937 = vst [vmem:[#allocation8 + $0x5d8] sm:$0xff] %v5905
      %5938 = vst [vmem:[#allocation8 + $0x668] sm:$0xff] %v5906
      %5939 = vst [vmem:[#allocation8 + $0x6f8] sm:$0xff] %v5907
      %5940 = vst [vmem:[#allocation8 + $0x788] sm:$0xff] %v5908
      %5941 = vst [vmem:[#allocation8 + $0x818] sm:$0xff] %v5909
      %5942 = vst [vmem:[#allocation8 + $0x8a8] sm:$0xff] %v5910
      %5943 = vst [vmem:[#allocation8 + $0x938] sm:$0xff] %v5911
      %5944 = vst [vmem:[#allocation8 + $0x9c8] sm:$0xff] %v5912
      %5945 = vst [vmem:[#allocation8 + $0xa58] sm:$0xff] %v5913
      %5946 = vst [vmem:[#allocation8 + $0xae8] sm:$0xff] %v5914
      %5947 = vst [vmem:[#allocation8 + $0xb78] sm:$0xff] %v5915
      %5948 = vst [vmem:[#allocation8 + $0xc08] sm:$0xff] %v5916
      %5949 = vst [vmem:[#allocation8 + $0xc98] sm:$0xff] %v5917
      %5950 = vst [vmem:[#allocation8 + $0xd28] sm:$0xff] %v5918
      %5951 = vst [vmem:[#allocation8 + $0xdb8] sm:$0xff] %v5919
      %5952 = vst [vmem:[#allocation8 + $0xe48] sm:$0xff] %v5920
      %5953 = vst [vmem:[#allocation8 + $0xed8] sm:$0xff] %v5921
      %5954 = vst [vmem:[#allocation8 + $0xf68] sm:$0xff] %v5922
      %5955 = vst [vmem:[#allocation8 + $0xff8] sm:$0xff] %v5923
      %5956 = vst [vmem:[#allocation8 + $0x1088] sm:$0xff] %v5924
      %5957 = vst [vmem:[#allocation8 + $0x1118] sm:$0xff] %v5925
      %5958 = vst [vmem:[#allocation8 + $0x11a8] sm:$0xff] %v5926
      %v5959 = vld [vmem:[%s5830 + $0x2] sm:$0xff]
      %v5960 = vld [vmem:[%s5830 + $0xa] sm:$0xff]
      %v5961 = vld [vmem:[%s5830 + $0x1a] sm:$0xff]
      %v5962 = vld [vmem:[%s5830 + $0x22] sm:$0xff]
      %v5963 = vld [vmem:[%s5830 + $0x32] sm:$0xff]
      %v5964 = vld [vmem:[%s5830 + $0x3a] sm:$0xff]
      %v5965 = vld [vmem:[%s5830 + $0x4a] sm:$0xff]
      %v5966 = vld [vmem:[%s5830 + $0x52] sm:$0xff]
      %v5967 = vld [vmem:[%s5830 + $0x62] sm:$0xff]
      %v5968 = vld [vmem:[%s5830 + $0x6a] sm:$0xff]
      %v5969 = vld [vmem:[%s5830 + $0x7a] sm:$0xff]
      %v5970 = vld [vmem:[%s5830 + $0x82] sm:$0xff]
      %v5971 = vld [vmem:[%s5830 + $0x92] sm:$0xff]
      %v5972 = vld [vmem:[%s5830 + $0x9a] sm:$0xff]
      %v5973 = vld [vmem:[%s5830 + $0xaa] sm:$0xff]
      %v5974 = vld [vmem:[%s5830 + $0xb2] sm:$0xff]
      %v5975 = vld [vmem:[%s5830 + $0xc2] sm:$0xff]
      %v5976 = vld [vmem:[%s5830 + $0xca] sm:$0xff]
      %v5977 = vld [vmem:[%s5830 + $0xda] sm:$0xff]
      %v5978 = vld [vmem:[%s5830 + $0xe2] sm:$0xff]
      %v5979 = vld [vmem:[%s5830 + $0xf2] sm:$0xff]
      %v5980 = vld [vmem:[%s5830 + $0xfa] sm:$0xff]
      %v5981 = vld [vmem:[%s5830 + $0x10a] sm:$0xff]
      %v5982 = vld [vmem:[%s5830 + $0x112] sm:$0xff]
      %v5983 = vld [vmem:[%s5830 + $0x122] sm:$0xff]
      %v5984 = vld [vmem:[%s5830 + $0x12a] sm:$0xff]
      %v5985 = vld [vmem:[%s5830 + $0x13a] sm:$0xff]
      %v5986 = vld [vmem:[%s5830 + $0x142] sm:$0xff]
      %v5987 = vld [vmem:[%s5830 + $0x152] sm:$0xff]
      %v5988 = vld [vmem:[%s5830 + $0x15a] sm:$0xff]
      %v5989 = vld [vmem:[%s5830 + $0x16a] sm:$0xff]
      %v5990 = vld [vmem:[%s5830 + $0x172] sm:$0xff]
      %5991 = vst [vmem:[#allocation8 + $0x40] sm:$0xff] %v5959
      %5992 = vst [vmem:[#allocation8 + $0xd0] sm:$0xff] %v5960
      %5993 = vst [vmem:[#allocation8 + $0x160] sm:$0xff] %v5961
      %5994 = vst [vmem:[#allocation8 + $0x1f0] sm:$0xff] %v5962
      %5995 = vst [vmem:[#allocation8 + $0x280] sm:$0xff] %v5963
      %5996 = vst [vmem:[#allocation8 + $0x310] sm:$0xff] %v5964
      %5997 = vst [vmem:[#allocation8 + $0x3a0] sm:$0xff] %v5965
      %5998 = vst [vmem:[#allocation8 + $0x430] sm:$0xff] %v5966
      %5999 = vst [vmem:[#allocation8 + $0x4c0] sm:$0xff] %v5967
      %6000 = vst [vmem:[#allocation8 + $0x550] sm:$0xff] %v5968
      %6001 = vst [vmem:[#allocation8 + $0x5e0] sm:$0xff] %v5969
      %6002 = vst [vmem:[#allocation8 + $0x670] sm:$0xff] %v5970
      %6003 = vst [vmem:[#allocation8 + $0x700] sm:$0xff] %v5971
      %6004 = vst [vmem:[#allocation8 + $0x790] sm:$0xff] %v5972
      %6005 = vst [vmem:[#allocation8 + $0x820] sm:$0xff] %v5973
      %6006 = vst [vmem:[#allocation8 + $0x8b0] sm:$0xff] %v5974
      %6007 = vst [vmem:[#allocation8 + $0x940] sm:$0xff] %v5975
      %6008 = vst [vmem:[#allocation8 + $0x9d0] sm:$0xff] %v5976
      %6009 = vst [vmem:[#allocation8 + $0xa60] sm:$0xff] %v5977
      %6010 = vst [vmem:[#allocation8 + $0xaf0] sm:$0xff] %v5978
      %6011 = vst [vmem:[#allocation8 + $0xb80] sm:$0xff] %v5979
      %6012 = vst [vmem:[#allocation8 + $0xc10] sm:$0xff] %v5980
      %6013 = vst [vmem:[#allocation8 + $0xca0] sm:$0xff] %v5981
      %6014 = vst [vmem:[#allocation8 + $0xd30] sm:$0xff] %v5982
      %6015 = vst [vmem:[#allocation8 + $0xdc0] sm:$0xff] %v5983
      %6016 = vst [vmem:[#allocation8 + $0xe50] sm:$0xff] %v5984
      %6017 = vst [vmem:[#allocation8 + $0xee0] sm:$0xff] %v5985
      %6018 = vst [vmem:[#allocation8 + $0xf70] sm:$0xff] %v5986
      %6019 = vst [vmem:[#allocation8 + $0x1000] sm:$0xff] %v5987
      %6020 = vst [vmem:[#allocation8 + $0x1090] sm:$0xff] %v5988
      %6021 = vst [vmem:[#allocation8 + $0x1120] sm:$0xff] %v5989
      %6022 = vst [vmem:[#allocation8 + $0x11b0] sm:$0xff] %v5990
      %v6023 = vld [vmem:[#allocation7] sm:$0xff]
      %v6024 = vld [vmem:[#allocation7 + $0x8] sm:$0xff]
      %v6025 = vld [vmem:[#allocation7 + $0x18] sm:$0xff]
      %v6026 = vld [vmem:[#allocation7 + $0x20] sm:$0xff]
      %v6027 = vld [vmem:[#allocation7 + $0x30] sm:$0xff]
      %v6028 = vld [vmem:[#allocation7 + $0x38] sm:$0xff]
      %v6029 = vld [vmem:[#allocation7 + $0x48] sm:$0xff]
      %v6030 = vld [vmem:[#allocation7 + $0x50] sm:$0xff]
      %v6031 = vld [vmem:[#allocation7 + $0x60] sm:$0xff]
      %v6032 = vld [vmem:[#allocation7 + $0x68] sm:$0xff]
      %v6033 = vld [vmem:[#allocation7 + $0x78] sm:$0xff]
      %v6034 = vld [vmem:[#allocation7 + $0x80] sm:$0xff]
      %v6035 = vld [vmem:[#allocation7 + $0x90] sm:$0xff]
      %v6036 = vld [vmem:[#allocation7 + $0x98] sm:$0xff]
      %v6037 = vld [vmem:[#allocation7 + $0xa8] sm:$0xff]
      %v6038 = vld [vmem:[#allocation7 + $0xb0] sm:$0xff]
      %v6039 = vld [vmem:[#allocation7 + $0xc0] sm:$0xff]
      %v6040 = vld [vmem:[#allocation7 + $0xc8] sm:$0xff]
      %v6041 = vld [vmem:[#allocation7 + $0xd8] sm:$0xff]
      %v6042 = vld [vmem:[#allocation7 + $0xe0] sm:$0xff]
      %v6043 = vld [vmem:[#allocation7 + $0xf0] sm:$0xff]
      %v6044 = vld [vmem:[#allocation7 + $0xf8] sm:$0xff]
      %v6045 = vld [vmem:[#allocation7 + $0x108] sm:$0xff]
      %v6046 = vld [vmem:[#allocation7 + $0x110] sm:$0xff]
      %v6047 = vld [vmem:[#allocation7 + $0x120] sm:$0xff]
      %v6048 = vld [vmem:[#allocation7 + $0x128] sm:$0xff]
      %v6049 = vld [vmem:[#allocation7 + $0x138] sm:$0xff]
      %v6050 = vld [vmem:[#allocation7 + $0x140] sm:$0xff]
      %v6051 = vld [vmem:[#allocation7 + $0x150] sm:$0xff]
      %v6052 = vld [vmem:[#allocation7 + $0x158] sm:$0xff]
      %v6053 = vld [vmem:[#allocation7 + $0x168] sm:$0xff]
      %v6054 = vld [vmem:[#allocation7 + $0x170] sm:$0xff]
      %6055 = vst [vmem:[#allocation8 + $0x48] sm:$0xff] %v6023
      %6056 = vst [vmem:[#allocation8 + $0xd8] sm:$0xff] %v6024
      %6057 = vst [vmem:[#allocation8 + $0x168] sm:$0xff] %v6025
      %6058 = vst [vmem:[#allocation8 + $0x1f8] sm:$0xff] %v6026
      %6059 = vst [vmem:[#allocation8 + $0x288] sm:$0xff] %v6027
      %6060 = vst [vmem:[#allocation8 + $0x318] sm:$0xff] %v6028
      %6061 = vst [vmem:[#allocation8 + $0x3a8] sm:$0xff] %v6029
      %6062 = vst [vmem:[#allocation8 + $0x438] sm:$0xff] %v6030
      %6063 = vst [vmem:[#allocation8 + $0x4c8] sm:$0xff] %v6031
      %6064 = vst [vmem:[#allocation8 + $0x558] sm:$0xff] %v6032
      %6065 = vst [vmem:[#allocation8 + $0x5e8] sm:$0xff] %v6033
      %6066 = vst [vmem:[#allocation8 + $0x678] sm:$0xff] %v6034
      %6067 = vst [vmem:[#allocation8 + $0x708] sm:$0xff] %v6035
      %6068 = vst [vmem:[#allocation8 + $0x798] sm:$0xff] %v6036
      %6069 = vst [vmem:[#allocation8 + $0x828] sm:$0xff] %v6037
      %6070 = vst [vmem:[#allocation8 + $0x8b8] sm:$0xff] %v6038
      %6071 = vst [vmem:[#allocation8 + $0x948] sm:$0xff] %v6039
      %6072 = vst [vmem:[#allocation8 + $0x9d8] sm:$0xff] %v6040
      %6073 = vst [vmem:[#allocation8 + $0xa68] sm:$0xff] %v6041
      %6074 = vst [vmem:[#allocation8 + $0xaf8] sm:$0xff] %v6042
      %6075 = vst [vmem:[#allocation8 + $0xb88] sm:$0xff] %v6043
      %6076 = vst [vmem:[#allocation8 + $0xc18] sm:$0xff] %v6044
      %6077 = vst [vmem:[#allocation8 + $0xca8] sm:$0xff] %v6045
      %6078 = vst [vmem:[#allocation8 + $0xd38] sm:$0xff] %v6046
      %6079 = vst [vmem:[#allocation8 + $0xdc8] sm:$0xff] %v6047
      %6080 = vst [vmem:[#allocation8 + $0xe58] sm:$0xff] %v6048
      %6081 = vst [vmem:[#allocation8 + $0xee8] sm:$0xff] %v6049
      %6082 = vst [vmem:[#allocation8 + $0xf78] sm:$0xff] %v6050
      %6083 = vst [vmem:[#allocation8 + $0x1008] sm:$0xff] %v6051
      %6084 = vst [vmem:[#allocation8 + $0x1098] sm:$0xff] %v6052
      %6085 = vst [vmem:[#allocation8 + $0x1128] sm:$0xff] %v6053
      %6086 = vst [vmem:[#allocation8 + $0x11b8] sm:$0xff] %v6054
      %v6087 = vld [vmem:[#allocation7 + $0x1] sm:$0xff]
      %v6088 = vld [vmem:[#allocation7 + $0x9] sm:$0xff]
      %v6089 = vld [vmem:[#allocation7 + $0x19] sm:$0xff]
      %v6090 = vld [vmem:[#allocation7 + $0x21] sm:$0xff]
      %v6091 = vld [vmem:[#allocation7 + $0x31] sm:$0xff]
      %v6092 = vld [vmem:[#allocation7 + $0x39] sm:$0xff]
      %v6093 = vld [vmem:[#allocation7 + $0x49] sm:$0xff]
      %v6094 = vld [vmem:[#allocation7 + $0x51] sm:$0xff]
      %v6095 = vld [vmem:[#allocation7 + $0x61] sm:$0xff]
      %v6096 = vld [vmem:[#allocation7 + $0x69] sm:$0xff]
      %v6097 = vld [vmem:[#allocation7 + $0x79] sm:$0xff]
      %v6098 = vld [vmem:[#allocation7 + $0x81] sm:$0xff]
      %v6099 = vld [vmem:[#allocation7 + $0x91] sm:$0xff]
      %v6100 = vld [vmem:[#allocation7 + $0x99] sm:$0xff]
      %v6101 = vld [vmem:[#allocation7 + $0xa9] sm:$0xff]
      %v6102 = vld [vmem:[#allocation7 + $0xb1] sm:$0xff]
      %v6103 = vld [vmem:[#allocation7 + $0xc1] sm:$0xff]
      %v6104 = vld [vmem:[#allocation7 + $0xc9] sm:$0xff]
      %v6105 = vld [vmem:[#allocation7 + $0xd9] sm:$0xff]
      %v6106 = vld [vmem:[#allocation7 + $0xe1] sm:$0xff]
      %v6107 = vld [vmem:[#allocation7 + $0xf1] sm:$0xff]
      %v6108 = vld [vmem:[#allocation7 + $0xf9] sm:$0xff]
      %v6109 = vld [vmem:[#allocation7 + $0x109] sm:$0xff]
      %v6110 = vld [vmem:[#allocation7 + $0x111] sm:$0xff]
      %v6111 = vld [vmem:[#allocation7 + $0x121] sm:$0xff]
      %v6112 = vld [vmem:[#allocation7 + $0x129] sm:$0xff]
      %v6113 = vld [vmem:[#allocation7 + $0x139] sm:$0xff]
      %v6114 = vld [vmem:[#allocation7 + $0x141] sm:$0xff]
      %v6115 = vld [vmem:[#allocation7 + $0x151] sm:$0xff]
      %v6116 = vld [vmem:[#allocation7 + $0x159] sm:$0xff]
      %v6117 = vld [vmem:[#allocation7 + $0x169] sm:$0xff]
      %v6118 = vld [vmem:[#allocation7 + $0x171] sm:$0xff]
      %6119 = vst [vmem:[#allocation8 + $0x50] sm:$0xff] %v6087
      %6120 = vst [vmem:[#allocation8 + $0xe0] sm:$0xff] %v6088
      %6121 = vst [vmem:[#allocation8 + $0x170] sm:$0xff] %v6089
      %6122 = vst [vmem:[#allocation8 + $0x200] sm:$0xff] %v6090
      %6123 = vst [vmem:[#allocation8 + $0x290] sm:$0xff] %v6091
      %6124 = vst [vmem:[#allocation8 + $0x320] sm:$0xff] %v6092
      %6125 = vst [vmem:[#allocation8 + $0x3b0] sm:$0xff] %v6093
      %6126 = vst [vmem:[#allocation8 + $0x440] sm:$0xff] %v6094
      %6127 = vst [vmem:[#allocation8 + $0x4d0] sm:$0xff] %v6095
      %6128 = vst [vmem:[#allocation8 + $0x560] sm:$0xff] %v6096
      %6129 = vst [vmem:[#allocation8 + $0x5f0] sm:$0xff] %v6097
      %6130 = vst [vmem:[#allocation8 + $0x680] sm:$0xff] %v6098
      %6131 = vst [vmem:[#allocation8 + $0x710] sm:$0xff] %v6099
      %6132 = vst [vmem:[#allocation8 + $0x7a0] sm:$0xff] %v6100
      %6133 = vst [vmem:[#allocation8 + $0x830] sm:$0xff] %v6101
      %6134 = vst [vmem:[#allocation8 + $0x8c0] sm:$0xff] %v6102
      %6135 = vst [vmem:[#allocation8 + $0x950] sm:$0xff] %v6103
      %6136 = vst [vmem:[#allocation8 + $0x9e0] sm:$0xff] %v6104
      %6137 = vst [vmem:[#allocation8 + $0xa70] sm:$0xff] %v6105
      %6138 = vst [vmem:[#allocation8 + $0xb00] sm:$0xff] %v6106
      %6139 = vst [vmem:[#allocation8 + $0xb90] sm:$0xff] %v6107
      %6140 = vst [vmem:[#allocation8 + $0xc20] sm:$0xff] %v6108
      %6141 = vst [vmem:[#allocation8 + $0xcb0] sm:$0xff] %v6109
      %6142 = vst [vmem:[#allocation8 + $0xd40] sm:$0xff] %v6110
      %6143 = vst [vmem:[#allocation8 + $0xdd0] sm:$0xff] %v6111
      %6144 = vst [vmem:[#allocation8 + $0xe60] sm:$0xff] %v6112
      %6145 = vst [vmem:[#allocation8 + $0xef0] sm:$0xff] %v6113
      %6146 = vst [vmem:[#allocation8 + $0xf80] sm:$0xff] %v6114
      %6147 = vst [vmem:[#allocation8 + $0x1010] sm:$0xff] %v6115
      %6148 = vst [vmem:[#allocation8 + $0x10a0] sm:$0xff] %v6116
      %6149 = vst [vmem:[#allocation8 + $0x1130] sm:$0xff] %v6117
      %6150 = vst [vmem:[#allocation8 + $0x11c0] sm:$0xff] %v6118
      %v6151 = vld [vmem:[#allocation7 + $0x2] sm:$0xff]
      %v6152 = vld [vmem:[#allocation7 + $0xa] sm:$0xff]
      %v6153 = vld [vmem:[#allocation7 + $0x1a] sm:$0xff]
      %v6154 = vld [vmem:[#allocation7 + $0x22] sm:$0xff]
      %v6155 = vld [vmem:[#allocation7 + $0x32] sm:$0xff]
      %v6156 = vld [vmem:[#allocation7 + $0x3a] sm:$0xff]
      %v6157 = vld [vmem:[#allocation7 + $0x4a] sm:$0xff]
      %v6158 = vld [vmem:[#allocation7 + $0x52] sm:$0xff]
      %v6159 = vld [vmem:[#allocation7 + $0x62] sm:$0xff]
      %v6160 = vld [vmem:[#allocation7 + $0x6a] sm:$0xff]
      %v6161 = vld [vmem:[#allocation7 + $0x7a] sm:$0xff]
      %v6162 = vld [vmem:[#allocation7 + $0x82] sm:$0xff]
      %v6163 = vld [vmem:[#allocation7 + $0x92] sm:$0xff]
      %v6164 = vld [vmem:[#allocation7 + $0x9a] sm:$0xff]
      %v6165 = vld [vmem:[#allocation7 + $0xaa] sm:$0xff]
      %v6166 = vld [vmem:[#allocation7 + $0xb2] sm:$0xff]
      %v6167 = vld [vmem:[#allocation7 + $0xc2] sm:$0xff]
      %v6168 = vld [vmem:[#allocation7 + $0xca] sm:$0xff]
      %v6169 = vld [vmem:[#allocation7 + $0xda] sm:$0xff]
      %v6170 = vld [vmem:[#allocation7 + $0xe2] sm:$0xff]
      %v6171 = vld [vmem:[#allocation7 + $0xf2] sm:$0xff]
      %v6172 = vld [vmem:[#allocation7 + $0xfa] sm:$0xff]
      %v6173 = vld [vmem:[#allocation7 + $0x10a] sm:$0xff]
      %v6174 = vld [vmem:[#allocation7 + $0x112] sm:$0xff]
      %v6175 = vld [vmem:[#allocation7 + $0x122] sm:$0xff]
      %v6176 = vld [vmem:[#allocation7 + $0x12a] sm:$0xff]
      %v6177 = vld [vmem:[#allocation7 + $0x13a] sm:$0xff]
      %v6178 = vld [vmem:[#allocation7 + $0x142] sm:$0xff]
      %v6179 = vld [vmem:[#allocation7 + $0x152] sm:$0xff]
      %v6180 = vld [vmem:[#allocation7 + $0x15a] sm:$0xff]
      %v6181 = vld [vmem:[#allocation7 + $0x16a] sm:$0xff]
      %v6182 = vld [vmem:[#allocation7 + $0x172] sm:$0xff]
      %6183 = vst [vmem:[#allocation8 + $0x58] sm:$0xff] %v6151
      %6184 = vst [vmem:[#allocation8 + $0xe8] sm:$0xff] %v6152
      %6185 = vst [vmem:[#allocation8 + $0x178] sm:$0xff] %v6153
      %6186 = vst [vmem:[#allocation8 + $0x208] sm:$0xff] %v6154
      %6187 = vst [vmem:[#allocation8 + $0x298] sm:$0xff] %v6155
      %6188 = vst [vmem:[#allocation8 + $0x328] sm:$0xff] %v6156
      %6189 = vst [vmem:[#allocation8 + $0x3b8] sm:$0xff] %v6157
      %6190 = vst [vmem:[#allocation8 + $0x448] sm:$0xff] %v6158
      %6191 = vst [vmem:[#allocation8 + $0x4d8] sm:$0xff] %v6159
      %6192 = vst [vmem:[#allocation8 + $0x568] sm:$0xff] %v6160
      %6193 = vst [vmem:[#allocation8 + $0x5f8] sm:$0xff] %v6161
      %6194 = vst [vmem:[#allocation8 + $0x688] sm:$0xff] %v6162
      %6195 = vst [vmem:[#allocation8 + $0x718] sm:$0xff] %v6163
      %6196 = vst [vmem:[#allocation8 + $0x7a8] sm:$0xff] %v6164
      %6197 = vst [vmem:[#allocation8 + $0x838] sm:$0xff] %v6165
      %6198 = vst [vmem:[#allocation8 + $0x8c8] sm:$0xff] %v6166
      %6199 = vst [vmem:[#allocation8 + $0x958] sm:$0xff] %v6167
      %6200 = vst [vmem:[#allocation8 + $0x9e8] sm:$0xff] %v6168
      %6201 = vst [vmem:[#allocation8 + $0xa78] sm:$0xff] %v6169
      %6202 = vst [vmem:[#allocation8 + $0xb08] sm:$0xff] %v6170
      %6203 = vst [vmem:[#allocation8 + $0xb98] sm:$0xff] %v6171
      %6204 = vst [vmem:[#allocation8 + $0xc28] sm:$0xff] %v6172
      %6205 = vst [vmem:[#allocation8 + $0xcb8] sm:$0xff] %v6173
      %6206 = vst [vmem:[#allocation8 + $0xd48] sm:$0xff] %v6174
      %6207 = vst [vmem:[#allocation8 + $0xdd8] sm:$0xff] %v6175
      %6208 = vst [vmem:[#allocation8 + $0xe68] sm:$0xff] %v6176
      %6209 = vst [vmem:[#allocation8 + $0xef8] sm:$0xff] %v6177
      %6210 = vst [vmem:[#allocation8 + $0xf88] sm:$0xff] %v6178
      %6211 = vst [vmem:[#allocation8 + $0x1018] sm:$0xff] %v6179
      %6212 = vst [vmem:[#allocation8 + $0x10a8] sm:$0xff] %v6180
      %6213 = vst [vmem:[#allocation8 + $0x1138] sm:$0xff] %v6181
      %6214 = vst [vmem:[#allocation8 + $0x11c8] sm:$0xff] %v6182
      %v6215 = vld [vmem:[%s520] sm:$0xff]
      %v6216 = vld [vmem:[%s520 + $0x8] sm:$0xff]
      %v6217 = vld [vmem:[%s520 + $0x18] sm:$0xff]
      %v6218 = vld [vmem:[%s520 + $0x20] sm:$0xff]
      %v6219 = vld [vmem:[%s520 + $0x30] sm:$0xff]
      %v6220 = vld [vmem:[%s520 + $0x38] sm:$0xff]
      %v6221 = vld [vmem:[%s520 + $0x48] sm:$0xff]
      %v6222 = vld [vmem:[%s520 + $0x50] sm:$0xff]
      %v6223 = vld [vmem:[%s520 + $0x60] sm:$0xff]
      %v6224 = vld [vmem:[%s520 + $0x68] sm:$0xff]
      %v6225 = vld [vmem:[%s520 + $0x78] sm:$0xff]
      %v6226 = vld [vmem:[%s520 + $0x80] sm:$0xff]
      %v6227 = vld [vmem:[%s520 + $0x90] sm:$0xff]
      %v6228 = vld [vmem:[%s520 + $0x98] sm:$0xff]
      %v6229 = vld [vmem:[%s520 + $0xa8] sm:$0xff]
      %v6230 = vld [vmem:[%s520 + $0xb0] sm:$0xff]
      %v6231 = vld [vmem:[%s520 + $0xc0] sm:$0xff]
      %v6232 = vld [vmem:[%s520 + $0xc8] sm:$0xff]
      %v6233 = vld [vmem:[%s520 + $0xd8] sm:$0xff]
      %v6234 = vld [vmem:[%s520 + $0xe0] sm:$0xff]
      %v6235 = vld [vmem:[%s520 + $0xf0] sm:$0xff]
      %v6236 = vld [vmem:[%s520 + $0xf8] sm:$0xff]
      %v6237 = vld [vmem:[%s520 + $0x108] sm:$0xff]
      %v6238 = vld [vmem:[%s520 + $0x110] sm:$0xff]
      %v6239 = vld [vmem:[%s520 + $0x120] sm:$0xff]
      %v6240 = vld [vmem:[%s520 + $0x128] sm:$0xff]
      %v6241 = vld [vmem:[%s520 + $0x138] sm:$0xff]
      %v6242 = vld [vmem:[%s520 + $0x140] sm:$0xff]
      %v6243 = vld [vmem:[%s520 + $0x150] sm:$0xff]
      %v6244 = vld [vmem:[%s520 + $0x158] sm:$0xff]
      %v6245 = vld [vmem:[%s520 + $0x168] sm:$0xff]
      %v6246 = vld [vmem:[%s520 + $0x170] sm:$0xff]
      %6247 = vst [vmem:[#allocation8 + $0x60] sm:$0xff] %v6215
      %6248 = vst [vmem:[#allocation8 + $0xf0] sm:$0xff] %v6216
      %6249 = vst [vmem:[#allocation8 + $0x180] sm:$0xff] %v6217
      %6250 = vst [vmem:[#allocation8 + $0x210] sm:$0xff] %v6218
      %6251 = vst [vmem:[#allocation8 + $0x2a0] sm:$0xff] %v6219
      %6252 = vst [vmem:[#allocation8 + $0x330] sm:$0xff] %v6220
      %6253 = vst [vmem:[#allocation8 + $0x3c0] sm:$0xff] %v6221
      %6254 = vst [vmem:[#allocation8 + $0x450] sm:$0xff] %v6222
      %6255 = vst [vmem:[#allocation8 + $0x4e0] sm:$0xff] %v6223
      %6256 = vst [vmem:[#allocation8 + $0x570] sm:$0xff] %v6224
      %6257 = vst [vmem:[#allocation8 + $0x600] sm:$0xff] %v6225
      %6258 = vst [vmem:[#allocation8 + $0x690] sm:$0xff] %v6226
      %6259 = vst [vmem:[#allocation8 + $0x720] sm:$0xff] %v6227
      %6260 = vst [vmem:[#allocation8 + $0x7b0] sm:$0xff] %v6228
      %6261 = vst [vmem:[#allocation8 + $0x840] sm:$0xff] %v6229
      %6262 = vst [vmem:[#allocation8 + $0x8d0] sm:$0xff] %v6230
      %6263 = vst [vmem:[#allocation8 + $0x960] sm:$0xff] %v6231
      %6264 = vst [vmem:[#allocation8 + $0x9f0] sm:$0xff] %v6232
      %6265 = vst [vmem:[#allocation8 + $0xa80] sm:$0xff] %v6233
      %6266 = vst [vmem:[#allocation8 + $0xb10] sm:$0xff] %v6234
      %6267 = vst [vmem:[#allocation8 + $0xba0] sm:$0xff] %v6235
      %6268 = vst [vmem:[#allocation8 + $0xc30] sm:$0xff] %v6236
      %6269 = vst [vmem:[#allocation8 + $0xcc0] sm:$0xff] %v6237
      %6270 = vst [vmem:[#allocation8 + $0xd50] sm:$0xff] %v6238
      %6271 = vst [vmem:[#allocation8 + $0xde0] sm:$0xff] %v6239
      %6272 = vst [vmem:[#allocation8 + $0xe70] sm:$0xff] %v6240
      %6273 = vst [vmem:[#allocation8 + $0xf00] sm:$0xff] %v6241
      %6274 = vst [vmem:[#allocation8 + $0xf90] sm:$0xff] %v6242
      %6275 = vst [vmem:[#allocation8 + $0x1020] sm:$0xff] %v6243
      %6276 = vst [vmem:[#allocation8 + $0x10b0] sm:$0xff] %v6244
      %6277 = vst [vmem:[#allocation8 + $0x1140] sm:$0xff] %v6245
      %6278 = vst [vmem:[#allocation8 + $0x11d0] sm:$0xff] %v6246
      %v6279 = vld [vmem:[%s520 + $0x1] sm:$0xff]
      %v6280 = vld [vmem:[%s520 + $0x9] sm:$0xff]
      %v6281 = vld [vmem:[%s520 + $0x19] sm:$0xff]
      %v6282 = vld [vmem:[%s520 + $0x21] sm:$0xff]
      %v6283 = vld [vmem:[%s520 + $0x31] sm:$0xff]
      %v6284 = vld [vmem:[%s520 + $0x39] sm:$0xff]
      %v6285 = vld [vmem:[%s520 + $0x49] sm:$0xff]
      %v6286 = vld [vmem:[%s520 + $0x51] sm:$0xff]
      %v6287 = vld [vmem:[%s520 + $0x61] sm:$0xff]
      %v6288 = vld [vmem:[%s520 + $0x69] sm:$0xff]
      %v6289 = vld [vmem:[%s520 + $0x79] sm:$0xff]
      %v6290 = vld [vmem:[%s520 + $0x81] sm:$0xff]
      %v6291 = vld [vmem:[%s520 + $0x91] sm:$0xff]
      %v6292 = vld [vmem:[%s520 + $0x99] sm:$0xff]
      %v6293 = vld [vmem:[%s520 + $0xa9] sm:$0xff]
      %v6294 = vld [vmem:[%s520 + $0xb1] sm:$0xff]
      %v6295 = vld [vmem:[%s520 + $0xc1] sm:$0xff]
      %v6296 = vld [vmem:[%s520 + $0xc9] sm:$0xff]
      %v6297 = vld [vmem:[%s520 + $0xd9] sm:$0xff]
      %v6298 = vld [vmem:[%s520 + $0xe1] sm:$0xff]
      %v6299 = vld [vmem:[%s520 + $0xf1] sm:$0xff]
      %v6300 = vld [vmem:[%s520 + $0xf9] sm:$0xff]
      %v6301 = vld [vmem:[%s520 + $0x109] sm:$0xff]
      %v6302 = vld [vmem:[%s520 + $0x111] sm:$0xff]
      %v6303 = vld [vmem:[%s520 + $0x121] sm:$0xff]
      %v6304 = vld [vmem:[%s520 + $0x129] sm:$0xff]
      %v6305 = vld [vmem:[%s520 + $0x139] sm:$0xff]
      %v6306 = vld [vmem:[%s520 + $0x141] sm:$0xff]
      %v6307 = vld [vmem:[%s520 + $0x151] sm:$0xff]
      %v6308 = vld [vmem:[%s520 + $0x159] sm:$0xff]
      %v6309 = vld [vmem:[%s520 + $0x169] sm:$0xff]
      %v6310 = vld [vmem:[%s520 + $0x171] sm:$0xff]
      %6311 = vst [vmem:[#allocation8 + $0x68] sm:$0xff] %v6279
      %6312 = vst [vmem:[#allocation8 + $0xf8] sm:$0xff] %v6280
      %6313 = vst [vmem:[#allocation8 + $0x188] sm:$0xff] %v6281
      %6314 = vst [vmem:[#allocation8 + $0x218] sm:$0xff] %v6282
      %6315 = vst [vmem:[#allocation8 + $0x2a8] sm:$0xff] %v6283
      %6316 = vst [vmem:[#allocation8 + $0x338] sm:$0xff] %v6284
      %6317 = vst [vmem:[#allocation8 + $0x3c8] sm:$0xff] %v6285
      %6318 = vst [vmem:[#allocation8 + $0x458] sm:$0xff] %v6286
      %6319 = vst [vmem:[#allocation8 + $0x4e8] sm:$0xff] %v6287
      %6320 = vst [vmem:[#allocation8 + $0x578] sm:$0xff] %v6288
      %6321 = vst [vmem:[#allocation8 + $0x608] sm:$0xff] %v6289
      %6322 = vst [vmem:[#allocation8 + $0x698] sm:$0xff] %v6290
      %6323 = vst [vmem:[#allocation8 + $0x728] sm:$0xff] %v6291
      %6324 = vst [vmem:[#allocation8 + $0x7b8] sm:$0xff] %v6292
      %6325 = vst [vmem:[#allocation8 + $0x848] sm:$0xff] %v6293
      %6326 = vst [vmem:[#allocation8 + $0x8d8] sm:$0xff] %v6294
      %6327 = vst [vmem:[#allocation8 + $0x968] sm:$0xff] %v6295
      %6328 = vst [vmem:[#allocation8 + $0x9f8] sm:$0xff] %v6296
      %6329 = vst [vmem:[#allocation8 + $0xa88] sm:$0xff] %v6297
      %6330 = vst [vmem:[#allocation8 + $0xb18] sm:$0xff] %v6298
      %6331 = vst [vmem:[#allocation8 + $0xba8] sm:$0xff] %v6299
      %6332 = vst [vmem:[#allocation8 + $0xc38] sm:$0xff] %v6300
      %6333 = vst [vmem:[#allocation8 + $0xcc8] sm:$0xff] %v6301
      %6334 = vst [vmem:[#allocation8 + $0xd58] sm:$0xff] %v6302
      %6335 = vst [vmem:[#allocation8 + $0xde8] sm:$0xff] %v6303
      %6336 = vst [vmem:[#allocation8 + $0xe78] sm:$0xff] %v6304
      %6337 = vst [vmem:[#allocation8 + $0xf08] sm:$0xff] %v6305
      %6338 = vst [vmem:[#allocation8 + $0xf98] sm:$0xff] %v6306
      %6339 = vst [vmem:[#allocation8 + $0x1028] sm:$0xff] %v6307
      %6340 = vst [vmem:[#allocation8 + $0x10b8] sm:$0xff] %v6308
      %6341 = vst [vmem:[#allocation8 + $0x1148] sm:$0xff] %v6309
      %6342 = vst [vmem:[#allocation8 + $0x11d8] sm:$0xff] %v6310
      %v6343 = vld [vmem:[%s520 + $0x2] sm:$0xff]
      %v6344 = vld [vmem:[%s520 + $0xa] sm:$0xff]
      %v6345 = vld [vmem:[%s520 + $0x1a] sm:$0xff]
      %v6346 = vld [vmem:[%s520 + $0x22] sm:$0xff]
      %v6347 = vld [vmem:[%s520 + $0x32] sm:$0xff]
      %v6348 = vld [vmem:[%s520 + $0x3a] sm:$0xff]
      %v6349 = vld [vmem:[%s520 + $0x4a] sm:$0xff]
      %v6350 = vld [vmem:[%s520 + $0x52] sm:$0xff]
      %v6351 = vld [vmem:[%s520 + $0x62] sm:$0xff]
      %v6352 = vld [vmem:[%s520 + $0x6a] sm:$0xff]
      %v6353 = vld [vmem:[%s520 + $0x7a] sm:$0xff]
      %v6354 = vld [vmem:[%s520 + $0x82] sm:$0xff]
      %v6355 = vld [vmem:[%s520 + $0x92] sm:$0xff]
      %v6356 = vld [vmem:[%s520 + $0x9a] sm:$0xff]
      %v6357 = vld [vmem:[%s520 + $0xaa] sm:$0xff]
      %v6358 = vld [vmem:[%s520 + $0xb2] sm:$0xff]
      %v6359 = vld [vmem:[%s520 + $0xc2] sm:$0xff]
      %v6360 = vld [vmem:[%s520 + $0xca] sm:$0xff]
      %v6361 = vld [vmem:[%s520 + $0xda] sm:$0xff]
      %v6362 = vld [vmem:[%s520 + $0xe2] sm:$0xff]
      %v6363 = vld [vmem:[%s520 + $0xf2] sm:$0xff]
      %v6364 = vld [vmem:[%s520 + $0xfa] sm:$0xff]
      %v6365 = vld [vmem:[%s520 + $0x10a] sm:$0xff]
      %v6366 = vld [vmem:[%s520 + $0x112] sm:$0xff]
      %v6367 = vld [vmem:[%s520 + $0x122] sm:$0xff]
      %v6368 = vld [vmem:[%s520 + $0x12a] sm:$0xff]
      %v6369 = vld [vmem:[%s520 + $0x13a] sm:$0xff]
      %v6370 = vld [vmem:[%s520 + $0x142] sm:$0xff]
      %v6371 = vld [vmem:[%s520 + $0x152] sm:$0xff]
      %v6372 = vld [vmem:[%s520 + $0x15a] sm:$0xff]
      %v6373 = vld [vmem:[%s520 + $0x16a] sm:$0xff]
      %v6374 = vld [vmem:[%s520 + $0x172] sm:$0xff]
      %6375 = vst [vmem:[#allocation8 + $0x70] sm:$0xff] %v6343
      %6376 = vst [vmem:[#allocation8 + $0x100] sm:$0xff] %v6344
      %6377 = vst [vmem:[#allocation8 + $0x190] sm:$0xff] %v6345
      %6378 = vst [vmem:[#allocation8 + $0x220] sm:$0xff] %v6346
      %6379 = vst [vmem:[#allocation8 + $0x2b0] sm:$0xff] %v6347
      %6380 = vst [vmem:[#allocation8 + $0x340] sm:$0xff] %v6348
      %6381 = vst [vmem:[#allocation8 + $0x3d0] sm:$0xff] %v6349
      %6382 = vst [vmem:[#allocation8 + $0x460] sm:$0xff] %v6350
      %6383 = vst [vmem:[#allocation8 + $0x4f0] sm:$0xff] %v6351
      %6384 = vst [vmem:[#allocation8 + $0x580] sm:$0xff] %v6352
      %6385 = vst [vmem:[#allocation8 + $0x610] sm:$0xff] %v6353
      %6386 = vst [vmem:[#allocation8 + $0x6a0] sm:$0xff] %v6354
      %6387 = vst [vmem:[#allocation8 + $0x730] sm:$0xff] %v6355
      %6388 = vst [vmem:[#allocation8 + $0x7c0] sm:$0xff] %v6356
      %6389 = vst [vmem:[#allocation8 + $0x850] sm:$0xff] %v6357
      %6390 = vst [vmem:[#allocation8 + $0x8e0] sm:$0xff] %v6358
      %6391 = vst [vmem:[#allocation8 + $0x970] sm:$0xff] %v6359
      %6392 = vst [vmem:[#allocation8 + $0xa00] sm:$0xff] %v6360
      %6393 = vst [vmem:[#allocation8 + $0xa90] sm:$0xff] %v6361
      %6394 = vst [vmem:[#allocation8 + $0xb20] sm:$0xff] %v6362
      %6395 = vst [vmem:[#allocation8 + $0xbb0] sm:$0xff] %v6363
      %6396 = vst [vmem:[#allocation8 + $0xc40] sm:$0xff] %v6364
      %6397 = vst [vmem:[#allocation8 + $0xcd0] sm:$0xff] %v6365
      %6398 = vst [vmem:[#allocation8 + $0xd60] sm:$0xff] %v6366
      %6399 = vst [vmem:[#allocation8 + $0xdf0] sm:$0xff] %v6367
      %6400 = vst [vmem:[#allocation8 + $0xe80] sm:$0xff] %v6368
      %6401 = vst [vmem:[#allocation8 + $0xf10] sm:$0xff] %v6369
      %6402 = vst [vmem:[#allocation8 + $0xfa0] sm:$0xff] %v6370
      %6403 = vst [vmem:[#allocation8 + $0x1030] sm:$0xff] %v6371
      %6404 = vst [vmem:[#allocation8 + $0x10c0] sm:$0xff] %v6372
      %6405 = vst [vmem:[#allocation8 + $0x1150] sm:$0xff] %v6373
      %6406 = vst [vmem:[#allocation8 + $0x11e0] sm:$0xff] %v6374
      %s6407 = scalar_lea.vmem [#allocation7], 48
      %v6408 = vld [vmem:[%s6407] sm:$0xff]
      %v6409 = vld [vmem:[%s6407 + $0x8] sm:$0xff]
      %v6410 = vld [vmem:[%s6407 + $0x18] sm:$0xff]
      %v6411 = vld [vmem:[%s6407 + $0x20] sm:$0xff]
      %v6412 = vld [vmem:[%s6407 + $0x30] sm:$0xff]
      %v6413 = vld [vmem:[%s6407 + $0x38] sm:$0xff]
      %v6414 = vld [vmem:[%s6407 + $0x48] sm:$0xff]
      %v6415 = vld [vmem:[%s6407 + $0x50] sm:$0xff]
      %v6416 = vld [vmem:[%s6407 + $0x60] sm:$0xff]
      %v6417 = vld [vmem:[%s6407 + $0x68] sm:$0xff]
      %v6418 = vld [vmem:[%s6407 + $0x78] sm:$0xff]
      %v6419 = vld [vmem:[%s6407 + $0x80] sm:$0xff]
      %v6420 = vld [vmem:[%s6407 + $0x90] sm:$0xff]
      %v6421 = vld [vmem:[%s6407 + $0x98] sm:$0xff]
      %v6422 = vld [vmem:[%s6407 + $0xa8] sm:$0xff]
      %v6423 = vld [vmem:[%s6407 + $0xb0] sm:$0xff]
      %v6424 = vld [vmem:[%s6407 + $0xc0] sm:$0xff]
      %v6425 = vld [vmem:[%s6407 + $0xc8] sm:$0xff]
      %v6426 = vld [vmem:[%s6407 + $0xd8] sm:$0xff]
      %v6427 = vld [vmem:[%s6407 + $0xe0] sm:$0xff]
      %v6428 = vld [vmem:[%s6407 + $0xf0] sm:$0xff]
      %v6429 = vld [vmem:[%s6407 + $0xf8] sm:$0xff]
      %v6430 = vld [vmem:[%s6407 + $0x108] sm:$0xff]
      %v6431 = vld [vmem:[%s6407 + $0x110] sm:$0xff]
      %v6432 = vld [vmem:[%s6407 + $0x120] sm:$0xff]
      %v6433 = vld [vmem:[%s6407 + $0x128] sm:$0xff]
      %v6434 = vld [vmem:[%s6407 + $0x138] sm:$0xff]
      %v6435 = vld [vmem:[%s6407 + $0x140] sm:$0xff]
      %v6436 = vld [vmem:[%s6407 + $0x150] sm:$0xff]
      %v6437 = vld [vmem:[%s6407 + $0x158] sm:$0xff]
      %v6438 = vld [vmem:[%s6407 + $0x168] sm:$0xff]
      %v6439 = vld [vmem:[%s6407 + $0x170] sm:$0xff]
      %6440 = vst [vmem:[#allocation8 + $0x78] sm:$0xff] %v6408
      %6441 = vst [vmem:[#allocation8 + $0x108] sm:$0xff] %v6409
      %6442 = vst [vmem:[#allocation8 + $0x198] sm:$0xff] %v6410
      %6443 = vst [vmem:[#allocation8 + $0x228] sm:$0xff] %v6411
      %6444 = vst [vmem:[#allocation8 + $0x2b8] sm:$0xff] %v6412
      %6445 = vst [vmem:[#allocation8 + $0x348] sm:$0xff] %v6413
      %6446 = vst [vmem:[#allocation8 + $0x3d8] sm:$0xff] %v6414
      %6447 = vst [vmem:[#allocation8 + $0x468] sm:$0xff] %v6415
      %6448 = vst [vmem:[#allocation8 + $0x4f8] sm:$0xff] %v6416
      %6449 = vst [vmem:[#allocation8 + $0x588] sm:$0xff] %v6417
      %6450 = vst [vmem:[#allocation8 + $0x618] sm:$0xff] %v6418
      %6451 = vst [vmem:[#allocation8 + $0x6a8] sm:$0xff] %v6419
      %6452 = vst [vmem:[#allocation8 + $0x738] sm:$0xff] %v6420
      %6453 = vst [vmem:[#allocation8 + $0x7c8] sm:$0xff] %v6421
      %6454 = vst [vmem:[#allocation8 + $0x858] sm:$0xff] %v6422
      %6455 = vst [vmem:[#allocation8 + $0x8e8] sm:$0xff] %v6423
      %6456 = vst [vmem:[#allocation8 + $0x978] sm:$0xff] %v6424
      %6457 = vst [vmem:[#allocation8 + $0xa08] sm:$0xff] %v6425
      %6458 = vst [vmem:[#allocation8 + $0xa98] sm:$0xff] %v6426
      %6459 = vst [vmem:[#allocation8 + $0xb28] sm:$0xff] %v6427
      %6460 = vst [vmem:[#allocation8 + $0xbb8] sm:$0xff] %v6428
      %6461 = vst [vmem:[#allocation8 + $0xc48] sm:$0xff] %v6429
      %6462 = vst [vmem:[#allocation8 + $0xcd8] sm:$0xff] %v6430
      %6463 = vst [vmem:[#allocation8 + $0xd68] sm:$0xff] %v6431
      %6464 = vst [vmem:[#allocation8 + $0xdf8] sm:$0xff] %v6432
      %6465 = vst [vmem:[#allocation8 + $0xe88] sm:$0xff] %v6433
      %6466 = vst [vmem:[#allocation8 + $0xf18] sm:$0xff] %v6434
      %6467 = vst [vmem:[#allocation8 + $0xfa8] sm:$0xff] %v6435
      %6468 = vst [vmem:[#allocation8 + $0x1038] sm:$0xff] %v6436
      %6469 = vst [vmem:[#allocation8 + $0x10c8] sm:$0xff] %v6437
      %6470 = vst [vmem:[#allocation8 + $0x1158] sm:$0xff] %v6438
      %6471 = vst [vmem:[#allocation8 + $0x11e8] sm:$0xff] %v6439
      %v6472 = vld [vmem:[%s6407 + $0x1] sm:$0xff]
      %v6473 = vld [vmem:[%s6407 + $0x9] sm:$0xff]
      %v6474 = vld [vmem:[%s6407 + $0x19] sm:$0xff]
      %v6475 = vld [vmem:[%s6407 + $0x21] sm:$0xff]
      %v6476 = vld [vmem:[%s6407 + $0x31] sm:$0xff]
      %v6477 = vld [vmem:[%s6407 + $0x39] sm:$0xff]
      %v6478 = vld [vmem:[%s6407 + $0x49] sm:$0xff]
      %v6479 = vld [vmem:[%s6407 + $0x51] sm:$0xff]
      %v6480 = vld [vmem:[%s6407 + $0x61] sm:$0xff]
      %v6481 = vld [vmem:[%s6407 + $0x69] sm:$0xff]
      %v6482 = vld [vmem:[%s6407 + $0x79] sm:$0xff]
      %v6483 = vld [vmem:[%s6407 + $0x81] sm:$0xff]
      %v6484 = vld [vmem:[%s6407 + $0x91] sm:$0xff]
      %v6485 = vld [vmem:[%s6407 + $0x99] sm:$0xff]
      %v6486 = vld [vmem:[%s6407 + $0xa9] sm:$0xff]
      %v6487 = vld [vmem:[%s6407 + $0xb1] sm:$0xff]
      %v6488 = vld [vmem:[%s6407 + $0xc1] sm:$0xff]
      %v6489 = vld [vmem:[%s6407 + $0xc9] sm:$0xff]
      %v6490 = vld [vmem:[%s6407 + $0xd9] sm:$0xff]
      %v6491 = vld [vmem:[%s6407 + $0xe1] sm:$0xff]
      %v6492 = vld [vmem:[%s6407 + $0xf1] sm:$0xff]
      %v6493 = vld [vmem:[%s6407 + $0xf9] sm:$0xff]
      %v6494 = vld [vmem:[%s6407 + $0x109] sm:$0xff]
      %v6495 = vld [vmem:[%s6407 + $0x111] sm:$0xff]
      %v6496 = vld [vmem:[%s6407 + $0x121] sm:$0xff]
      %v6497 = vld [vmem:[%s6407 + $0x129] sm:$0xff]
      %v6498 = vld [vmem:[%s6407 + $0x139] sm:$0xff]
      %v6499 = vld [vmem:[%s6407 + $0x141] sm:$0xff]
      %v6500 = vld [vmem:[%s6407 + $0x151] sm:$0xff]
      %v6501 = vld [vmem:[%s6407 + $0x159] sm:$0xff]
      %v6502 = vld [vmem:[%s6407 + $0x169] sm:$0xff]
      %v6503 = vld [vmem:[%s6407 + $0x171] sm:$0xff]
      %6504 = vst [vmem:[#allocation8 + $0x80] sm:$0xff] %v6472
      %6505 = vst [vmem:[#allocation8 + $0x110] sm:$0xff] %v6473
      %6506 = vst [vmem:[#allocation8 + $0x1a0] sm:$0xff] %v6474
      %6507 = vst [vmem:[#allocation8 + $0x230] sm:$0xff] %v6475
      %6508 = vst [vmem:[#allocation8 + $0x2c0] sm:$0xff] %v6476
      %6509 = vst [vmem:[#allocation8 + $0x350] sm:$0xff] %v6477
      %6510 = vst [vmem:[#allocation8 + $0x3e0] sm:$0xff] %v6478
      %6511 = vst [vmem:[#allocation8 + $0x470] sm:$0xff] %v6479
      %6512 = vst [vmem:[#allocation8 + $0x500] sm:$0xff] %v6480
      %6513 = vst [vmem:[#allocation8 + $0x590] sm:$0xff] %v6481
      %6514 = vst [vmem:[#allocation8 + $0x620] sm:$0xff] %v6482
      %6515 = vst [vmem:[#allocation8 + $0x6b0] sm:$0xff] %v6483
      %6516 = vst [vmem:[#allocation8 + $0x740] sm:$0xff] %v6484
      %6517 = vst [vmem:[#allocation8 + $0x7d0] sm:$0xff] %v6485
      %6518 = vst [vmem:[#allocation8 + $0x860] sm:$0xff] %v6486
      %6519 = vst [vmem:[#allocation8 + $0x8f0] sm:$0xff] %v6487
      %6520 = vst [vmem:[#allocation8 + $0x980] sm:$0xff] %v6488
      %6521 = vst [vmem:[#allocation8 + $0xa10] sm:$0xff] %v6489
      %6522 = vst [vmem:[#allocation8 + $0xaa0] sm:$0xff] %v6490
      %6523 = vst [vmem:[#allocation8 + $0xb30] sm:$0xff] %v6491
      %6524 = vst [vmem:[#allocation8 + $0xbc0] sm:$0xff] %v6492
      %6525 = vst [vmem:[#allocation8 + $0xc50] sm:$0xff] %v6493
      %6526 = vst [vmem:[#allocation8 + $0xce0] sm:$0xff] %v6494
      %6527 = vst [vmem:[#allocation8 + $0xd70] sm:$0xff] %v6495
      %6528 = vst [vmem:[#allocation8 + $0xe00] sm:$0xff] %v6496
      %6529 = vst [vmem:[#allocation8 + $0xe90] sm:$0xff] %v6497
      %6530 = vst [vmem:[#allocation8 + $0xf20] sm:$0xff] %v6498
      %6531 = vst [vmem:[#allocation8 + $0xfb0] sm:$0xff] %v6499
      %6532 = vst [vmem:[#allocation8 + $0x1040] sm:$0xff] %v6500
      %6533 = vst [vmem:[#allocation8 + $0x10d0] sm:$0xff] %v6501
      %6534 = vst [vmem:[#allocation8 + $0x1160] sm:$0xff] %v6502
      %6535 = vst [vmem:[#allocation8 + $0x11f0] sm:$0xff] %v6503
      %v6536 = vld [vmem:[%s6407 + $0x2] sm:$0xff]
      %v6537 = vld [vmem:[%s6407 + $0xa] sm:$0xff]
      %v6538 = vld [vmem:[%s6407 + $0x1a] sm:$0xff]
      %v6539 = vld [vmem:[%s6407 + $0x22] sm:$0xff]
      %v6540 = vld [vmem:[%s6407 + $0x32] sm:$0xff]
      %v6541 = vld [vmem:[%s6407 + $0x3a] sm:$0xff]
      %v6542 = vld [vmem:[%s6407 + $0x4a] sm:$0xff]
      %v6543 = vld [vmem:[%s6407 + $0x52] sm:$0xff]
      %v6544 = vld [vmem:[%s6407 + $0x62] sm:$0xff]
      %v6545 = vld [vmem:[%s6407 + $0x6a] sm:$0xff]
      %v6546 = vld [vmem:[%s6407 + $0x7a] sm:$0xff]
      %v6547 = vld [vmem:[%s6407 + $0x82] sm:$0xff]
      %v6548 = vld [vmem:[%s6407 + $0x92] sm:$0xff]
      %v6549 = vld [vmem:[%s6407 + $0x9a] sm:$0xff]
      %v6550 = vld [vmem:[%s6407 + $0xaa] sm:$0xff]
      %v6551 = vld [vmem:[%s6407 + $0xb2] sm:$0xff]
      %v6552 = vld [vmem:[%s6407 + $0xc2] sm:$0xff]
      %v6553 = vld [vmem:[%s6407 + $0xca] sm:$0xff]
      %v6554 = vld [vmem:[%s6407 + $0xda] sm:$0xff]
      %v6555 = vld [vmem:[%s6407 + $0xe2] sm:$0xff]
      %v6556 = vld [vmem:[%s6407 + $0xf2] sm:$0xff]
      %v6557 = vld [vmem:[%s6407 + $0xfa] sm:$0xff]
      %v6558 = vld [vmem:[%s6407 + $0x10a] sm:$0xff]
      %v6559 = vld [vmem:[%s6407 + $0x112] sm:$0xff]
      %v6560 = vld [vmem:[%s6407 + $0x122] sm:$0xff]
      %v6561 = vld [vmem:[%s6407 + $0x12a] sm:$0xff]
      %v6562 = vld [vmem:[%s6407 + $0x13a] sm:$0xff]
      %v6563 = vld [vmem:[%s6407 + $0x142] sm:$0xff]
      %v6564 = vld [vmem:[%s6407 + $0x152] sm:$0xff]
      %v6565 = vld [vmem:[%s6407 + $0x15a] sm:$0xff]
      %v6566 = vld [vmem:[%s6407 + $0x16a] sm:$0xff]
      %v6567 = vld [vmem:[%s6407 + $0x172] sm:$0xff]
      %6568 = vst [vmem:[#allocation8 + $0x88] sm:$0xff] %v6536
      %6569 = vst [vmem:[#allocation8 + $0x118] sm:$0xff] %v6537
      %6570 = vst [vmem:[#allocation8 + $0x1a8] sm:$0xff] %v6538
      %6571 = vst [vmem:[#allocation8 + $0x238] sm:$0xff] %v6539
      %6572 = vst [vmem:[#allocation8 + $0x2c8] sm:$0xff] %v6540
      %6573 = vst [vmem:[#allocation8 + $0x358] sm:$0xff] %v6541
      %6574 = vst [vmem:[#allocation8 + $0x3e8] sm:$0xff] %v6542
      %6575 = vst [vmem:[#allocation8 + $0x478] sm:$0xff] %v6543
      %6576 = vst [vmem:[#allocation8 + $0x508] sm:$0xff] %v6544
      %6577 = vst [vmem:[#allocation8 + $0x598] sm:$0xff] %v6545
      %6578 = vst [vmem:[#allocation8 + $0x628] sm:$0xff] %v6546
      %6579 = vst [vmem:[#allocation8 + $0x6b8] sm:$0xff] %v6547
      %6580 = vst [vmem:[#allocation8 + $0x748] sm:$0xff] %v6548
      %6581 = vst [vmem:[#allocation8 + $0x7d8] sm:$0xff] %v6549
      %6582 = vst [vmem:[#allocation8 + $0x868] sm:$0xff] %v6550
      %6583 = vst [vmem:[#allocation8 + $0x8f8] sm:$0xff] %v6551
      %6584 = vst [vmem:[#allocation8 + $0x988] sm:$0xff] %v6552
      %6585 = vst [vmem:[#allocation8 + $0xa18] sm:$0xff] %v6553
      %6586 = vst [vmem:[#allocation8 + $0xaa8] sm:$0xff] %v6554
      %6587 = vst [vmem:[#allocation8 + $0xb38] sm:$0xff] %v6555
      %6588 = vst [vmem:[#allocation8 + $0xbc8] sm:$0xff] %v6556
      %6589 = vst [vmem:[#allocation8 + $0xc58] sm:$0xff] %v6557
      %6590 = vst [vmem:[#allocation8 + $0xce8] sm:$0xff] %v6558
      %6591 = vst [vmem:[#allocation8 + $0xd78] sm:$0xff] %v6559
      %6592 = vst [vmem:[#allocation8 + $0xe08] sm:$0xff] %v6560
      %6593 = vst [vmem:[#allocation8 + $0xe98] sm:$0xff] %v6561
      %6594 = vst [vmem:[#allocation8 + $0xf28] sm:$0xff] %v6562
      %6595 = vst [vmem:[#allocation8 + $0xfb8] sm:$0xff] %v6563
      %6596 = vst [vmem:[#allocation8 + $0x1048] sm:$0xff] %v6564
      %6597 = vst [vmem:[#allocation8 + $0x10d8] sm:$0xff] %v6565
      %6598 = vst [vmem:[#allocation8 + $0x1168] sm:$0xff] %v6566
      %6599 = vst [vmem:[#allocation8 + $0x11f8] sm:$0xff] %v6567
      %v6600 = vld [vmem:[#allocation8] sm:$0xff]
      %v6601 = vld [vmem:[#allocation8 + $0x8] sm:$0xff]
      %v6602 = vld [vmem:[#allocation8 + $0x10] sm:$0xff]
      %v6603 = vld [vmem:[#allocation8 + $0x18] sm:$0xff]
      %v6604 = vld [vmem:[#allocation8 + $0x20] sm:$0xff]
      %v6605 = vld [vmem:[#allocation8 + $0x28] sm:$0xff]
      %v6606 = vld [vmem:[#allocation8 + $0x30] sm:$0xff]
      %v6607 = vld [vmem:[#allocation8 + $0x38] sm:$0xff]
      %v6608 = vld [vmem:[#allocation8 + $0x40] sm:$0xff]
      %v6609 = vld [vmem:[#allocation8 + $0x48] sm:$0xff]
      %v6610 = vld [vmem:[#allocation8 + $0x50] sm:$0xff]
      %v6611 = vld [vmem:[#allocation8 + $0x58] sm:$0xff]
      %v6612 = vld [vmem:[#allocation8 + $0x60] sm:$0xff]
      %v6613 = vld [vmem:[#allocation8 + $0x68] sm:$0xff]
      %v6614 = vld [vmem:[#allocation8 + $0x70] sm:$0xff]
      %v6615 = vld [vmem:[#allocation8 + $0x78] sm:$0xff]
      %v6616 = vld [vmem:[#allocation8 + $0x80] sm:$0xff]
      %v6617 = vld [vmem:[#allocation8 + $0x88] sm:$0xff]
      %v6618 = vld [vmem:[#allocation8 + $0x90] sm:$0xff]
      %v6619 = vld [vmem:[#allocation8 + $0x98] sm:$0xff]
      %v6620 = vld [vmem:[#allocation8 + $0xa0] sm:$0xff]
      %v6621 = vld [vmem:[#allocation8 + $0xa8] sm:$0xff]
      %v6622 = vld [vmem:[#allocation8 + $0xb0] sm:$0xff]
      %v6623 = vld [vmem:[#allocation8 + $0xb8] sm:$0xff]
      %v6624 = vld [vmem:[#allocation8 + $0xc0] sm:$0xff]
      %v6625 = vld [vmem:[#allocation8 + $0xc8] sm:$0xff]
      %v6626 = vld [vmem:[#allocation8 + $0xd0] sm:$0xff]
      %v6627 = vld [vmem:[#allocation8 + $0xd8] sm:$0xff]
      %v6628 = vld [vmem:[#allocation8 + $0xe0] sm:$0xff]
      %v6629 = vld [vmem:[#allocation8 + $0xe8] sm:$0xff]
      %v6630 = vld [vmem:[#allocation8 + $0xf0] sm:$0xff]
      %v6631 = vld [vmem:[#allocation8 + $0xf8] sm:$0xff]
      %v6632 = vld [vmem:[#allocation8 + $0x100] sm:$0xff]
      %v6633 = vld [vmem:[#allocation8 + $0x108] sm:$0xff]
      %v6634 = vld [vmem:[#allocation8 + $0x110] sm:$0xff]
      %v6635 = vld [vmem:[#allocation8 + $0x118] sm:$0xff]
      %v6636 = vld [vmem:[#allocation8 + $0x120] sm:$0xff]
      %v6637 = vld [vmem:[#allocation8 + $0x128] sm:$0xff]
      %v6638 = vld [vmem:[#allocation8 + $0x130] sm:$0xff]
      %v6639 = vld [vmem:[#allocation8 + $0x138] sm:$0xff]
      %v6640 = vld [vmem:[#allocation8 + $0x140] sm:$0xff]
      %v6641 = vld [vmem:[#allocation8 + $0x148] sm:$0xff]
      %v6642 = vld [vmem:[#allocation8 + $0x150] sm:$0xff]
      %v6643 = vld [vmem:[#allocation8 + $0x158] sm:$0xff]
      %v6644 = vld [vmem:[#allocation8 + $0x160] sm:$0xff]
      %v6645 = vld [vmem:[#allocation8 + $0x168] sm:$0xff]
      %v6646 = vld [vmem:[#allocation8 + $0x170] sm:$0xff]
      %v6647 = vld [vmem:[#allocation8 + $0x178] sm:$0xff]
      %v6648 = vld [vmem:[#allocation8 + $0x180] sm:$0xff]
      %v6649 = vld [vmem:[#allocation8 + $0x188] sm:$0xff]
      %v6650 = vld [vmem:[#allocation8 + $0x190] sm:$0xff]
      %v6651 = vld [vmem:[#allocation8 + $0x198] sm:$0xff]
      %v6652 = vld [vmem:[#allocation8 + $0x1a0] sm:$0xff]
      %v6653 = vld [vmem:[#allocation8 + $0x1a8] sm:$0xff]
      %v6654 = vld [vmem:[#allocation8 + $0x1b0] sm:$0xff]
      %v6655 = vld [vmem:[#allocation8 + $0x1b8] sm:$0xff]
      %v6656 = vld [vmem:[#allocation8 + $0x1c0] sm:$0xff]
      %v6657 = vld [vmem:[#allocation8 + $0x1c8] sm:$0xff]
      %v6658 = vld [vmem:[#allocation8 + $0x1d0] sm:$0xff]
      %v6659 = vld [vmem:[#allocation8 + $0x1d8] sm:$0xff]
      %v6660 = vld [vmem:[#allocation8 + $0x1e0] sm:$0xff]
      %v6661 = vld [vmem:[#allocation8 + $0x1e8] sm:$0xff]
      %v6662 = vld [vmem:[#allocation8 + $0x1f0] sm:$0xff]
      %v6663 = vld [vmem:[#allocation8 + $0x1f8] sm:$0xff]
      %v6664 = vld [vmem:[#allocation8 + $0x200] sm:$0xff]
      %v6665 = vld [vmem:[#allocation8 + $0x208] sm:$0xff]
      %v6666 = vld [vmem:[#allocation8 + $0x210] sm:$0xff]
      %v6667 = vld [vmem:[#allocation8 + $0x218] sm:$0xff]
      %v6668 = vld [vmem:[#allocation8 + $0x220] sm:$0xff]
      %v6669 = vld [vmem:[#allocation8 + $0x228] sm:$0xff]
      %v6670 = vld [vmem:[#allocation8 + $0x230] sm:$0xff]
      %v6671 = vld [vmem:[#allocation8 + $0x238] sm:$0xff]
      %v6672 = vld [vmem:[#allocation8 + $0x240] sm:$0xff]
      %v6673 = vld [vmem:[#allocation8 + $0x248] sm:$0xff]
      %v6674 = vld [vmem:[#allocation8 + $0x250] sm:$0xff]
      %v6675 = vld [vmem:[#allocation8 + $0x258] sm:$0xff]
      %v6676 = vld [vmem:[#allocation8 + $0x260] sm:$0xff]
      %v6677 = vld [vmem:[#allocation8 + $0x268] sm:$0xff]
      %v6678 = vld [vmem:[#allocation8 + $0x270] sm:$0xff]
      %v6679 = vld [vmem:[#allocation8 + $0x278] sm:$0xff]
      %v6680 = vld [vmem:[#allocation8 + $0x280] sm:$0xff]
      %v6681 = vld [vmem:[#allocation8 + $0x288] sm:$0xff]
      %v6682 = vld [vmem:[#allocation8 + $0x290] sm:$0xff]
      %v6683 = vld [vmem:[#allocation8 + $0x298] sm:$0xff]
      %v6684 = vld [vmem:[#allocation8 + $0x2a0] sm:$0xff]
      %v6685 = vld [vmem:[#allocation8 + $0x2a8] sm:$0xff]
      %v6686 = vld [vmem:[#allocation8 + $0x2b0] sm:$0xff]
      %v6687 = vld [vmem:[#allocation8 + $0x2b8] sm:$0xff]
      %v6688 = vld [vmem:[#allocation8 + $0x2c0] sm:$0xff]
      %v6689 = vld [vmem:[#allocation8 + $0x2c8] sm:$0xff]
      %v6690 = vld [vmem:[#allocation8 + $0x2d0] sm:$0xff]
      %v6691 = vld [vmem:[#allocation8 + $0x2d8] sm:$0xff]
      %v6692 = vld [vmem:[#allocation8 + $0x2e0] sm:$0xff]
      %v6693 = vld [vmem:[#allocation8 + $0x2e8] sm:$0xff]
      %v6694 = vld [vmem:[#allocation8 + $0x2f0] sm:$0xff]
      %v6695 = vld [vmem:[#allocation8 + $0x2f8] sm:$0xff]
      %v6696 = vld [vmem:[#allocation8 + $0x300] sm:$0xff]
      %v6697 = vld [vmem:[#allocation8 + $0x308] sm:$0xff]
      %v6698 = vld [vmem:[#allocation8 + $0x310] sm:$0xff]
      %v6699 = vld [vmem:[#allocation8 + $0x318] sm:$0xff]
      %v6700 = vld [vmem:[#allocation8 + $0x320] sm:$0xff]
      %v6701 = vld [vmem:[#allocation8 + $0x328] sm:$0xff]
      %v6702 = vld [vmem:[#allocation8 + $0x330] sm:$0xff]
      %v6703 = vld [vmem:[#allocation8 + $0x338] sm:$0xff]
      %v6704 = vld [vmem:[#allocation8 + $0x340] sm:$0xff]
      %v6705 = vld [vmem:[#allocation8 + $0x348] sm:$0xff]
      %v6706 = vld [vmem:[#allocation8 + $0x350] sm:$0xff]
      %v6707 = vld [vmem:[#allocation8 + $0x358] sm:$0xff]
      %v6708 = vld [vmem:[#allocation8 + $0x360] sm:$0xff]
      %v6709 = vld [vmem:[#allocation8 + $0x368] sm:$0xff]
      %v6710 = vld [vmem:[#allocation8 + $0x370] sm:$0xff]
      %v6711 = vld [vmem:[#allocation8 + $0x378] sm:$0xff]
      %v6712 = vld [vmem:[#allocation8 + $0x380] sm:$0xff]
      %v6713 = vld [vmem:[#allocation8 + $0x388] sm:$0xff]
      %v6714 = vld [vmem:[#allocation8 + $0x390] sm:$0xff]
      %v6715 = vld [vmem:[#allocation8 + $0x398] sm:$0xff]
      %v6716 = vld [vmem:[#allocation8 + $0x3a0] sm:$0xff]
      %v6717 = vld [vmem:[#allocation8 + $0x3a8] sm:$0xff]
      %v6718 = vld [vmem:[#allocation8 + $0x3b0] sm:$0xff]
      %v6719 = vld [vmem:[#allocation8 + $0x3b8] sm:$0xff]
      %v6720 = vld [vmem:[#allocation8 + $0x3c0] sm:$0xff]
      %v6721 = vld [vmem:[#allocation8 + $0x3c8] sm:$0xff]
      %v6722 = vld [vmem:[#allocation8 + $0x3d0] sm:$0xff]
      %v6723 = vld [vmem:[#allocation8 + $0x3d8] sm:$0xff]
      %v6724 = vld [vmem:[#allocation8 + $0x3e0] sm:$0xff]
      %v6725 = vld [vmem:[#allocation8 + $0x3e8] sm:$0xff]
      %v6726 = vld [vmem:[#allocation8 + $0x3f0] sm:$0xff]
      %v6727 = vld [vmem:[#allocation8 + $0x3f8] sm:$0xff]
      %v6728 = vld [vmem:[#allocation8 + $0x400] sm:$0xff]
      %v6729 = vld [vmem:[#allocation8 + $0x408] sm:$0xff]
      %v6730 = vld [vmem:[#allocation8 + $0x410] sm:$0xff]
      %v6731 = vld [vmem:[#allocation8 + $0x418] sm:$0xff]
      %v6732 = vld [vmem:[#allocation8 + $0x420] sm:$0xff]
      %v6733 = vld [vmem:[#allocation8 + $0x428] sm:$0xff]
      %v6734 = vld [vmem:[#allocation8 + $0x430] sm:$0xff]
      %v6735 = vld [vmem:[#allocation8 + $0x438] sm:$0xff]
      %v6736 = vld [vmem:[#allocation8 + $0x440] sm:$0xff]
      %v6737 = vld [vmem:[#allocation8 + $0x448] sm:$0xff]
      %v6738 = vld [vmem:[#allocation8 + $0x450] sm:$0xff]
      %v6739 = vld [vmem:[#allocation8 + $0x458] sm:$0xff]
      %v6740 = vld [vmem:[#allocation8 + $0x460] sm:$0xff]
      %v6741 = vld [vmem:[#allocation8 + $0x468] sm:$0xff]
      %v6742 = vld [vmem:[#allocation8 + $0x470] sm:$0xff]
      %v6743 = vld [vmem:[#allocation8 + $0x478] sm:$0xff]
      %v6744 = vld [vmem:[#allocation8 + $0x480] sm:$0xff]
      %v6745 = vld [vmem:[#allocation8 + $0x488] sm:$0xff]
      %v6746 = vld [vmem:[#allocation8 + $0x490] sm:$0xff]
      %v6747 = vld [vmem:[#allocation8 + $0x498] sm:$0xff]
      %v6748 = vld [vmem:[#allocation8 + $0x4a0] sm:$0xff]
      %v6749 = vld [vmem:[#allocation8 + $0x4a8] sm:$0xff]
      %v6750 = vld [vmem:[#allocation8 + $0x4b0] sm:$0xff]
      %v6751 = vld [vmem:[#allocation8 + $0x4b8] sm:$0xff]
      %v6752 = vld [vmem:[#allocation8 + $0x4c0] sm:$0xff]
      %v6753 = vld [vmem:[#allocation8 + $0x4c8] sm:$0xff]
      %v6754 = vld [vmem:[#allocation8 + $0x4d0] sm:$0xff]
      %v6755 = vld [vmem:[#allocation8 + $0x4d8] sm:$0xff]
      %v6756 = vld [vmem:[#allocation8 + $0x4e0] sm:$0xff]
      %v6757 = vld [vmem:[#allocation8 + $0x4e8] sm:$0xff]
      %v6758 = vld [vmem:[#allocation8 + $0x4f0] sm:$0xff]
      %v6759 = vld [vmem:[#allocation8 + $0x4f8] sm:$0xff]
      %v6760 = vld [vmem:[#allocation8 + $0x500] sm:$0xff]
      %v6761 = vld [vmem:[#allocation8 + $0x508] sm:$0xff]
      %v6762 = vld [vmem:[#allocation8 + $0x510] sm:$0xff]
      %v6763 = vld [vmem:[#allocation8 + $0x518] sm:$0xff]
      %v6764 = vld [vmem:[#allocation8 + $0x520] sm:$0xff]
      %v6765 = vld [vmem:[#allocation8 + $0x528] sm:$0xff]
      %v6766 = vld [vmem:[#allocation8 + $0x530] sm:$0xff]
      %v6767 = vld [vmem:[#allocation8 + $0x538] sm:$0xff]
      %v6768 = vld [vmem:[#allocation8 + $0x540] sm:$0xff]
      %v6769 = vld [vmem:[#allocation8 + $0x548] sm:$0xff]
      %v6770 = vld [vmem:[#allocation8 + $0x550] sm:$0xff]
      %v6771 = vld [vmem:[#allocation8 + $0x558] sm:$0xff]
      %v6772 = vld [vmem:[#allocation8 + $0x560] sm:$0xff]
      %v6773 = vld [vmem:[#allocation8 + $0x568] sm:$0xff]
      %v6774 = vld [vmem:[#allocation8 + $0x570] sm:$0xff]
      %v6775 = vld [vmem:[#allocation8 + $0x578] sm:$0xff]
      %v6776 = vld [vmem:[#allocation8 + $0x580] sm:$0xff]
      %v6777 = vld [vmem:[#allocation8 + $0x588] sm:$0xff]
      %v6778 = vld [vmem:[#allocation8 + $0x590] sm:$0xff]
      %v6779 = vld [vmem:[#allocation8 + $0x598] sm:$0xff]
      %v6780 = vld [vmem:[#allocation8 + $0x5a0] sm:$0xff]
      %v6781 = vld [vmem:[#allocation8 + $0x5a8] sm:$0xff]
      %v6782 = vld [vmem:[#allocation8 + $0x5b0] sm:$0xff]
      %v6783 = vld [vmem:[#allocation8 + $0x5b8] sm:$0xff]
      %v6784 = vld [vmem:[#allocation8 + $0x5c0] sm:$0xff]
      %v6785 = vld [vmem:[#allocation8 + $0x5c8] sm:$0xff]
      %v6786 = vld [vmem:[#allocation8 + $0x5d0] sm:$0xff]
      %v6787 = vld [vmem:[#allocation8 + $0x5d8] sm:$0xff]
      %v6788 = vld [vmem:[#allocation8 + $0x5e0] sm:$0xff]
      %v6789 = vld [vmem:[#allocation8 + $0x5e8] sm:$0xff]
      %v6790 = vld [vmem:[#allocation8 + $0x5f0] sm:$0xff]
      %v6791 = vld [vmem:[#allocation8 + $0x5f8] sm:$0xff]
      %v6792 = vld [vmem:[#allocation8 + $0x600] sm:$0xff]
      %v6793 = vld [vmem:[#allocation8 + $0x608] sm:$0xff]
      %v6794 = vld [vmem:[#allocation8 + $0x610] sm:$0xff]
      %v6795 = vld [vmem:[#allocation8 + $0x618] sm:$0xff]
      %v6796 = vld [vmem:[#allocation8 + $0x620] sm:$0xff]
      %v6797 = vld [vmem:[#allocation8 + $0x628] sm:$0xff]
      %v6798 = vld [vmem:[#allocation8 + $0x630] sm:$0xff]
      %v6799 = vld [vmem:[#allocation8 + $0x638] sm:$0xff]
      %v6800 = vld [vmem:[#allocation8 + $0x640] sm:$0xff]
      %v6801 = vld [vmem:[#allocation8 + $0x648] sm:$0xff]
      %v6802 = vld [vmem:[#allocation8 + $0x650] sm:$0xff]
      %v6803 = vld [vmem:[#allocation8 + $0x658] sm:$0xff]
      %v6804 = vld [vmem:[#allocation8 + $0x660] sm:$0xff]
      %v6805 = vld [vmem:[#allocation8 + $0x668] sm:$0xff]
      %v6806 = vld [vmem:[#allocation8 + $0x670] sm:$0xff]
      %v6807 = vld [vmem:[#allocation8 + $0x678] sm:$0xff]
      %v6808 = vld [vmem:[#allocation8 + $0x680] sm:$0xff]
      %v6809 = vld [vmem:[#allocation8 + $0x688] sm:$0xff]
      %v6810 = vld [vmem:[#allocation8 + $0x690] sm:$0xff]
      %v6811 = vld [vmem:[#allocation8 + $0x698] sm:$0xff]
      %v6812 = vld [vmem:[#allocation8 + $0x6a0] sm:$0xff]
      %v6813 = vld [vmem:[#allocation8 + $0x6a8] sm:$0xff]
      %v6814 = vld [vmem:[#allocation8 + $0x6b0] sm:$0xff]
      %v6815 = vld [vmem:[#allocation8 + $0x6b8] sm:$0xff]
      %v6816 = vld [vmem:[#allocation8 + $0x6c0] sm:$0xff]
      %v6817 = vld [vmem:[#allocation8 + $0x6c8] sm:$0xff]
      %v6818 = vld [vmem:[#allocation8 + $0x6d0] sm:$0xff]
      %v6819 = vld [vmem:[#allocation8 + $0x6d8] sm:$0xff]
      %v6820 = vld [vmem:[#allocation8 + $0x6e0] sm:$0xff]
      %v6821 = vld [vmem:[#allocation8 + $0x6e8] sm:$0xff]
      %v6822 = vld [vmem:[#allocation8 + $0x6f0] sm:$0xff]
      %v6823 = vld [vmem:[#allocation8 + $0x6f8] sm:$0xff]
      %v6824 = vld [vmem:[#allocation8 + $0x700] sm:$0xff]
      %v6825 = vld [vmem:[#allocation8 + $0x708] sm:$0xff]
      %v6826 = vld [vmem:[#allocation8 + $0x710] sm:$0xff]
      %v6827 = vld [vmem:[#allocation8 + $0x718] sm:$0xff]
      %v6828 = vld [vmem:[#allocation8 + $0x720] sm:$0xff]
      %v6829 = vld [vmem:[#allocation8 + $0x728] sm:$0xff]
      %v6830 = vld [vmem:[#allocation8 + $0x730] sm:$0xff]
      %v6831 = vld [vmem:[#allocation8 + $0x738] sm:$0xff]
      %v6832 = vld [vmem:[#allocation8 + $0x740] sm:$0xff]
      %v6833 = vld [vmem:[#allocation8 + $0x748] sm:$0xff]
      %v6834 = vld [vmem:[#allocation8 + $0x750] sm:$0xff]
      %v6835 = vld [vmem:[#allocation8 + $0x758] sm:$0xff]
      %v6836 = vld [vmem:[#allocation8 + $0x760] sm:$0xff]
      %v6837 = vld [vmem:[#allocation8 + $0x768] sm:$0xff]
      %v6838 = vld [vmem:[#allocation8 + $0x770] sm:$0xff]
      %v6839 = vld [vmem:[#allocation8 + $0x778] sm:$0xff]
      %v6840 = vld [vmem:[#allocation8 + $0x780] sm:$0xff]
      %v6841 = vld [vmem:[#allocation8 + $0x788] sm:$0xff]
      %v6842 = vld [vmem:[#allocation8 + $0x790] sm:$0xff]
      %v6843 = vld [vmem:[#allocation8 + $0x798] sm:$0xff]
      %v6844 = vld [vmem:[#allocation8 + $0x7a0] sm:$0xff]
      %v6845 = vld [vmem:[#allocation8 + $0x7a8] sm:$0xff]
      %v6846 = vld [vmem:[#allocation8 + $0x7b0] sm:$0xff]
      %v6847 = vld [vmem:[#allocation8 + $0x7b8] sm:$0xff]
      %v6848 = vld [vmem:[#allocation8 + $0x7c0] sm:$0xff]
      %v6849 = vld [vmem:[#allocation8 + $0x7c8] sm:$0xff]
      %v6850 = vld [vmem:[#allocation8 + $0x7d0] sm:$0xff]
      %v6851 = vld [vmem:[#allocation8 + $0x7d8] sm:$0xff]
      %v6852 = vld [vmem:[#allocation8 + $0x7e0] sm:$0xff]
      %v6853 = vld [vmem:[#allocation8 + $0x7e8] sm:$0xff]
      %v6854 = vld [vmem:[#allocation8 + $0x7f0] sm:$0xff]
      %v6855 = vld [vmem:[#allocation8 + $0x7f8] sm:$0xff]
      %v6856 = vld [vmem:[#allocation8 + $0x800] sm:$0xff]
      %v6857 = vld [vmem:[#allocation8 + $0x808] sm:$0xff]
      %v6858 = vld [vmem:[#allocation8 + $0x810] sm:$0xff]
      %v6859 = vld [vmem:[#allocation8 + $0x818] sm:$0xff]
      %v6860 = vld [vmem:[#allocation8 + $0x820] sm:$0xff]
      %v6861 = vld [vmem:[#allocation8 + $0x828] sm:$0xff]
      %v6862 = vld [vmem:[#allocation8 + $0x830] sm:$0xff]
      %v6863 = vld [vmem:[#allocation8 + $0x838] sm:$0xff]
      %v6864 = vld [vmem:[#allocation8 + $0x840] sm:$0xff]
      %v6865 = vld [vmem:[#allocation8 + $0x848] sm:$0xff]
      %v6866 = vld [vmem:[#allocation8 + $0x850] sm:$0xff]
      %v6867 = vld [vmem:[#allocation8 + $0x858] sm:$0xff]
      %v6868 = vld [vmem:[#allocation8 + $0x860] sm:$0xff]
      %v6869 = vld [vmem:[#allocation8 + $0x868] sm:$0xff]
      %v6870 = vld [vmem:[#allocation8 + $0x870] sm:$0xff]
      %v6871 = vld [vmem:[#allocation8 + $0x878] sm:$0xff]
      %v6872 = vld [vmem:[#allocation8 + $0x880] sm:$0xff]
      %v6873 = vld [vmem:[#allocation8 + $0x888] sm:$0xff]
      %v6874 = vld [vmem:[#allocation8 + $0x890] sm:$0xff]
      %v6875 = vld [vmem:[#allocation8 + $0x898] sm:$0xff]
      %v6876 = vld [vmem:[#allocation8 + $0x8a0] sm:$0xff]
      %v6877 = vld [vmem:[#allocation8 + $0x8a8] sm:$0xff]
      %v6878 = vld [vmem:[#allocation8 + $0x8b0] sm:$0xff]
      %v6879 = vld [vmem:[#allocation8 + $0x8b8] sm:$0xff]
      %v6880 = vld [vmem:[#allocation8 + $0x8c0] sm:$0xff]
      %v6881 = vld [vmem:[#allocation8 + $0x8c8] sm:$0xff]
      %v6882 = vld [vmem:[#allocation8 + $0x8d0] sm:$0xff]
      %v6883 = vld [vmem:[#allocation8 + $0x8d8] sm:$0xff]
      %v6884 = vld [vmem:[#allocation8 + $0x8e0] sm:$0xff]
      %v6885 = vld [vmem:[#allocation8 + $0x8e8] sm:$0xff]
      %v6886 = vld [vmem:[#allocation8 + $0x8f0] sm:$0xff]
      %v6887 = vld [vmem:[#allocation8 + $0x8f8] sm:$0xff]
      %v6888 = vld [vmem:[#allocation8 + $0x900] sm:$0xff]
      %v6889 = vld [vmem:[#allocation8 + $0x908] sm:$0xff]
      %v6890 = vld [vmem:[#allocation8 + $0x910] sm:$0xff]
      %v6891 = vld [vmem:[#allocation8 + $0x918] sm:$0xff]
      %v6892 = vld [vmem:[#allocation8 + $0x920] sm:$0xff]
      %v6893 = vld [vmem:[#allocation8 + $0x928] sm:$0xff]
      %v6894 = vld [vmem:[#allocation8 + $0x930] sm:$0xff]
      %v6895 = vld [vmem:[#allocation8 + $0x938] sm:$0xff]
      %v6896 = vld [vmem:[#allocation8 + $0x940] sm:$0xff]
      %v6897 = vld [vmem:[#allocation8 + $0x948] sm:$0xff]
      %v6898 = vld [vmem:[#allocation8 + $0x950] sm:$0xff]
      %v6899 = vld [vmem:[#allocation8 + $0x958] sm:$0xff]
      %v6900 = vld [vmem:[#allocation8 + $0x960] sm:$0xff]
      %v6901 = vld [vmem:[#allocation8 + $0x968] sm:$0xff]
      %v6902 = vld [vmem:[#allocation8 + $0x970] sm:$0xff]
      %v6903 = vld [vmem:[#allocation8 + $0x978] sm:$0xff]
      %v6904 = vld [vmem:[#allocation8 + $0x980] sm:$0xff]
      %v6905 = vld [vmem:[#allocation8 + $0x988] sm:$0xff]
      %v6906 = vld [vmem:[#allocation8 + $0x990] sm:$0xff]
      %v6907 = vld [vmem:[#allocation8 + $0x998] sm:$0xff]
      %v6908 = vld [vmem:[#allocation8 + $0x9a0] sm:$0xff]
      %v6909 = vld [vmem:[#allocation8 + $0x9a8] sm:$0xff]
      %v6910 = vld [vmem:[#allocation8 + $0x9b0] sm:$0xff]
      %v6911 = vld [vmem:[#allocation8 + $0x9b8] sm:$0xff]
      %v6912 = vld [vmem:[#allocation8 + $0x9c0] sm:$0xff]
      %v6913 = vld [vmem:[#allocation8 + $0x9c8] sm:$0xff]
      %v6914 = vld [vmem:[#allocation8 + $0x9d0] sm:$0xff]
      %v6915 = vld [vmem:[#allocation8 + $0x9d8] sm:$0xff]
      %v6916 = vld [vmem:[#allocation8 + $0x9e0] sm:$0xff]
      %v6917 = vld [vmem:[#allocation8 + $0x9e8] sm:$0xff]
      %v6918 = vld [vmem:[#allocation8 + $0x9f0] sm:$0xff]
      %v6919 = vld [vmem:[#allocation8 + $0x9f8] sm:$0xff]
      %v6920 = vld [vmem:[#allocation8 + $0xa00] sm:$0xff]
      %v6921 = vld [vmem:[#allocation8 + $0xa08] sm:$0xff]
      %v6922 = vld [vmem:[#allocation8 + $0xa10] sm:$0xff]
      %v6923 = vld [vmem:[#allocation8 + $0xa18] sm:$0xff]
      %v6924 = vld [vmem:[#allocation8 + $0xa20] sm:$0xff]
      %v6925 = vld [vmem:[#allocation8 + $0xa28] sm:$0xff]
      %v6926 = vld [vmem:[#allocation8 + $0xa30] sm:$0xff]
      %v6927 = vld [vmem:[#allocation8 + $0xa38] sm:$0xff]
      %v6928 = vld [vmem:[#allocation8 + $0xa40] sm:$0xff]
      %v6929 = vld [vmem:[#allocation8 + $0xa48] sm:$0xff]
      %v6930 = vld [vmem:[#allocation8 + $0xa50] sm:$0xff]
      %v6931 = vld [vmem:[#allocation8 + $0xa58] sm:$0xff]
      %v6932 = vld [vmem:[#allocation8 + $0xa60] sm:$0xff]
      %v6933 = vld [vmem:[#allocation8 + $0xa68] sm:$0xff]
      %v6934 = vld [vmem:[#allocation8 + $0xa70] sm:$0xff]
      %v6935 = vld [vmem:[#allocation8 + $0xa78] sm:$0xff]
      %v6936 = vld [vmem:[#allocation8 + $0xa80] sm:$0xff]
      %v6937 = vld [vmem:[#allocation8 + $0xa88] sm:$0xff]
      %v6938 = vld [vmem:[#allocation8 + $0xa90] sm:$0xff]
      %v6939 = vld [vmem:[#allocation8 + $0xa98] sm:$0xff]
      %v6940 = vld [vmem:[#allocation8 + $0xaa0] sm:$0xff]
      %v6941 = vld [vmem:[#allocation8 + $0xaa8] sm:$0xff]
      %v6942 = vld [vmem:[#allocation8 + $0xab0] sm:$0xff]
      %v6943 = vld [vmem:[#allocation8 + $0xab8] sm:$0xff]
      %v6944 = vld [vmem:[#allocation8 + $0xac0] sm:$0xff]
      %v6945 = vld [vmem:[#allocation8 + $0xac8] sm:$0xff]
      %v6946 = vld [vmem:[#allocation8 + $0xad0] sm:$0xff]
      %v6947 = vld [vmem:[#allocation8 + $0xad8] sm:$0xff]
      %v6948 = vld [vmem:[#allocation8 + $0xae0] sm:$0xff]
      %v6949 = vld [vmem:[#allocation8 + $0xae8] sm:$0xff]
      %v6950 = vld [vmem:[#allocation8 + $0xaf0] sm:$0xff]
      %v6951 = vld [vmem:[#allocation8 + $0xaf8] sm:$0xff]
      %v6952 = vld [vmem:[#allocation8 + $0xb00] sm:$0xff]
      %v6953 = vld [vmem:[#allocation8 + $0xb08] sm:$0xff]
      %v6954 = vld [vmem:[#allocation8 + $0xb10] sm:$0xff]
      %v6955 = vld [vmem:[#allocation8 + $0xb18] sm:$0xff]
      %v6956 = vld [vmem:[#allocation8 + $0xb20] sm:$0xff]
      %v6957 = vld [vmem:[#allocation8 + $0xb28] sm:$0xff]
      %v6958 = vld [vmem:[#allocation8 + $0xb30] sm:$0xff]
      %v6959 = vld [vmem:[#allocation8 + $0xb38] sm:$0xff]
      %v6960 = vld [vmem:[#allocation8 + $0xb40] sm:$0xff]
      %v6961 = vld [vmem:[#allocation8 + $0xb48] sm:$0xff]
      %v6962 = vld [vmem:[#allocation8 + $0xb50] sm:$0xff]
      %v6963 = vld [vmem:[#allocation8 + $0xb58] sm:$0xff]
      %v6964 = vld [vmem:[#allocation8 + $0xb60] sm:$0xff]
      %v6965 = vld [vmem:[#allocation8 + $0xb68] sm:$0xff]
      %v6966 = vld [vmem:[#allocation8 + $0xb70] sm:$0xff]
      %v6967 = vld [vmem:[#allocation8 + $0xb78] sm:$0xff]
      %v6968 = vld [vmem:[#allocation8 + $0xb80] sm:$0xff]
      %v6969 = vld [vmem:[#allocation8 + $0xb88] sm:$0xff]
      %v6970 = vld [vmem:[#allocation8 + $0xb90] sm:$0xff]
      %v6971 = vld [vmem:[#allocation8 + $0xb98] sm:$0xff]
      %v6972 = vld [vmem:[#allocation8 + $0xba0] sm:$0xff]
      %v6973 = vld [vmem:[#allocation8 + $0xba8] sm:$0xff]
      %v6974 = vld [vmem:[#allocation8 + $0xbb0] sm:$0xff]
      %v6975 = vld [vmem:[#allocation8 + $0xbb8] sm:$0xff]
      %v6976 = vld [vmem:[#allocation8 + $0xbc0] sm:$0xff]
      %v6977 = vld [vmem:[#allocation8 + $0xbc8] sm:$0xff]
      %v6978 = vld [vmem:[#allocation8 + $0xbd0] sm:$0xff]
      %v6979 = vld [vmem:[#allocation8 + $0xbd8] sm:$0xff]
      %v6980 = vld [vmem:[#allocation8 + $0xbe0] sm:$0xff]
      %v6981 = vld [vmem:[#allocation8 + $0xbe8] sm:$0xff]
      %v6982 = vld [vmem:[#allocation8 + $0xbf0] sm:$0xff]
      %v6983 = vld [vmem:[#allocation8 + $0xbf8] sm:$0xff]
      %v6984 = vld [vmem:[#allocation8 + $0xc00] sm:$0xff]
      %v6985 = vld [vmem:[#allocation8 + $0xc08] sm:$0xff]
      %v6986 = vld [vmem:[#allocation8 + $0xc10] sm:$0xff]
      %v6987 = vld [vmem:[#allocation8 + $0xc18] sm:$0xff]
      %v6988 = vld [vmem:[#allocation8 + $0xc20] sm:$0xff]
      %v6989 = vld [vmem:[#allocation8 + $0xc28] sm:$0xff]
      %v6990 = vld [vmem:[#allocation8 + $0xc30] sm:$0xff]
      %v6991 = vld [vmem:[#allocation8 + $0xc38] sm:$0xff]
      %v6992 = vld [vmem:[#allocation8 + $0xc40] sm:$0xff]
      %v6993 = vld [vmem:[#allocation8 + $0xc48] sm:$0xff]
      %v6994 = vld [vmem:[#allocation8 + $0xc50] sm:$0xff]
      %v6995 = vld [vmem:[#allocation8 + $0xc58] sm:$0xff]
      %v6996 = vld [vmem:[#allocation8 + $0xc60] sm:$0xff]
      %v6997 = vld [vmem:[#allocation8 + $0xc68] sm:$0xff]
      %v6998 = vld [vmem:[#allocation8 + $0xc70] sm:$0xff]
      %v6999 = vld [vmem:[#allocation8 + $0xc78] sm:$0xff]
      %v7000 = vld [vmem:[#allocation8 + $0xc80] sm:$0xff]
      %v7001 = vld [vmem:[#allocation8 + $0xc88] sm:$0xff]
      %v7002 = vld [vmem:[#allocation8 + $0xc90] sm:$0xff]
      %v7003 = vld [vmem:[#allocation8 + $0xc98] sm:$0xff]
      %v7004 = vld [vmem:[#allocation8 + $0xca0] sm:$0xff]
      %v7005 = vld [vmem:[#allocation8 + $0xca8] sm:$0xff]
      %v7006 = vld [vmem:[#allocation8 + $0xcb0] sm:$0xff]
      %v7007 = vld [vmem:[#allocation8 + $0xcb8] sm:$0xff]
      %v7008 = vld [vmem:[#allocation8 + $0xcc0] sm:$0xff]
      %v7009 = vld [vmem:[#allocation8 + $0xcc8] sm:$0xff]
      %v7010 = vld [vmem:[#allocation8 + $0xcd0] sm:$0xff]
      %v7011 = vld [vmem:[#allocation8 + $0xcd8] sm:$0xff]
      %v7012 = vld [vmem:[#allocation8 + $0xce0] sm:$0xff]
      %v7013 = vld [vmem:[#allocation8 + $0xce8] sm:$0xff]
      %v7014 = vld [vmem:[#allocation8 + $0xcf0] sm:$0xff]
      %v7015 = vld [vmem:[#allocation8 + $0xcf8] sm:$0xff]
      %v7016 = vld [vmem:[#allocation8 + $0xd00] sm:$0xff]
      %v7017 = vld [vmem:[#allocation8 + $0xd08] sm:$0xff]
      %v7018 = vld [vmem:[#allocation8 + $0xd10] sm:$0xff]
      %v7019 = vld [vmem:[#allocation8 + $0xd18] sm:$0xff]
      %v7020 = vld [vmem:[#allocation8 + $0xd20] sm:$0xff]
      %v7021 = vld [vmem:[#allocation8 + $0xd28] sm:$0xff]
      %v7022 = vld [vmem:[#allocation8 + $0xd30] sm:$0xff]
      %v7023 = vld [vmem:[#allocation8 + $0xd38] sm:$0xff]
      %v7024 = vld [vmem:[#allocation8 + $0xd40] sm:$0xff]
      %v7025 = vld [vmem:[#allocation8 + $0xd48] sm:$0xff]
      %v7026 = vld [vmem:[#allocation8 + $0xd50] sm:$0xff]
      %v7027 = vld [vmem:[#allocation8 + $0xd58] sm:$0xff]
      %v7028 = vld [vmem:[#allocation8 + $0xd60] sm:$0xff]
      %v7029 = vld [vmem:[#allocation8 + $0xd68] sm:$0xff]
      %v7030 = vld [vmem:[#allocation8 + $0xd70] sm:$0xff]
      %v7031 = vld [vmem:[#allocation8 + $0xd78] sm:$0xff]
      %v7032 = vld [vmem:[#allocation8 + $0xd80] sm:$0xff]
      %v7033 = vld [vmem:[#allocation8 + $0xd88] sm:$0xff]
      %v7034 = vld [vmem:[#allocation8 + $0xd90] sm:$0xff]
      %v7035 = vld [vmem:[#allocation8 + $0xd98] sm:$0xff]
      %v7036 = vld [vmem:[#allocation8 + $0xda0] sm:$0xff]
      %v7037 = vld [vmem:[#allocation8 + $0xda8] sm:$0xff]
      %v7038 = vld [vmem:[#allocation8 + $0xdb0] sm:$0xff]
      %v7039 = vld [vmem:[#allocation8 + $0xdb8] sm:$0xff]
      %v7040 = vld [vmem:[#allocation8 + $0xdc0] sm:$0xff]
      %v7041 = vld [vmem:[#allocation8 + $0xdc8] sm:$0xff]
      %v7042 = vld [vmem:[#allocation8 + $0xdd0] sm:$0xff]
      %v7043 = vld [vmem:[#allocation8 + $0xdd8] sm:$0xff]
      %v7044 = vld [vmem:[#allocation8 + $0xde0] sm:$0xff]
      %v7045 = vld [vmem:[#allocation8 + $0xde8] sm:$0xff]
      %v7046 = vld [vmem:[#allocation8 + $0xdf0] sm:$0xff]
      %v7047 = vld [vmem:[#allocation8 + $0xdf8] sm:$0xff]
      %v7048 = vld [vmem:[#allocation8 + $0xe00] sm:$0xff]
      %v7049 = vld [vmem:[#allocation8 + $0xe08] sm:$0xff]
      %v7050 = vld [vmem:[#allocation8 + $0xe10] sm:$0xff]
      %v7051 = vld [vmem:[#allocation8 + $0xe18] sm:$0xff]
      %v7052 = vld [vmem:[#allocation8 + $0xe20] sm:$0xff]
      %v7053 = vld [vmem:[#allocation8 + $0xe28] sm:$0xff]
      %v7054 = vld [vmem:[#allocation8 + $0xe30] sm:$0xff]
      %v7055 = vld [vmem:[#allocation8 + $0xe38] sm:$0xff]
      %v7056 = vld [vmem:[#allocation8 + $0xe40] sm:$0xff]
      %v7057 = vld [vmem:[#allocation8 + $0xe48] sm:$0xff]
      %v7058 = vld [vmem:[#allocation8 + $0xe50] sm:$0xff]
      %v7059 = vld [vmem:[#allocation8 + $0xe58] sm:$0xff]
      %v7060 = vld [vmem:[#allocation8 + $0xe60] sm:$0xff]
      %v7061 = vld [vmem:[#allocation8 + $0xe68] sm:$0xff]
      %v7062 = vld [vmem:[#allocation8 + $0xe70] sm:$0xff]
      %v7063 = vld [vmem:[#allocation8 + $0xe78] sm:$0xff]
      %v7064 = vld [vmem:[#allocation8 + $0xe80] sm:$0xff]
      %v7065 = vld [vmem:[#allocation8 + $0xe88] sm:$0xff]
      %v7066 = vld [vmem:[#allocation8 + $0xe90] sm:$0xff]
      %v7067 = vld [vmem:[#allocation8 + $0xe98] sm:$0xff]
      %v7068 = vld [vmem:[#allocation8 + $0xea0] sm:$0xff]
      %v7069 = vld [vmem:[#allocation8 + $0xea8] sm:$0xff]
      %v7070 = vld [vmem:[#allocation8 + $0xeb0] sm:$0xff]
      %v7071 = vld [vmem:[#allocation8 + $0xeb8] sm:$0xff]
      %v7072 = vld [vmem:[#allocation8 + $0xec0] sm:$0xff]
      %v7073 = vld [vmem:[#allocation8 + $0xec8] sm:$0xff]
      %v7074 = vld [vmem:[#allocation8 + $0xed0] sm:$0xff]
      %v7075 = vld [vmem:[#allocation8 + $0xed8] sm:$0xff]
      %v7076 = vld [vmem:[#allocation8 + $0xee0] sm:$0xff]
      %v7077 = vld [vmem:[#allocation8 + $0xee8] sm:$0xff]
      %v7078 = vld [vmem:[#allocation8 + $0xef0] sm:$0xff]
      %v7079 = vld [vmem:[#allocation8 + $0xef8] sm:$0xff]
      %v7080 = vld [vmem:[#allocation8 + $0xf00] sm:$0xff]
      %v7081 = vld [vmem:[#allocation8 + $0xf08] sm:$0xff]
      %v7082 = vld [vmem:[#allocation8 + $0xf10] sm:$0xff]
      %v7083 = vld [vmem:[#allocation8 + $0xf18] sm:$0xff]
      %v7084 = vld [vmem:[#allocation8 + $0xf20] sm:$0xff]
      %v7085 = vld [vmem:[#allocation8 + $0xf28] sm:$0xff]
      %v7086 = vld [vmem:[#allocation8 + $0xf30] sm:$0xff]
      %v7087 = vld [vmem:[#allocation8 + $0xf38] sm:$0xff]
      %v7088 = vld [vmem:[#allocation8 + $0xf40] sm:$0xff]
      %v7089 = vld [vmem:[#allocation8 + $0xf48] sm:$0xff]
      %v7090 = vld [vmem:[#allocation8 + $0xf50] sm:$0xff]
      %v7091 = vld [vmem:[#allocation8 + $0xf58] sm:$0xff]
      %v7092 = vld [vmem:[#allocation8 + $0xf60] sm:$0xff]
      %v7093 = vld [vmem:[#allocation8 + $0xf68] sm:$0xff]
      %v7094 = vld [vmem:[#allocation8 + $0xf70] sm:$0xff]
      %v7095 = vld [vmem:[#allocation8 + $0xf78] sm:$0xff]
      %v7096 = vld [vmem:[#allocation8 + $0xf80] sm:$0xff]
      %v7097 = vld [vmem:[#allocation8 + $0xf88] sm:$0xff]
      %v7098 = vld [vmem:[#allocation8 + $0xf90] sm:$0xff]
      %v7099 = vld [vmem:[#allocation8 + $0xf98] sm:$0xff]
      %v7100 = vld [vmem:[#allocation8 + $0xfa0] sm:$0xff]
      %v7101 = vld [vmem:[#allocation8 + $0xfa8] sm:$0xff]
      %v7102 = vld [vmem:[#allocation8 + $0xfb0] sm:$0xff]
      %v7103 = vld [vmem:[#allocation8 + $0xfb8] sm:$0xff]
      %v7104 = vld [vmem:[#allocation8 + $0xfc0] sm:$0xff]
      %v7105 = vld [vmem:[#allocation8 + $0xfc8] sm:$0xff]
      %v7106 = vld [vmem:[#allocation8 + $0xfd0] sm:$0xff]
      %v7107 = vld [vmem:[#allocation8 + $0xfd8] sm:$0xff]
      %v7108 = vld [vmem:[#allocation8 + $0xfe0] sm:$0xff]
      %v7109 = vld [vmem:[#allocation8 + $0xfe8] sm:$0xff]
      %v7110 = vld [vmem:[#allocation8 + $0xff0] sm:$0xff]
      %v7111 = vld [vmem:[#allocation8 + $0xff8] sm:$0xff]
      %v7112 = vld [vmem:[#allocation8 + $0x1000] sm:$0xff]
      %v7113 = vld [vmem:[#allocation8 + $0x1008] sm:$0xff]
      %v7114 = vld [vmem:[#allocation8 + $0x1010] sm:$0xff]
      %v7115 = vld [vmem:[#allocation8 + $0x1018] sm:$0xff]
      %v7116 = vld [vmem:[#allocation8 + $0x1020] sm:$0xff]
      %v7117 = vld [vmem:[#allocation8 + $0x1028] sm:$0xff]
      %v7118 = vld [vmem:[#allocation8 + $0x1030] sm:$0xff]
      %v7119 = vld [vmem:[#allocation8 + $0x1038] sm:$0xff]
      %v7120 = vld [vmem:[#allocation8 + $0x1040] sm:$0xff]
      %v7121 = vld [vmem:[#allocation8 + $0x1048] sm:$0xff]
      %v7122 = vld [vmem:[#allocation8 + $0x1050] sm:$0xff]
      %v7123 = vld [vmem:[#allocation8 + $0x1058] sm:$0xff]
      %v7124 = vld [vmem:[#allocation8 + $0x1060] sm:$0xff]
      %v7125 = vld [vmem:[#allocation8 + $0x1068] sm:$0xff]
      %v7126 = vld [vmem:[#allocation8 + $0x1070] sm:$0xff]
      %v7127 = vld [vmem:[#allocation8 + $0x1078] sm:$0xff]
      %v7128 = vld [vmem:[#allocation8 + $0x1080] sm:$0xff]
      %v7129 = vld [vmem:[#allocation8 + $0x1088] sm:$0xff]
      %v7130 = vld [vmem:[#allocation8 + $0x1090] sm:$0xff]
      %v7131 = vld [vmem:[#allocation8 + $0x1098] sm:$0xff]
      %v7132 = vld [vmem:[#allocation8 + $0x10a0] sm:$0xff]
      %v7133 = vld [vmem:[#allocation8 + $0x10a8] sm:$0xff]
      %v7134 = vld [vmem:[#allocation8 + $0x10b0] sm:$0xff]
      %v7135 = vld [vmem:[#allocation8 + $0x10b8] sm:$0xff]
      %v7136 = vld [vmem:[#allocation8 + $0x10c0] sm:$0xff]
      %v7137 = vld [vmem:[#allocation8 + $0x10c8] sm:$0xff]
      %v7138 = vld [vmem:[#allocation8 + $0x10d0] sm:$0xff]
      %v7139 = vld [vmem:[#allocation8 + $0x10d8] sm:$0xff]
      %v7140 = vld [vmem:[#allocation8 + $0x10e0] sm:$0xff]
      %v7141 = vld [vmem:[#allocation8 + $0x10e8] sm:$0xff]
      %v7142 = vld [vmem:[#allocation8 + $0x10f0] sm:$0xff]
      %v7143 = vld [vmem:[#allocation8 + $0x10f8] sm:$0xff]
      %v7144 = vld [vmem:[#allocation8 + $0x1100] sm:$0xff]
      %v7145 = vld [vmem:[#allocation8 + $0x1108] sm:$0xff]
      %v7146 = vld [vmem:[#allocation8 + $0x1110] sm:$0xff]
      %v7147 = vld [vmem:[#allocation8 + $0x1118] sm:$0xff]
      %v7148 = vld [vmem:[#allocation8 + $0x1120] sm:$0xff]
      %v7149 = vld [vmem:[#allocation8 + $0x1128] sm:$0xff]
      %v7150 = vld [vmem:[#allocation8 + $0x1130] sm:$0xff]
      %v7151 = vld [vmem:[#allocation8 + $0x1138] sm:$0xff]
      %v7152 = vld [vmem:[#allocation8 + $0x1140] sm:$0xff]
      %v7153 = vld [vmem:[#allocation8 + $0x1148] sm:$0xff]
      %v7154 = vld [vmem:[#allocation8 + $0x1150] sm:$0xff]
      %v7155 = vld [vmem:[#allocation8 + $0x1158] sm:$0xff]
      %v7156 = vld [vmem:[#allocation8 + $0x1160] sm:$0xff]
      %v7157 = vld [vmem:[#allocation8 + $0x1168] sm:$0xff]
      %v7158 = vld [vmem:[#allocation8 + $0x1170] sm:$0xff]
      %v7159 = vld [vmem:[#allocation8 + $0x1178] sm:$0xff]
      %v7160 = vld [vmem:[#allocation8 + $0x1180] sm:$0xff]
      %v7161 = vld [vmem:[#allocation8 + $0x1188] sm:$0xff]
      %v7162 = vld [vmem:[#allocation8 + $0x1190] sm:$0xff]
      %v7163 = vld [vmem:[#allocation8 + $0x1198] sm:$0xff]
      %v7164 = vld [vmem:[#allocation8 + $0x11a0] sm:$0xff]
      %v7165 = vld [vmem:[#allocation8 + $0x11a8] sm:$0xff]
      %v7166 = vld [vmem:[#allocation8 + $0x11b0] sm:$0xff]
      %v7167 = vld [vmem:[#allocation8 + $0x11b8] sm:$0xff]
      %v7168 = vld [vmem:[#allocation8 + $0x11c0] sm:$0xff]
      %v7169 = vld [vmem:[#allocation8 + $0x11c8] sm:$0xff]
      %v7170 = vld [vmem:[#allocation8 + $0x11d0] sm:$0xff]
      %v7171 = vld [vmem:[#allocation8 + $0x11d8] sm:$0xff]
      %v7172 = vld [vmem:[#allocation8 + $0x11e0] sm:$0xff]
      %v7173 = vld [vmem:[#allocation8 + $0x11e8] sm:$0xff]
      %v7174 = vld [vmem:[#allocation8 + $0x11f0] sm:$0xff]
      %v7175 = vld [vmem:[#allocation8 + $0x11f8] sm:$0xff]
      %v7176 = vld [vmem:[%s7] sm:$0xff]
      %v7177 = vld [vmem:[%s7 + $0x8] sm:$0xff]
      %v7178 = vld [vmem:[%s7 + $0x10] sm:$0xff]
      %v7179 = vld [vmem:[%s7 + $0x18] sm:$0xff]
      %v7180 = vld [vmem:[%s7 + $0x20] sm:$0xff]
      %v7181 = vld [vmem:[%s7 + $0x28] sm:$0xff]
      %v7182 = vld [vmem:[%s7 + $0x30] sm:$0xff]
      %v7183 = vld [vmem:[%s7 + $0x38] sm:$0xff]
      %v7184 = vld [vmem:[%s7 + $0x40] sm:$0xff]
      %v7185 = vld [vmem:[%s7 + $0x48] sm:$0xff]
      %v7186 = vld [vmem:[%s7 + $0x50] sm:$0xff]
      %v7187 = vld [vmem:[%s7 + $0x58] sm:$0xff]
      %v7188 = vld [vmem:[%s7 + $0x60] sm:$0xff]
      %v7189 = vld [vmem:[%s7 + $0x68] sm:$0xff]
      %v7190 = vld [vmem:[%s7 + $0x70] sm:$0xff]
      %v7191 = vld [vmem:[%s7 + $0x78] sm:$0xff]
      %v7192 = vld [vmem:[%s7 + $0x80] sm:$0xff]
      %v7193 = vld [vmem:[%s7 + $0x88] sm:$0xff]
      %v7194 = vld [vmem:[%s7 + $0x90] sm:$0xff]
      %v7195 = vld [vmem:[%s7 + $0x98] sm:$0xff]
      %v7196 = vld [vmem:[%s7 + $0xa0] sm:$0xff]
      %v7197 = vld [vmem:[%s7 + $0xa8] sm:$0xff]
      %v7198 = vld [vmem:[%s7 + $0xb0] sm:$0xff]
      %v7199 = vld [vmem:[%s7 + $0xb8] sm:$0xff]
      %v7200 = vld [vmem:[%s7 + $0xc0] sm:$0xff]
      %v7201 = vld [vmem:[%s7 + $0xc8] sm:$0xff]
      %v7202 = vld [vmem:[%s7 + $0xd0] sm:$0xff]
      %v7203 = vld [vmem:[%s7 + $0xd8] sm:$0xff]
      %v7204 = vld [vmem:[%s7 + $0xe0] sm:$0xff]
      %v7205 = vld [vmem:[%s7 + $0xe8] sm:$0xff]
      %v7206 = vld [vmem:[%s7 + $0xf0] sm:$0xff]
      %v7207 = vld [vmem:[%s7 + $0xf8] sm:$0xff]
      %v7208 = vld [vmem:[%s7 + $0x100] sm:$0xff]
      %v7209 = vld [vmem:[%s7 + $0x108] sm:$0xff]
      %v7210 = vld [vmem:[%s7 + $0x110] sm:$0xff]
      %v7211 = vld [vmem:[%s7 + $0x118] sm:$0xff]
      %v7212 = vld [vmem:[%s7 + $0x120] sm:$0xff]
      %v7213 = vld [vmem:[%s7 + $0x128] sm:$0xff]
      %v7214 = vld [vmem:[%s7 + $0x130] sm:$0xff]
      %v7215 = vld [vmem:[%s7 + $0x138] sm:$0xff]
      %v7216 = vld [vmem:[%s7 + $0x140] sm:$0xff]
      %v7217 = vld [vmem:[%s7 + $0x148] sm:$0xff]
      %v7218 = vld [vmem:[%s7 + $0x150] sm:$0xff]
      %v7219 = vld [vmem:[%s7 + $0x158] sm:$0xff]
      %v7220 = vld [vmem:[%s7 + $0x160] sm:$0xff]
      %v7221 = vld [vmem:[%s7 + $0x168] sm:$0xff]
      %v7222 = vld [vmem:[%s7 + $0x170] sm:$0xff]
      %v7223 = vld [vmem:[%s7 + $0x178] sm:$0xff]
      %v7224 = vld [vmem:[%s7 + $0x180] sm:$0xff]
      %v7225 = vld [vmem:[%s7 + $0x188] sm:$0xff]
      %v7226 = vld [vmem:[%s7 + $0x190] sm:$0xff]
      %v7227 = vld [vmem:[%s7 + $0x198] sm:$0xff]
      %v7228 = vld [vmem:[%s7 + $0x1a0] sm:$0xff]
      %v7229 = vld [vmem:[%s7 + $0x1a8] sm:$0xff]
      %v7230 = vld [vmem:[%s7 + $0x1b0] sm:$0xff]
      %v7231 = vld [vmem:[%s7 + $0x1b8] sm:$0xff]
      %v7232 = vld [vmem:[%s7 + $0x1c0] sm:$0xff]
      %v7233 = vld [vmem:[%s7 + $0x1c8] sm:$0xff]
      %v7234 = vld [vmem:[%s7 + $0x1d0] sm:$0xff]
      %v7235 = vld [vmem:[%s7 + $0x1d8] sm:$0xff]
      %v7236 = vld [vmem:[%s7 + $0x1e0] sm:$0xff]
      %v7237 = vld [vmem:[%s7 + $0x1e8] sm:$0xff]
      %v7238 = vld [vmem:[%s7 + $0x1f0] sm:$0xff]
      %v7239 = vld [vmem:[%s7 + $0x1f8] sm:$0xff]
      %v7240 = vld [vmem:[%s7 + $0x200] sm:$0xff]
      %v7241 = vld [vmem:[%s7 + $0x208] sm:$0xff]
      %v7242 = vld [vmem:[%s7 + $0x210] sm:$0xff]
      %v7243 = vld [vmem:[%s7 + $0x218] sm:$0xff]
      %v7244 = vld [vmem:[%s7 + $0x220] sm:$0xff]
      %v7245 = vld [vmem:[%s7 + $0x228] sm:$0xff]
      %v7246 = vld [vmem:[%s7 + $0x230] sm:$0xff]
      %v7247 = vld [vmem:[%s7 + $0x238] sm:$0xff]
      %v7248 = vld [vmem:[%s7 + $0x240] sm:$0xff]
      %v7249 = vld [vmem:[%s7 + $0x248] sm:$0xff]
      %v7250 = vld [vmem:[%s7 + $0x250] sm:$0xff]
      %v7251 = vld [vmem:[%s7 + $0x258] sm:$0xff]
      %v7252 = vld [vmem:[%s7 + $0x260] sm:$0xff]
      %v7253 = vld [vmem:[%s7 + $0x268] sm:$0xff]
      %v7254 = vld [vmem:[%s7 + $0x270] sm:$0xff]
      %v7255 = vld [vmem:[%s7 + $0x278] sm:$0xff]
      %v7256 = vld [vmem:[%s7 + $0x280] sm:$0xff]
      %v7257 = vld [vmem:[%s7 + $0x288] sm:$0xff]
      %v7258 = vld [vmem:[%s7 + $0x290] sm:$0xff]
      %v7259 = vld [vmem:[%s7 + $0x298] sm:$0xff]
      %v7260 = vld [vmem:[%s7 + $0x2a0] sm:$0xff]
      %v7261 = vld [vmem:[%s7 + $0x2a8] sm:$0xff]
      %v7262 = vld [vmem:[%s7 + $0x2b0] sm:$0xff]
      %v7263 = vld [vmem:[%s7 + $0x2b8] sm:$0xff]
      %v7264 = vld [vmem:[%s7 + $0x2c0] sm:$0xff]
      %v7265 = vld [vmem:[%s7 + $0x2c8] sm:$0xff]
      %v7266 = vld [vmem:[%s7 + $0x2d0] sm:$0xff]
      %v7267 = vld [vmem:[%s7 + $0x2d8] sm:$0xff]
      %v7268 = vld [vmem:[%s7 + $0x2e0] sm:$0xff]
      %v7269 = vld [vmem:[%s7 + $0x2e8] sm:$0xff]
      %v7270 = vld [vmem:[%s7 + $0x2f0] sm:$0xff]
      %v7271 = vld [vmem:[%s7 + $0x2f8] sm:$0xff]
      %v7272 = vld [vmem:[%s7 + $0x300] sm:$0xff]
      %v7273 = vld [vmem:[%s7 + $0x308] sm:$0xff]
      %v7274 = vld [vmem:[%s7 + $0x310] sm:$0xff]
      %v7275 = vld [vmem:[%s7 + $0x318] sm:$0xff]
      %v7276 = vld [vmem:[%s7 + $0x320] sm:$0xff]
      %v7277 = vld [vmem:[%s7 + $0x328] sm:$0xff]
      %v7278 = vld [vmem:[%s7 + $0x330] sm:$0xff]
      %v7279 = vld [vmem:[%s7 + $0x338] sm:$0xff]
      %v7280 = vld [vmem:[%s7 + $0x340] sm:$0xff]
      %v7281 = vld [vmem:[%s7 + $0x348] sm:$0xff]
      %v7282 = vld [vmem:[%s7 + $0x350] sm:$0xff]
      %v7283 = vld [vmem:[%s7 + $0x358] sm:$0xff]
      %v7284 = vld [vmem:[%s7 + $0x360] sm:$0xff]
      %v7285 = vld [vmem:[%s7 + $0x368] sm:$0xff]
      %v7286 = vld [vmem:[%s7 + $0x370] sm:$0xff]
      %v7287 = vld [vmem:[%s7 + $0x378] sm:$0xff]
      %v7288 = vld [vmem:[%s7 + $0x380] sm:$0xff]
      %v7289 = vld [vmem:[%s7 + $0x388] sm:$0xff]
      %v7290 = vld [vmem:[%s7 + $0x390] sm:$0xff]
      %v7291 = vld [vmem:[%s7 + $0x398] sm:$0xff]
      %v7292 = vld [vmem:[%s7 + $0x3a0] sm:$0xff]
      %v7293 = vld [vmem:[%s7 + $0x3a8] sm:$0xff]
      %v7294 = vld [vmem:[%s7 + $0x3b0] sm:$0xff]
      %v7295 = vld [vmem:[%s7 + $0x3b8] sm:$0xff]
      %v7296 = vld [vmem:[%s7 + $0x3c0] sm:$0xff]
      %v7297 = vld [vmem:[%s7 + $0x3c8] sm:$0xff]
      %v7298 = vld [vmem:[%s7 + $0x3d0] sm:$0xff]
      %v7299 = vld [vmem:[%s7 + $0x3d8] sm:$0xff]
      %v7300 = vld [vmem:[%s7 + $0x3e0] sm:$0xff]
      %v7301 = vld [vmem:[%s7 + $0x3e8] sm:$0xff]
      %v7302 = vld [vmem:[%s7 + $0x3f0] sm:$0xff]
      %v7303 = vld [vmem:[%s7 + $0x3f8] sm:$0xff]
      %v7304 = vld [vmem:[%s7 + $0x400] sm:$0xff]
      %v7305 = vld [vmem:[%s7 + $0x408] sm:$0xff]
      %v7306 = vld [vmem:[%s7 + $0x410] sm:$0xff]
      %v7307 = vld [vmem:[%s7 + $0x418] sm:$0xff]
      %v7308 = vld [vmem:[%s7 + $0x420] sm:$0xff]
      %v7309 = vld [vmem:[%s7 + $0x428] sm:$0xff]
      %v7310 = vld [vmem:[%s7 + $0x430] sm:$0xff]
      %v7311 = vld [vmem:[%s7 + $0x438] sm:$0xff]
      %v7312 = vld [vmem:[%s7 + $0x440] sm:$0xff]
      %v7313 = vld [vmem:[%s7 + $0x448] sm:$0xff]
      %v7314 = vld [vmem:[%s7 + $0x450] sm:$0xff]
      %v7315 = vld [vmem:[%s7 + $0x458] sm:$0xff]
      %v7316 = vld [vmem:[%s7 + $0x460] sm:$0xff]
      %v7317 = vld [vmem:[%s7 + $0x468] sm:$0xff]
      %v7318 = vld [vmem:[%s7 + $0x470] sm:$0xff]
      %v7319 = vld [vmem:[%s7 + $0x478] sm:$0xff]
      %v7320 = vld [vmem:[%s7 + $0x480] sm:$0xff]
      %v7321 = vld [vmem:[%s7 + $0x488] sm:$0xff]
      %v7322 = vld [vmem:[%s7 + $0x490] sm:$0xff]
      %v7323 = vld [vmem:[%s7 + $0x498] sm:$0xff]
      %v7324 = vld [vmem:[%s7 + $0x4a0] sm:$0xff]
      %v7325 = vld [vmem:[%s7 + $0x4a8] sm:$0xff]
      %v7326 = vld [vmem:[%s7 + $0x4b0] sm:$0xff]
      %v7327 = vld [vmem:[%s7 + $0x4b8] sm:$0xff]
      %v7328 = vld [vmem:[%s7 + $0x4c0] sm:$0xff]
      %v7329 = vld [vmem:[%s7 + $0x4c8] sm:$0xff]
      %v7330 = vld [vmem:[%s7 + $0x4d0] sm:$0xff]
      %v7331 = vld [vmem:[%s7 + $0x4d8] sm:$0xff]
      %v7332 = vld [vmem:[%s7 + $0x4e0] sm:$0xff]
      %v7333 = vld [vmem:[%s7 + $0x4e8] sm:$0xff]
      %v7334 = vld [vmem:[%s7 + $0x4f0] sm:$0xff]
      %v7335 = vld [vmem:[%s7 + $0x4f8] sm:$0xff]
      %v7336 = vld [vmem:[%s7 + $0x500] sm:$0xff]
      %v7337 = vld [vmem:[%s7 + $0x508] sm:$0xff]
      %v7338 = vld [vmem:[%s7 + $0x510] sm:$0xff]
      %v7339 = vld [vmem:[%s7 + $0x518] sm:$0xff]
      %v7340 = vld [vmem:[%s7 + $0x520] sm:$0xff]
      %v7341 = vld [vmem:[%s7 + $0x528] sm:$0xff]
      %v7342 = vld [vmem:[%s7 + $0x530] sm:$0xff]
      %v7343 = vld [vmem:[%s7 + $0x538] sm:$0xff]
      %v7344 = vld [vmem:[%s7 + $0x540] sm:$0xff]
      %v7345 = vld [vmem:[%s7 + $0x548] sm:$0xff]
      %v7346 = vld [vmem:[%s7 + $0x550] sm:$0xff]
      %v7347 = vld [vmem:[%s7 + $0x558] sm:$0xff]
      %v7348 = vld [vmem:[%s7 + $0x560] sm:$0xff]
      %v7349 = vld [vmem:[%s7 + $0x568] sm:$0xff]
      %v7350 = vld [vmem:[%s7 + $0x570] sm:$0xff]
      %v7351 = vld [vmem:[%s7 + $0x578] sm:$0xff]
      %v7352 = vld [vmem:[%s7 + $0x580] sm:$0xff]
      %v7353 = vld [vmem:[%s7 + $0x588] sm:$0xff]
      %v7354 = vld [vmem:[%s7 + $0x590] sm:$0xff]
      %v7355 = vld [vmem:[%s7 + $0x598] sm:$0xff]
      %v7356 = vld [vmem:[%s7 + $0x5a0] sm:$0xff]
      %v7357 = vld [vmem:[%s7 + $0x5a8] sm:$0xff]
      %v7358 = vld [vmem:[%s7 + $0x5b0] sm:$0xff]
      %v7359 = vld [vmem:[%s7 + $0x5b8] sm:$0xff]
      %v7360 = vld [vmem:[%s7 + $0x5c0] sm:$0xff]
      %v7361 = vld [vmem:[%s7 + $0x5c8] sm:$0xff]
      %v7362 = vld [vmem:[%s7 + $0x5d0] sm:$0xff]
      %v7363 = vld [vmem:[%s7 + $0x5d8] sm:$0xff]
      %v7364 = vld [vmem:[%s7 + $0x5e0] sm:$0xff]
      %v7365 = vld [vmem:[%s7 + $0x5e8] sm:$0xff]
      %v7366 = vld [vmem:[%s7 + $0x5f0] sm:$0xff]
      %v7367 = vld [vmem:[%s7 + $0x5f8] sm:$0xff]
      %v7368 = vld [vmem:[%s7 + $0x600] sm:$0xff]
      %v7369 = vld [vmem:[%s7 + $0x608] sm:$0xff]
      %v7370 = vld [vmem:[%s7 + $0x610] sm:$0xff]
      %v7371 = vld [vmem:[%s7 + $0x618] sm:$0xff]
      %v7372 = vld [vmem:[%s7 + $0x620] sm:$0xff]
      %v7373 = vld [vmem:[%s7 + $0x628] sm:$0xff]
      %v7374 = vld [vmem:[%s7 + $0x630] sm:$0xff]
      %v7375 = vld [vmem:[%s7 + $0x638] sm:$0xff]
      %v7376 = vld [vmem:[%s7 + $0x640] sm:$0xff]
      %v7377 = vld [vmem:[%s7 + $0x648] sm:$0xff]
      %v7378 = vld [vmem:[%s7 + $0x650] sm:$0xff]
      %v7379 = vld [vmem:[%s7 + $0x658] sm:$0xff]
      %v7380 = vld [vmem:[%s7 + $0x660] sm:$0xff]
      %v7381 = vld [vmem:[%s7 + $0x668] sm:$0xff]
      %v7382 = vld [vmem:[%s7 + $0x670] sm:$0xff]
      %v7383 = vld [vmem:[%s7 + $0x678] sm:$0xff]
      %v7384 = vld [vmem:[%s7 + $0x680] sm:$0xff]
      %v7385 = vld [vmem:[%s7 + $0x688] sm:$0xff]
      %v7386 = vld [vmem:[%s7 + $0x690] sm:$0xff]
      %v7387 = vld [vmem:[%s7 + $0x698] sm:$0xff]
      %v7388 = vld [vmem:[%s7 + $0x6a0] sm:$0xff]
      %v7389 = vld [vmem:[%s7 + $0x6a8] sm:$0xff]
      %v7390 = vld [vmem:[%s7 + $0x6b0] sm:$0xff]
      %v7391 = vld [vmem:[%s7 + $0x6b8] sm:$0xff]
      %v7392 = vld [vmem:[%s7 + $0x6c0] sm:$0xff]
      %v7393 = vld [vmem:[%s7 + $0x6c8] sm:$0xff]
      %v7394 = vld [vmem:[%s7 + $0x6d0] sm:$0xff]
      %v7395 = vld [vmem:[%s7 + $0x6d8] sm:$0xff]
      %v7396 = vld [vmem:[%s7 + $0x6e0] sm:$0xff]
      %v7397 = vld [vmem:[%s7 + $0x6e8] sm:$0xff]
      %v7398 = vld [vmem:[%s7 + $0x6f0] sm:$0xff]
      %v7399 = vld [vmem:[%s7 + $0x6f8] sm:$0xff]
      %v7400 = vld [vmem:[%s7 + $0x700] sm:$0xff]
      %v7401 = vld [vmem:[%s7 + $0x708] sm:$0xff]
      %v7402 = vld [vmem:[%s7 + $0x710] sm:$0xff]
      %v7403 = vld [vmem:[%s7 + $0x718] sm:$0xff]
      %v7404 = vld [vmem:[%s7 + $0x720] sm:$0xff]
      %v7405 = vld [vmem:[%s7 + $0x728] sm:$0xff]
      %v7406 = vld [vmem:[%s7 + $0x730] sm:$0xff]
      %v7407 = vld [vmem:[%s7 + $0x738] sm:$0xff]
      %v7408 = vld [vmem:[%s7 + $0x740] sm:$0xff]
      %v7409 = vld [vmem:[%s7 + $0x748] sm:$0xff]
      %v7410 = vld [vmem:[%s7 + $0x750] sm:$0xff]
      %v7411 = vld [vmem:[%s7 + $0x758] sm:$0xff]
      %v7412 = vld [vmem:[%s7 + $0x760] sm:$0xff]
      %v7413 = vld [vmem:[%s7 + $0x768] sm:$0xff]
      %v7414 = vld [vmem:[%s7 + $0x770] sm:$0xff]
      %v7415 = vld [vmem:[%s7 + $0x778] sm:$0xff]
      %v7416 = vld [vmem:[%s7 + $0x780] sm:$0xff]
      %v7417 = vld [vmem:[%s7 + $0x788] sm:$0xff]
      %v7418 = vld [vmem:[%s7 + $0x790] sm:$0xff]
      %v7419 = vld [vmem:[%s7 + $0x798] sm:$0xff]
      %v7420 = vld [vmem:[%s7 + $0x7a0] sm:$0xff]
      %v7421 = vld [vmem:[%s7 + $0x7a8] sm:$0xff]
      %v7422 = vld [vmem:[%s7 + $0x7b0] sm:$0xff]
      %v7423 = vld [vmem:[%s7 + $0x7b8] sm:$0xff]
      %v7424 = vld [vmem:[%s7 + $0x7c0] sm:$0xff]
      %v7425 = vld [vmem:[%s7 + $0x7c8] sm:$0xff]
      %v7426 = vld [vmem:[%s7 + $0x7d0] sm:$0xff]
      %v7427 = vld [vmem:[%s7 + $0x7d8] sm:$0xff]
      %v7428 = vld [vmem:[%s7 + $0x7e0] sm:$0xff]
      %v7429 = vld [vmem:[%s7 + $0x7e8] sm:$0xff]
      %v7430 = vld [vmem:[%s7 + $0x7f0] sm:$0xff]
      %v7431 = vld [vmem:[%s7 + $0x7f8] sm:$0xff]
      %v7432 = vld [vmem:[%s7 + $0x800] sm:$0xff]
      %v7433 = vld [vmem:[%s7 + $0x808] sm:$0xff]
      %v7434 = vld [vmem:[%s7 + $0x810] sm:$0xff]
      %v7435 = vld [vmem:[%s7 + $0x818] sm:$0xff]
      %v7436 = vld [vmem:[%s7 + $0x820] sm:$0xff]
      %v7437 = vld [vmem:[%s7 + $0x828] sm:$0xff]
      %v7438 = vld [vmem:[%s7 + $0x830] sm:$0xff]
      %v7439 = vld [vmem:[%s7 + $0x838] sm:$0xff]
      %v7440 = vld [vmem:[%s7 + $0x840] sm:$0xff]
      %v7441 = vld [vmem:[%s7 + $0x848] sm:$0xff]
      %v7442 = vld [vmem:[%s7 + $0x850] sm:$0xff]
      %v7443 = vld [vmem:[%s7 + $0x858] sm:$0xff]
      %v7444 = vld [vmem:[%s7 + $0x860] sm:$0xff]
      %v7445 = vld [vmem:[%s7 + $0x868] sm:$0xff]
      %v7446 = vld [vmem:[%s7 + $0x870] sm:$0xff]
      %v7447 = vld [vmem:[%s7 + $0x878] sm:$0xff]
      %v7448 = vld [vmem:[%s7 + $0x880] sm:$0xff]
      %v7449 = vld [vmem:[%s7 + $0x888] sm:$0xff]
      %v7450 = vld [vmem:[%s7 + $0x890] sm:$0xff]
      %v7451 = vld [vmem:[%s7 + $0x898] sm:$0xff]
      %v7452 = vld [vmem:[%s7 + $0x8a0] sm:$0xff]
      %v7453 = vld [vmem:[%s7 + $0x8a8] sm:$0xff]
      %v7454 = vld [vmem:[%s7 + $0x8b0] sm:$0xff]
      %v7455 = vld [vmem:[%s7 + $0x8b8] sm:$0xff]
      %v7456 = vld [vmem:[%s7 + $0x8c0] sm:$0xff]
      %v7457 = vld [vmem:[%s7 + $0x8c8] sm:$0xff]
      %v7458 = vld [vmem:[%s7 + $0x8d0] sm:$0xff]
      %v7459 = vld [vmem:[%s7 + $0x8d8] sm:$0xff]
      %v7460 = vld [vmem:[%s7 + $0x8e0] sm:$0xff]
      %v7461 = vld [vmem:[%s7 + $0x8e8] sm:$0xff]
      %v7462 = vld [vmem:[%s7 + $0x8f0] sm:$0xff]
      %v7463 = vld [vmem:[%s7 + $0x8f8] sm:$0xff]
      %v7464 = vld [vmem:[%s8] sm:$0x1]
      %v7466 = vlaneseq
      %v7467 = vshrl.u32 %v7466, 7
      %v7468 = vsub.s32 0, %v7467
      %v7469 = vrot.slane %v7464, %v7468
      %7471 = vmatprep.subr.mxu0 0.0
      %7472 = vmatpush1.msra.mxu0 %v7191
      %7473 = vmatprep.subr.mxu0 0.0
      %7474 = vmatpush1.msra.mxu0 %v7190
      %7475 = vmatprep.subr.mxu0 0.0
      %7476 = vmatpush1.msra.mxu0 %v7189
      %7477 = vmatprep.subr.mxu0 0.0
      %7478 = vmatpush1.msra.mxu0 %v7188
      %7479 = vmatprep.subr.mxu0 0.0
      %7480 = vmatpush1.msra.mxu0 %v7187
      %7481 = vmatprep.subr.mxu0 0.0
      %7482 = vmatpush1.msra.mxu0 %v7186
      %7483 = vmatprep.subr.mxu0 0.0
      %7484 = vmatpush1.msra.mxu0 %v7185
      %7485 = vmatprep.subr.mxu0 0.0
      %7486 = vmatpush1.msra.mxu0 %v7184
      %7487 = vmatprep.subr.mxu0 0.0
      %7488 = vmatpush1.msra.mxu0 %v7183
      %7489 = vmatprep.subr.mxu0 0.0
      %7490 = vmatpush1.msra.mxu0 %v7182
      %7491 = vmatprep.subr.mxu0 0.0
      %7492 = vmatpush1.msra.mxu0 %v7181
      %7493 = vmatprep.subr.mxu0 0.0
      %7494 = vmatpush1.msra.mxu0 %v7180
      %7495 = vmatprep.subr.mxu0 0.0
      %7496 = vmatpush1.msra.mxu0 %v7179
      %7497 = vmatprep.subr.mxu0 0.0
      %7498 = vmatpush1.msra.mxu0 %v7178
      %7499 = vmatprep.subr.mxu0 0.0
      %7500 = vmatpush1.msra.mxu0 %v7177
      %7501 = vmatprep.subr.mxu0 0.0
      %7502 = vmatpush1.msra.mxu0 %v7176
      %7503 = vmatprep.subr.mxu0 0.0
      %7504 = vmatpush2.msra.mxu0 %v7207
      %7505 = vmatprep.subr.mxu0 0.0
      %7506 = vmatpush2.msra.mxu0 %v7206
      %7507 = vmatprep.subr.mxu0 0.0
      %7508 = vmatpush2.msra.mxu0 %v7205
      %7509 = vmatprep.subr.mxu0 0.0
      %7510 = vmatpush2.msra.mxu0 %v7204
      %7511 = vmatprep.subr.mxu0 0.0
      %7512 = vmatpush2.msra.mxu0 %v7203
      %7513 = vmatprep.subr.mxu0 0.0
      %7514 = vmatpush2.msra.mxu0 %v7202
      %7515 = vmatprep.subr.mxu0 0.0
      %7516 = vmatpush2.msra.mxu0 %v7201
      %7517 = vmatprep.subr.mxu0 0.0
      %7518 = vmatpush2.msra.mxu0 %v7200
      %7519 = vmatprep.subr.mxu0 0.0
      %7520 = vmatpush2.msra.mxu0 %v7199
      %7521 = vmatprep.subr.mxu0 0.0
      %7522 = vmatpush2.msra.mxu0 %v7198
      %7523 = vmatprep.subr.mxu0 0.0
      %7524 = vmatpush2.msra.mxu0 %v7197
      %7525 = vmatprep.subr.mxu0 0.0
      %7526 = vmatpush2.msra.mxu0 %v7196
      %7527 = vmatprep.subr.mxu0 0.0
      %7528 = vmatpush2.msra.mxu0 %v7195
      %7529 = vmatprep.subr.mxu0 0.0
      %7530 = vmatpush2.msra.mxu0 %v7194
      %7531 = vmatprep.subr.mxu0 0.0
      %7532 = vmatpush2.msra.mxu0 %v7193
      %7533 = vmatprep.subr.mxu0 0.0
      %7534 = vmatpush2.msra.mxu0 %v7192
      %7535 = vmatprep.mubr.f32.mxu0 %v6601
      %7536 = vmatmul.mubr.f32.gmra.mxu0 %v6600
      %v7537 = vpop.f32.mrf.mxu0
      %v7538 = vadd.f32 %v7469, %v7537
      %v7539 = vpop.f32.mrf.mxu0
      %7540 = vmatprep.mubr.f32.mxu0 %v6619
      %7541 = vmatmul.mubr.f32.gmra.mxu0 %v6618
      %v7542 = vpop.f32.mrf.mxu0
      %v7543 = vadd.f32 %v7469, %v7542
      %v7544 = vpop.f32.mrf.mxu0
      %7545 = vmatprep.mubr.f32.mxu0 %v6637
      %7546 = vmatmul.mubr.f32.gmra.mxu0 %v6636
      %v7547 = vpop.f32.mrf.mxu0
      %v7548 = vadd.f32 %v7469, %v7547
      %v7549 = vpop.f32.mrf.mxu0
      %7550 = vmatprep.mubr.f32.mxu0 %v6655
      %7551 = vmatmul.mubr.f32.gmra.mxu0 %v6654
      %v7552 = vpop.f32.mrf.mxu0
      %v7553 = vadd.f32 %v7469, %v7552
      %v7554 = vpop.f32.mrf.mxu0
      %7555 = vmatprep.mubr.f32.mxu0 %v6673
      %7556 = vmatmul.mubr.f32.gmra.mxu0 %v6672
      %v7557 = vpop.f32.mrf.mxu0
      %v7558 = vadd.f32 %v7469, %v7557
      %v7559 = vpop.f32.mrf.mxu0
      %7560 = vmatprep.mubr.f32.mxu0 %v6691
      %7561 = vmatmul.mubr.f32.gmra.mxu0 %v6690
      %v7562 = vpop.f32.mrf.mxu0
      %v7563 = vadd.f32 %v7469, %v7562
      %v7564 = vpop.f32.mrf.mxu0
      %7565 = vmatprep.mubr.f32.mxu0 %v6709
      %7566 = vmatmul.mubr.f32.gmra.mxu0 %v6708
      %v7567 = vpop.f32.mrf.mxu0
      %v7568 = vadd.f32 %v7469, %v7567
      %v7569 = vpop.f32.mrf.mxu0
      %7570 = vmatprep.mubr.f32.mxu0 %v6727
      %7571 = vmatmul.mubr.f32.gmra.mxu0 %v6726
      %v7572 = vpop.f32.mrf.mxu0
      %v7573 = vadd.f32 %v7469, %v7572
      %v7574 = vpop.f32.mrf.mxu0
      %7575 = vmatprep.mubr.f32.mxu0 %v6745
      %7576 = vmatmul.mubr.f32.gmra.mxu0 %v6744
      %v7577 = vpop.f32.mrf.mxu0
      %v7578 = vadd.f32 %v7469, %v7577
      %v7579 = vpop.f32.mrf.mxu0
      %7580 = vmatprep.mubr.f32.mxu0 %v6763
      %7581 = vmatmul.mubr.f32.gmra.mxu0 %v6762
      %v7582 = vpop.f32.mrf.mxu0
      %v7583 = vadd.f32 %v7469, %v7582
      %v7584 = vpop.f32.mrf.mxu0
      %7585 = vmatprep.mubr.f32.mxu0 %v6781
      %7586 = vmatmul.mubr.f32.gmra.mxu0 %v6780
      %v7587 = vpop.f32.mrf.mxu0
      %v7588 = vadd.f32 %v7469, %v7587
      %v7589 = vpop.f32.mrf.mxu0
      %7590 = vmatprep.mubr.f32.mxu0 %v6799
      %7591 = vmatmul.mubr.f32.gmra.mxu0 %v6798
      %v7592 = vpop.f32.mrf.mxu0
      %v7593 = vadd.f32 %v7469, %v7592
      %v7594 = vpop.f32.mrf.mxu0
      %7595 = vmatprep.mubr.f32.mxu0 %v6817
      %7596 = vmatmul.mubr.f32.gmra.mxu0 %v6816
      %v7597 = vpop.f32.mrf.mxu0
      %v7598 = vadd.f32 %v7469, %v7597
      %v7599 = vpop.f32.mrf.mxu0
      %7600 = vmatprep.mubr.f32.mxu0 %v6835
      %7601 = vmatmul.mubr.f32.gmra.mxu0 %v6834
      %v7602 = vpop.f32.mrf.mxu0
      %v7603 = vadd.f32 %v7469, %v7602
      %v7604 = vpop.f32.mrf.mxu0
      %7605 = vmatprep.mubr.f32.mxu0 %v6853
      %7606 = vmatmul.mubr.f32.gmra.mxu0 %v6852
      %v7607 = vpop.f32.mrf.mxu0
      %v7608 = vadd.f32 %v7469, %v7607
      %v7609 = vpop.f32.mrf.mxu0
      %7610 = vmatprep.mubr.f32.mxu0 %v6871
      %7611 = vmatmul.mubr.f32.gmra.mxu0 %v6870
      %v7612 = vpop.f32.mrf.mxu0
      %v7613 = vadd.f32 %v7469, %v7612
      %v7614 = vpop.f32.mrf.mxu0
      %7615 = vmatprep.mubr.f32.mxu0 %v6889
      %7616 = vmatmul.mubr.f32.gmra.mxu0 %v6888
      %v7617 = vpop.f32.mrf.mxu0
      %v7618 = vadd.f32 %v7469, %v7617
      %v7619 = vpop.f32.mrf.mxu0
      %7620 = vmatprep.mubr.f32.mxu0 %v6907
      %7621 = vmatmul.mubr.f32.gmra.mxu0 %v6906
      %v7622 = vpop.f32.mrf.mxu0
      %v7623 = vadd.f32 %v7469, %v7622
      %v7624 = vpop.f32.mrf.mxu0
      %7625 = vmatprep.mubr.f32.mxu0 %v6925
      %7626 = vmatmul.mubr.f32.gmra.mxu0 %v6924
      %v7627 = vpop.f32.mrf.mxu0
      %v7628 = vadd.f32 %v7469, %v7627
      %v7629 = vpop.f32.mrf.mxu0
      %7630 = vmatprep.mubr.f32.mxu0 %v6943
      %7631 = vmatmul.mubr.f32.gmra.mxu0 %v6942
      %v7632 = vpop.f32.mrf.mxu0
      %v7633 = vadd.f32 %v7469, %v7632
      %v7634 = vpop.f32.mrf.mxu0
      %7635 = vmatprep.mubr.f32.mxu0 %v6961
      %7636 = vmatmul.mubr.f32.gmra.mxu0 %v6960
      %v7637 = vpop.f32.mrf.mxu0
      %v7638 = vadd.f32 %v7469, %v7637
      %v7639 = vpop.f32.mrf.mxu0
      %7640 = vmatprep.mubr.f32.mxu0 %v6979
      %7641 = vmatmul.mubr.f32.gmra.mxu0 %v6978
      %v7642 = vpop.f32.mrf.mxu0
      %v7643 = vadd.f32 %v7469, %v7642
      %v7644 = vpop.f32.mrf.mxu0
      %7645 = vmatprep.mubr.f32.mxu0 %v6997
      %7646 = vmatmul.mubr.f32.gmra.mxu0 %v6996
      %v7647 = vpop.f32.mrf.mxu0
      %v7648 = vadd.f32 %v7469, %v7647
      %v7649 = vpop.f32.mrf.mxu0
      %7650 = vmatprep.mubr.f32.mxu0 %v7015
      %7651 = vmatmul.mubr.f32.gmra.mxu0 %v7014
      %v7652 = vpop.f32.mrf.mxu0
      %v7653 = vadd.f32 %v7469, %v7652
      %v7654 = vpop.f32.mrf.mxu0
      %7655 = vmatprep.mubr.f32.mxu0 %v7033
      %7656 = vmatmul.mubr.f32.gmra.mxu0 %v7032
      %v7657 = vpop.f32.mrf.mxu0
      %v7658 = vadd.f32 %v7469, %v7657
      %v7659 = vpop.f32.mrf.mxu0
      %7660 = vmatprep.mubr.f32.mxu0 %v7051
      %7661 = vmatmul.mubr.f32.gmra.mxu0 %v7050
      %v7662 = vpop.f32.mrf.mxu0
      %v7663 = vadd.f32 %v7469, %v7662
      %v7664 = vpop.f32.mrf.mxu0
      %7665 = vmatprep.mubr.f32.mxu0 %v7069
      %7666 = vmatmul.mubr.f32.gmra.mxu0 %v7068
      %v7667 = vpop.f32.mrf.mxu0
      %v7668 = vadd.f32 %v7469, %v7667
      %v7669 = vpop.f32.mrf.mxu0
      %7670 = vmatprep.mubr.f32.mxu0 %v7087
      %7671 = vmatmul.mubr.f32.gmra.mxu0 %v7086
      %v7672 = vpop.f32.mrf.mxu0
      %v7673 = vadd.f32 %v7469, %v7672
      %v7674 = vpop.f32.mrf.mxu0
      %7675 = vmatprep.mubr.f32.mxu0 %v7105
      %7676 = vmatmul.mubr.f32.gmra.mxu0 %v7104
      %v7677 = vpop.f32.mrf.mxu0
      %v7678 = vadd.f32 %v7469, %v7677
      %v7679 = vpop.f32.mrf.mxu0
      %7680 = vmatprep.mubr.f32.mxu0 %v7123
      %7681 = vmatmul.mubr.f32.gmra.mxu0 %v7122
      %v7682 = vpop.f32.mrf.mxu0
      %v7683 = vadd.f32 %v7469, %v7682
      %v7684 = vpop.f32.mrf.mxu0
      %7685 = vmatprep.mubr.f32.mxu0 %v7141
      %7686 = vmatmul.mubr.f32.gmra.mxu0 %v7140
      %v7687 = vpop.f32.mrf.mxu0
      %v7688 = vadd.f32 %v7469, %v7687
      %v7689 = vpop.f32.mrf.mxu0
      %7690 = vmatprep.mubr.f32.mxu0 %v7159
      %7691 = vmatmul.mubr.f32.gmra.mxu0 %v7158
      %v7692 = vpop.f32.mrf.mxu0
      %v7693 = vadd.f32 %v7469, %v7692
      %v7694 = vpop.f32.mrf.mxu0
      %7695 = vdwg.mxu0
      %7696 = vmatprep.subr.mxu0 0.0
      %7697 = vmatpush1.msra.mxu0 %v7223
      %7698 = vmatprep.subr.mxu0 0.0
      %7699 = vmatpush1.msra.mxu0 %v7222
      %7700 = vmatprep.subr.mxu0 0.0
      %7701 = vmatpush1.msra.mxu0 %v7221
      %7702 = vmatprep.subr.mxu0 0.0
      %7703 = vmatpush1.msra.mxu0 %v7220
      %7704 = vmatprep.subr.mxu0 0.0
      %7705 = vmatpush1.msra.mxu0 %v7219
      %7706 = vmatprep.subr.mxu0 0.0
      %7707 = vmatpush1.msra.mxu0 %v7218
      %7708 = vmatprep.subr.mxu0 0.0
      %7709 = vmatpush1.msra.mxu0 %v7217
      %7710 = vmatprep.subr.mxu0 0.0
      %7711 = vmatpush1.msra.mxu0 %v7216
      %7712 = vmatprep.subr.mxu0 0.0
      %7713 = vmatpush1.msra.mxu0 %v7215
      %7714 = vmatprep.subr.mxu0 0.0
      %7715 = vmatpush1.msra.mxu0 %v7214
      %7716 = vmatprep.subr.mxu0 0.0
      %7717 = vmatpush1.msra.mxu0 %v7213
      %7718 = vmatprep.subr.mxu0 0.0
      %7719 = vmatpush1.msra.mxu0 %v7212
      %7720 = vmatprep.subr.mxu0 0.0
      %7721 = vmatpush1.msra.mxu0 %v7211
      %7722 = vmatprep.subr.mxu0 0.0
      %7723 = vmatpush1.msra.mxu0 %v7210
      %7724 = vmatprep.subr.mxu0 0.0
      %7725 = vmatpush1.msra.mxu0 %v7209
      %7726 = vmatprep.subr.mxu0 0.0
      %7727 = vmatpush1.msra.mxu0 %v7208
      %7728 = vmatprep.subr.mxu0 0.0
      %7729 = vmatpush2.msra.mxu0 %v7239
      %7730 = vmatprep.subr.mxu0 0.0
      %7731 = vmatpush2.msra.mxu0 %v7238
      %7732 = vmatprep.subr.mxu0 0.0
      %7733 = vmatpush2.msra.mxu0 %v7237
      %7734 = vmatprep.subr.mxu0 0.0
      %7735 = vmatpush2.msra.mxu0 %v7236
      %7736 = vmatprep.subr.mxu0 0.0
      %7737 = vmatpush2.msra.mxu0 %v7235
      %7738 = vmatprep.subr.mxu0 0.0
      %7739 = vmatpush2.msra.mxu0 %v7234
      %7740 = vmatprep.subr.mxu0 0.0
      %7741 = vmatpush2.msra.mxu0 %v7233
      %7742 = vmatprep.subr.mxu0 0.0
      %7743 = vmatpush2.msra.mxu0 %v7232
      %7744 = vmatprep.subr.mxu0 0.0
      %7745 = vmatpush2.msra.mxu0 %v7231
      %7746 = vmatprep.subr.mxu0 0.0
      %7747 = vmatpush2.msra.mxu0 %v7230
      %7748 = vmatprep.subr.mxu0 0.0
      %7749 = vmatpush2.msra.mxu0 %v7229
      %7750 = vmatprep.subr.mxu0 0.0
      %7751 = vmatpush2.msra.mxu0 %v7228
      %7752 = vmatprep.subr.mxu0 0.0
      %7753 = vmatpush2.msra.mxu0 %v7227
      %7754 = vmatprep.subr.mxu0 0.0
      %7755 = vmatpush2.msra.mxu0 %v7226
      %7756 = vmatprep.subr.mxu0 0.0
      %7757 = vmatpush2.msra.mxu0 %v7225
      %7758 = vmatprep.subr.mxu0 0.0
      %7759 = vmatpush2.msra.mxu0 %v7224
      %7760 = vmatprep.mubr.f32.mxu0 %v6603
      %7761 = vmatmul.mubr.f32.gmra.mxu0 %v6602
      %v7762 = vpop.f32.mrf.mxu0
      %v7763 = vadd.f32 %v7538, %v7762
      %v7764 = vpop.f32.mrf.mxu0
      %7765 = vmatprep.mubr.f32.mxu0 %v6621
      %7766 = vmatmul.mubr.f32.gmra.mxu0 %v6620
      %v7767 = vpop.f32.mrf.mxu0
      %v7768 = vadd.f32 %v7543, %v7767
      %v7769 = vpop.f32.mrf.mxu0
      %7770 = vmatprep.mubr.f32.mxu0 %v6639
      %7771 = vmatmul.mubr.f32.gmra.mxu0 %v6638
      %v7772 = vpop.f32.mrf.mxu0
      %v7773 = vadd.f32 %v7548, %v7772
      %v7774 = vpop.f32.mrf.mxu0
      %7775 = vmatprep.mubr.f32.mxu0 %v6657
      %7776 = vmatmul.mubr.f32.gmra.mxu0 %v6656
      %v7777 = vpop.f32.mrf.mxu0
      %v7778 = vadd.f32 %v7553, %v7777
      %v7779 = vpop.f32.mrf.mxu0
      %7780 = vmatprep.mubr.f32.mxu0 %v6675
      %7781 = vmatmul.mubr.f32.gmra.mxu0 %v6674
      %v7782 = vpop.f32.mrf.mxu0
      %v7783 = vadd.f32 %v7558, %v7782
      %v7784 = vpop.f32.mrf.mxu0
      %7785 = vmatprep.mubr.f32.mxu0 %v6693
      %7786 = vmatmul.mubr.f32.gmra.mxu0 %v6692
      %v7787 = vpop.f32.mrf.mxu0
      %v7788 = vadd.f32 %v7563, %v7787
      %v7789 = vpop.f32.mrf.mxu0
      %7790 = vmatprep.mubr.f32.mxu0 %v6711
      %7791 = vmatmul.mubr.f32.gmra.mxu0 %v6710
      %v7792 = vpop.f32.mrf.mxu0
      %v7793 = vadd.f32 %v7568, %v7792
      %v7794 = vpop.f32.mrf.mxu0
      %7795 = vmatprep.mubr.f32.mxu0 %v6729
      %7796 = vmatmul.mubr.f32.gmra.mxu0 %v6728
      %v7797 = vpop.f32.mrf.mxu0
      %v7798 = vadd.f32 %v7573, %v7797
      %v7799 = vpop.f32.mrf.mxu0
      %7800 = vmatprep.mubr.f32.mxu0 %v6747
      %7801 = vmatmul.mubr.f32.gmra.mxu0 %v6746
      %v7802 = vpop.f32.mrf.mxu0
      %v7803 = vadd.f32 %v7578, %v7802
      %v7804 = vpop.f32.mrf.mxu0
      %7805 = vmatprep.mubr.f32.mxu0 %v6765
      %7806 = vmatmul.mubr.f32.gmra.mxu0 %v6764
      %v7807 = vpop.f32.mrf.mxu0
      %v7808 = vadd.f32 %v7583, %v7807
      %v7809 = vpop.f32.mrf.mxu0
      %7810 = vmatprep.mubr.f32.mxu0 %v6783
      %7811 = vmatmul.mubr.f32.gmra.mxu0 %v6782
      %v7812 = vpop.f32.mrf.mxu0
      %v7813 = vadd.f32 %v7588, %v7812
      %v7814 = vpop.f32.mrf.mxu0
      %7815 = vmatprep.mubr.f32.mxu0 %v6801
      %7816 = vmatmul.mubr.f32.gmra.mxu0 %v6800
      %v7817 = vpop.f32.mrf.mxu0
      %v7818 = vadd.f32 %v7593, %v7817
      %v7819 = vpop.f32.mrf.mxu0
      %7820 = vmatprep.mubr.f32.mxu0 %v6819
      %7821 = vmatmul.mubr.f32.gmra.mxu0 %v6818
      %v7822 = vpop.f32.mrf.mxu0
      %v7823 = vadd.f32 %v7598, %v7822
      %v7824 = vpop.f32.mrf.mxu0
      %7825 = vmatprep.mubr.f32.mxu0 %v6837
      %7826 = vmatmul.mubr.f32.gmra.mxu0 %v6836
      %v7827 = vpop.f32.mrf.mxu0
      %v7828 = vadd.f32 %v7603, %v7827
      %v7829 = vpop.f32.mrf.mxu0
      %7830 = vmatprep.mubr.f32.mxu0 %v6855
      %7831 = vmatmul.mubr.f32.gmra.mxu0 %v6854
      %v7832 = vpop.f32.mrf.mxu0
      %v7833 = vadd.f32 %v7608, %v7832
      %v7834 = vpop.f32.mrf.mxu0
      %7835 = vmatprep.mubr.f32.mxu0 %v6873
      %7836 = vmatmul.mubr.f32.gmra.mxu0 %v6872
      %v7837 = vpop.f32.mrf.mxu0
      %v7838 = vadd.f32 %v7613, %v7837
      %v7839 = vpop.f32.mrf.mxu0
      %7840 = vmatprep.mubr.f32.mxu0 %v6891
      %7841 = vmatmul.mubr.f32.gmra.mxu0 %v6890
      %v7842 = vpop.f32.mrf.mxu0
      %v7843 = vadd.f32 %v7618, %v7842
      %v7844 = vpop.f32.mrf.mxu0
      %7845 = vmatprep.mubr.f32.mxu0 %v6909
      %7846 = vmatmul.mubr.f32.gmra.mxu0 %v6908
      %v7847 = vpop.f32.mrf.mxu0
      %v7848 = vadd.f32 %v7623, %v7847
      %v7849 = vpop.f32.mrf.mxu0
      %7850 = vmatprep.mubr.f32.mxu0 %v6927
      %7851 = vmatmul.mubr.f32.gmra.mxu0 %v6926
      %v7852 = vpop.f32.mrf.mxu0
      %v7853 = vadd.f32 %v7628, %v7852
      %v7854 = vpop.f32.mrf.mxu0
      %7855 = vmatprep.mubr.f32.mxu0 %v6945
      %7856 = vmatmul.mubr.f32.gmra.mxu0 %v6944
      %v7857 = vpop.f32.mrf.mxu0
      %v7858 = vadd.f32 %v7633, %v7857
      %v7859 = vpop.f32.mrf.mxu0
      %7860 = vmatprep.mubr.f32.mxu0 %v6963
      %7861 = vmatmul.mubr.f32.gmra.mxu0 %v6962
      %v7862 = vpop.f32.mrf.mxu0
      %v7863 = vadd.f32 %v7638, %v7862
      %v7864 = vpop.f32.mrf.mxu0
      %7865 = vmatprep.mubr.f32.mxu0 %v6981
      %7866 = vmatmul.mubr.f32.gmra.mxu0 %v6980
      %v7867 = vpop.f32.mrf.mxu0
      %v7868 = vadd.f32 %v7643, %v7867
      %v7869 = vpop.f32.mrf.mxu0
      %7870 = vmatprep.mubr.f32.mxu0 %v6999
      %7871 = vmatmul.mubr.f32.gmra.mxu0 %v6998
      %v7872 = vpop.f32.mrf.mxu0
      %v7873 = vadd.f32 %v7648, %v7872
      %v7874 = vpop.f32.mrf.mxu0
      %7875 = vmatprep.mubr.f32.mxu0 %v7017
      %7876 = vmatmul.mubr.f32.gmra.mxu0 %v7016
      %v7877 = vpop.f32.mrf.mxu0
      %v7878 = vadd.f32 %v7653, %v7877
      %v7879 = vpop.f32.mrf.mxu0
      %7880 = vmatprep.mubr.f32.mxu0 %v7035
      %7881 = vmatmul.mubr.f32.gmra.mxu0 %v7034
      %v7882 = vpop.f32.mrf.mxu0
      %v7883 = vadd.f32 %v7658, %v7882
      %v7884 = vpop.f32.mrf.mxu0
      %7885 = vmatprep.mubr.f32.mxu0 %v7053
      %7886 = vmatmul.mubr.f32.gmra.mxu0 %v7052
      %v7887 = vpop.f32.mrf.mxu0
      %v7888 = vadd.f32 %v7663, %v7887
      %v7889 = vpop.f32.mrf.mxu0
      %7890 = vmatprep.mubr.f32.mxu0 %v7071
      %7891 = vmatmul.mubr.f32.gmra.mxu0 %v7070
      %v7892 = vpop.f32.mrf.mxu0
      %v7893 = vadd.f32 %v7668, %v7892
      %v7894 = vpop.f32.mrf.mxu0
      %7895 = vmatprep.mubr.f32.mxu0 %v7089
      %7896 = vmatmul.mubr.f32.gmra.mxu0 %v7088
      %v7897 = vpop.f32.mrf.mxu0
      %v7898 = vadd.f32 %v7673, %v7897
      %v7899 = vpop.f32.mrf.mxu0
      %7900 = vmatprep.mubr.f32.mxu0 %v7107
      %7901 = vmatmul.mubr.f32.gmra.mxu0 %v7106
      %v7902 = vpop.f32.mrf.mxu0
      %v7903 = vadd.f32 %v7678, %v7902
      %v7904 = vpop.f32.mrf.mxu0
      %7905 = vmatprep.mubr.f32.mxu0 %v7125
      %7906 = vmatmul.mubr.f32.gmra.mxu0 %v7124
      %v7907 = vpop.f32.mrf.mxu0
      %v7908 = vadd.f32 %v7683, %v7907
      %v7909 = vpop.f32.mrf.mxu0
      %7910 = vmatprep.mubr.f32.mxu0 %v7143
      %7911 = vmatmul.mubr.f32.gmra.mxu0 %v7142
      %v7912 = vpop.f32.mrf.mxu0
      %v7913 = vadd.f32 %v7688, %v7912
      %v7914 = vpop.f32.mrf.mxu0
      %7915 = vmatprep.mubr.f32.mxu0 %v7161
      %7916 = vmatmul.mubr.f32.gmra.mxu0 %v7160
      %v7917 = vpop.f32.mrf.mxu0
      %v7918 = vadd.f32 %v7693, %v7917
      %v7919 = vpop.f32.mrf.mxu0
      %7920 = vdwg.mxu0
      %7921 = vmatprep.subr.mxu0 0.0
      %7922 = vmatpush1.msra.mxu0 %v7255
      %7923 = vmatprep.subr.mxu0 0.0
      %7924 = vmatpush1.msra.mxu0 %v7254
      %7925 = vmatprep.subr.mxu0 0.0
      %7926 = vmatpush1.msra.mxu0 %v7253
      %7927 = vmatprep.subr.mxu0 0.0
      %7928 = vmatpush1.msra.mxu0 %v7252
      %7929 = vmatprep.subr.mxu0 0.0
      %7930 = vmatpush1.msra.mxu0 %v7251
      %7931 = vmatprep.subr.mxu0 0.0
      %7932 = vmatpush1.msra.mxu0 %v7250
      %7933 = vmatprep.subr.mxu0 0.0
      %7934 = vmatpush1.msra.mxu0 %v7249
      %7935 = vmatprep.subr.mxu0 0.0
      %7936 = vmatpush1.msra.mxu0 %v7248
      %7937 = vmatprep.subr.mxu0 0.0
      %7938 = vmatpush1.msra.mxu0 %v7247
      %7939 = vmatprep.subr.mxu0 0.0
      %7940 = vmatpush1.msra.mxu0 %v7246
      %7941 = vmatprep.subr.mxu0 0.0
      %7942 = vmatpush1.msra.mxu0 %v7245
      %7943 = vmatprep.subr.mxu0 0.0
      %7944 = vmatpush1.msra.mxu0 %v7244
      %7945 = vmatprep.subr.mxu0 0.0
      %7946 = vmatpush1.msra.mxu0 %v7243
      %7947 = vmatprep.subr.mxu0 0.0
      %7948 = vmatpush1.msra.mxu0 %v7242
      %7949 = vmatprep.subr.mxu0 0.0
      %7950 = vmatpush1.msra.mxu0 %v7241
      %7951 = vmatprep.subr.mxu0 0.0
      %7952 = vmatpush1.msra.mxu0 %v7240
      %7953 = vmatprep.subr.mxu0 0.0
      %7954 = vmatpush2.msra.mxu0 %v7271
      %7955 = vmatprep.subr.mxu0 0.0
      %7956 = vmatpush2.msra.mxu0 %v7270
      %7957 = vmatprep.subr.mxu0 0.0
      %7958 = vmatpush2.msra.mxu0 %v7269
      %7959 = vmatprep.subr.mxu0 0.0
      %7960 = vmatpush2.msra.mxu0 %v7268
      %7961 = vmatprep.subr.mxu0 0.0
      %7962 = vmatpush2.msra.mxu0 %v7267
      %7963 = vmatprep.subr.mxu0 0.0
      %7964 = vmatpush2.msra.mxu0 %v7266
      %7965 = vmatprep.subr.mxu0 0.0
      %7966 = vmatpush2.msra.mxu0 %v7265
      %7967 = vmatprep.subr.mxu0 0.0
      %7968 = vmatpush2.msra.mxu0 %v7264
      %7969 = vmatprep.subr.mxu0 0.0
      %7970 = vmatpush2.msra.mxu0 %v7263
      %7971 = vmatprep.subr.mxu0 0.0
      %7972 = vmatpush2.msra.mxu0 %v7262
      %7973 = vmatprep.subr.mxu0 0.0
      %7974 = vmatpush2.msra.mxu0 %v7261
      %7975 = vmatprep.subr.mxu0 0.0
      %7976 = vmatpush2.msra.mxu0 %v7260
      %7977 = vmatprep.subr.mxu0 0.0
      %7978 = vmatpush2.msra.mxu0 %v7259
      %7979 = vmatprep.subr.mxu0 0.0
      %7980 = vmatpush2.msra.mxu0 %v7258
      %7981 = vmatprep.subr.mxu0 0.0
      %7982 = vmatpush2.msra.mxu0 %v7257
      %7983 = vmatprep.subr.mxu0 0.0
      %7984 = vmatpush2.msra.mxu0 %v7256
      %7985 = vmatprep.mubr.f32.mxu0 %v6605
      %7986 = vmatmul.mubr.f32.gmra.mxu0 %v6604
      %v7987 = vpop.f32.mrf.mxu0
      %v7988 = vadd.f32 %v7763, %v7987
      %v7989 = vpop.f32.mrf.mxu0
      %7990 = vmatprep.mubr.f32.mxu0 %v6623
      %7991 = vmatmul.mubr.f32.gmra.mxu0 %v6622
      %v7992 = vpop.f32.mrf.mxu0
      %v7993 = vadd.f32 %v7768, %v7992
      %v7994 = vpop.f32.mrf.mxu0
      %7995 = vmatprep.mubr.f32.mxu0 %v6641
      %7996 = vmatmul.mubr.f32.gmra.mxu0 %v6640
      %v7997 = vpop.f32.mrf.mxu0
      %v7998 = vadd.f32 %v7773, %v7997
      %v7999 = vpop.f32.mrf.mxu0
      %8000 = vmatprep.mubr.f32.mxu0 %v6659
      %8001 = vmatmul.mubr.f32.gmra.mxu0 %v6658
      %v8002 = vpop.f32.mrf.mxu0
      %v8003 = vadd.f32 %v7778, %v8002
      %v8004 = vpop.f32.mrf.mxu0
      %8005 = vmatprep.mubr.f32.mxu0 %v6677
      %8006 = vmatmul.mubr.f32.gmra.mxu0 %v6676
      %v8007 = vpop.f32.mrf.mxu0
      %v8008 = vadd.f32 %v7783, %v8007
      %v8009 = vpop.f32.mrf.mxu0
      %8010 = vmatprep.mubr.f32.mxu0 %v6695
      %8011 = vmatmul.mubr.f32.gmra.mxu0 %v6694
      %v8012 = vpop.f32.mrf.mxu0
      %v8013 = vadd.f32 %v7788, %v8012
      %v8014 = vpop.f32.mrf.mxu0
      %8015 = vmatprep.mubr.f32.mxu0 %v6713
      %8016 = vmatmul.mubr.f32.gmra.mxu0 %v6712
      %v8017 = vpop.f32.mrf.mxu0
      %v8018 = vadd.f32 %v7793, %v8017
      %v8019 = vpop.f32.mrf.mxu0
      %8020 = vmatprep.mubr.f32.mxu0 %v6731
      %8021 = vmatmul.mubr.f32.gmra.mxu0 %v6730
      %v8022 = vpop.f32.mrf.mxu0
      %v8023 = vadd.f32 %v7798, %v8022
      %v8024 = vpop.f32.mrf.mxu0
      %8025 = vmatprep.mubr.f32.mxu0 %v6749
      %8026 = vmatmul.mubr.f32.gmra.mxu0 %v6748
      %v8027 = vpop.f32.mrf.mxu0
      %v8028 = vadd.f32 %v7803, %v8027
      %v8029 = vpop.f32.mrf.mxu0
      %8030 = vmatprep.mubr.f32.mxu0 %v6767
      %8031 = vmatmul.mubr.f32.gmra.mxu0 %v6766
      %v8032 = vpop.f32.mrf.mxu0
      %v8033 = vadd.f32 %v7808, %v8032
      %v8034 = vpop.f32.mrf.mxu0
      %8035 = vmatprep.mubr.f32.mxu0 %v6785
      %8036 = vmatmul.mubr.f32.gmra.mxu0 %v6784
      %v8037 = vpop.f32.mrf.mxu0
      %v8038 = vadd.f32 %v7813, %v8037
      %v8039 = vpop.f32.mrf.mxu0
      %8040 = vmatprep.mubr.f32.mxu0 %v6803
      %8041 = vmatmul.mubr.f32.gmra.mxu0 %v6802
      %v8042 = vpop.f32.mrf.mxu0
      %v8043 = vadd.f32 %v7818, %v8042
      %v8044 = vpop.f32.mrf.mxu0
      %8045 = vmatprep.mubr.f32.mxu0 %v6821
      %8046 = vmatmul.mubr.f32.gmra.mxu0 %v6820
      %v8047 = vpop.f32.mrf.mxu0
      %v8048 = vadd.f32 %v7823, %v8047
      %v8049 = vpop.f32.mrf.mxu0
      %8050 = vmatprep.mubr.f32.mxu0 %v6839
      %8051 = vmatmul.mubr.f32.gmra.mxu0 %v6838
      %v8052 = vpop.f32.mrf.mxu0
      %v8053 = vadd.f32 %v7828, %v8052
      %v8054 = vpop.f32.mrf.mxu0
      %8055 = vmatprep.mubr.f32.mxu0 %v6857
      %8056 = vmatmul.mubr.f32.gmra.mxu0 %v6856
      %v8057 = vpop.f32.mrf.mxu0
      %v8058 = vadd.f32 %v7833, %v8057
      %v8059 = vpop.f32.mrf.mxu0
      %8060 = vmatprep.mubr.f32.mxu0 %v6875
      %8061 = vmatmul.mubr.f32.gmra.mxu0 %v6874
      %v8062 = vpop.f32.mrf.mxu0
      %v8063 = vadd.f32 %v7838, %v8062
      %v8064 = vpop.f32.mrf.mxu0
      %8065 = vmatprep.mubr.f32.mxu0 %v6893
      %8066 = vmatmul.mubr.f32.gmra.mxu0 %v6892
      %v8067 = vpop.f32.mrf.mxu0
      %v8068 = vadd.f32 %v7843, %v8067
      %v8069 = vpop.f32.mrf.mxu0
      %8070 = vmatprep.mubr.f32.mxu0 %v6911
      %8071 = vmatmul.mubr.f32.gmra.mxu0 %v6910
      %v8072 = vpop.f32.mrf.mxu0
      %v8073 = vadd.f32 %v7848, %v8072
      %v8074 = vpop.f32.mrf.mxu0
      %8075 = vmatprep.mubr.f32.mxu0 %v6929
      %8076 = vmatmul.mubr.f32.gmra.mxu0 %v6928
      %v8077 = vpop.f32.mrf.mxu0
      %v8078 = vadd.f32 %v7853, %v8077
      %v8079 = vpop.f32.mrf.mxu0
      %8080 = vmatprep.mubr.f32.mxu0 %v6947
      %8081 = vmatmul.mubr.f32.gmra.mxu0 %v6946
      %v8082 = vpop.f32.mrf.mxu0
      %v8083 = vadd.f32 %v7858, %v8082
      %v8084 = vpop.f32.mrf.mxu0
      %8085 = vmatprep.mubr.f32.mxu0 %v6965
      %8086 = vmatmul.mubr.f32.gmra.mxu0 %v6964
      %v8087 = vpop.f32.mrf.mxu0
      %v8088 = vadd.f32 %v7863, %v8087
      %v8089 = vpop.f32.mrf.mxu0
      %8090 = vmatprep.mubr.f32.mxu0 %v6983
      %8091 = vmatmul.mubr.f32.gmra.mxu0 %v6982
      %v8092 = vpop.f32.mrf.mxu0
      %v8093 = vadd.f32 %v7868, %v8092
      %v8094 = vpop.f32.mrf.mxu0
      %8095 = vmatprep.mubr.f32.mxu0 %v7001
      %8096 = vmatmul.mubr.f32.gmra.mxu0 %v7000
      %v8097 = vpop.f32.mrf.mxu0
      %v8098 = vadd.f32 %v7873, %v8097
      %v8099 = vpop.f32.mrf.mxu0
      %8100 = vmatprep.mubr.f32.mxu0 %v7019
      %8101 = vmatmul.mubr.f32.gmra.mxu0 %v7018
      %v8102 = vpop.f32.mrf.mxu0
      %v8103 = vadd.f32 %v7878, %v8102
      %v8104 = vpop.f32.mrf.mxu0
      %8105 = vmatprep.mubr.f32.mxu0 %v7037
      %8106 = vmatmul.mubr.f32.gmra.mxu0 %v7036
      %v8107 = vpop.f32.mrf.mxu0
      %v8108 = vadd.f32 %v7883, %v8107
      %v8109 = vpop.f32.mrf.mxu0
      %8110 = vmatprep.mubr.f32.mxu0 %v7055
      %8111 = vmatmul.mubr.f32.gmra.mxu0 %v7054
      %v8112 = vpop.f32.mrf.mxu0
      %v8113 = vadd.f32 %v7888, %v8112
      %v8114 = vpop.f32.mrf.mxu0
      %8115 = vmatprep.mubr.f32.mxu0 %v7073
      %8116 = vmatmul.mubr.f32.gmra.mxu0 %v7072
      %v8117 = vpop.f32.mrf.mxu0
      %v8118 = vadd.f32 %v7893, %v8117
      %v8119 = vpop.f32.mrf.mxu0
      %8120 = vmatprep.mubr.f32.mxu0 %v7091
      %8121 = vmatmul.mubr.f32.gmra.mxu0 %v7090
      %v8122 = vpop.f32.mrf.mxu0
      %v8123 = vadd.f32 %v7898, %v8122
      %v8124 = vpop.f32.mrf.mxu0
      %8125 = vmatprep.mubr.f32.mxu0 %v7109
      %8126 = vmatmul.mubr.f32.gmra.mxu0 %v7108
      %v8127 = vpop.f32.mrf.mxu0
      %v8128 = vadd.f32 %v7903, %v8127
      %v8129 = vpop.f32.mrf.mxu0
      %8130 = vmatprep.mubr.f32.mxu0 %v7127
      %8131 = vmatmul.mubr.f32.gmra.mxu0 %v7126
      %v8132 = vpop.f32.mrf.mxu0
      %v8133 = vadd.f32 %v7908, %v8132
      %v8134 = vpop.f32.mrf.mxu0
      %8135 = vmatprep.mubr.f32.mxu0 %v7145
      %8136 = vmatmul.mubr.f32.gmra.mxu0 %v7144
      %v8137 = vpop.f32.mrf.mxu0
      %v8138 = vadd.f32 %v7913, %v8137
      %v8139 = vpop.f32.mrf.mxu0
      %8140 = vmatprep.mubr.f32.mxu0 %v7163
      %8141 = vmatmul.mubr.f32.gmra.mxu0 %v7162
      %v8142 = vpop.f32.mrf.mxu0
      %v8143 = vadd.f32 %v7918, %v8142
      %v8144 = vpop.f32.mrf.mxu0
      %8145 = vdwg.mxu0
      %8146 = vmatprep.subr.mxu0 0.0
      %8147 = vmatpush1.msra.mxu0 %v7287
      %8148 = vmatprep.subr.mxu0 0.0
      %8149 = vmatpush1.msra.mxu0 %v7286
      %8150 = vmatprep.subr.mxu0 0.0
      %8151 = vmatpush1.msra.mxu0 %v7285
      %8152 = vmatprep.subr.mxu0 0.0
      %8153 = vmatpush1.msra.mxu0 %v7284
      %8154 = vmatprep.subr.mxu0 0.0
      %8155 = vmatpush1.msra.mxu0 %v7283
      %8156 = vmatprep.subr.mxu0 0.0
      %8157 = vmatpush1.msra.mxu0 %v7282
      %8158 = vmatprep.subr.mxu0 0.0
      %8159 = vmatpush1.msra.mxu0 %v7281
      %8160 = vmatprep.subr.mxu0 0.0
      %8161 = vmatpush1.msra.mxu0 %v7280
      %8162 = vmatprep.subr.mxu0 0.0
      %8163 = vmatpush1.msra.mxu0 %v7279
      %8164 = vmatprep.subr.mxu0 0.0
      %8165 = vmatpush1.msra.mxu0 %v7278
      %8166 = vmatprep.subr.mxu0 0.0
      %8167 = vmatpush1.msra.mxu0 %v7277
      %8168 = vmatprep.subr.mxu0 0.0
      %8169 = vmatpush1.msra.mxu0 %v7276
      %8170 = vmatprep.subr.mxu0 0.0
      %8171 = vmatpush1.msra.mxu0 %v7275
      %8172 = vmatprep.subr.mxu0 0.0
      %8173 = vmatpush1.msra.mxu0 %v7274
      %8174 = vmatprep.subr.mxu0 0.0
      %8175 = vmatpush1.msra.mxu0 %v7273
      %8176 = vmatprep.subr.mxu0 0.0
      %8177 = vmatpush1.msra.mxu0 %v7272
      %8178 = vmatprep.subr.mxu0 0.0
      %8179 = vmatpush2.msra.mxu0 %v7303
      %8180 = vmatprep.subr.mxu0 0.0
      %8181 = vmatpush2.msra.mxu0 %v7302
      %8182 = vmatprep.subr.mxu0 0.0
      %8183 = vmatpush2.msra.mxu0 %v7301
      %8184 = vmatprep.subr.mxu0 0.0
      %8185 = vmatpush2.msra.mxu0 %v7300
      %8186 = vmatprep.subr.mxu0 0.0
      %8187 = vmatpush2.msra.mxu0 %v7299
      %8188 = vmatprep.subr.mxu0 0.0
      %8189 = vmatpush2.msra.mxu0 %v7298
      %8190 = vmatprep.subr.mxu0 0.0
      %8191 = vmatpush2.msra.mxu0 %v7297
      %8192 = vmatprep.subr.mxu0 0.0
      %8193 = vmatpush2.msra.mxu0 %v7296
      %8194 = vmatprep.subr.mxu0 0.0
      %8195 = vmatpush2.msra.mxu0 %v7295
      %8196 = vmatprep.subr.mxu0 0.0
      %8197 = vmatpush2.msra.mxu0 %v7294
      %8198 = vmatprep.subr.mxu0 0.0
      %8199 = vmatpush2.msra.mxu0 %v7293
      %8200 = vmatprep.subr.mxu0 0.0
      %8201 = vmatpush2.msra.mxu0 %v7292
      %8202 = vmatprep.subr.mxu0 0.0
      %8203 = vmatpush2.msra.mxu0 %v7291
      %8204 = vmatprep.subr.mxu0 0.0
      %8205 = vmatpush2.msra.mxu0 %v7290
      %8206 = vmatprep.subr.mxu0 0.0
      %8207 = vmatpush2.msra.mxu0 %v7289
      %8208 = vmatprep.subr.mxu0 0.0
      %8209 = vmatpush2.msra.mxu0 %v7288
      %8210 = vmatprep.mubr.f32.mxu0 %v6607
      %8211 = vmatmul.mubr.f32.gmra.mxu0 %v6606
      %v8212 = vpop.f32.mrf.mxu0
      %v8213 = vadd.f32 %v7988, %v8212
      %v8214 = vpop.f32.mrf.mxu0
      %8215 = vmatprep.mubr.f32.mxu0 %v6625
      %8216 = vmatmul.mubr.f32.gmra.mxu0 %v6624
      %v8217 = vpop.f32.mrf.mxu0
      %v8218 = vadd.f32 %v7993, %v8217
      %v8219 = vpop.f32.mrf.mxu0
      %8220 = vmatprep.mubr.f32.mxu0 %v6643
      %8221 = vmatmul.mubr.f32.gmra.mxu0 %v6642
      %v8222 = vpop.f32.mrf.mxu0
      %v8223 = vadd.f32 %v7998, %v8222
      %v8224 = vpop.f32.mrf.mxu0
      %8225 = vmatprep.mubr.f32.mxu0 %v6661
      %8226 = vmatmul.mubr.f32.gmra.mxu0 %v6660
      %v8227 = vpop.f32.mrf.mxu0
      %v8228 = vadd.f32 %v8003, %v8227
      %v8229 = vpop.f32.mrf.mxu0
      %8230 = vmatprep.mubr.f32.mxu0 %v6679
      %8231 = vmatmul.mubr.f32.gmra.mxu0 %v6678
      %v8232 = vpop.f32.mrf.mxu0
      %v8233 = vadd.f32 %v8008, %v8232
      %v8234 = vpop.f32.mrf.mxu0
      %8235 = vmatprep.mubr.f32.mxu0 %v6697
      %8236 = vmatmul.mubr.f32.gmra.mxu0 %v6696
      %v8237 = vpop.f32.mrf.mxu0
      %v8238 = vadd.f32 %v8013, %v8237
      %v8239 = vpop.f32.mrf.mxu0
      %8240 = vmatprep.mubr.f32.mxu0 %v6715
      %8241 = vmatmul.mubr.f32.gmra.mxu0 %v6714
      %v8242 = vpop.f32.mrf.mxu0
      %v8243 = vadd.f32 %v8018, %v8242
      %v8244 = vpop.f32.mrf.mxu0
      %8245 = vmatprep.mubr.f32.mxu0 %v6733
      %8246 = vmatmul.mubr.f32.gmra.mxu0 %v6732
      %v8247 = vpop.f32.mrf.mxu0
      %v8248 = vadd.f32 %v8023, %v8247
      %v8249 = vpop.f32.mrf.mxu0
      %8250 = vmatprep.mubr.f32.mxu0 %v6751
      %8251 = vmatmul.mubr.f32.gmra.mxu0 %v6750
      %v8252 = vpop.f32.mrf.mxu0
      %v8253 = vadd.f32 %v8028, %v8252
      %v8254 = vpop.f32.mrf.mxu0
      %8255 = vmatprep.mubr.f32.mxu0 %v6769
      %8256 = vmatmul.mubr.f32.gmra.mxu0 %v6768
      %v8257 = vpop.f32.mrf.mxu0
      %v8258 = vadd.f32 %v8033, %v8257
      %v8259 = vpop.f32.mrf.mxu0
      %8260 = vmatprep.mubr.f32.mxu0 %v6787
      %8261 = vmatmul.mubr.f32.gmra.mxu0 %v6786
      %v8262 = vpop.f32.mrf.mxu0
      %v8263 = vadd.f32 %v8038, %v8262
      %v8264 = vpop.f32.mrf.mxu0
      %8265 = vmatprep.mubr.f32.mxu0 %v6805
      %8266 = vmatmul.mubr.f32.gmra.mxu0 %v6804
      %v8267 = vpop.f32.mrf.mxu0
      %v8268 = vadd.f32 %v8043, %v8267
      %v8269 = vpop.f32.mrf.mxu0
      %8270 = vmatprep.mubr.f32.mxu0 %v6823
      %8271 = vmatmul.mubr.f32.gmra.mxu0 %v6822
      %v8272 = vpop.f32.mrf.mxu0
      %v8273 = vadd.f32 %v8048, %v8272
      %v8274 = vpop.f32.mrf.mxu0
      %8275 = vmatprep.mubr.f32.mxu0 %v6841
      %8276 = vmatmul.mubr.f32.gmra.mxu0 %v6840
      %v8277 = vpop.f32.mrf.mxu0
      %v8278 = vadd.f32 %v8053, %v8277
      %v8279 = vpop.f32.mrf.mxu0
      %8280 = vmatprep.mubr.f32.mxu0 %v6859
      %8281 = vmatmul.mubr.f32.gmra.mxu0 %v6858
      %v8282 = vpop.f32.mrf.mxu0
      %v8283 = vadd.f32 %v8058, %v8282
      %v8284 = vpop.f32.mrf.mxu0
      %8285 = vmatprep.mubr.f32.mxu0 %v6877
      %8286 = vmatmul.mubr.f32.gmra.mxu0 %v6876
      %v8287 = vpop.f32.mrf.mxu0
      %v8288 = vadd.f32 %v8063, %v8287
      %v8289 = vpop.f32.mrf.mxu0
      %8290 = vmatprep.mubr.f32.mxu0 %v6895
      %8291 = vmatmul.mubr.f32.gmra.mxu0 %v6894
      %v8292 = vpop.f32.mrf.mxu0
      %v8293 = vadd.f32 %v8068, %v8292
      %v8294 = vpop.f32.mrf.mxu0
      %8295 = vmatprep.mubr.f32.mxu0 %v6913
      %8296 = vmatmul.mubr.f32.gmra.mxu0 %v6912
      %v8297 = vpop.f32.mrf.mxu0
      %v8298 = vadd.f32 %v8073, %v8297
      %v8299 = vpop.f32.mrf.mxu0
      %8300 = vmatprep.mubr.f32.mxu0 %v6931
      %8301 = vmatmul.mubr.f32.gmra.mxu0 %v6930
      %v8302 = vpop.f32.mrf.mxu0
      %v8303 = vadd.f32 %v8078, %v8302
      %v8304 = vpop.f32.mrf.mxu0
      %8305 = vmatprep.mubr.f32.mxu0 %v6949
      %8306 = vmatmul.mubr.f32.gmra.mxu0 %v6948
      %v8307 = vpop.f32.mrf.mxu0
      %v8308 = vadd.f32 %v8083, %v8307
      %v8309 = vpop.f32.mrf.mxu0
      %8310 = vmatprep.mubr.f32.mxu0 %v6967
      %8311 = vmatmul.mubr.f32.gmra.mxu0 %v6966
      %v8312 = vpop.f32.mrf.mxu0
      %v8313 = vadd.f32 %v8088, %v8312
      %v8314 = vpop.f32.mrf.mxu0
      %8315 = vmatprep.mubr.f32.mxu0 %v6985
      %8316 = vmatmul.mubr.f32.gmra.mxu0 %v6984
      %v8317 = vpop.f32.mrf.mxu0
      %v8318 = vadd.f32 %v8093, %v8317
      %v8319 = vpop.f32.mrf.mxu0
      %8320 = vmatprep.mubr.f32.mxu0 %v7003
      %8321 = vmatmul.mubr.f32.gmra.mxu0 %v7002
      %v8322 = vpop.f32.mrf.mxu0
      %v8323 = vadd.f32 %v8098, %v8322
      %v8324 = vpop.f32.mrf.mxu0
      %8325 = vmatprep.mubr.f32.mxu0 %v7021
      %8326 = vmatmul.mubr.f32.gmra.mxu0 %v7020
      %v8327 = vpop.f32.mrf.mxu0
      %v8328 = vadd.f32 %v8103, %v8327
      %v8329 = vpop.f32.mrf.mxu0
      %8330 = vmatprep.mubr.f32.mxu0 %v7039
      %8331 = vmatmul.mubr.f32.gmra.mxu0 %v7038
      %v8332 = vpop.f32.mrf.mxu0
      %v8333 = vadd.f32 %v8108, %v8332
      %v8334 = vpop.f32.mrf.mxu0
      %8335 = vmatprep.mubr.f32.mxu0 %v7057
      %8336 = vmatmul.mubr.f32.gmra.mxu0 %v7056
      %v8337 = vpop.f32.mrf.mxu0
      %v8338 = vadd.f32 %v8113, %v8337
      %v8339 = vpop.f32.mrf.mxu0
      %8340 = vmatprep.mubr.f32.mxu0 %v7075
      %8341 = vmatmul.mubr.f32.gmra.mxu0 %v7074
      %v8342 = vpop.f32.mrf.mxu0
      %v8343 = vadd.f32 %v8118, %v8342
      %v8344 = vpop.f32.mrf.mxu0
      %8345 = vmatprep.mubr.f32.mxu0 %v7093
      %8346 = vmatmul.mubr.f32.gmra.mxu0 %v7092
      %v8347 = vpop.f32.mrf.mxu0
      %v8348 = vadd.f32 %v8123, %v8347
      %v8349 = vpop.f32.mrf.mxu0
      %8350 = vmatprep.mubr.f32.mxu0 %v7111
      %8351 = vmatmul.mubr.f32.gmra.mxu0 %v7110
      %v8352 = vpop.f32.mrf.mxu0
      %v8353 = vadd.f32 %v8128, %v8352
      %v8354 = vpop.f32.mrf.mxu0
      %8355 = vmatprep.mubr.f32.mxu0 %v7129
      %8356 = vmatmul.mubr.f32.gmra.mxu0 %v7128
      %v8357 = vpop.f32.mrf.mxu0
      %v8358 = vadd.f32 %v8133, %v8357
      %v8359 = vpop.f32.mrf.mxu0
      %8360 = vmatprep.mubr.f32.mxu0 %v7147
      %8361 = vmatmul.mubr.f32.gmra.mxu0 %v7146
      %v8362 = vpop.f32.mrf.mxu0
      %v8363 = vadd.f32 %v8138, %v8362
      %v8364 = vpop.f32.mrf.mxu0
      %8365 = vmatprep.mubr.f32.mxu0 %v7165
      %8366 = vmatmul.mubr.f32.gmra.mxu0 %v7164
      %v8367 = vpop.f32.mrf.mxu0
      %v8368 = vadd.f32 %v8143, %v8367
      %v8369 = vpop.f32.mrf.mxu0
      %8370 = vdwg.mxu0
      %8371 = vmatprep.subr.mxu0 0.0
      %8372 = vmatpush1.msra.mxu0 %v7319
      %8373 = vmatprep.subr.mxu0 0.0
      %8374 = vmatpush1.msra.mxu0 %v7318
      %8375 = vmatprep.subr.mxu0 0.0
      %8376 = vmatpush1.msra.mxu0 %v7317
      %8377 = vmatprep.subr.mxu0 0.0
      %8378 = vmatpush1.msra.mxu0 %v7316
      %8379 = vmatprep.subr.mxu0 0.0
      %8380 = vmatpush1.msra.mxu0 %v7315
      %8381 = vmatprep.subr.mxu0 0.0
      %8382 = vmatpush1.msra.mxu0 %v7314
      %8383 = vmatprep.subr.mxu0 0.0
      %8384 = vmatpush1.msra.mxu0 %v7313
      %8385 = vmatprep.subr.mxu0 0.0
      %8386 = vmatpush1.msra.mxu0 %v7312
      %8387 = vmatprep.subr.mxu0 0.0
      %8388 = vmatpush1.msra.mxu0 %v7311
      %8389 = vmatprep.subr.mxu0 0.0
      %8390 = vmatpush1.msra.mxu0 %v7310
      %8391 = vmatprep.subr.mxu0 0.0
      %8392 = vmatpush1.msra.mxu0 %v7309
      %8393 = vmatprep.subr.mxu0 0.0
      %8394 = vmatpush1.msra.mxu0 %v7308
      %8395 = vmatprep.subr.mxu0 0.0
      %8396 = vmatpush1.msra.mxu0 %v7307
      %8397 = vmatprep.subr.mxu0 0.0
      %8398 = vmatpush1.msra.mxu0 %v7306
      %8399 = vmatprep.subr.mxu0 0.0
      %8400 = vmatpush1.msra.mxu0 %v7305
      %8401 = vmatprep.subr.mxu0 0.0
      %8402 = vmatpush1.msra.mxu0 %v7304
      %8403 = vmatprep.subr.mxu0 0.0
      %8404 = vmatpush2.msra.mxu0 %v7335
      %8405 = vmatprep.subr.mxu0 0.0
      %8406 = vmatpush2.msra.mxu0 %v7334
      %8407 = vmatprep.subr.mxu0 0.0
      %8408 = vmatpush2.msra.mxu0 %v7333
      %8409 = vmatprep.subr.mxu0 0.0
      %8410 = vmatpush2.msra.mxu0 %v7332
      %8411 = vmatprep.subr.mxu0 0.0
      %8412 = vmatpush2.msra.mxu0 %v7331
      %8413 = vmatprep.subr.mxu0 0.0
      %8414 = vmatpush2.msra.mxu0 %v7330
      %8415 = vmatprep.subr.mxu0 0.0
      %8416 = vmatpush2.msra.mxu0 %v7329
      %8417 = vmatprep.subr.mxu0 0.0
      %8418 = vmatpush2.msra.mxu0 %v7328
      %8419 = vmatprep.subr.mxu0 0.0
      %8420 = vmatpush2.msra.mxu0 %v7327
      %8421 = vmatprep.subr.mxu0 0.0
      %8422 = vmatpush2.msra.mxu0 %v7326
      %8423 = vmatprep.subr.mxu0 0.0
      %8424 = vmatpush2.msra.mxu0 %v7325
      %8425 = vmatprep.subr.mxu0 0.0
      %8426 = vmatpush2.msra.mxu0 %v7324
      %8427 = vmatprep.subr.mxu0 0.0
      %8428 = vmatpush2.msra.mxu0 %v7323
      %8429 = vmatprep.subr.mxu0 0.0
      %8430 = vmatpush2.msra.mxu0 %v7322
      %8431 = vmatprep.subr.mxu0 0.0
      %8432 = vmatpush2.msra.mxu0 %v7321
      %8433 = vmatprep.subr.mxu0 0.0
      %8434 = vmatpush2.msra.mxu0 %v7320
      %8435 = vmatprep.mubr.f32.mxu0 %v6609
      %8436 = vmatmul.mubr.f32.gmra.mxu0 %v6608
      %v8437 = vpop.f32.mrf.mxu0
      %v8438 = vadd.f32 %v8213, %v8437
      %v8439 = vpop.f32.mrf.mxu0
      %8440 = vmatprep.mubr.f32.mxu0 %v6627
      %8441 = vmatmul.mubr.f32.gmra.mxu0 %v6626
      %v8442 = vpop.f32.mrf.mxu0
      %v8443 = vadd.f32 %v8218, %v8442
      %v8444 = vpop.f32.mrf.mxu0
      %8445 = vmatprep.mubr.f32.mxu0 %v6645
      %8446 = vmatmul.mubr.f32.gmra.mxu0 %v6644
      %v8447 = vpop.f32.mrf.mxu0
      %v8448 = vadd.f32 %v8223, %v8447
      %v8449 = vpop.f32.mrf.mxu0
      %8450 = vmatprep.mubr.f32.mxu0 %v6663
      %8451 = vmatmul.mubr.f32.gmra.mxu0 %v6662
      %v8452 = vpop.f32.mrf.mxu0
      %v8453 = vadd.f32 %v8228, %v8452
      %v8454 = vpop.f32.mrf.mxu0
      %8455 = vmatprep.mubr.f32.mxu0 %v6681
      %8456 = vmatmul.mubr.f32.gmra.mxu0 %v6680
      %v8457 = vpop.f32.mrf.mxu0
      %v8458 = vadd.f32 %v8233, %v8457
      %v8459 = vpop.f32.mrf.mxu0
      %8460 = vmatprep.mubr.f32.mxu0 %v6699
      %8461 = vmatmul.mubr.f32.gmra.mxu0 %v6698
      %v8462 = vpop.f32.mrf.mxu0
      %v8463 = vadd.f32 %v8238, %v8462
      %v8464 = vpop.f32.mrf.mxu0
      %8465 = vmatprep.mubr.f32.mxu0 %v6717
      %8466 = vmatmul.mubr.f32.gmra.mxu0 %v6716
      %v8467 = vpop.f32.mrf.mxu0
      %v8468 = vadd.f32 %v8243, %v8467
      %v8469 = vpop.f32.mrf.mxu0
      %8470 = vmatprep.mubr.f32.mxu0 %v6735
      %8471 = vmatmul.mubr.f32.gmra.mxu0 %v6734
      %v8472 = vpop.f32.mrf.mxu0
      %v8473 = vadd.f32 %v8248, %v8472
      %v8474 = vpop.f32.mrf.mxu0
      %8475 = vmatprep.mubr.f32.mxu0 %v6753
      %8476 = vmatmul.mubr.f32.gmra.mxu0 %v6752
      %v8477 = vpop.f32.mrf.mxu0
      %v8478 = vadd.f32 %v8253, %v8477
      %v8479 = vpop.f32.mrf.mxu0
      %8480 = vmatprep.mubr.f32.mxu0 %v6771
      %8481 = vmatmul.mubr.f32.gmra.mxu0 %v6770
      %v8482 = vpop.f32.mrf.mxu0
      %v8483 = vadd.f32 %v8258, %v8482
      %v8484 = vpop.f32.mrf.mxu0
      %8485 = vmatprep.mubr.f32.mxu0 %v6789
      %8486 = vmatmul.mubr.f32.gmra.mxu0 %v6788
      %v8487 = vpop.f32.mrf.mxu0
      %v8488 = vadd.f32 %v8263, %v8487
      %v8489 = vpop.f32.mrf.mxu0
      %8490 = vmatprep.mubr.f32.mxu0 %v6807
      %8491 = vmatmul.mubr.f32.gmra.mxu0 %v6806
      %v8492 = vpop.f32.mrf.mxu0
      %v8493 = vadd.f32 %v8268, %v8492
      %v8494 = vpop.f32.mrf.mxu0
      %8495 = vmatprep.mubr.f32.mxu0 %v6825
      %8496 = vmatmul.mubr.f32.gmra.mxu0 %v6824
      %v8497 = vpop.f32.mrf.mxu0
      %v8498 = vadd.f32 %v8273, %v8497
      %v8499 = vpop.f32.mrf.mxu0
      %8500 = vmatprep.mubr.f32.mxu0 %v6843
      %8501 = vmatmul.mubr.f32.gmra.mxu0 %v6842
      %v8502 = vpop.f32.mrf.mxu0
      %v8503 = vadd.f32 %v8278, %v8502
      %v8504 = vpop.f32.mrf.mxu0
      %8505 = vmatprep.mubr.f32.mxu0 %v6861
      %8506 = vmatmul.mubr.f32.gmra.mxu0 %v6860
      %v8507 = vpop.f32.mrf.mxu0
      %v8508 = vadd.f32 %v8283, %v8507
      %v8509 = vpop.f32.mrf.mxu0
      %8510 = vmatprep.mubr.f32.mxu0 %v6879
      %8511 = vmatmul.mubr.f32.gmra.mxu0 %v6878
      %v8512 = vpop.f32.mrf.mxu0
      %v8513 = vadd.f32 %v8288, %v8512
      %v8514 = vpop.f32.mrf.mxu0
      %8515 = vmatprep.mubr.f32.mxu0 %v6897
      %8516 = vmatmul.mubr.f32.gmra.mxu0 %v6896
      %v8517 = vpop.f32.mrf.mxu0
      %v8518 = vadd.f32 %v8293, %v8517
      %v8519 = vpop.f32.mrf.mxu0
      %8520 = vmatprep.mubr.f32.mxu0 %v6915
      %8521 = vmatmul.mubr.f32.gmra.mxu0 %v6914
      %v8522 = vpop.f32.mrf.mxu0
      %v8523 = vadd.f32 %v8298, %v8522
      %v8524 = vpop.f32.mrf.mxu0
      %8525 = vmatprep.mubr.f32.mxu0 %v6933
      %8526 = vmatmul.mubr.f32.gmra.mxu0 %v6932
      %v8527 = vpop.f32.mrf.mxu0
      %v8528 = vadd.f32 %v8303, %v8527
      %v8529 = vpop.f32.mrf.mxu0
      %8530 = vmatprep.mubr.f32.mxu0 %v6951
      %8531 = vmatmul.mubr.f32.gmra.mxu0 %v6950
      %v8532 = vpop.f32.mrf.mxu0
      %v8533 = vadd.f32 %v8308, %v8532
      %v8534 = vpop.f32.mrf.mxu0
      %8535 = vmatprep.mubr.f32.mxu0 %v6969
      %8536 = vmatmul.mubr.f32.gmra.mxu0 %v6968
      %v8537 = vpop.f32.mrf.mxu0
      %v8538 = vadd.f32 %v8313, %v8537
      %v8539 = vpop.f32.mrf.mxu0
      %8540 = vmatprep.mubr.f32.mxu0 %v6987
      %8541 = vmatmul.mubr.f32.gmra.mxu0 %v6986
      %v8542 = vpop.f32.mrf.mxu0
      %v8543 = vadd.f32 %v8318, %v8542
      %v8544 = vpop.f32.mrf.mxu0
      %8545 = vmatprep.mubr.f32.mxu0 %v7005
      %8546 = vmatmul.mubr.f32.gmra.mxu0 %v7004
      %v8547 = vpop.f32.mrf.mxu0
      %v8548 = vadd.f32 %v8323, %v8547
      %v8549 = vpop.f32.mrf.mxu0
      %8550 = vmatprep.mubr.f32.mxu0 %v7023
      %8551 = vmatmul.mubr.f32.gmra.mxu0 %v7022
      %v8552 = vpop.f32.mrf.mxu0
      %v8553 = vadd.f32 %v8328, %v8552
      %v8554 = vpop.f32.mrf.mxu0
      %8555 = vmatprep.mubr.f32.mxu0 %v7041
      %8556 = vmatmul.mubr.f32.gmra.mxu0 %v7040
      %v8557 = vpop.f32.mrf.mxu0
      %v8558 = vadd.f32 %v8333, %v8557
      %v8559 = vpop.f32.mrf.mxu0
      %8560 = vmatprep.mubr.f32.mxu0 %v7059
      %8561 = vmatmul.mubr.f32.gmra.mxu0 %v7058
      %v8562 = vpop.f32.mrf.mxu0
      %v8563 = vadd.f32 %v8338, %v8562
      %v8564 = vpop.f32.mrf.mxu0
      %8565 = vmatprep.mubr.f32.mxu0 %v7077
      %8566 = vmatmul.mubr.f32.gmra.mxu0 %v7076
      %v8567 = vpop.f32.mrf.mxu0
      %v8568 = vadd.f32 %v8343, %v8567
      %v8569 = vpop.f32.mrf.mxu0
      %8570 = vmatprep.mubr.f32.mxu0 %v7095
      %8571 = vmatmul.mubr.f32.gmra.mxu0 %v7094
      %v8572 = vpop.f32.mrf.mxu0
      %v8573 = vadd.f32 %v8348, %v8572
      %v8574 = vpop.f32.mrf.mxu0
      %8575 = vmatprep.mubr.f32.mxu0 %v7113
      %8576 = vmatmul.mubr.f32.gmra.mxu0 %v7112
      %v8577 = vpop.f32.mrf.mxu0
      %v8578 = vadd.f32 %v8353, %v8577
      %v8579 = vpop.f32.mrf.mxu0
      %8580 = vmatprep.mubr.f32.mxu0 %v7131
      %8581 = vmatmul.mubr.f32.gmra.mxu0 %v7130
      %v8582 = vpop.f32.mrf.mxu0
      %v8583 = vadd.f32 %v8358, %v8582
      %v8584 = vpop.f32.mrf.mxu0
      %8585 = vmatprep.mubr.f32.mxu0 %v7149
      %8586 = vmatmul.mubr.f32.gmra.mxu0 %v7148
      %v8587 = vpop.f32.mrf.mxu0
      %v8588 = vadd.f32 %v8363, %v8587
      %v8589 = vpop.f32.mrf.mxu0
      %8590 = vmatprep.mubr.f32.mxu0 %v7167
      %8591 = vmatmul.mubr.f32.gmra.mxu0 %v7166
      %v8592 = vpop.f32.mrf.mxu0
      %v8593 = vadd.f32 %v8368, %v8592
      %v8594 = vpop.f32.mrf.mxu0
      %8595 = vdwg.mxu0
      %8596 = vmatprep.subr.mxu0 0.0
      %8597 = vmatpush1.msra.mxu0 %v7351
      %8598 = vmatprep.subr.mxu0 0.0
      %8599 = vmatpush1.msra.mxu0 %v7350
      %8600 = vmatprep.subr.mxu0 0.0
      %8601 = vmatpush1.msra.mxu0 %v7349
      %8602 = vmatprep.subr.mxu0 0.0
      %8603 = vmatpush1.msra.mxu0 %v7348
      %8604 = vmatprep.subr.mxu0 0.0
      %8605 = vmatpush1.msra.mxu0 %v7347
      %8606 = vmatprep.subr.mxu0 0.0
      %8607 = vmatpush1.msra.mxu0 %v7346
      %8608 = vmatprep.subr.mxu0 0.0
      %8609 = vmatpush1.msra.mxu0 %v7345
      %8610 = vmatprep.subr.mxu0 0.0
      %8611 = vmatpush1.msra.mxu0 %v7344
      %8612 = vmatprep.subr.mxu0 0.0
      %8613 = vmatpush1.msra.mxu0 %v7343
      %8614 = vmatprep.subr.mxu0 0.0
      %8615 = vmatpush1.msra.mxu0 %v7342
      %8616 = vmatprep.subr.mxu0 0.0
      %8617 = vmatpush1.msra.mxu0 %v7341
      %8618 = vmatprep.subr.mxu0 0.0
      %8619 = vmatpush1.msra.mxu0 %v7340
      %8620 = vmatprep.subr.mxu0 0.0
      %8621 = vmatpush1.msra.mxu0 %v7339
      %8622 = vmatprep.subr.mxu0 0.0
      %8623 = vmatpush1.msra.mxu0 %v7338
      %8624 = vmatprep.subr.mxu0 0.0
      %8625 = vmatpush1.msra.mxu0 %v7337
      %8626 = vmatprep.subr.mxu0 0.0
      %8627 = vmatpush1.msra.mxu0 %v7336
      %8628 = vmatprep.subr.mxu0 0.0
      %8629 = vmatpush2.msra.mxu0 %v7367
      %8630 = vmatprep.subr.mxu0 0.0
      %8631 = vmatpush2.msra.mxu0 %v7366
      %8632 = vmatprep.subr.mxu0 0.0
      %8633 = vmatpush2.msra.mxu0 %v7365
      %8634 = vmatprep.subr.mxu0 0.0
      %8635 = vmatpush2.msra.mxu0 %v7364
      %8636 = vmatprep.subr.mxu0 0.0
      %8637 = vmatpush2.msra.mxu0 %v7363
      %8638 = vmatprep.subr.mxu0 0.0
      %8639 = vmatpush2.msra.mxu0 %v7362
      %8640 = vmatprep.subr.mxu0 0.0
      %8641 = vmatpush2.msra.mxu0 %v7361
      %8642 = vmatprep.subr.mxu0 0.0
      %8643 = vmatpush2.msra.mxu0 %v7360
      %8644 = vmatprep.subr.mxu0 0.0
      %8645 = vmatpush2.msra.mxu0 %v7359
      %8646 = vmatprep.subr.mxu0 0.0
      %8647 = vmatpush2.msra.mxu0 %v7358
      %8648 = vmatprep.subr.mxu0 0.0
      %8649 = vmatpush2.msra.mxu0 %v7357
      %8650 = vmatprep.subr.mxu0 0.0
      %8651 = vmatpush2.msra.mxu0 %v7356
      %8652 = vmatprep.subr.mxu0 0.0
      %8653 = vmatpush2.msra.mxu0 %v7355
      %8654 = vmatprep.subr.mxu0 0.0
      %8655 = vmatpush2.msra.mxu0 %v7354
      %8656 = vmatprep.subr.mxu0 0.0
      %8657 = vmatpush2.msra.mxu0 %v7353
      %8658 = vmatprep.subr.mxu0 0.0
      %8659 = vmatpush2.msra.mxu0 %v7352
      %8660 = vmatprep.mubr.f32.mxu0 %v6611
      %8661 = vmatmul.mubr.f32.gmra.mxu0 %v6610
      %v8662 = vpop.f32.mrf.mxu0
      %v8663 = vadd.f32 %v8438, %v8662
      %v8664 = vpop.f32.mrf.mxu0
      %8665 = vmatprep.mubr.f32.mxu0 %v6629
      %8666 = vmatmul.mubr.f32.gmra.mxu0 %v6628
      %v8667 = vpop.f32.mrf.mxu0
      %v8668 = vadd.f32 %v8443, %v8667
      %v8669 = vpop.f32.mrf.mxu0
      %8670 = vmatprep.mubr.f32.mxu0 %v6647
      %8671 = vmatmul.mubr.f32.gmra.mxu0 %v6646
      %v8672 = vpop.f32.mrf.mxu0
      %v8673 = vadd.f32 %v8448, %v8672
      %v8674 = vpop.f32.mrf.mxu0
      %8675 = vmatprep.mubr.f32.mxu0 %v6665
      %8676 = vmatmul.mubr.f32.gmra.mxu0 %v6664
      %v8677 = vpop.f32.mrf.mxu0
      %v8678 = vadd.f32 %v8453, %v8677
      %v8679 = vpop.f32.mrf.mxu0
      %8680 = vmatprep.mubr.f32.mxu0 %v6683
      %8681 = vmatmul.mubr.f32.gmra.mxu0 %v6682
      %v8682 = vpop.f32.mrf.mxu0
      %v8683 = vadd.f32 %v8458, %v8682
      %v8684 = vpop.f32.mrf.mxu0
      %8685 = vmatprep.mubr.f32.mxu0 %v6701
      %8686 = vmatmul.mubr.f32.gmra.mxu0 %v6700
      %v8687 = vpop.f32.mrf.mxu0
      %v8688 = vadd.f32 %v8463, %v8687
      %v8689 = vpop.f32.mrf.mxu0
      %8690 = vmatprep.mubr.f32.mxu0 %v6719
      %8691 = vmatmul.mubr.f32.gmra.mxu0 %v6718
      %v8692 = vpop.f32.mrf.mxu0
      %v8693 = vadd.f32 %v8468, %v8692
      %v8694 = vpop.f32.mrf.mxu0
      %8695 = vmatprep.mubr.f32.mxu0 %v6737
      %8696 = vmatmul.mubr.f32.gmra.mxu0 %v6736
      %v8697 = vpop.f32.mrf.mxu0
      %v8698 = vadd.f32 %v8473, %v8697
      %v8699 = vpop.f32.mrf.mxu0
      %8700 = vmatprep.mubr.f32.mxu0 %v6755
      %8701 = vmatmul.mubr.f32.gmra.mxu0 %v6754
      %v8702 = vpop.f32.mrf.mxu0
      %v8703 = vadd.f32 %v8478, %v8702
      %v8704 = vpop.f32.mrf.mxu0
      %8705 = vmatprep.mubr.f32.mxu0 %v6773
      %8706 = vmatmul.mubr.f32.gmra.mxu0 %v6772
      %v8707 = vpop.f32.mrf.mxu0
      %v8708 = vadd.f32 %v8483, %v8707
      %v8709 = vpop.f32.mrf.mxu0
      %8710 = vmatprep.mubr.f32.mxu0 %v6791
      %8711 = vmatmul.mubr.f32.gmra.mxu0 %v6790
      %v8712 = vpop.f32.mrf.mxu0
      %v8713 = vadd.f32 %v8488, %v8712
      %v8714 = vpop.f32.mrf.mxu0
      %8715 = vmatprep.mubr.f32.mxu0 %v6809
      %8716 = vmatmul.mubr.f32.gmra.mxu0 %v6808
      %v8717 = vpop.f32.mrf.mxu0
      %v8718 = vadd.f32 %v8493, %v8717
      %v8719 = vpop.f32.mrf.mxu0
      %8720 = vmatprep.mubr.f32.mxu0 %v6827
      %8721 = vmatmul.mubr.f32.gmra.mxu0 %v6826
      %v8722 = vpop.f32.mrf.mxu0
      %v8723 = vadd.f32 %v8498, %v8722
      %v8724 = vpop.f32.mrf.mxu0
      %8725 = vmatprep.mubr.f32.mxu0 %v6845
      %8726 = vmatmul.mubr.f32.gmra.mxu0 %v6844
      %v8727 = vpop.f32.mrf.mxu0
      %v8728 = vadd.f32 %v8503, %v8727
      %v8729 = vpop.f32.mrf.mxu0
      %8730 = vmatprep.mubr.f32.mxu0 %v6863
      %8731 = vmatmul.mubr.f32.gmra.mxu0 %v6862
      %v8732 = vpop.f32.mrf.mxu0
      %v8733 = vadd.f32 %v8508, %v8732
      %v8734 = vpop.f32.mrf.mxu0
      %8735 = vmatprep.mubr.f32.mxu0 %v6881
      %8736 = vmatmul.mubr.f32.gmra.mxu0 %v6880
      %v8737 = vpop.f32.mrf.mxu0
      %v8738 = vadd.f32 %v8513, %v8737
      %v8739 = vpop.f32.mrf.mxu0
      %8740 = vmatprep.mubr.f32.mxu0 %v6899
      %8741 = vmatmul.mubr.f32.gmra.mxu0 %v6898
      %v8742 = vpop.f32.mrf.mxu0
      %v8743 = vadd.f32 %v8518, %v8742
      %v8744 = vpop.f32.mrf.mxu0
      %8745 = vmatprep.mubr.f32.mxu0 %v6917
      %8746 = vmatmul.mubr.f32.gmra.mxu0 %v6916
      %v8747 = vpop.f32.mrf.mxu0
      %v8748 = vadd.f32 %v8523, %v8747
      %v8749 = vpop.f32.mrf.mxu0
      %8750 = vmatprep.mubr.f32.mxu0 %v6935
      %8751 = vmatmul.mubr.f32.gmra.mxu0 %v6934
      %v8752 = vpop.f32.mrf.mxu0
      %v8753 = vadd.f32 %v8528, %v8752
      %v8754 = vpop.f32.mrf.mxu0
      %8755 = vmatprep.mubr.f32.mxu0 %v6953
      %8756 = vmatmul.mubr.f32.gmra.mxu0 %v6952
      %v8757 = vpop.f32.mrf.mxu0
      %v8758 = vadd.f32 %v8533, %v8757
      %v8759 = vpop.f32.mrf.mxu0
      %8760 = vmatprep.mubr.f32.mxu0 %v6971
      %8761 = vmatmul.mubr.f32.gmra.mxu0 %v6970
      %v8762 = vpop.f32.mrf.mxu0
      %v8763 = vadd.f32 %v8538, %v8762
      %v8764 = vpop.f32.mrf.mxu0
      %8765 = vmatprep.mubr.f32.mxu0 %v6989
      %8766 = vmatmul.mubr.f32.gmra.mxu0 %v6988
      %v8767 = vpop.f32.mrf.mxu0
      %v8768 = vadd.f32 %v8543, %v8767
      %v8769 = vpop.f32.mrf.mxu0
      %8770 = vmatprep.mubr.f32.mxu0 %v7007
      %8771 = vmatmul.mubr.f32.gmra.mxu0 %v7006
      %v8772 = vpop.f32.mrf.mxu0
      %v8773 = vadd.f32 %v8548, %v8772
      %v8774 = vpop.f32.mrf.mxu0
      %8775 = vmatprep.mubr.f32.mxu0 %v7025
      %8776 = vmatmul.mubr.f32.gmra.mxu0 %v7024
      %v8777 = vpop.f32.mrf.mxu0
      %v8778 = vadd.f32 %v8553, %v8777
      %v8779 = vpop.f32.mrf.mxu0
      %8780 = vmatprep.mubr.f32.mxu0 %v7043
      %8781 = vmatmul.mubr.f32.gmra.mxu0 %v7042
      %v8782 = vpop.f32.mrf.mxu0
      %v8783 = vadd.f32 %v8558, %v8782
      %v8784 = vpop.f32.mrf.mxu0
      %8785 = vmatprep.mubr.f32.mxu0 %v7061
      %8786 = vmatmul.mubr.f32.gmra.mxu0 %v7060
      %v8787 = vpop.f32.mrf.mxu0
      %v8788 = vadd.f32 %v8563, %v8787
      %v8789 = vpop.f32.mrf.mxu0
      %8790 = vmatprep.mubr.f32.mxu0 %v7079
      %8791 = vmatmul.mubr.f32.gmra.mxu0 %v7078
      %v8792 = vpop.f32.mrf.mxu0
      %v8793 = vadd.f32 %v8568, %v8792
      %v8794 = vpop.f32.mrf.mxu0
      %8795 = vmatprep.mubr.f32.mxu0 %v7097
      %8796 = vmatmul.mubr.f32.gmra.mxu0 %v7096
      %v8797 = vpop.f32.mrf.mxu0
      %v8798 = vadd.f32 %v8573, %v8797
      %v8799 = vpop.f32.mrf.mxu0
      %8800 = vmatprep.mubr.f32.mxu0 %v7115
      %8801 = vmatmul.mubr.f32.gmra.mxu0 %v7114
      %v8802 = vpop.f32.mrf.mxu0
      %v8803 = vadd.f32 %v8578, %v8802
      %v8804 = vpop.f32.mrf.mxu0
      %8805 = vmatprep.mubr.f32.mxu0 %v7133
      %8806 = vmatmul.mubr.f32.gmra.mxu0 %v7132
      %v8807 = vpop.f32.mrf.mxu0
      %v8808 = vadd.f32 %v8583, %v8807
      %v8809 = vpop.f32.mrf.mxu0
      %8810 = vmatprep.mubr.f32.mxu0 %v7151
      %8811 = vmatmul.mubr.f32.gmra.mxu0 %v7150
      %v8812 = vpop.f32.mrf.mxu0
      %v8813 = vadd.f32 %v8588, %v8812
      %v8814 = vpop.f32.mrf.mxu0
      %8815 = vmatprep.mubr.f32.mxu0 %v7169
      %8816 = vmatmul.mubr.f32.gmra.mxu0 %v7168
      %v8817 = vpop.f32.mrf.mxu0
      %v8818 = vadd.f32 %v8593, %v8817
      %v8819 = vpop.f32.mrf.mxu0
      %8820 = vdwg.mxu0
      %8821 = vmatprep.subr.mxu0 0.0
      %8822 = vmatpush1.msra.mxu0 %v7383
      %8823 = vmatprep.subr.mxu0 0.0
      %8824 = vmatpush1.msra.mxu0 %v7382
      %8825 = vmatprep.subr.mxu0 0.0
      %8826 = vmatpush1.msra.mxu0 %v7381
      %8827 = vmatprep.subr.mxu0 0.0
      %8828 = vmatpush1.msra.mxu0 %v7380
      %8829 = vmatprep.subr.mxu0 0.0
      %8830 = vmatpush1.msra.mxu0 %v7379
      %8831 = vmatprep.subr.mxu0 0.0
      %8832 = vmatpush1.msra.mxu0 %v7378
      %8833 = vmatprep.subr.mxu0 0.0
      %8834 = vmatpush1.msra.mxu0 %v7377
      %8835 = vmatprep.subr.mxu0 0.0
      %8836 = vmatpush1.msra.mxu0 %v7376
      %8837 = vmatprep.subr.mxu0 0.0
      %8838 = vmatpush1.msra.mxu0 %v7375
      %8839 = vmatprep.subr.mxu0 0.0
      %8840 = vmatpush1.msra.mxu0 %v7374
      %8841 = vmatprep.subr.mxu0 0.0
      %8842 = vmatpush1.msra.mxu0 %v7373
      %8843 = vmatprep.subr.mxu0 0.0
      %8844 = vmatpush1.msra.mxu0 %v7372
      %8845 = vmatprep.subr.mxu0 0.0
      %8846 = vmatpush1.msra.mxu0 %v7371
      %8847 = vmatprep.subr.mxu0 0.0
      %8848 = vmatpush1.msra.mxu0 %v7370
      %8849 = vmatprep.subr.mxu0 0.0
      %8850 = vmatpush1.msra.mxu0 %v7369
      %8851 = vmatprep.subr.mxu0 0.0
      %8852 = vmatpush1.msra.mxu0 %v7368
      %8853 = vmatprep.subr.mxu0 0.0
      %8854 = vmatpush2.msra.mxu0 %v7399
      %8855 = vmatprep.subr.mxu0 0.0
      %8856 = vmatpush2.msra.mxu0 %v7398
      %8857 = vmatprep.subr.mxu0 0.0
      %8858 = vmatpush2.msra.mxu0 %v7397
      %8859 = vmatprep.subr.mxu0 0.0
      %8860 = vmatpush2.msra.mxu0 %v7396
      %8861 = vmatprep.subr.mxu0 0.0
      %8862 = vmatpush2.msra.mxu0 %v7395
      %8863 = vmatprep.subr.mxu0 0.0
      %8864 = vmatpush2.msra.mxu0 %v7394
      %8865 = vmatprep.subr.mxu0 0.0
      %8866 = vmatpush2.msra.mxu0 %v7393
      %8867 = vmatprep.subr.mxu0 0.0
      %8868 = vmatpush2.msra.mxu0 %v7392
      %8869 = vmatprep.subr.mxu0 0.0
      %8870 = vmatpush2.msra.mxu0 %v7391
      %8871 = vmatprep.subr.mxu0 0.0
      %8872 = vmatpush2.msra.mxu0 %v7390
      %8873 = vmatprep.subr.mxu0 0.0
      %8874 = vmatpush2.msra.mxu0 %v7389
      %8875 = vmatprep.subr.mxu0 0.0
      %8876 = vmatpush2.msra.mxu0 %v7388
      %8877 = vmatprep.subr.mxu0 0.0
      %8878 = vmatpush2.msra.mxu0 %v7387
      %8879 = vmatprep.subr.mxu0 0.0
      %8880 = vmatpush2.msra.mxu0 %v7386
      %8881 = vmatprep.subr.mxu0 0.0
      %8882 = vmatpush2.msra.mxu0 %v7385
      %8883 = vmatprep.subr.mxu0 0.0
      %8884 = vmatpush2.msra.mxu0 %v7384
      %8885 = vmatprep.mubr.f32.mxu0 %v6613
      %8886 = vmatmul.mubr.f32.gmra.mxu0 %v6612
      %v8887 = vpop.f32.mrf.mxu0
      %v8888 = vadd.f32 %v8663, %v8887
      %v8889 = vpop.f32.mrf.mxu0
      %8890 = vmatprep.mubr.f32.mxu0 %v6631
      %8891 = vmatmul.mubr.f32.gmra.mxu0 %v6630
      %v8892 = vpop.f32.mrf.mxu0
      %v8893 = vadd.f32 %v8668, %v8892
      %v8894 = vpop.f32.mrf.mxu0
      %8895 = vmatprep.mubr.f32.mxu0 %v6649
      %8896 = vmatmul.mubr.f32.gmra.mxu0 %v6648
      %v8897 = vpop.f32.mrf.mxu0
      %v8898 = vadd.f32 %v8673, %v8897
      %v8899 = vpop.f32.mrf.mxu0
      %8900 = vmatprep.mubr.f32.mxu0 %v6667
      %8901 = vmatmul.mubr.f32.gmra.mxu0 %v6666
      %v8902 = vpop.f32.mrf.mxu0
      %v8903 = vadd.f32 %v8678, %v8902
      %v8904 = vpop.f32.mrf.mxu0
      %8905 = vmatprep.mubr.f32.mxu0 %v6685
      %8906 = vmatmul.mubr.f32.gmra.mxu0 %v6684
      %v8907 = vpop.f32.mrf.mxu0
      %v8908 = vadd.f32 %v8683, %v8907
      %v8909 = vpop.f32.mrf.mxu0
      %8910 = vmatprep.mubr.f32.mxu0 %v6703
      %8911 = vmatmul.mubr.f32.gmra.mxu0 %v6702
      %v8912 = vpop.f32.mrf.mxu0
      %v8913 = vadd.f32 %v8688, %v8912
      %v8914 = vpop.f32.mrf.mxu0
      %8915 = vmatprep.mubr.f32.mxu0 %v6721
      %8916 = vmatmul.mubr.f32.gmra.mxu0 %v6720
      %v8917 = vpop.f32.mrf.mxu0
      %v8918 = vadd.f32 %v8693, %v8917
      %v8919 = vpop.f32.mrf.mxu0
      %8920 = vmatprep.mubr.f32.mxu0 %v6739
      %8921 = vmatmul.mubr.f32.gmra.mxu0 %v6738
      %v8922 = vpop.f32.mrf.mxu0
      %v8923 = vadd.f32 %v8698, %v8922
      %v8924 = vpop.f32.mrf.mxu0
      %8925 = vmatprep.mubr.f32.mxu0 %v6757
      %8926 = vmatmul.mubr.f32.gmra.mxu0 %v6756
      %v8927 = vpop.f32.mrf.mxu0
      %v8928 = vadd.f32 %v8703, %v8927
      %v8929 = vpop.f32.mrf.mxu0
      %8930 = vmatprep.mubr.f32.mxu0 %v6775
      %8931 = vmatmul.mubr.f32.gmra.mxu0 %v6774
      %v8932 = vpop.f32.mrf.mxu0
      %v8933 = vadd.f32 %v8708, %v8932
      %v8934 = vpop.f32.mrf.mxu0
      %8935 = vmatprep.mubr.f32.mxu0 %v6793
      %8936 = vmatmul.mubr.f32.gmra.mxu0 %v6792
      %v8937 = vpop.f32.mrf.mxu0
      %v8938 = vadd.f32 %v8713, %v8937
      %v8939 = vpop.f32.mrf.mxu0
      %8940 = vmatprep.mubr.f32.mxu0 %v6811
      %8941 = vmatmul.mubr.f32.gmra.mxu0 %v6810
      %v8942 = vpop.f32.mrf.mxu0
      %v8943 = vadd.f32 %v8718, %v8942
      %v8944 = vpop.f32.mrf.mxu0
      %8945 = vmatprep.mubr.f32.mxu0 %v6829
      %8946 = vmatmul.mubr.f32.gmra.mxu0 %v6828
      %v8947 = vpop.f32.mrf.mxu0
      %v8948 = vadd.f32 %v8723, %v8947
      %v8949 = vpop.f32.mrf.mxu0
      %8950 = vmatprep.mubr.f32.mxu0 %v6847
      %8951 = vmatmul.mubr.f32.gmra.mxu0 %v6846
      %v8952 = vpop.f32.mrf.mxu0
      %v8953 = vadd.f32 %v8728, %v8952
      %v8954 = vpop.f32.mrf.mxu0
      %8955 = vmatprep.mubr.f32.mxu0 %v6865
      %8956 = vmatmul.mubr.f32.gmra.mxu0 %v6864
      %v8957 = vpop.f32.mrf.mxu0
      %v8958 = vadd.f32 %v8733, %v8957
      %v8959 = vpop.f32.mrf.mxu0
      %8960 = vmatprep.mubr.f32.mxu0 %v6883
      %8961 = vmatmul.mubr.f32.gmra.mxu0 %v6882
      %v8962 = vpop.f32.mrf.mxu0
      %v8963 = vadd.f32 %v8738, %v8962
      %v8964 = vpop.f32.mrf.mxu0
      %8965 = vmatprep.mubr.f32.mxu0 %v6901
      %8966 = vmatmul.mubr.f32.gmra.mxu0 %v6900
      %v8967 = vpop.f32.mrf.mxu0
      %v8968 = vadd.f32 %v8743, %v8967
      %v8969 = vpop.f32.mrf.mxu0
      %8970 = vmatprep.mubr.f32.mxu0 %v6919
      %8971 = vmatmul.mubr.f32.gmra.mxu0 %v6918
      %v8972 = vpop.f32.mrf.mxu0
      %v8973 = vadd.f32 %v8748, %v8972
      %v8974 = vpop.f32.mrf.mxu0
      %8975 = vmatprep.mubr.f32.mxu0 %v6937
      %8976 = vmatmul.mubr.f32.gmra.mxu0 %v6936
      %v8977 = vpop.f32.mrf.mxu0
      %v8978 = vadd.f32 %v8753, %v8977
      %v8979 = vpop.f32.mrf.mxu0
      %8980 = vmatprep.mubr.f32.mxu0 %v6955
      %8981 = vmatmul.mubr.f32.gmra.mxu0 %v6954
      %v8982 = vpop.f32.mrf.mxu0
      %v8983 = vadd.f32 %v8758, %v8982
      %v8984 = vpop.f32.mrf.mxu0
      %8985 = vmatprep.mubr.f32.mxu0 %v6973
      %8986 = vmatmul.mubr.f32.gmra.mxu0 %v6972
      %v8987 = vpop.f32.mrf.mxu0
      %v8988 = vadd.f32 %v8763, %v8987
      %v8989 = vpop.f32.mrf.mxu0
      %8990 = vmatprep.mubr.f32.mxu0 %v6991
      %8991 = vmatmul.mubr.f32.gmra.mxu0 %v6990
      %v8992 = vpop.f32.mrf.mxu0
      %v8993 = vadd.f32 %v8768, %v8992
      %v8994 = vpop.f32.mrf.mxu0
      %8995 = vmatprep.mubr.f32.mxu0 %v7009
      %8996 = vmatmul.mubr.f32.gmra.mxu0 %v7008
      %v8997 = vpop.f32.mrf.mxu0
      %v8998 = vadd.f32 %v8773, %v8997
      %v8999 = vpop.f32.mrf.mxu0
      %9000 = vmatprep.mubr.f32.mxu0 %v7027
      %9001 = vmatmul.mubr.f32.gmra.mxu0 %v7026
      %v9002 = vpop.f32.mrf.mxu0
      %v9003 = vadd.f32 %v8778, %v9002
      %v9004 = vpop.f32.mrf.mxu0
      %9005 = vmatprep.mubr.f32.mxu0 %v7045
      %9006 = vmatmul.mubr.f32.gmra.mxu0 %v7044
      %v9007 = vpop.f32.mrf.mxu0
      %v9008 = vadd.f32 %v8783, %v9007
      %v9009 = vpop.f32.mrf.mxu0
      %9010 = vmatprep.mubr.f32.mxu0 %v7063
      %9011 = vmatmul.mubr.f32.gmra.mxu0 %v7062
      %v9012 = vpop.f32.mrf.mxu0
      %v9013 = vadd.f32 %v8788, %v9012
      %v9014 = vpop.f32.mrf.mxu0
      %9015 = vmatprep.mubr.f32.mxu0 %v7081
      %9016 = vmatmul.mubr.f32.gmra.mxu0 %v7080
      %v9017 = vpop.f32.mrf.mxu0
      %v9018 = vadd.f32 %v8793, %v9017
      %v9019 = vpop.f32.mrf.mxu0
      %9020 = vmatprep.mubr.f32.mxu0 %v7099
      %9021 = vmatmul.mubr.f32.gmra.mxu0 %v7098
      %v9022 = vpop.f32.mrf.mxu0
      %v9023 = vadd.f32 %v8798, %v9022
      %v9024 = vpop.f32.mrf.mxu0
      %9025 = vmatprep.mubr.f32.mxu0 %v7117
      %9026 = vmatmul.mubr.f32.gmra.mxu0 %v7116
      %v9027 = vpop.f32.mrf.mxu0
      %v9028 = vadd.f32 %v8803, %v9027
      %v9029 = vpop.f32.mrf.mxu0
      %9030 = vmatprep.mubr.f32.mxu0 %v7135
      %9031 = vmatmul.mubr.f32.gmra.mxu0 %v7134
      %v9032 = vpop.f32.mrf.mxu0
      %v9033 = vadd.f32 %v8808, %v9032
      %v9034 = vpop.f32.mrf.mxu0
      %9035 = vmatprep.mubr.f32.mxu0 %v7153
      %9036 = vmatmul.mubr.f32.gmra.mxu0 %v7152
      %v9037 = vpop.f32.mrf.mxu0
      %v9038 = vadd.f32 %v8813, %v9037
      %v9039 = vpop.f32.mrf.mxu0
      %9040 = vmatprep.mubr.f32.mxu0 %v7171
      %9041 = vmatmul.mubr.f32.gmra.mxu0 %v7170
      %v9042 = vpop.f32.mrf.mxu0
      %v9043 = vadd.f32 %v8818, %v9042
      %v9044 = vpop.f32.mrf.mxu0
      %9045 = vdwg.mxu0
      %9046 = vmatprep.subr.mxu0 0.0
      %9047 = vmatpush1.msra.mxu0 %v7415
      %9048 = vmatprep.subr.mxu0 0.0
      %9049 = vmatpush1.msra.mxu0 %v7414
      %9050 = vmatprep.subr.mxu0 0.0
      %9051 = vmatpush1.msra.mxu0 %v7413
      %9052 = vmatprep.subr.mxu0 0.0
      %9053 = vmatpush1.msra.mxu0 %v7412
      %9054 = vmatprep.subr.mxu0 0.0
      %9055 = vmatpush1.msra.mxu0 %v7411
      %9056 = vmatprep.subr.mxu0 0.0
      %9057 = vmatpush1.msra.mxu0 %v7410
      %9058 = vmatprep.subr.mxu0 0.0
      %9059 = vmatpush1.msra.mxu0 %v7409
      %9060 = vmatprep.subr.mxu0 0.0
      %9061 = vmatpush1.msra.mxu0 %v7408
      %9062 = vmatprep.subr.mxu0 0.0
      %9063 = vmatpush1.msra.mxu0 %v7407
      %9064 = vmatprep.subr.mxu0 0.0
      %9065 = vmatpush1.msra.mxu0 %v7406
      %9066 = vmatprep.subr.mxu0 0.0
      %9067 = vmatpush1.msra.mxu0 %v7405
      %9068 = vmatprep.subr.mxu0 0.0
      %9069 = vmatpush1.msra.mxu0 %v7404
      %9070 = vmatprep.subr.mxu0 0.0
      %9071 = vmatpush1.msra.mxu0 %v7403
      %9072 = vmatprep.subr.mxu0 0.0
      %9073 = vmatpush1.msra.mxu0 %v7402
      %9074 = vmatprep.subr.mxu0 0.0
      %9075 = vmatpush1.msra.mxu0 %v7401
      %9076 = vmatprep.subr.mxu0 0.0
      %9077 = vmatpush1.msra.mxu0 %v7400
      %9078 = vmatprep.subr.mxu0 0.0
      %9079 = vmatpush2.msra.mxu0 %v7431
      %9080 = vmatprep.subr.mxu0 0.0
      %9081 = vmatpush2.msra.mxu0 %v7430
      %9082 = vmatprep.subr.mxu0 0.0
      %9083 = vmatpush2.msra.mxu0 %v7429
      %9084 = vmatprep.subr.mxu0 0.0
      %9085 = vmatpush2.msra.mxu0 %v7428
      %9086 = vmatprep.subr.mxu0 0.0
      %9087 = vmatpush2.msra.mxu0 %v7427
      %9088 = vmatprep.subr.mxu0 0.0
      %9089 = vmatpush2.msra.mxu0 %v7426
      %9090 = vmatprep.subr.mxu0 0.0
      %9091 = vmatpush2.msra.mxu0 %v7425
      %9092 = vmatprep.subr.mxu0 0.0
      %9093 = vmatpush2.msra.mxu0 %v7424
      %9094 = vmatprep.subr.mxu0 0.0
      %9095 = vmatpush2.msra.mxu0 %v7423
      %9096 = vmatprep.subr.mxu0 0.0
      %9097 = vmatpush2.msra.mxu0 %v7422
      %9098 = vmatprep.subr.mxu0 0.0
      %9099 = vmatpush2.msra.mxu0 %v7421
      %9100 = vmatprep.subr.mxu0 0.0
      %9101 = vmatpush2.msra.mxu0 %v7420
      %9102 = vmatprep.subr.mxu0 0.0
      %9103 = vmatpush2.msra.mxu0 %v7419
      %9104 = vmatprep.subr.mxu0 0.0
      %9105 = vmatpush2.msra.mxu0 %v7418
      %9106 = vmatprep.subr.mxu0 0.0
      %9107 = vmatpush2.msra.mxu0 %v7417
      %9108 = vmatprep.subr.mxu0 0.0
      %9109 = vmatpush2.msra.mxu0 %v7416
      %9110 = vmatprep.mubr.f32.mxu0 %v6615
      %9111 = vmatmul.mubr.f32.gmra.mxu0 %v6614
      %v9112 = vpop.f32.mrf.mxu0
      %v9113 = vadd.f32 %v8888, %v9112
      %v9114 = vpop.f32.mrf.mxu0
      %9115 = vmatprep.mubr.f32.mxu0 %v6633
      %9116 = vmatmul.mubr.f32.gmra.mxu0 %v6632
      %v9117 = vpop.f32.mrf.mxu0
      %v9118 = vadd.f32 %v8893, %v9117
      %v9119 = vpop.f32.mrf.mxu0
      %9120 = vmatprep.mubr.f32.mxu0 %v6651
      %9121 = vmatmul.mubr.f32.gmra.mxu0 %v6650
      %v9122 = vpop.f32.mrf.mxu0
      %v9123 = vadd.f32 %v8898, %v9122
      %v9124 = vpop.f32.mrf.mxu0
      %9125 = vmatprep.mubr.f32.mxu0 %v6669
      %9126 = vmatmul.mubr.f32.gmra.mxu0 %v6668
      %v9127 = vpop.f32.mrf.mxu0
      %v9128 = vadd.f32 %v8903, %v9127
      %v9129 = vpop.f32.mrf.mxu0
      %9130 = vmatprep.mubr.f32.mxu0 %v6687
      %9131 = vmatmul.mubr.f32.gmra.mxu0 %v6686
      %v9132 = vpop.f32.mrf.mxu0
      %v9133 = vadd.f32 %v8908, %v9132
      %v9134 = vpop.f32.mrf.mxu0
      %9135 = vmatprep.mubr.f32.mxu0 %v6705
      %9136 = vmatmul.mubr.f32.gmra.mxu0 %v6704
      %v9137 = vpop.f32.mrf.mxu0
      %v9138 = vadd.f32 %v8913, %v9137
      %v9139 = vpop.f32.mrf.mxu0
      %9140 = vmatprep.mubr.f32.mxu0 %v6723
      %9141 = vmatmul.mubr.f32.gmra.mxu0 %v6722
      %v9142 = vpop.f32.mrf.mxu0
      %v9143 = vadd.f32 %v8918, %v9142
      %v9144 = vpop.f32.mrf.mxu0
      %9145 = vmatprep.mubr.f32.mxu0 %v6741
      %9146 = vmatmul.mubr.f32.gmra.mxu0 %v6740
      %v9147 = vpop.f32.mrf.mxu0
      %v9148 = vadd.f32 %v8923, %v9147
      %v9149 = vpop.f32.mrf.mxu0
      %9150 = vmatprep.mubr.f32.mxu0 %v6759
      %9151 = vmatmul.mubr.f32.gmra.mxu0 %v6758
      %v9152 = vpop.f32.mrf.mxu0
      %v9153 = vadd.f32 %v8928, %v9152
      %v9154 = vpop.f32.mrf.mxu0
      %9155 = vmatprep.mubr.f32.mxu0 %v6777
      %9156 = vmatmul.mubr.f32.gmra.mxu0 %v6776
      %v9157 = vpop.f32.mrf.mxu0
      %v9158 = vadd.f32 %v8933, %v9157
      %v9159 = vpop.f32.mrf.mxu0
      %9160 = vmatprep.mubr.f32.mxu0 %v6795
      %9161 = vmatmul.mubr.f32.gmra.mxu0 %v6794
      %v9162 = vpop.f32.mrf.mxu0
      %v9163 = vadd.f32 %v8938, %v9162
      %v9164 = vpop.f32.mrf.mxu0
      %9165 = vmatprep.mubr.f32.mxu0 %v6813
      %9166 = vmatmul.mubr.f32.gmra.mxu0 %v6812
      %v9167 = vpop.f32.mrf.mxu0
      %v9168 = vadd.f32 %v8943, %v9167
      %v9169 = vpop.f32.mrf.mxu0
      %9170 = vmatprep.mubr.f32.mxu0 %v6831
      %9171 = vmatmul.mubr.f32.gmra.mxu0 %v6830
      %v9172 = vpop.f32.mrf.mxu0
      %v9173 = vadd.f32 %v8948, %v9172
      %v9174 = vpop.f32.mrf.mxu0
      %9175 = vmatprep.mubr.f32.mxu0 %v6849
      %9176 = vmatmul.mubr.f32.gmra.mxu0 %v6848
      %v9177 = vpop.f32.mrf.mxu0
      %v9178 = vadd.f32 %v8953, %v9177
      %v9179 = vpop.f32.mrf.mxu0
      %9180 = vmatprep.mubr.f32.mxu0 %v6867
      %9181 = vmatmul.mubr.f32.gmra.mxu0 %v6866
      %v9182 = vpop.f32.mrf.mxu0
      %v9183 = vadd.f32 %v8958, %v9182
      %v9184 = vpop.f32.mrf.mxu0
      %9185 = vmatprep.mubr.f32.mxu0 %v6885
      %9186 = vmatmul.mubr.f32.gmra.mxu0 %v6884
      %v9187 = vpop.f32.mrf.mxu0
      %v9188 = vadd.f32 %v8963, %v9187
      %v9189 = vpop.f32.mrf.mxu0
      %9190 = vmatprep.mubr.f32.mxu0 %v6903
      %9191 = vmatmul.mubr.f32.gmra.mxu0 %v6902
      %v9192 = vpop.f32.mrf.mxu0
      %v9193 = vadd.f32 %v8968, %v9192
      %v9194 = vpop.f32.mrf.mxu0
      %9195 = vmatprep.mubr.f32.mxu0 %v6921
      %9196 = vmatmul.mubr.f32.gmra.mxu0 %v6920
      %v9197 = vpop.f32.mrf.mxu0
      %v9198 = vadd.f32 %v8973, %v9197
      %v9199 = vpop.f32.mrf.mxu0
      %9200 = vmatprep.mubr.f32.mxu0 %v6939
      %9201 = vmatmul.mubr.f32.gmra.mxu0 %v6938
      %v9202 = vpop.f32.mrf.mxu0
      %v9203 = vadd.f32 %v8978, %v9202
      %v9204 = vpop.f32.mrf.mxu0
      %9205 = vmatprep.mubr.f32.mxu0 %v6957
      %9206 = vmatmul.mubr.f32.gmra.mxu0 %v6956
      %v9207 = vpop.f32.mrf.mxu0
      %v9208 = vadd.f32 %v8983, %v9207
      %v9209 = vpop.f32.mrf.mxu0
      %9210 = vmatprep.mubr.f32.mxu0 %v6975
      %9211 = vmatmul.mubr.f32.gmra.mxu0 %v6974
      %v9212 = vpop.f32.mrf.mxu0
      %v9213 = vadd.f32 %v8988, %v9212
      %v9214 = vpop.f32.mrf.mxu0
      %9215 = vmatprep.mubr.f32.mxu0 %v6993
      %9216 = vmatmul.mubr.f32.gmra.mxu0 %v6992
      %v9217 = vpop.f32.mrf.mxu0
      %v9218 = vadd.f32 %v8993, %v9217
      %v9219 = vpop.f32.mrf.mxu0
      %9220 = vmatprep.mubr.f32.mxu0 %v7011
      %9221 = vmatmul.mubr.f32.gmra.mxu0 %v7010
      %v9222 = vpop.f32.mrf.mxu0
      %v9223 = vadd.f32 %v8998, %v9222
      %v9224 = vpop.f32.mrf.mxu0
      %9225 = vmatprep.mubr.f32.mxu0 %v7029
      %9226 = vmatmul.mubr.f32.gmra.mxu0 %v7028
      %v9227 = vpop.f32.mrf.mxu0
      %v9228 = vadd.f32 %v9003, %v9227
      %v9229 = vpop.f32.mrf.mxu0
      %9230 = vmatprep.mubr.f32.mxu0 %v7047
      %9231 = vmatmul.mubr.f32.gmra.mxu0 %v7046
      %v9232 = vpop.f32.mrf.mxu0
      %v9233 = vadd.f32 %v9008, %v9232
      %v9234 = vpop.f32.mrf.mxu0
      %9235 = vmatprep.mubr.f32.mxu0 %v7065
      %9236 = vmatmul.mubr.f32.gmra.mxu0 %v7064
      %v9237 = vpop.f32.mrf.mxu0
      %v9238 = vadd.f32 %v9013, %v9237
      %v9239 = vpop.f32.mrf.mxu0
      %9240 = vmatprep.mubr.f32.mxu0 %v7083
      %9241 = vmatmul.mubr.f32.gmra.mxu0 %v7082
      %v9242 = vpop.f32.mrf.mxu0
      %v9243 = vadd.f32 %v9018, %v9242
      %v9244 = vpop.f32.mrf.mxu0
      %9245 = vmatprep.mubr.f32.mxu0 %v7101
      %9246 = vmatmul.mubr.f32.gmra.mxu0 %v7100
      %v9247 = vpop.f32.mrf.mxu0
      %v9248 = vadd.f32 %v9023, %v9247
      %v9249 = vpop.f32.mrf.mxu0
      %9250 = vmatprep.mubr.f32.mxu0 %v7119
      %9251 = vmatmul.mubr.f32.gmra.mxu0 %v7118
      %v9252 = vpop.f32.mrf.mxu0
      %v9253 = vadd.f32 %v9028, %v9252
      %v9254 = vpop.f32.mrf.mxu0
      %9255 = vmatprep.mubr.f32.mxu0 %v7137
      %9256 = vmatmul.mubr.f32.gmra.mxu0 %v7136
      %v9257 = vpop.f32.mrf.mxu0
      %v9258 = vadd.f32 %v9033, %v9257
      %v9259 = vpop.f32.mrf.mxu0
      %9260 = vmatprep.mubr.f32.mxu0 %v7155
      %9261 = vmatmul.mubr.f32.gmra.mxu0 %v7154
      %v9262 = vpop.f32.mrf.mxu0
      %v9263 = vadd.f32 %v9038, %v9262
      %v9264 = vpop.f32.mrf.mxu0
      %9265 = vmatprep.mubr.f32.mxu0 %v7173
      %9266 = vmatmul.mubr.f32.gmra.mxu0 %v7172
      %v9267 = vpop.f32.mrf.mxu0
      %v9268 = vadd.f32 %v9043, %v9267
      %v9269 = vpop.f32.mrf.mxu0
      %9270 = vdwg.mxu0
      %9271 = vmatprep.subr.mxu0 0.0
      %9272 = vmatpush1.msra.mxu0 %v7447
      %9273 = vmatprep.subr.mxu0 0.0
      %9274 = vmatpush1.msra.mxu0 %v7446
      %9275 = vmatprep.subr.mxu0 0.0
      %9276 = vmatpush1.msra.mxu0 %v7445
      %9277 = vmatprep.subr.mxu0 0.0
      %9278 = vmatpush1.msra.mxu0 %v7444
      %9279 = vmatprep.subr.mxu0 0.0
      %9280 = vmatpush1.msra.mxu0 %v7443
      %9281 = vmatprep.subr.mxu0 0.0
      %9282 = vmatpush1.msra.mxu0 %v7442
      %9283 = vmatprep.subr.mxu0 0.0
      %9284 = vmatpush1.msra.mxu0 %v7441
      %9285 = vmatprep.subr.mxu0 0.0
      %9286 = vmatpush1.msra.mxu0 %v7440
      %9287 = vmatprep.subr.mxu0 0.0
      %9288 = vmatpush1.msra.mxu0 %v7439
      %9289 = vmatprep.subr.mxu0 0.0
      %9290 = vmatpush1.msra.mxu0 %v7438
      %9291 = vmatprep.subr.mxu0 0.0
      %9292 = vmatpush1.msra.mxu0 %v7437
      %9293 = vmatprep.subr.mxu0 0.0
      %9294 = vmatpush1.msra.mxu0 %v7436
      %9295 = vmatprep.subr.mxu0 0.0
      %9296 = vmatpush1.msra.mxu0 %v7435
      %9297 = vmatprep.subr.mxu0 0.0
      %9298 = vmatpush1.msra.mxu0 %v7434
      %9299 = vmatprep.subr.mxu0 0.0
      %9300 = vmatpush1.msra.mxu0 %v7433
      %9301 = vmatprep.subr.mxu0 0.0
      %9302 = vmatpush1.msra.mxu0 %v7432
      %9303 = vmatprep.subr.mxu0 0.0
      %9304 = vmatpush2.msra.mxu0 %v7463
      %9305 = vmatprep.subr.mxu0 0.0
      %9306 = vmatpush2.msra.mxu0 %v7462
      %9307 = vmatprep.subr.mxu0 0.0
      %9308 = vmatpush2.msra.mxu0 %v7461
      %9309 = vmatprep.subr.mxu0 0.0
      %9310 = vmatpush2.msra.mxu0 %v7460
      %9311 = vmatprep.subr.mxu0 0.0
      %9312 = vmatpush2.msra.mxu0 %v7459
      %9313 = vmatprep.subr.mxu0 0.0
      %9314 = vmatpush2.msra.mxu0 %v7458
      %9315 = vmatprep.subr.mxu0 0.0
      %9316 = vmatpush2.msra.mxu0 %v7457
      %9317 = vmatprep.subr.mxu0 0.0
      %9318 = vmatpush2.msra.mxu0 %v7456
      %9319 = vmatprep.subr.mxu0 0.0
      %9320 = vmatpush2.msra.mxu0 %v7455
      %9321 = vmatprep.subr.mxu0 0.0
      %9322 = vmatpush2.msra.mxu0 %v7454
      %9323 = vmatprep.subr.mxu0 0.0
      %9324 = vmatpush2.msra.mxu0 %v7453
      %9325 = vmatprep.subr.mxu0 0.0
      %9326 = vmatpush2.msra.mxu0 %v7452
      %9327 = vmatprep.subr.mxu0 0.0
      %9328 = vmatpush2.msra.mxu0 %v7451
      %9329 = vmatprep.subr.mxu0 0.0
      %9330 = vmatpush2.msra.mxu0 %v7450
      %9331 = vmatprep.subr.mxu0 0.0
      %9332 = vmatpush2.msra.mxu0 %v7449
      %9333 = vmatprep.subr.mxu0 0.0
      %9334 = vmatpush2.msra.mxu0 %v7448
      %9335 = vmatprep.mubr.f32.mxu0 %v6617
      %9336 = vmatmul.mubr.f32.gmra.mxu0 %v6616
      %v9337 = vpop.f32.mrf.mxu0
      %v9338 = vadd.f32 %v9113, %v9337
      %v9339 = vpop.f32.mrf.mxu0
      %9340 = vmatprep.mubr.f32.mxu0 %v6635
      %9341 = vmatmul.mubr.f32.gmra.mxu0 %v6634
      %v9342 = vpop.f32.mrf.mxu0
      %v9343 = vadd.f32 %v9118, %v9342
      %v9344 = vpop.f32.mrf.mxu0
      %9345 = vmatprep.mubr.f32.mxu0 %v6653
      %9346 = vmatmul.mubr.f32.gmra.mxu0 %v6652
      %v9347 = vpop.f32.mrf.mxu0
      %v9348 = vadd.f32 %v9123, %v9347
      %v9349 = vpop.f32.mrf.mxu0
      %9350 = vmatprep.mubr.f32.mxu0 %v6671
      %9351 = vmatmul.mubr.f32.gmra.mxu0 %v6670
      %v9352 = vpop.f32.mrf.mxu0
      %v9353 = vadd.f32 %v9128, %v9352
      %v9354 = vpop.f32.mrf.mxu0
      %9355 = vmatprep.mubr.f32.mxu0 %v6689
      %9356 = vmatmul.mubr.f32.gmra.mxu0 %v6688
      %v9357 = vpop.f32.mrf.mxu0
      %v9358 = vadd.f32 %v9133, %v9357
      %v9359 = vpop.f32.mrf.mxu0
      %9360 = vmatprep.mubr.f32.mxu0 %v6707
      %9361 = vmatmul.mubr.f32.gmra.mxu0 %v6706
      %v9362 = vpop.f32.mrf.mxu0
      %v9363 = vadd.f32 %v9138, %v9362
      %v9364 = vpop.f32.mrf.mxu0
      %9365 = vmatprep.mubr.f32.mxu0 %v6725
      %9366 = vmatmul.mubr.f32.gmra.mxu0 %v6724
      %v9367 = vpop.f32.mrf.mxu0
      %v9368 = vadd.f32 %v9143, %v9367
      %v9369 = vpop.f32.mrf.mxu0
      %9370 = vmatprep.mubr.f32.mxu0 %v6743
      %9371 = vmatmul.mubr.f32.gmra.mxu0 %v6742
      %v9372 = vpop.f32.mrf.mxu0
      %v9373 = vadd.f32 %v9148, %v9372
      %v9374 = vpop.f32.mrf.mxu0
      %9375 = vmatprep.mubr.f32.mxu0 %v6761
      %9376 = vmatmul.mubr.f32.gmra.mxu0 %v6760
      %v9377 = vpop.f32.mrf.mxu0
      %v9378 = vadd.f32 %v9153, %v9377
      %v9379 = vpop.f32.mrf.mxu0
      %9380 = vmatprep.mubr.f32.mxu0 %v6779
      %9381 = vmatmul.mubr.f32.gmra.mxu0 %v6778
      %v9382 = vpop.f32.mrf.mxu0
      %v9383 = vadd.f32 %v9158, %v9382
      %v9384 = vpop.f32.mrf.mxu0
      %9385 = vmatprep.mubr.f32.mxu0 %v6797
      %9386 = vmatmul.mubr.f32.gmra.mxu0 %v6796
      %v9387 = vpop.f32.mrf.mxu0
      %v9388 = vadd.f32 %v9163, %v9387
      %v9389 = vpop.f32.mrf.mxu0
      %9390 = vmatprep.mubr.f32.mxu0 %v6815
      %9391 = vmatmul.mubr.f32.gmra.mxu0 %v6814
      %v9392 = vpop.f32.mrf.mxu0
      %v9393 = vadd.f32 %v9168, %v9392
      %v9394 = vpop.f32.mrf.mxu0
      %9395 = vmatprep.mubr.f32.mxu0 %v6833
      %9396 = vmatmul.mubr.f32.gmra.mxu0 %v6832
      %v9397 = vpop.f32.mrf.mxu0
      %v9398 = vadd.f32 %v9173, %v9397
      %v9399 = vpop.f32.mrf.mxu0
      %9400 = vmatprep.mubr.f32.mxu0 %v6851
      %9401 = vmatmul.mubr.f32.gmra.mxu0 %v6850
      %v9402 = vpop.f32.mrf.mxu0
      %v9403 = vadd.f32 %v9178, %v9402
      %v9404 = vpop.f32.mrf.mxu0
      %9405 = vmatprep.mubr.f32.mxu0 %v6869
      %9406 = vmatmul.mubr.f32.gmra.mxu0 %v6868
      %v9407 = vpop.f32.mrf.mxu0
      %v9408 = vadd.f32 %v9183, %v9407
      %v9409 = vpop.f32.mrf.mxu0
      %9410 = vmatprep.mubr.f32.mxu0 %v6887
      %9411 = vmatmul.mubr.f32.gmra.mxu0 %v6886
      %v9412 = vpop.f32.mrf.mxu0
      %v9413 = vadd.f32 %v9188, %v9412
      %v9414 = vpop.f32.mrf.mxu0
      %9415 = vmatprep.mubr.f32.mxu0 %v6905
      %9416 = vmatmul.mubr.f32.gmra.mxu0 %v6904
      %v9417 = vpop.f32.mrf.mxu0
      %v9418 = vadd.f32 %v9193, %v9417
      %v9419 = vpop.f32.mrf.mxu0
      %9420 = vmatprep.mubr.f32.mxu0 %v6923
      %9421 = vmatmul.mubr.f32.gmra.mxu0 %v6922
      %v9422 = vpop.f32.mrf.mxu0
      %v9423 = vadd.f32 %v9198, %v9422
      %v9424 = vpop.f32.mrf.mxu0
      %9425 = vmatprep.mubr.f32.mxu0 %v6941
      %9426 = vmatmul.mubr.f32.gmra.mxu0 %v6940
      %v9427 = vpop.f32.mrf.mxu0
      %v9428 = vadd.f32 %v9203, %v9427
      %v9429 = vpop.f32.mrf.mxu0
      %9430 = vmatprep.mubr.f32.mxu0 %v6959
      %9431 = vmatmul.mubr.f32.gmra.mxu0 %v6958
      %v9432 = vpop.f32.mrf.mxu0
      %v9433 = vadd.f32 %v9208, %v9432
      %v9434 = vpop.f32.mrf.mxu0
      %9435 = vmatprep.mubr.f32.mxu0 %v6977
      %9436 = vmatmul.mubr.f32.gmra.mxu0 %v6976
      %v9437 = vpop.f32.mrf.mxu0
      %v9438 = vadd.f32 %v9213, %v9437
      %v9439 = vpop.f32.mrf.mxu0
      %9440 = vmatprep.mubr.f32.mxu0 %v6995
      %9441 = vmatmul.mubr.f32.gmra.mxu0 %v6994
      %v9442 = vpop.f32.mrf.mxu0
      %v9443 = vadd.f32 %v9218, %v9442
      %v9444 = vpop.f32.mrf.mxu0
      %9445 = vmatprep.mubr.f32.mxu0 %v7013
      %9446 = vmatmul.mubr.f32.gmra.mxu0 %v7012
      %v9447 = vpop.f32.mrf.mxu0
      %v9448 = vadd.f32 %v9223, %v9447
      %v9449 = vpop.f32.mrf.mxu0
      %9450 = vmatprep.mubr.f32.mxu0 %v7031
      %9451 = vmatmul.mubr.f32.gmra.mxu0 %v7030
      %v9452 = vpop.f32.mrf.mxu0
      %v9453 = vadd.f32 %v9228, %v9452
      %v9454 = vpop.f32.mrf.mxu0
      %9455 = vmatprep.mubr.f32.mxu0 %v7049
      %9456 = vmatmul.mubr.f32.gmra.mxu0 %v7048
      %v9457 = vpop.f32.mrf.mxu0
      %v9458 = vadd.f32 %v9233, %v9457
      %v9459 = vpop.f32.mrf.mxu0
      %9460 = vmatprep.mubr.f32.mxu0 %v7067
      %9461 = vmatmul.mubr.f32.gmra.mxu0 %v7066
      %v9462 = vpop.f32.mrf.mxu0
      %v9463 = vadd.f32 %v9238, %v9462
      %v9464 = vpop.f32.mrf.mxu0
      %9465 = vmatprep.mubr.f32.mxu0 %v7085
      %9466 = vmatmul.mubr.f32.gmra.mxu0 %v7084
      %v9467 = vpop.f32.mrf.mxu0
      %v9468 = vadd.f32 %v9243, %v9467
      %v9469 = vpop.f32.mrf.mxu0
      %9470 = vmatprep.mubr.f32.mxu0 %v7103
      %9471 = vmatmul.mubr.f32.gmra.mxu0 %v7102
      %v9472 = vpop.f32.mrf.mxu0
      %v9473 = vadd.f32 %v9248, %v9472
      %v9474 = vpop.f32.mrf.mxu0
      %9475 = vmatprep.mubr.f32.mxu0 %v7121
      %9476 = vmatmul.mubr.f32.gmra.mxu0 %v7120
      %v9477 = vpop.f32.mrf.mxu0
      %v9478 = vadd.f32 %v9253, %v9477
      %v9479 = vpop.f32.mrf.mxu0
      %9480 = vmatprep.mubr.f32.mxu0 %v7139
      %9481 = vmatmul.mubr.f32.gmra.mxu0 %v7138
      %v9482 = vpop.f32.mrf.mxu0
      %v9483 = vadd.f32 %v9258, %v9482
      %v9484 = vpop.f32.mrf.mxu0
      %9485 = vmatprep.mubr.f32.mxu0 %v7157
      %9486 = vmatmul.mubr.f32.gmra.mxu0 %v7156
      %v9487 = vpop.f32.mrf.mxu0
      %v9488 = vadd.f32 %v9263, %v9487
      %v9489 = vpop.f32.mrf.mxu0
      %9490 = vmatprep.mubr.f32.mxu0 %v7175
      %9491 = vmatmul.mubr.f32.gmra.mxu0 %v7174
      %v9492 = vpop.f32.mrf.mxu0
      %v9493 = vadd.f32 %v9268, %v9492
      %v9494 = vpop.f32.mrf.mxu0
      %9495 = vdwg.mxu0
      %v9496 = vmax.f32 %v9338, 0.0
      %v9497 = vmax.f32 %v9343, 0.0
      %v9498 = vmax.f32 %v9348, 0.0
      %v9499 = vmax.f32 %v9353, 0.0
      %v9500 = vmax.f32 %v9358, 0.0
      %v9501 = vmax.f32 %v9363, 0.0
      %v9502 = vmax.f32 %v9368, 0.0
      %v9503 = vmax.f32 %v9373, 0.0
      %v9504 = vmax.f32 %v9378, 0.0
      %v9505 = vmax.f32 %v9383, 0.0
      %v9506 = vmax.f32 %v9388, 0.0
      %v9507 = vmax.f32 %v9393, 0.0
      %v9508 = vmax.f32 %v9398, 0.0
      %v9509 = vmax.f32 %v9403, 0.0
      %v9510 = vmax.f32 %v9408, 0.0
      %v9511 = vmax.f32 %v9413, 0.0
      %v9512 = vmax.f32 %v9418, 0.0
      %v9513 = vmax.f32 %v9423, 0.0
      %v9514 = vmax.f32 %v9428, 0.0
      %v9515 = vmax.f32 %v9433, 0.0
      %v9516 = vmax.f32 %v9438, 0.0
      %v9517 = vmax.f32 %v9443, 0.0
      %v9518 = vmax.f32 %v9448, 0.0
      %v9519 = vmax.f32 %v9453, 0.0
      %v9520 = vmax.f32 %v9458, 0.0
      %v9521 = vmax.f32 %v9463, 0.0
      %v9522 = vmax.f32 %v9468, 0.0
      %v9523 = vmax.f32 %v9473, 0.0
      %v9524 = vmax.f32 %v9478, 0.0
      %v9525 = vmax.f32 %v9483, 0.0
      %v9526 = vmax.f32 %v9488, 0.0
      %v9527 = vmax.f32 %v9493, 0.0
      %v9528 = vld [vmem:[%s9] sm:$0xff]
      %v9529 = vld [vmem:[%s9 + $0x8] sm:$0xff]
      %v9530 = vld [vmem:[%s9 + $0x10] sm:$0xff]
      %v9531 = vld [vmem:[%s9 + $0x18] sm:$0xff]
      %v9532 = vld [vmem:[%s9 + $0x20] sm:$0xff]
      %v9533 = vld [vmem:[%s9 + $0x28] sm:$0xff]
      %v9534 = vld [vmem:[%s9 + $0x30] sm:$0xff]
      %v9535 = vld [vmem:[%s9 + $0x38] sm:$0xff]
      %v9536 = vld [vmem:[%s9 + $0x40] sm:$0xff]
      %v9537 = vld [vmem:[%s9 + $0x48] sm:$0xff]
      %v9538 = vld [vmem:[%s9 + $0x50] sm:$0xff]
      %v9539 = vld [vmem:[%s9 + $0x58] sm:$0xff]
      %v9540 = vld [vmem:[%s9 + $0x60] sm:$0xff]
      %v9541 = vld [vmem:[%s9 + $0x68] sm:$0xff]
      %v9542 = vld [vmem:[%s9 + $0x70] sm:$0xff]
      %v9543 = vld [vmem:[%s9 + $0x78] sm:$0xff]
      %v9544 = vld [vmem:[%s10] sm:$0x1]
      %v9546 = vlaneseq
      %v9547 = vshrl.u32 %v9546, 7
      %v9548 = vsub.s32 0, %v9547
      %v9549 = vrot.slane %v9544, %v9548
      %9551 = vmatprep.subr.mxu0 0.0
      %9552 = vmatpush1.msra.mxu0 %v9543
      %9553 = vmatprep.subr.mxu0 0.0
      %9554 = vmatpush1.msra.mxu0 %v9542
      %9555 = vmatprep.subr.mxu0 0.0
      %9556 = vmatpush1.msra.mxu0 %v9541
      %9557 = vmatprep.subr.mxu0 0.0
      %9558 = vmatpush1.msra.mxu0 %v9540
      %9559 = vmatprep.subr.mxu0 0.0
      %9560 = vmatpush1.msra.mxu0 %v9539
      %9561 = vmatprep.subr.mxu0 0.0
      %9562 = vmatpush1.msra.mxu0 %v9538
      %9563 = vmatprep.subr.mxu0 0.0
      %9564 = vmatpush1.msra.mxu0 %v9537
      %9565 = vmatprep.subr.mxu0 0.0
      %9566 = vmatpush1.msra.mxu0 %v9536
      %9567 = vmatprep.subr.mxu0 0.0
      %9568 = vmatpush1.msra.mxu0 %v9535
      %9569 = vmatprep.subr.mxu0 0.0
      %9570 = vmatpush1.msra.mxu0 %v9534
      %9571 = vmatprep.subr.mxu0 0.0
      %9572 = vmatpush1.msra.mxu0 %v9533
      %9573 = vmatprep.subr.mxu0 0.0
      %9574 = vmatpush1.msra.mxu0 %v9532
      %9575 = vmatprep.subr.mxu0 0.0
      %9576 = vmatpush1.msra.mxu0 %v9531
      %9577 = vmatprep.subr.mxu0 0.0
      %9578 = vmatpush1.msra.mxu0 %v9530
      %9579 = vmatprep.subr.mxu0 0.0
      %9580 = vmatpush1.msra.mxu0 %v9529
      %9581 = vmatprep.subr.mxu0 0.0
      %9582 = vmatpush1.msra.mxu0 %v9528
      %9583 = vmatprep.subr.mxu0 0.0
      %9584 = vmatpush2.msra.mxu0 0.0
      %9585 = vmatprep.subr.mxu0 0.0
      %9586 = vmatpush2.msra.mxu0 0.0
      %9587 = vmatprep.subr.mxu0 0.0
      %9588 = vmatpush2.msra.mxu0 0.0
      %9589 = vmatprep.subr.mxu0 0.0
      %9590 = vmatpush2.msra.mxu0 0.0
      %9591 = vmatprep.subr.mxu0 0.0
      %9592 = vmatpush2.msra.mxu0 0.0
      %9593 = vmatprep.subr.mxu0 0.0
      %9594 = vmatpush2.msra.mxu0 0.0
      %9595 = vmatprep.subr.mxu0 0.0
      %9596 = vmatpush2.msra.mxu0 0.0
      %9597 = vmatprep.subr.mxu0 0.0
      %9598 = vmatpush2.msra.mxu0 0.0
      %9599 = vmatprep.subr.mxu0 0.0
      %9600 = vmatpush2.msra.mxu0 0.0
      %9601 = vmatprep.subr.mxu0 0.0
      %9602 = vmatpush2.msra.mxu0 0.0
      %9603 = vmatprep.subr.mxu0 0.0
      %9604 = vmatpush2.msra.mxu0 0.0
      %9605 = vmatprep.subr.mxu0 0.0
      %9606 = vmatpush2.msra.mxu0 0.0
      %9607 = vmatprep.subr.mxu0 0.0
      %9608 = vmatpush2.msra.mxu0 0.0
      %9609 = vmatprep.subr.mxu0 0.0
      %9610 = vmatpush2.msra.mxu0 0.0
      %9611 = vmatprep.subr.mxu0 0.0
      %9612 = vmatpush2.msra.mxu0 0.0
      %9613 = vmatprep.subr.mxu0 0.0
      %9614 = vmatpush2.msra.mxu0 0.0
      %9615 = vmatprep.mubr.f32.mxu0 0.0
      %9616 = vmatmul.mubr.f32.gmra.mxu0 %v9496
      %v9617 = vpop.f32.mrf.mxu0
      %v9618 = vadd.f32 %v9549, %v9617
      %v9619 = vpop.f32.mrf.mxu0
      %9620 = vmatprep.mubr.f32.mxu0 0.0
      %9621 = vmatmul.mubr.f32.gmra.mxu0 %v9497
      %v9622 = vpop.f32.mrf.mxu0
      %v9623 = vadd.f32 %v9549, %v9622
      %v9624 = vpop.f32.mrf.mxu0
      %9625 = vmatprep.mubr.f32.mxu0 0.0
      %9626 = vmatmul.mubr.f32.gmra.mxu0 %v9498
      %v9627 = vpop.f32.mrf.mxu0
      %v9628 = vadd.f32 %v9549, %v9627
      %v9629 = vpop.f32.mrf.mxu0
      %9630 = vmatprep.mubr.f32.mxu0 0.0
      %9631 = vmatmul.mubr.f32.gmra.mxu0 %v9499
      %v9632 = vpop.f32.mrf.mxu0
      %v9633 = vadd.f32 %v9549, %v9632
      %v9634 = vpop.f32.mrf.mxu0
      %9635 = vmatprep.mubr.f32.mxu0 0.0
      %9636 = vmatmul.mubr.f32.gmra.mxu0 %v9500
      %v9637 = vpop.f32.mrf.mxu0
      %v9638 = vadd.f32 %v9549, %v9637
      %v9639 = vpop.f32.mrf.mxu0
      %9640 = vmatprep.mubr.f32.mxu0 0.0
      %9641 = vmatmul.mubr.f32.gmra.mxu0 %v9501
      %v9642 = vpop.f32.mrf.mxu0
      %v9643 = vadd.f32 %v9549, %v9642
      %v9644 = vpop.f32.mrf.mxu0
      %9645 = vmatprep.mubr.f32.mxu0 0.0
      %9646 = vmatmul.mubr.f32.gmra.mxu0 %v9502
      %v9647 = vpop.f32.mrf.mxu0
      %v9648 = vadd.f32 %v9549, %v9647
      %v9649 = vpop.f32.mrf.mxu0
      %9650 = vmatprep.mubr.f32.mxu0 0.0
      %9651 = vmatmul.mubr.f32.gmra.mxu0 %v9503
      %v9652 = vpop.f32.mrf.mxu0
      %v9653 = vadd.f32 %v9549, %v9652
      %v9654 = vpop.f32.mrf.mxu0
      %9655 = vmatprep.mubr.f32.mxu0 0.0
      %9656 = vmatmul.mubr.f32.gmra.mxu0 %v9504
      %v9657 = vpop.f32.mrf.mxu0
      %v9658 = vadd.f32 %v9549, %v9657
      %v9659 = vpop.f32.mrf.mxu0
      %9660 = vmatprep.mubr.f32.mxu0 0.0
      %9661 = vmatmul.mubr.f32.gmra.mxu0 %v9505
      %v9662 = vpop.f32.mrf.mxu0
      %v9663 = vadd.f32 %v9549, %v9662
      %v9664 = vpop.f32.mrf.mxu0
      %9665 = vmatprep.mubr.f32.mxu0 0.0
      %9666 = vmatmul.mubr.f32.gmra.mxu0 %v9506
      %v9667 = vpop.f32.mrf.mxu0
      %v9668 = vadd.f32 %v9549, %v9667
      %v9669 = vpop.f32.mrf.mxu0
      %9670 = vmatprep.mubr.f32.mxu0 0.0
      %9671 = vmatmul.mubr.f32.gmra.mxu0 %v9507
      %v9672 = vpop.f32.mrf.mxu0
      %v9673 = vadd.f32 %v9549, %v9672
      %v9674 = vpop.f32.mrf.mxu0
      %9675 = vmatprep.mubr.f32.mxu0 0.0
      %9676 = vmatmul.mubr.f32.gmra.mxu0 %v9508
      %v9677 = vpop.f32.mrf.mxu0
      %v9678 = vadd.f32 %v9549, %v9677
      %v9679 = vpop.f32.mrf.mxu0
      %9680 = vmatprep.mubr.f32.mxu0 0.0
      %9681 = vmatmul.mubr.f32.gmra.mxu0 %v9509
      %v9682 = vpop.f32.mrf.mxu0
      %v9683 = vadd.f32 %v9549, %v9682
      %v9684 = vpop.f32.mrf.mxu0
      %9685 = vmatprep.mubr.f32.mxu0 0.0
      %9686 = vmatmul.mubr.f32.gmra.mxu0 %v9510
      %v9687 = vpop.f32.mrf.mxu0
      %v9688 = vadd.f32 %v9549, %v9687
      %v9689 = vpop.f32.mrf.mxu0
      %9690 = vmatprep.mubr.f32.mxu0 0.0
      %9691 = vmatmul.mubr.f32.gmra.mxu0 %v9511
      %v9692 = vpop.f32.mrf.mxu0
      %v9693 = vadd.f32 %v9549, %v9692
      %v9694 = vpop.f32.mrf.mxu0
      %9695 = vmatprep.mubr.f32.mxu0 0.0
      %9696 = vmatmul.mubr.f32.gmra.mxu0 %v9512
      %v9697 = vpop.f32.mrf.mxu0
      %v9698 = vadd.f32 %v9549, %v9697
      %v9699 = vpop.f32.mrf.mxu0
      %9700 = vmatprep.mubr.f32.mxu0 0.0
      %9701 = vmatmul.mubr.f32.gmra.mxu0 %v9513
      %v9702 = vpop.f32.mrf.mxu0
      %v9703 = vadd.f32 %v9549, %v9702
      %v9704 = vpop.f32.mrf.mxu0
      %9705 = vmatprep.mubr.f32.mxu0 0.0
      %9706 = vmatmul.mubr.f32.gmra.mxu0 %v9514
      %v9707 = vpop.f32.mrf.mxu0
      %v9708 = vadd.f32 %v9549, %v9707
      %v9709 = vpop.f32.mrf.mxu0
      %9710 = vmatprep.mubr.f32.mxu0 0.0
      %9711 = vmatmul.mubr.f32.gmra.mxu0 %v9515
      %v9712 = vpop.f32.mrf.mxu0
      %v9713 = vadd.f32 %v9549, %v9712
      %v9714 = vpop.f32.mrf.mxu0
      %9715 = vmatprep.mubr.f32.mxu0 0.0
      %9716 = vmatmul.mubr.f32.gmra.mxu0 %v9516
      %v9717 = vpop.f32.mrf.mxu0
      %v9718 = vadd.f32 %v9549, %v9717
      %v9719 = vpop.f32.mrf.mxu0
      %9720 = vmatprep.mubr.f32.mxu0 0.0
      %9721 = vmatmul.mubr.f32.gmra.mxu0 %v9517
      %v9722 = vpop.f32.mrf.mxu0
      %v9723 = vadd.f32 %v9549, %v9722
      %v9724 = vpop.f32.mrf.mxu0
      %9725 = vmatprep.mubr.f32.mxu0 0.0
      %9726 = vmatmul.mubr.f32.gmra.mxu0 %v9518
      %v9727 = vpop.f32.mrf.mxu0
      %v9728 = vadd.f32 %v9549, %v9727
      %v9729 = vpop.f32.mrf.mxu0
      %9730 = vmatprep.mubr.f32.mxu0 0.0
      %9731 = vmatmul.mubr.f32.gmra.mxu0 %v9519
      %v9732 = vpop.f32.mrf.mxu0
      %v9733 = vadd.f32 %v9549, %v9732
      %v9734 = vpop.f32.mrf.mxu0
      %9735 = vmatprep.mubr.f32.mxu0 0.0
      %9736 = vmatmul.mubr.f32.gmra.mxu0 %v9520
      %v9737 = vpop.f32.mrf.mxu0
      %v9738 = vadd.f32 %v9549, %v9737
      %v9739 = vpop.f32.mrf.mxu0
      %9740 = vmatprep.mubr.f32.mxu0 0.0
      %9741 = vmatmul.mubr.f32.gmra.mxu0 %v9521
      %v9742 = vpop.f32.mrf.mxu0
      %v9743 = vadd.f32 %v9549, %v9742
      %v9744 = vpop.f32.mrf.mxu0
      %9745 = vmatprep.mubr.f32.mxu0 0.0
      %9746 = vmatmul.mubr.f32.gmra.mxu0 %v9522
      %v9747 = vpop.f32.mrf.mxu0
      %v9748 = vadd.f32 %v9549, %v9747
      %v9749 = vpop.f32.mrf.mxu0
      %9750 = vmatprep.mubr.f32.mxu0 0.0
      %9751 = vmatmul.mubr.f32.gmra.mxu0 %v9523
      %v9752 = vpop.f32.mrf.mxu0
      %v9753 = vadd.f32 %v9549, %v9752
      %v9754 = vpop.f32.mrf.mxu0
      %9755 = vmatprep.mubr.f32.mxu0 0.0
      %9756 = vmatmul.mubr.f32.gmra.mxu0 %v9524
      %v9757 = vpop.f32.mrf.mxu0
      %v9758 = vadd.f32 %v9549, %v9757
      %v9759 = vpop.f32.mrf.mxu0
      %9760 = vmatprep.mubr.f32.mxu0 0.0
      %9761 = vmatmul.mubr.f32.gmra.mxu0 %v9525
      %v9762 = vpop.f32.mrf.mxu0
      %v9763 = vadd.f32 %v9549, %v9762
      %v9764 = vpop.f32.mrf.mxu0
      %9765 = vmatprep.mubr.f32.mxu0 0.0
      %9766 = vmatmul.mubr.f32.gmra.mxu0 %v9526
      %v9767 = vpop.f32.mrf.mxu0
      %v9768 = vadd.f32 %v9549, %v9767
      %v9769 = vpop.f32.mrf.mxu0
      %9770 = vmatprep.mubr.f32.mxu0 0.0
      %9771 = vmatmul.mubr.f32.gmra.mxu0 %v9527
      %v9772 = vpop.f32.mrf.mxu0
      %v9773 = vadd.f32 %v9549, %v9772
      %v9774 = vpop.f32.mrf.mxu0
      %9775 = vdwg.mxu0
      %9776 = vst.msk [vmem:[%s386] sm:$0xff] %vm387, %v9618
      %9777 = vst.msk [vmem:[%s386 + $0x8] sm:$0xff] %vm387, %v9623
      %9778 = vst.msk [vmem:[%s386 + $0x10] sm:$0xff] %vm387, %v9628
      %9779 = vst.msk [vmem:[%s386 + $0x18] sm:$0xff] %vm387, %v9633
      %9780 = vst.msk [vmem:[%s386 + $0x20] sm:$0xff] %vm387, %v9638
      %9781 = vst.msk [vmem:[%s386 + $0x28] sm:$0xff] %vm387, %v9643
      %9782 = vst.msk [vmem:[%s386 + $0x30] sm:$0xff] %vm387, %v9648
      %9783 = vst.msk [vmem:[%s386 + $0x38] sm:$0xff] %vm387, %v9653
      %9784 = vst.msk [vmem:[%s386 + $0x40] sm:$0xff] %vm387, %v9658
      %9785 = vst.msk [vmem:[%s386 + $0x48] sm:$0xff] %vm387, %v9663
      %9786 = vst.msk [vmem:[%s386 + $0x50] sm:$0xff] %vm387, %v9668
      %9787 = vst.msk [vmem:[%s386 + $0x58] sm:$0xff] %vm387, %v9673
      %9788 = vst.msk [vmem:[%s386 + $0x60] sm:$0xff] %vm387, %v9678
      %9789 = vst.msk [vmem:[%s386 + $0x68] sm:$0xff] %vm387, %v9683
      %9790 = vst.msk [vmem:[%s386 + $0x70] sm:$0xff] %vm387, %v9688
      %9791 = vst.msk [vmem:[%s386 + $0x78] sm:$0xff] %vm387, %v9693
      %9792 = vst.msk [vmem:[%s386 + $0x80] sm:$0xff] %vm387, %v9698
      %9793 = vst.msk [vmem:[%s386 + $0x88] sm:$0xff] %vm387, %v9703
      %9794 = vst.msk [vmem:[%s386 + $0x90] sm:$0xff] %vm387, %v9708
      %9795 = vst.msk [vmem:[%s386 + $0x98] sm:$0xff] %vm387, %v9713
      %9796 = vst.msk [vmem:[%s386 + $0xa0] sm:$0xff] %vm387, %v9718
      %9797 = vst.msk [vmem:[%s386 + $0xa8] sm:$0xff] %vm387, %v9723
      %9798 = vst.msk [vmem:[%s386 + $0xb0] sm:$0xff] %vm387, %v9728
      %9799 = vst.msk [vmem:[%s386 + $0xb8] sm:$0xff] %vm387, %v9733
      %9800 = vst.msk [vmem:[%s386 + $0xc0] sm:$0xff] %vm387, %v9738
      %9801 = vst.msk [vmem:[%s386 + $0xc8] sm:$0xff] %vm387, %v9743
      %9802 = vst.msk [vmem:[%s386 + $0xd0] sm:$0xff] %vm387, %v9748
      %9803 = vst.msk [vmem:[%s386 + $0xd8] sm:$0xff] %vm387, %v9753
      %9804 = vst.msk [vmem:[%s386 + $0xe0] sm:$0xff] %vm387, %v9758
      %9805 = vst.msk [vmem:[%s386 + $0xe8] sm:$0xff] %vm387, %v9763
      %9806 = vst.msk [vmem:[%s386 + $0xf0] sm:$0xff] %vm387, %v9768
      %9807 = vst.msk [vmem:[%s386 + $0xf8] sm:$0xff] %vm387, %v9773
      %p9808 = scmp.lt.s32.totalorder %s22, 1
      %s9809 = scalar_select %p9808, %s22, 1
      %s9810 = smul.addr %s9809, 32
      %s9811 = smul.addr %s9810, 8
      %s9812 = scalar_lea.vmem %s11, %s9811
      // Predicated region
      $region65: #{audio_model_forward.1} parent=63 // pred_check
        %p9813 = pneg %p276
      $region66: #{audio_model_forward.1} parent=63 // pred_check_branch
        %9815 = sbr.rel (%p9813) target = $region68
      $region67: #{audio_model_forward.1} parent=63 // pred_region
        _
      $region68: #{audio_model_forward.1} parent=63 // pred_fallthru
        _
    $region64: #{audio_model_forward.1} parent=5 // pred_fallthru
      _
    %p9816 = scmp.le.s32.totalorder 2, %s17
    // Predicated region
    $region69: #{audio_model_forward.1} parent=5 // pred_check
      %p9817 = pneg %p9816
    $region70: #{audio_model_forward.1} parent=5 // pred_check_branch
      %9819 = sbr.rel (%p9817) target = $region72
    $region71: #{audio_model_forward.1} parent=5 // pred_region
      %s9820 = ssub.s32 %s17, 2
      // Predicated region
      $region73: #{audio_model_forward.1} parent=71 // pred_check
        %p9821 = pneg %p282
      $region74: #{audio_model_forward.1} parent=71 // pred_check_branch
        %9823 = sbr.rel (%p9821) target = $region76
      $region75: #{audio_model_forward.1} parent=71 // pred_region
        %p9824 = scmp.lt.s32.totalorder %s23, 1
        %s9825 = scalar_select %p9824, %s23, 1
        %s9826 = smul.addr %s9825, 32
        %s9827 = smul.addr %s9826, 8
        %s9828 = scalar_lea.vmem %s11, %s9827
      $region76: #{audio_model_forward.1} parent=71 // pred_fallthru
        _
    $region72: #{audio_model_forward.1} parent=5 // pred_fallthru
      _
  $region6: #{audio_model_forward.1} parent=0 // loop_footer
    %s21 = sadd.s32 1, %s17
  $region7: #{audio_model_forward.1} parent=0 // loop_footer_branch
    %16 = sbr.rel target = $region3
  $region8: #{audio_model_forward.1} parent=0 // loop_exit
    _

</llo_original>
